<compile_context>
chip_gen: v7x
topology: tpu7x:2x2x1
jax: 0.10.0
libtpu: 0.0.40
codegen_flags: <defaults>
</compile_context>

<pallas_src>
import functools

import jax
import jax.numpy as jnp
from jax import lax
from jax.experimental import pallas as pl
from jax.experimental.pallas import tpu as pltpu
import numpy as np


# --------------------------------------------------------------------------------
# Kernel A: the 4 Affine MLPs of one DFBLK -> per-batch modulation params (N, 4, C)
#   order: 0 = affine0.gamma, 1 = affine0.beta, 2 = affine1.gamma, 3 = affine1.beta
# --------------------------------------------------------------------------------
def _affine_mods_kernel(y_ref, w1_ref, b1_ref, w2_ref, b2_ref, o_ref, *, C):
    # y: (N, cond); w1: (cond, 4C); b1: (1, 4C); w2: (4, C, C); b2: (4, 1, C)
    h = jnp.dot(y_ref[...], w1_ref[...], preferred_element_type=jnp.float32)
    h = jnp.maximum(h + b1_ref[...], 0.0)                       # ReLU
    for k in range(4):
        o_ref[:, k * C:(k + 1) * C] = (
            jnp.dot(h[:, k * C:(k + 1) * C], w2_ref[k],
                    preferred_element_type=jnp.float32) + b2_ref[k])


def affine_mods_pallas(y, dfp):
    """Returns per-batch modulation params, shape (N, 4, C)."""
    N = y.shape[0]
    C = dfp['w2'].shape[-1]
    out = pl.pallas_call(
        functools.partial(_affine_mods_kernel, C=C),
        out_shape=jax.ShapeDtypeStruct((N, 4 * C), jnp.float32),
    )(y, dfp['w1'], dfp['b1'], dfp['w2'], dfp['b2'])
    return out.reshape(N, 4, C)        # free row-major reshape


# --------------------------------------------------------------------------------
# Kernel B: whole residual branch + shortcut for one (batch, row-band)
# --------------------------------------------------------------------------------
def _leaky(v):
    return jnp.where(v > 0, v, 0.2 * v)


def _gblock_residual_kernel(xt2_ref, xt1_ref, xmid_ref, xb1_ref, xb2_ref,
                            m1_ref, m2_ref, w1_ref, b1_ref, w2_ref, b2_ref,
                            *rest, th, W, H, Cin, Cout, sc_mode, band_axis,
                            nchw_out):
    if sc_mode == "conv":
        scw_ref, scb_ref, o_ref, xwin, slab1, rwin, slab2 = rest
    else:
        o_ref, xwin, slab1, rwin, slab2 = rest

    i = pl.program_id(band_axis)
    r0 = i * th
    f32 = jnp.float32

    # Halo-row validity (BlockSpec indices are clamped; invalid rows are zeroed here,
    # which is exactly the conv zero padding at the image borders).
    t2v = (r0 >= 2).astype(f32)
    t1v = (r0 >= 1).astype(f32)
    b1v = (r0 + th < H).astype(f32)
    b2v = (r0 + th + 1 < H).astype(f32)

    m1 = m1_ref[0]                         # (4, Cin): gamma0, beta0, gamma1, beta1
    m2 = m2_ref[0]                         # (4, Cout)

    def mod1(v):                           # DFBLK1: (affine + LeakyReLU 0.2) x 2
        hh = _leaky(m1[0:1] * v + m1[1:2])
        return _leaky(m1[2:3] * hh + m1[3:4])

    # ---- modulated input window: rows r0-2 .. r0+th+1, zero halo columns ---------
    zc = jnp.zeros((th + 4, 1, Cin), f32)
    xwin[:, 0:1, :] = zc
    xwin[:, W + 1:W + 2, :] = zc
    xwin[0:1, 1:W + 1, :] = mod1(xt2_ref[0]) * t2v
    xwin[1:2, 1:W + 1, :] = mod1(xt1_ref[0]) * t1v
    xwin[2:th + 2, 1:W + 1, :] = mod1(xmid_ref[0])
    xwin[th + 2:th + 3, 1:W + 1, :] = mod1(xb1_ref[0]) * b1v
    xwin[th + 3:th + 4, 1:W + 1, :] = mod1(xb2_ref[0]) * b2v

    # ---- conv1 over th+2 rows (2 halo rows of r recomputed): single K=9*Cin matmul
    for kh in range(3):
        for kw in range(3):
            t = kh * 3 + kw
            slab1[:, t * Cin:(t + 1) * Cin] = (
                xwin[kh:kh + th + 2, kw:kw + W, :].reshape((th + 2) * W, Cin))
    r_raw = jnp.dot(slab1[...], w1_ref[...],
                    preferred_element_type=jnp.float32) + b1_ref[...]

    # ---- DFBLK2 modulation, then conv2 input window (zero pads after modulation) --
    hh = _leaky(m2[0:1] * r_raw + m2[1:2])
    r_mod = _leaky(m2[2:3] * hh + m2[3:4]).reshape(th + 2, W, Cout)
    zc2 = jnp.zeros((th + 2, 1, Cout), f32)
    rwin[:, 0:1, :] = zc2
    rwin[:, W + 1:W + 2, :] = zc2
    rwin[0:1, 1:W + 1, :] = r_mod[0:1] * t1v            # r row r0-1 (image top pad)
    rwin[1:th + 1, 1:W + 1, :] = r_mod[1:th + 1]
    rwin[th + 1:th + 2, 1:W + 1, :] = r_mod[th + 1:th + 2] * b1v   # r row r0+th

    # ---- conv2: single K=9*Cout matmul, fused shortcut + residual add ------------
    for kh in range(3):
        for kw in range(3):
            t = kh * 3 + kw
            slab2[:, t * Cout:(t + 1) * Cout] = (
                rwin[kh:kh + th, kw:kw + W, :].reshape(th * W, Cout))
    acc = jnp.dot(slab2[...], w2_ref[...],
                  preferred_element_type=jnp.float32) + b2_ref[...]

    if sc_mode == "conv":
        xs = xmid_ref[0].reshape(th * W, Cin)
        acc = acc + jnp.dot(xs, scw_ref[...],
                            preferred_element_type=jnp.float32) + scb_ref[...]
    else:
        acc = acc + xmid_ref[0].reshape(th * W, Cout)

    if nchw_out:
        o_ref[0] = acc.T                      # (Cout, th*W): lane-dense, flat NCHW
    else:
        o_ref[0] = acc.reshape(th, W, Cout)   # NHWC fallback (th*W not 128-aligned)


# ---------------- tile / VMEM budgeting (generation-aware) ----------------

def _physical_vmem_bytes():
    try:
        info = pltpu.get_tpu_info()
        return int(getattr(info, "vmem_capacity_bytes", 64 * 2**20))
    except Exception:
        return 64 * 2**20                      # conservative default (v7x per-TC)


def _choose_row_tile(H, W, Cin, Cout, budget_bytes):
    """Largest divisor of H whose per-band VMEM footprint fits the budget."""
    def est(th):
        f = 4  # f32
        io = 2 * f * W * ((th + 4) * Cin + th * Cout)                  # dbl-buffered in/out
        wts = 2 * f * (9 * Cin * Cout + 9 * Cout * Cout + Cin * Cout
                       + 8 * Cout + 4 * (Cin + Cout))
        scr = f * ((th + 4) * (W + 2) * Cin + (th + 2) * W * 9 * Cin
                   + (th + 2) * (W + 2) * Cout + th * W * 9 * Cout)
        return io + wts + scr
    for th in [d for d in range(H, 0, -1) if H % d == 0]:
        if est(th) <= budget_bytes:
            return th
    return 1


def fused_gblock_residual(x, mods1, mods2, PP, learnable_sc, force_th=None):
    """x: (N,H,W,Cin) NHWC; returns the full G_Block output in NCHW (N,Cout,H,W)."""
    N, H, W, Cin = x.shape
    Cout = PP['c2_w'].shape[-1]
    assert W % 8 == 0, "width must be a multiple of 8 (sublane tiling)"

    phys_vmem = _physical_vmem_bytes()
    th = force_th if force_th is not None else _choose_row_tile(
        H, W, Cin, Cout, int(phys_vmem * 0.55))
    assert H % th == 0
    nb = H // th
    # lane-dense flat-NCHW output needs the block's last dim (th*W) 128-aligned
    nchw_out = (th * W) % 128 == 0 or th == H

    # put the longer grid axis first (megacore split on v7x)
    if nb >= N:
        grid = (nb, N)
        band_axis = 0
        def ni(a, b): return b, a
    else:
        grid = (N, nb)
        band_axis = 1
        def ni(a, b): return a, b

    def idx_t2(a, b):
        n, i = ni(a, b); return (n, jnp.maximum(i * th - 2, 0), 0, 0)
    def idx_t1(a, b):
        n, i = ni(a, b); return (n, jnp.maximum(i * th - 1, 0), 0, 0)
    def idx_mid(a, b):
        n, i = ni(a, b); return (n, i, 0, 0)
    def idx_b1(a, b):
        n, i = ni(a, b); return (n, jnp.minimum((i + 1) * th, H - 1), 0, 0)
    def idx_b2(a, b):
        n, i = ni(a, b); return (n, jnp.minimum((i + 1) * th + 1, H - 1), 0, 0)
    def idx_mod(a, b):
        n, i = ni(a, b); return (n, 0, 0)
    def idx_cst2(a, b):
        return (0, 0)
    def idx_out_nchw(a, b):
        n, i = ni(a, b); return (n, 0, i)
    def idx_out_nhwc(a, b):
        n, i = ni(a, b); return (n, i, 0, 0)

    in_specs = [
        pl.BlockSpec((1, 1, W, Cin), idx_t2),       # x row r0-2 (clamped)
        pl.BlockSpec((1, 1, W, Cin), idx_t1),       # x row r0-1 (clamped)
        pl.BlockSpec((1, th, W, Cin), idx_mid),     # x rows r0 .. r0+th-1
        pl.BlockSpec((1, 1, W, Cin), idx_b1),       # x row r0+th   (clamped)
        pl.BlockSpec((1, 1, W, Cin), idx_b2),       # x row r0+th+1 (clamped)
        pl.BlockSpec((1, 4, Cin), idx_mod),         # DFBLK1 mods
        pl.BlockSpec((1, 4, Cout), idx_mod),        # DFBLK2 mods
        pl.BlockSpec((9 * Cin, Cout), idx_cst2),    # conv1 packed weight
        pl.BlockSpec((1, Cout), idx_cst2),          # conv1 bias
        pl.BlockSpec((9 * Cout, Cout), idx_cst2),   # conv2 packed weight
        pl.BlockSpec((1, Cout), idx_cst2),          # conv2 bias
    ]
    args = [x, x, x, x, x, mods1, mods2,
            PP['c1_w'], PP['c1_b'], PP['c2_w'], PP['c2_b']]
    if learnable_sc:
        sc_mode = "conv"
        in_specs += [pl.BlockSpec((Cin, Cout), idx_cst2),
                     pl.BlockSpec((1, Cout), idx_cst2)]
        args += [PP['sc_w'], PP['sc_b']]
    else:
        sc_mode = "identity"

    if nchw_out:
        out_shape = jax.ShapeDtypeStruct((N, Cout, H * W), jnp.float32)
        out_spec = pl.BlockSpec((1, Cout, th * W), idx_out_nchw)
    else:
        out_shape = jax.ShapeDtypeStruct((N, H, W, Cout), jnp.float32)
        out_spec = pl.BlockSpec((1, th, W, Cout), idx_out_nhwc)

    kernel = functools.partial(
        _gblock_residual_kernel, th=th, W=W, H=H, Cin=Cin, Cout=Cout,
        sc_mode=sc_mode, band_axis=band_axis, nchw_out=nchw_out)

    out = pl.pallas_call(
        kernel,
        out_shape=out_shape,
        grid=grid,
        in_specs=in_specs,
        out_specs=out_spec,
        scratch_shapes=[
            pltpu.VMEM((th + 4, W + 2, Cin), jnp.float32),       # modulated x window
            pltpu.VMEM(((th + 2) * W, 9 * Cin), jnp.float32),    # conv1 im2col slab
            pltpu.VMEM((th + 2, W + 2, Cout), jnp.float32),      # modulated r window
            pltpu.VMEM((th * W, 9 * Cout), jnp.float32),         # conv2 im2col slab
        ],
        compiler_params=pltpu.CompilerParams(
            dimension_semantics=("parallel", "parallel"),
            vmem_limit_bytes=int(phys_vmem * 0.9)),
    )(*args)

    if nchw_out:
        return out.reshape(N, Cout, H, W)          # already NCHW; free reshape
    return jnp.transpose(out, (0, 3, 1, 2))


# ---------------- G_Block forward ----------------

@functools.partial(jax.jit, static_argnames=("imsize", "force_th"))
def g_block_pallas(h_nchw, y, PP, imsize, force_th=None):
    N, Cin, Hin, Win = h_nchw.shape
    Cout = PP['c2_w'].shape[-1]
    learnable_sc = Cin != Cout

    # F.interpolate(size=(imsize, imsize)), torch default 'nearest': src = floor(dst*in/out)
    # TODO(synk): nearest upsample + NCHW->NHWC stay as XLA gather/transpose in the
    # wrapper (one pass); fusing them in would need a per-row scalar-prefetch gather
    # plus an in-kernel channel transpose that isn't worth it here.
    ridx = (jnp.arange(imsize) * Hin) // imsize
    cidx = (jnp.arange(imsize) * Win) // imsize
    hu = h_nchw[:, :, ridx, :][:, :, :, cidx]
    x = jnp.transpose(hu, (0, 2, 3, 1))                       # NHWC

    mods1 = affine_mods_pallas(y, PP['f1'])                   # (N, 4, Cin)
    mods2 = affine_mods_pallas(y, PP['f2'])                   # (N, 4, Cout)
    return fused_gblock_residual(x, mods1, mods2, PP, learnable_sc, force_th)


# ---------------- one-time parameter preprocessing (hoisted out of the forward) ----

def preprocess_params(P):
    def pack_dfblk(a0, a1):
        # torch Linear weight is (out, in); transpose to (in, out) for y @ W
        # first layers fused into one (cond, 4C) matrix; order g0, b0, g1, b1
        w1 = jnp.concatenate([a0['gw1'].T, a0['bw1'].T, a1['gw1'].T, a1['bw1'].T], axis=1)
        b1 = jnp.concatenate([a0['gb1'], a0['bb1'], a1['gb1'], a1['bb1']])[None, :]
        w2 = jnp.stack([a0['gw2'].T, a0['bw2'].T, a1['gw2'].T, a1['bw2'].T])      # (4,C,C)
        b2 = jnp.stack([a0['gb2'], a0['bb2'], a1['gb2'], a1['bb2']])[:, None, :]  # (4,1,C)
        return dict(w1=w1, b1=b1, w2=w2, b2=b2)

    def pack_conv3x3(w_oihw, bias):
        co, ci = w_oihw.shape[0], w_oihw.shape[1]
        # K ordering (kh, kw, ci) matches the im2col slab column ordering
        w = jnp.transpose(w_oihw, (2, 3, 1, 0)).reshape(9 * ci, co)
        return w, bias.reshape(1, co)

    c1_w, c1_b = pack_conv3x3(P['c1_w'], P['c1_b'])
    c2_w, c2_b = pack_conv3x3(P['c2_w'], P['c2_b'])
    return dict(
        f1=pack_dfblk(P['f1a0'], P['f1a1']),
        f2=pack_dfblk(P['f2a0'], P['f2a1']),
        c1_w=c1_w, c1_b=c1_b, c2_w=c2_w, c2_b=c2_b,
        sc_w=P['c_sc_w'][:, :, 0, 0].T,                        # (Cin, Cout)
        sc_b=P['c_sc_b'].reshape(1, -1),
    )


# ---------------- pure-JAX reference (mirrors torch semantics) ----------------

def _ref_mlp(y, w1, b1, w2, b2):
    h = jax.nn.relu(y @ w1.T + b1)
    return h @ w2.T + b2


def _ref_affine(x, y, p):  # x NCHW
    g = _ref_mlp(y, p['gw1'], p['gb1'], p['gw2'], p['gb2'])
    b = _ref_mlp(y, p['bw1'], p['bb1'], p['bw2'], p['bb2'])
    return g[:, :, None, None] * x + b[:, :, None, None]


def _leaky_ref(x):
    return jnp.where(x > 0, x, 0.2 * x)


def _ref_dfblk(x, y, a0, a1):
    h = _leaky_ref(_ref_affine(x, y, a0))
    return _leaky_ref(_ref_affine(h, y, a1))


def _ref_conv(x, w, b, pad):
    out = lax.conv_general_dilated(x, w, (1, 1), [(pad, pad), (pad, pad)],
                                   dimension_numbers=('NCHW', 'OIHW', 'NCHW'))
    return out + b[None, :, None, None]


def ref_gblock(h, y, P, imsize):
    N, Cin, Hin, Win = h.shape
    Cout = P['c1_w'].shape[0]
    ridx = (jnp.arange(imsize) * Hin) // imsize
    cidx = (jnp.arange(imsize) * Win) // imsize
    h = h[:, :, ridx, :][:, :, :, cidx]
    sc = _ref_conv(h, P['c_sc_w'], P['c_sc_b'], 0) if Cin != Cout else h
    r = _ref_dfblk(h, y, P['f1a0'], P['f1a1'])
    r = _ref_conv(r, P['c1_w'], P['c1_b'], 1)
    r = _ref_dfblk(r, y, P['f2a0'], P['f2a1'])
    r = _ref_conv(r, P['c2_w'], P['c2_b'], 1)
    return sc + r


# ---------------- parameter construction ----------------

def make_params(key, cond_dim, in_ch, out_ch):
    def init(k, shape, scale=0.1):
        return jax.random.normal(k, shape, jnp.float32) * scale

    def affine_params(k, C):
        kk = jax.random.split(k, 8)
        return dict(gw1=init(kk[0], (C, cond_dim)), gb1=init(kk[1], (C,)),
                    gw2=init(kk[2], (C, C)),        gb2=init(kk[3], (C,)),
                    bw1=init(kk[4], (C, cond_dim)), bb1=init(kk[5], (C,)),
                    bw2=init(kk[6], (C, C)),        bb2=init(kk[7], (C,)))

    ks = jax.random.split(key, 10)
    return dict(
        f1a0=affine_params(ks[0], in_ch),
        f1a1=affine_params(ks[1], in_ch),
        f2a0=affine_params(ks[2], out_ch),
        f2a1=affine_params(ks[3], out_ch),
        c1_w=init(ks[4], (out_ch, in_ch, 3, 3)),
        c1_b=init(ks[5], (out_ch,)),
        c2_w=init(ks[6], (out_ch, out_ch, 3, 3)),
        c2_b=init(ks[7], (out_ch,)),
        c_sc_w=init(ks[8], (out_ch, in_ch, 1, 1)),
        c_sc_b=init(ks[9], (out_ch,)),
    )


if __name__ == "__main__":
    key = jax.random.PRNGKey(0)

    def run_case(k, N, cond_dim, in_ch, out_ch, Hin, Win, imsize, force_th=None):
        k1, k2, kp = jax.random.split(k, 3)
        h = jax.random.normal(k1, (N, in_ch, Hin, Win), jnp.float32)
        y = jax.random.normal(k2, (N, cond_dim), jnp.float32)
        P = make_params(kp, cond_dim, in_ch, out_ch)
        PP = preprocess_params(P)                 # one-time weight preprocessing
        out = jax.block_until_ready(
            g_block_pallas(h, y, PP, imsize=imsize, force_th=force_th))
        ref = jax.block_until_ready(ref_gblock(h, y, P, imsize))
        assert out.shape == (N, out_ch, imsize, imsize)
        np.testing.assert_allclose(np.asarray(out), np.asarray(ref),
                                   rtol=1e-4, atol=1e-4)

    ka, kb, kc, kd = jax.random.split(key, 4)
    # learnable shortcut (in_ch != out_ch) + nearest upsample 8 -> 16, whole-image band
    run_case(ka, N=2, cond_dim=32, in_ch=8, out_ch=16, Hin=8, Win=8, imsize=16)
    # identity shortcut (in_ch == out_ch)
    run_case(kb, N=2, cond_dim=32, in_ch=16, out_ch=16, Hin=8, Win=8, imsize=16)
    # forced row-banding: exercises halo masking + NHWC-fallback output path
    run_case(kc, N=2, cond_dim=32, in_ch=8, out_ch=16, Hin=8, Win=8, imsize=16,
             force_th=4)
    # forced row-banding with lane-dense flat-NCHW output path (th*W = 128)
    run_case(kd, N=2, cond_dim=32, in_ch=16, out_ch=16, Hin=8, Win=8, imsize=16,
             force_th=8)

    print("KERNEL_OK")
</pallas_src>

<mosaic_0001>
module attributes {stable_mosaic.version = 11 : i64} {
  func.func @_affine_mods_kernel(%arg0: memref<2x32xf32, #tpu.memory_space<vmem>>, %arg1: memref<32x32xf32, #tpu.memory_space<vmem>>, %arg2: memref<1x32xf32, #tpu.memory_space<vmem>>, %arg3: memref<4x8x8xf32, #tpu.memory_space<vmem>>, %arg4: memref<4x1x8xf32, #tpu.memory_space<vmem>>, %arg5: memref<2x32xf32, #tpu.memory_space<vmem>>) attributes {dimension_semantics = [], scalar_prefetch = 0 : i64, scratch_operands = 0 : i64, tpu.core_type = #tpu.core_type<tc>} {
    %c0 = arith.constant 0 : index
    %c0_0 = arith.constant 0 : index
    %0 = vector.load %arg0[%c0, %c0_0] : memref<2x32xf32, #tpu.memory_space<vmem>>, vector<2x32xf32>
    %c0_1 = arith.constant 0 : index
    %c0_2 = arith.constant 0 : index
    %1 = vector.load %arg1[%c0_1, %c0_2] : memref<32x32xf32, #tpu.memory_space<vmem>>, vector<32x32xf32>
    %cst = arith.constant dense<0.000000e+00> : vector<2x32xf32>
    %2 = tpu.matmul %0, %1, %cst {dimension_numbers = #tpu.dot_dimension_numbers<[1], [0], [0], [1], [0, 0, 1, 1], [], []>} : vector<2x32xf32>, vector<32x32xf32>, vector<2x32xf32> -> vector<2x32xf32>
    %c0_3 = arith.constant 0 : index
    %c0_4 = arith.constant 0 : index
    %3 = vector.load %arg2[%c0_3, %c0_4] : memref<1x32xf32, #tpu.memory_space<vmem>>, vector<1x32xf32>
    %4 = vector.broadcast %3 : vector<1x32xf32> to vector<2x32xf32>
    %5 = arith.addf %2, %4 : vector<2x32xf32>
    %cst_5 = arith.constant 0.000000e+00 : f32
    %6 = vector.broadcast %cst_5 : f32 to vector<2x32xf32>
    %7 = arith.maximumf %5, %6 : vector<2x32xf32>
    %8 = vector.extract_strided_slice %7 {offsets = [0, 0], sizes = [2, 8], strides = [1, 1]} : vector<2x32xf32> to vector<2x8xf32>
    %c0_6 = arith.constant 0 : index
    %c0_7 = arith.constant 0 : index
    %c0_8 = arith.constant 0 : index
    %9 = vector.load %arg3[%c0_6, %c0_7, %c0_8] : memref<4x8x8xf32, #tpu.memory_space<vmem>>, vector<1x8x8xf32>
    %10 = vector.shape_cast %9 : vector<1x8x8xf32> to vector<8x8xf32>
    %cst_9 = arith.constant dense<0.000000e+00> : vector<2x8xf32>
    %11 = tpu.matmul %8, %10, %cst_9 {dimension_numbers = #tpu.dot_dimension_numbers<[1], [0], [0], [1], [0, 0, 1, 1], [], []>} : vector<2x8xf32>, vector<8x8xf32>, vector<2x8xf32> -> vector<2x8xf32>
    %c0_10 = arith.constant 0 : index
    %c0_11 = arith.constant 0 : index
    %c0_12 = arith.constant 0 : index
    %12 = vector.load %arg4[%c0_10, %c0_11, %c0_12] : memref<4x1x8xf32, #tpu.memory_space<vmem>>, vector<1x1x8xf32>
    %13 = vector.shape_cast %12 : vector<1x1x8xf32> to vector<1x8xf32>
    %14 = vector.broadcast %13 : vector<1x8xf32> to vector<2x8xf32>
    %15 = arith.addf %11, %14 : vector<2x8xf32>
    %c0_13 = arith.constant 0 : index
    %c0_14 = arith.constant 0 : index
    %16 = vector.load %arg5[%c0_13, %c0_14] : memref<2x32xf32, #tpu.memory_space<vmem>>, vector<2x8xf32>
    tpu.vector_store %arg5[%c0_13, %c0_14], %15 {strides = array<i32>} : memref<2x32xf32, #tpu.memory_space<vmem>>, vector<2x8xf32>,
    %17 = vector.extract_strided_slice %7 {offsets = [0, 8], sizes = [2, 8], strides = [1, 1]} : vector<2x32xf32> to vector<2x8xf32>
    %c1 = arith.constant 1 : index
    %c0_15 = arith.constant 0 : index
    %c0_16 = arith.constant 0 : index
    %18 = vector.load %arg3[%c1, %c0_15, %c0_16] : memref<4x8x8xf32, #tpu.memory_space<vmem>>, vector<1x8x8xf32>
    %19 = vector.shape_cast %18 : vector<1x8x8xf32> to vector<8x8xf32>
    %cst_17 = arith.constant dense<0.000000e+00> : vector<2x8xf32>
    %20 = tpu.matmul %17, %19, %cst_17 {dimension_numbers = #tpu.dot_dimension_numbers<[1], [0], [0], [1], [0, 0, 1, 1], [], []>} : vector<2x8xf32>, vector<8x8xf32>, vector<2x8xf32> -> vector<2x8xf32>
    %c1_18 = arith.constant 1 : index
    %c0_19 = arith.constant 0 : index
    %c0_20 = arith.constant 0 : index
    %21 = vector.load %arg4[%c1_18, %c0_19, %c0_20] : memref<4x1x8xf32, #tpu.memory_space<vmem>>, vector<1x1x8xf32>
    %22 = vector.shape_cast %21 : vector<1x1x8xf32> to vector<1x8xf32>
    %23 = vector.broadcast %22 : vector<1x8xf32> to vector<2x8xf32>
    %24 = arith.addf %20, %23 : vector<2x8xf32>
    %c0_21 = arith.constant 0 : index
    %c8 = arith.constant 8 : index
    %25 = vector.load %arg5[%c0_21, %c8] : memref<2x32xf32, #tpu.memory_space<vmem>>, vector<2x8xf32>
    tpu.vector_store %arg5[%c0_21, %c8], %24 {strides = array<i32>} : memref<2x32xf32, #tpu.memory_space<vmem>>, vector<2x8xf32>,
    %26 = vector.extract_strided_slice %7 {offsets = [0, 16], sizes = [2, 8], strides = [1, 1]} : vector<2x32xf32> to vector<2x8xf32>
    %c2 = arith.constant 2 : index
    %c0_22 = arith.constant 0 : index
    %c0_23 = arith.constant 0 : index
    %27 = vector.load %arg3[%c2, %c0_22, %c0_23] : memref<4x8x8xf32, #tpu.memory_space<vmem>>, vector<1x8x8xf32>
    %28 = vector.shape_cast %27 : vector<1x8x8xf32> to vector<8x8xf32>
    %cst_24 = arith.constant dense<0.000000e+00> : vector<2x8xf32>
    %29 = tpu.matmul %26, %28, %cst_24 {dimension_numbers = #tpu.dot_dimension_numbers<[1], [0], [0], [1], [0, 0, 1, 1], [], []>} : vector<2x8xf32>, vector<8x8xf32>, vector<2x8xf32> -> vector<2x8xf32>
    %c2_25 = arith.constant 2 : index
    %c0_26 = arith.constant 0 : index
    %c0_27 = arith.constant 0 : index
    %30 = vector.load %arg4[%c2_25, %c0_26, %c0_27] : memref<4x1x8xf32, #tpu.memory_space<vmem>>, vector<1x1x8xf32>
    %31 = vector.shape_cast %30 : vector<1x1x8xf32> to vector<1x8xf32>
    %32 = vector.broadcast %31 : vector<1x8xf32> to vector<2x8xf32>
    %33 = arith.addf %29, %32 : vector<2x8xf32>
    %c0_28 = arith.constant 0 : index
    %c16 = arith.constant 16 : index
    %34 = vector.load %arg5[%c0_28, %c16] : memref<2x32xf32, #tpu.memory_space<vmem>>, vector<2x8xf32>
    tpu.vector_store %arg5[%c0_28, %c16], %33 {strides = array<i32>} : memref<2x32xf32, #tpu.memory_space<vmem>>, vector<2x8xf32>,
    %35 = vector.extract_strided_slice %7 {offsets = [0, 24], sizes = [2, 8], strides = [1, 1]} : vector<2x32xf32> to vector<2x8xf32>
    %c3 = arith.constant 3 : index
    %c0_29 = arith.constant 0 : index
    %c0_30 = arith.constant 0 : index
    %36 = vector.load %arg3[%c3, %c0_29, %c0_30] : memref<4x8x8xf32, #tpu.memory_space<vmem>>, vector<1x8x8xf32>
    %37 = vector.shape_cast %36 : vector<1x8x8xf32> to vector<8x8xf32>
    %cst_31 = arith.constant dense<0.000000e+00> : vector<2x8xf32>
    %38 = tpu.matmul %35, %37, %cst_31 {dimension_numbers = #tpu.dot_dimension_numbers<[1], [0], [0], [1], [0, 0, 1, 1], [], []>} : vector<2x8xf32>, vector<8x8xf32>, vector<2x8xf32> -> vector<2x8xf32>
    %c3_32 = arith.constant 3 : index
    %c0_33 = arith.constant 0 : index
    %c0_34 = arith.constant 0 : index
    %39 = vector.load %arg4[%c3_32, %c0_33, %c0_34] : memref<4x1x8xf32, #tpu.memory_space<vmem>>, vector<1x1x8xf32>
    %40 = vector.shape_cast %39 : vector<1x1x8xf32> to vector<1x8xf32>
    %41 = vector.broadcast %40 : vector<1x8xf32> to vector<2x8xf32>
    %42 = arith.addf %38, %41 : vector<2x8xf32>
    %c0_35 = arith.constant 0 : index
    %c24 = arith.constant 24 : index
    %43 = vector.load %arg5[%c0_35, %c24] : memref<2x32xf32, #tpu.memory_space<vmem>>, vector<2x8xf32>
    tpu.vector_store %arg5[%c0_35, %c24], %42 {strides = array<i32>} : memref<2x32xf32, #tpu.memory_space<vmem>>, vector<2x8xf32>,
    return
  }
}

module attributes {stable_mosaic.version = 11 : i64} {
  func.func @_affine_mods_kernel(%arg0: memref<2x32xf32, #tpu.memory_space<vmem>>, %arg1: memref<32x64xf32, #tpu.memory_space<vmem>>, %arg2: memref<1x64xf32, #tpu.memory_space<vmem>>, %arg3: memref<4x16x16xf32, #tpu.memory_space<vmem>>, %arg4: memref<4x1x16xf32, #tpu.memory_space<vmem>>, %arg5: memref<2x64xf32, #tpu.memory_space<vmem>>) attributes {dimension_semantics = [], scalar_prefetch = 0 : i64, scratch_operands = 0 : i64, tpu.core_type = #tpu.core_type<tc>} {
    %c0 = arith.constant 0 : index
    %c0_0 = arith.constant 0 : index
    %0 = vector.load %arg0[%c0, %c0_0] : memref<2x32xf32, #tpu.memory_space<vmem>>, vector<2x32xf32>
    %c0_1 = arith.constant 0 : index
    %c0_2 = arith.constant 0 : index
    %1 = vector.load %arg1[%c0_1, %c0_2] : memref<32x64xf32, #tpu.memory_space<vmem>>, vector<32x64xf32>
    %cst = arith.constant dense<0.000000e+00> : vector<2x64xf32>
    %2 = tpu.matmul %0, %1, %cst {dimension_numbers = #tpu.dot_dimension_numbers<[1], [0], [0], [1], [0, 0, 1, 1], [], []>} : vector<2x32xf32>, vector<32x64xf32>, vector<2x64xf32> -> vector<2x64xf32>
    %c0_3 = arith.constant 0 : index
    %c0_4 = arith.constant 0 : index
    %3 = vector.load %arg2[%c0_3, %c0_4] : memref<1x64xf32, #tpu.memory_space<vmem>>, vector<1x64xf32>
    %4 = vector.broadcast %3 : vector<1x64xf32> to vector<2x64xf32>
    %5 = arith.addf %2, %4 : vector<2x64xf32>
    %cst_5 = arith.constant 0.000000e+00 : f32
    %6 = vector.broadcast %cst_5 : f32 to vector<2x64xf32>
    %7 = arith.maximumf %5, %6 : vector<2x64xf32>
    %8 = vector.extract_strided_slice %7 {offsets = [0, 0], sizes = [2, 16], strides = [1, 1]} : vector<2x64xf32> to vector<2x16xf32>
    %c0_6 = arith.constant 0 : index
    %c0_7 = arith.constant 0 : index
    %c0_8 = arith.constant 0 : index
    %9 = vector.load %arg3[%c0_6, %c0_7, %c0_8] : memref<4x16x16xf32, #tpu.memory_space<vmem>>, vector<1x16x16xf32>
    %10 = vector.shape_cast %9 : vector<1x16x16xf32> to vector<16x16xf32>
    %cst_9 = arith.constant dense<0.000000e+00> : vector<2x16xf32>
    %11 = tpu.matmul %8, %10, %cst_9 {dimension_numbers = #tpu.dot_dimension_numbers<[1], [0], [0], [1], [0, 0, 1, 1], [], []>} : vector<2x16xf32>, vector<16x16xf32>, vector<2x16xf32> -> vector<2x16xf32>
    %c0_10 = arith.constant 0 : index
    %c0_11 = arith.constant 0 : index
    %c0_12 = arith.constant 0 : index
    %12 = vector.load %arg4[%c0_10, %c0_11, %c0_12] : memref<4x1x16xf32, #tpu.memory_space<vmem>>, vector<1x1x16xf32>
    %13 = vector.shape_cast %12 : vector<1x1x16xf32> to vector<1x16xf32>
    %14 = vector.broadcast %13 : vector<1x16xf32> to vector<2x16xf32>
    %15 = arith.addf %11, %14 : vector<2x16xf32>
    %c0_13 = arith.constant 0 : index
    %c0_14 = arith.constant 0 : index
    %16 = vector.load %arg5[%c0_13, %c0_14] : memref<2x64xf32, #tpu.memory_space<vmem>>, vector<2x16xf32>
    tpu.vector_store %arg5[%c0_13, %c0_14], %15 {strides = array<i32>} : memref<2x64xf32, #tpu.memory_space<vmem>>, vector<2x16xf32>,
    %17 = vector.extract_strided_slice %7 {offsets = [0, 16], sizes = [2, 16], strides = [1, 1]} : vector<2x64xf32> to vector<2x16xf32>
    %c1 = arith.constant 1 : index
    %c0_15 = arith.constant 0 : index
    %c0_16 = arith.constant 0 : index
    %18 = vector.load %arg3[%c1, %c0_15, %c0_16] : memref<4x16x16xf32, #tpu.memory_space<vmem>>, vector<1x16x16xf32>
    %19 = vector.shape_cast %18 : vector<1x16x16xf32> to vector<16x16xf32>
    %cst_17 = arith.constant dense<0.000000e+00> : vector<2x16xf32>
    %20 = tpu.matmul %17, %19, %cst_17 {dimension_numbers = #tpu.dot_dimension_numbers<[1], [0], [0], [1], [0, 0, 1, 1], [], []>} : vector<2x16xf32>, vector<16x16xf32>, vector<2x16xf32> -> vector<2x16xf32>
    %c1_18 = arith.constant 1 : index
    %c0_19 = arith.constant 0 : index
    %c0_20 = arith.constant 0 : index
    %21 = vector.load %arg4[%c1_18, %c0_19, %c0_20] : memref<4x1x16xf32, #tpu.memory_space<vmem>>, vector<1x1x16xf32>
    %22 = vector.shape_cast %21 : vector<1x1x16xf32> to vector<1x16xf32>
    %23 = vector.broadcast %22 : vector<1x16xf32> to vector<2x16xf32>
    %24 = arith.addf %20, %23 : vector<2x16xf32>
    %c0_21 = arith.constant 0 : index
    %c16 = arith.constant 16 : index
    %25 = vector.load %arg5[%c0_21, %c16] : memref<2x64xf32, #tpu.memory_space<vmem>>, vector<2x16xf32>
    tpu.vector_store %arg5[%c0_21, %c16], %24 {strides = array<i32>} : memref<2x64xf32, #tpu.memory_space<vmem>>, vector<2x16xf32>,
    %26 = vector.extract_strided_slice %7 {offsets = [0, 32], sizes = [2, 16], strides = [1, 1]} : vector<2x64xf32> to vector<2x16xf32>
    %c2 = arith.constant 2 : index
    %c0_22 = arith.constant 0 : index
    %c0_23 = arith.constant 0 : index
    %27 = vector.load %arg3[%c2, %c0_22, %c0_23] : memref<4x16x16xf32, #tpu.memory_space<vmem>>, vector<1x16x16xf32>
    %28 = vector.shape_cast %27 : vector<1x16x16xf32> to vector<16x16xf32>
    %cst_24 = arith.constant dense<0.000000e+00> : vector<2x16xf32>
    %29 = tpu.matmul %26, %28, %cst_24 {dimension_numbers = #tpu.dot_dimension_numbers<[1], [0], [0], [1], [0, 0, 1, 1], [], []>} : vector<2x16xf32>, vector<16x16xf32>, vector<2x16xf32> -> vector<2x16xf32>
    %c2_25 = arith.constant 2 : index
    %c0_26 = arith.constant 0 : index
    %c0_27 = arith.constant 0 : index
    %30 = vector.load %arg4[%c2_25, %c0_26, %c0_27] : memref<4x1x16xf32, #tpu.memory_space<vmem>>, vector<1x1x16xf32>
    %31 = vector.shape_cast %30 : vector<1x1x16xf32> to vector<1x16xf32>
    %32 = vector.broadcast %31 : vector<1x16xf32> to vector<2x16xf32>
    %33 = arith.addf %29, %32 : vector<2x16xf32>
    %c0_28 = arith.constant 0 : index
    %c32 = arith.constant 32 : index
    %34 = vector.load %arg5[%c0_28, %c32] : memref<2x64xf32, #tpu.memory_space<vmem>>, vector<2x16xf32>
    tpu.vector_store %arg5[%c0_28, %c32], %33 {strides = array<i32>} : memref<2x64xf32, #tpu.memory_space<vmem>>, vector<2x16xf32>,
    %35 = vector.extract_strided_slice %7 {offsets = [0, 48], sizes = [2, 16], strides = [1, 1]} : vector<2x64xf32> to vector<2x16xf32>
    %c3 = arith.constant 3 : index
    %c0_29 = arith.constant 0 : index
    %c0_30 = arith.constant 0 : index
    %36 = vector.load %arg3[%c3, %c0_29, %c0_30] : memref<4x16x16xf32, #tpu.memory_space<vmem>>, vector<1x16x16xf32>
    %37 = vector.shape_cast %36 : vector<1x16x16xf32> to vector<16x16xf32>
    %cst_31 = arith.constant dense<0.000000e+00> : vector<2x16xf32>
    %38 = tpu.matmul %35, %37, %cst_31 {dimension_numbers = #tpu.dot_dimension_numbers<[1], [0], [0], [1], [0, 0, 1, 1], [], []>} : vector<2x16xf32>, vector<16x16xf32>, vector<2x16xf32> -> vector<2x16xf32>
    %c3_32 = arith.constant 3 : index
    %c0_33 = arith.constant 0 : index
    %c0_34 = arith.constant 0 : index
    %39 = vector.load %arg4[%c3_32, %c0_33, %c0_34] : memref<4x1x16xf32, #tpu.memory_space<vmem>>, vector<1x1x16xf32>
    %40 = vector.shape_cast %39 : vector<1x1x16xf32> to vector<1x16xf32>
    %41 = vector.broadcast %40 : vector<1x16xf32> to vector<2x16xf32>
    %42 = arith.addf %38, %41 : vector<2x16xf32>
    %c0_35 = arith.constant 0 : index
    %c48 = arith.constant 48 : index
    %43 = vector.load %arg5[%c0_35, %c48] : memref<2x64xf32, #tpu.memory_space<vmem>>, vector<2x16xf32>
    tpu.vector_store %arg5[%c0_35, %c48], %42 {strides = array<i32>} : memref<2x64xf32, #tpu.memory_space<vmem>>, vector<2x16xf32>,
    return
  }
}

module attributes {stable_mosaic.version = 11 : i64} {
  func.func @_gblock_residual_kernel(%arg0: i32, %arg1: i32, %arg2: memref<1x1x16x8xf32, #tpu.memory_space<vmem>>, %arg3: memref<1x1x16x8xf32, #tpu.memory_space<vmem>>, %arg4: memref<1x16x16x8xf32, #tpu.memory_space<vmem>>, %arg5: memref<1x1x16x8xf32, #tpu.memory_space<vmem>>, %arg6: memref<1x1x16x8xf32, #tpu.memory_space<vmem>>, %arg7: memref<1x4x8xf32, #tpu.memory_space<vmem>>, %arg8: memref<1x4x16xf32, #tpu.memory_space<vmem>>, %arg9: memref<72x16xf32, #tpu.memory_space<vmem>>, %arg10: memref<1x16xf32, #tpu.memory_space<vmem>>, %arg11: memref<144x16xf32, #tpu.memory_space<vmem>>, %arg12: memref<1x16xf32, #tpu.memory_space<vmem>>, %arg13: memref<8x16xf32, #tpu.memory_space<vmem>>, %arg14: memref<1x16xf32, #tpu.memory_space<vmem>>, %arg15: memref<1x16x256xf32, #tpu.memory_space<vmem>>, %arg16: memref<20x18x8xf32, #tpu.memory_space<vmem>>, %arg17: memref<288x72xf32, #tpu.memory_space<vmem>>, %arg18: memref<18x18x16xf32, #tpu.memory_space<vmem>>, %arg19: memref<256x144xf32, #tpu.memory_space<vmem>>) attributes {dimension_semantics = [#tpu.dimension_semantics<parallel>, #tpu.dimension_semantics<parallel>], iteration_bounds = array<i64: 2, 1>, scalar_prefetch = 0 : i64, scratch_operands = 4 : i64, tpu.core_type = #tpu.core_type<tc>, window_params = [{transform_indices = @transform_0, window_bounds = array<i64: 1, 1, 16, 8>}, {transform_indices = @transform_1, window_bounds = array<i64: 1, 1, 16, 8>}, {transform_indices = @transform_2, window_bounds = array<i64: 1, 16, 16, 8>}, {transform_indices = @transform_3, window_bounds = array<i64: 1, 1, 16, 8>}, {transform_indices = @transform_4, window_bounds = array<i64: 1, 1, 16, 8>}, {transform_indices = @transform_5, window_bounds = array<i64: 1, 4, 8>}, {transform_indices = @transform_6, window_bounds = array<i64: 1, 4, 16>}, {pipeline_mode = #tpu.pipeline_mode<synchronous>, transform_indices = @transform_7, window_bounds = array<i64: 72, 16>}, {pipeline_mode = #tpu.pipeline_mode<synchronous>, transform_indices = @transform_8, window_bounds = array<i64: 1, 16>}, {pipeline_mode = #tpu.pipeline_mode<synchronous>, transform_indices = @transform_9, window_bounds = array<i64: 144, 16>}, {pipeline_mode = #tpu.pipeline_mode<synchronous>, transform_indices = @transform_10, window_bounds = array<i64: 1, 16>}, {pipeline_mode = #tpu.pipeline_mode<synchronous>, transform_indices = @transform_11, window_bounds = array<i64: 8, 16>}, {pipeline_mode = #tpu.pipeline_mode<synchronous>, transform_indices = @transform_12, window_bounds = array<i64: 1, 16>}, {transform_indices = @transform_13, window_bounds = array<i64: 1, 16, 256>}]} {
    %c16_i32 = arith.constant 16 : i32
    %0 = arith.muli %arg1, %c16_i32 : i32
    %c2_i32 = arith.constant 2 : i32
    %1 = arith.cmpi sge, %0, %c2_i32 : i32
    %2 = arith.extui %1 : i1 to i32
    %3 = arith.sitofp %2 : i32 to f32
    %c1_i32 = arith.constant 1 : i32
    %4 = arith.cmpi sge, %0, %c1_i32 : i32
    %5 = arith.extui %4 : i1 to i32
    %6 = arith.sitofp %5 : i32 to f32
    %c16_i32_0 = arith.constant 16 : i32
    %7 = arith.addi %0, %c16_i32_0 : i32
    %c16_i32_1 = arith.constant 16 : i32
    %8 = arith.cmpi slt, %7, %c16_i32_1 : i32
    %9 = arith.extui %8 : i1 to i32
    %10 = arith.sitofp %9 : i32 to f32
    %c16_i32_2 = arith.constant 16 : i32
    %11 = arith.addi %0, %c16_i32_2 : i32
    %c1_i32_3 = arith.constant 1 : i32
    %12 = arith.addi %11, %c1_i32_3 : i32
    %c16_i32_4 = arith.constant 16 : i32
    %13 = arith.cmpi slt, %12, %c16_i32_4 : i32
    %14 = arith.extui %13 : i1 to i32
    %15 = arith.sitofp %14 : i32 to f32
    %c0 = arith.constant 0 : index
    %c0_5 = arith.constant 0 : index
    %c0_6 = arith.constant 0 : index
    %16 = vector.load %arg7[%c0, %c0_5, %c0_6] : memref<1x4x8xf32, #tpu.memory_space<vmem>>, vector<1x4x8xf32>
    %17 = vector.shape_cast %16 : vector<1x4x8xf32> to vector<4x8xf32>
    %c0_7 = arith.constant 0 : index
    %c0_8 = arith.constant 0 : index
    %c0_9 = arith.constant 0 : index
    %18 = vector.load %arg8[%c0_7, %c0_8, %c0_9] : memref<1x4x16xf32, #tpu.memory_space<vmem>>, vector<1x4x16xf32>
    %19 = vector.shape_cast %18 : vector<1x4x16xf32> to vector<4x16xf32>
    %cst = arith.constant 0.000000e+00 : f32
    %20 = vector.broadcast %cst : f32 to vector<20x1x8xf32>
    %c0_10 = arith.constant 0 : index
    %c0_11 = arith.constant 0 : index
    %c0_12 = arith.constant 0 : index
    %21 = vector.load %arg16[%c0_10, %c0_11, %c0_12] : memref<20x18x8xf32, #tpu.memory_space<vmem>>, vector<20x1x8xf32>
    tpu.vector_store %arg16[%c0_10, %c0_11, %c0_12], %20 {strides = array<i32>} : memref<20x18x8xf32, #tpu.memory_space<vmem>>, vector<20x1x8xf32>,
    %c0_13 = arith.constant 0 : index
    %c17 = arith.constant 17 : index
    %c0_14 = arith.constant 0 : index
    %22 = vector.load %arg16[%c0_13, %c17, %c0_14] : memref<20x18x8xf32, #tpu.memory_space<vmem>>, vector<20x1x8xf32>
    tpu.vector_store %arg16[%c0_13, %c17, %c0_14], %20 {strides = array<i32>} : memref<20x18x8xf32, #tpu.memory_space<vmem>>, vector<20x1x8xf32>,
    %c0_15 = arith.constant 0 : index
    %c0_16 = arith.constant 0 : index
    %c0_17 = arith.constant 0 : index
    %c0_18 = arith.constant 0 : index
    %23 = vector.load %arg2[%c0_15, %c0_16, %c0_17, %c0_18] : memref<1x1x16x8xf32, #tpu.memory_space<vmem>>, vector<1x1x16x8xf32>
    %24 = vector.shape_cast %23 : vector<1x1x16x8xf32> to vector<1x16x8xf32>
    %25 = vector.extract_strided_slice %17 {offsets = [0, 0], sizes = [1, 8], strides = [1, 1]} : vector<4x8xf32> to vector<1x8xf32>
    %26 = vector.shape_cast %25 : vector<1x8xf32> to vector<1x1x8xf32>
    %27 = vector.broadcast %26 : vector<1x1x8xf32> to vector<1x16x8xf32>
    %28 = arith.mulf %27, %24 : vector<1x16x8xf32>
    %29 = vector.extract_strided_slice %17 {offsets = [1, 0], sizes = [1, 8], strides = [1, 1]} : vector<4x8xf32> to vector<1x8xf32>
    %30 = vector.shape_cast %29 : vector<1x8xf32> to vector<1x1x8xf32>
    %31 = vector.broadcast %30 : vector<1x1x8xf32> to vector<1x16x8xf32>
    %32 = arith.addf %28, %31 : vector<1x16x8xf32>
    %cst_19 = arith.constant 0.000000e+00 : f32
    %33 = vector.broadcast %cst_19 : f32 to vector<1x16x8xf32>
    %34 = arith.cmpf ogt, %32, %33 : vector<1x16x8xf32>
    %cst_20 = arith.constant 2.000000e-01 : f32
    %35 = vector.broadcast %cst_20 : f32 to vector<1x16x8xf32>
    %36 = arith.mulf %35, %32 : vector<1x16x8xf32>
    %37 = arith.select %34, %32, %36 : vector<1x16x8xi1>, vector<1x16x8xf32>
    %38 = vector.extract_strided_slice %17 {offsets = [2, 0], sizes = [1, 8], strides = [1, 1]} : vector<4x8xf32> to vector<1x8xf32>
    %39 = vector.shape_cast %38 : vector<1x8xf32> to vector<1x1x8xf32>
    %40 = vector.broadcast %39 : vector<1x1x8xf32> to vector<1x16x8xf32>
    %41 = arith.mulf %40, %37 : vector<1x16x8xf32>
    %42 = vector.extract_strided_slice %17 {offsets = [3, 0], sizes = [1, 8], strides = [1, 1]} : vector<4x8xf32> to vector<1x8xf32>
    %43 = vector.shape_cast %42 : vector<1x8xf32> to vector<1x1x8xf32>
    %44 = vector.broadcast %43 : vector<1x1x8xf32> to vector<1x16x8xf32>
    %45 = arith.addf %41, %44 : vector<1x16x8xf32>
    %cst_21 = arith.constant 0.000000e+00 : f32
    %46 = vector.broadcast %cst_21 : f32 to vector<1x16x8xf32>
    %47 = arith.cmpf ogt, %45, %46 : vector<1x16x8xf32>
    %cst_22 = arith.constant 2.000000e-01 : f32
    %48 = vector.broadcast %cst_22 : f32 to vector<1x16x8xf32>
    %49 = arith.mulf %48, %45 : vector<1x16x8xf32>
    %50 = arith.select %47, %45, %49 : vector<1x16x8xi1>, vector<1x16x8xf32>
    %51 = vector.broadcast %3 : f32 to vector<1x16x8xf32>
    %52 = arith.mulf %50, %51 : vector<1x16x8xf32>
    %c0_23 = arith.constant 0 : index
    %c1 = arith.constant 1 : index
    %c0_24 = arith.constant 0 : index
    %53 = vector.load %arg16[%c0_23, %c1, %c0_24] : memref<20x18x8xf32, #tpu.memory_space<vmem>>, vector<1x16x8xf32>
    tpu.vector_store %arg16[%c0_23, %c1, %c0_24], %52 {strides = array<i32>} : memref<20x18x8xf32, #tpu.memory_space<vmem>>, vector<1x16x8xf32>,
    %c0_25 = arith.constant 0 : index
    %c0_26 = arith.constant 0 : index
    %c0_27 = arith.constant 0 : index
    %c0_28 = arith.constant 0 : index
    %54 = vector.load %arg3[%c0_25, %c0_26, %c0_27, %c0_28] : memref<1x1x16x8xf32, #tpu.memory_space<vmem>>, vector<1x1x16x8xf32>
    %55 = vector.shape_cast %54 : vector<1x1x16x8xf32> to vector<1x16x8xf32>
    %56 = vector.extract_strided_slice %17 {offsets = [0, 0], sizes = [1, 8], strides = [1, 1]} : vector<4x8xf32> to vector<1x8xf32>
    %57 = vector.shape_cast %56 : vector<1x8xf32> to vector<1x1x8xf32>
    %58 = vector.broadcast %57 : vector<1x1x8xf32> to vector<1x16x8xf32>
    %59 = arith.mulf %58, %55 : vector<1x16x8xf32>
    %60 = vector.extract_strided_slice %17 {offsets = [1, 0], sizes = [1, 8], strides = [1, 1]} : vector<4x8xf32> to vector<1x8xf32>
    %61 = vector.shape_cast %60 : vector<1x8xf32> to vector<1x1x8xf32>
    %62 = vector.broadcast %61 : vector<1x1x8xf32> to vector<1x16x8xf32>
    %63 = arith.addf %59, %62 : vector<1x16x8xf32>
    %cst_29 = arith.constant 0.000000e+00 : f32
    %64 = vector.broadcast %cst_29 : f32 to vector<1x16x8xf32>
    %65 = arith.cmpf ogt, %63, %64 : vector<1x16x8xf32>
    %cst_30 = arith.constant 2.000000e-01 : f32
    %66 = vector.broadcast %cst_30 : f32 to vector<1x16x8xf32>
    %67 = arith.mulf %66, %63 : vector<1x16x8xf32>
    %68 = arith.select %65, %63, %67 : vector<1x16x8xi1>, vector<1x16x8xf32>
    %69 = vector.extract_strided_slice %17 {offsets = [2, 0], sizes = [1, 8], strides = [1, 1]} : vector<4x8xf32> to vector<1x8xf32>
    %70 = vector.shape_cast %69 : vector<1x8xf32> to vector<1x1x8xf32>
    %71 = vector.broadcast %70 : vector<1x1x8xf32> to vector<1x16x8xf32>
    %72 = arith.mulf %71, %68 : vector<1x16x8xf32>
    %73 = vector.extract_strided_slice %17 {offsets = [3, 0], sizes = [1, 8], strides = [1, 1]} : vector<4x8xf32> to vector<1x8xf32>
    %74 = vector.shape_cast %73 : vector<1x8xf32> to vector<1x1x8xf32>
    %75 = vector.broadcast %74 : vector<1x1x8xf32> to vector<1x16x8xf32>
    %76 = arith.addf %72, %75 : vector<1x16x8xf32>
    %cst_31 = arith.constant 0.000000e+00 : f32
    %77 = vector.broadcast %cst_31 : f32 to vector<1x16x8xf32>
    %78 = arith.cmpf ogt, %76, %77 : vector<1x16x8xf32>
    %cst_32 = arith.constant 2.000000e-01 : f32
    %79 = vector.broadcast %cst_32 : f32 to vector<1x16x8xf32>
    %80 = arith.mulf %79, %76 : vector<1x16x8xf32>
    %81 = arith.select %78, %76, %80 : vector<1x16x8xi1>, vector<1x16x8xf32>
    %82 = vector.broadcast %6 : f32 to vector<1x16x8xf32>
    %83 = arith.mulf %81, %82 : vector<1x16x8xf32>
    %c1_33 = arith.constant 1 : index
    %c1_34 = arith.constant 1 : index
    %c0_35 = arith.constant 0 : index
    %84 = vector.load %arg16[%c1_33, %c1_34, %c0_35] : memref<20x18x8xf32, #tpu.memory_space<vmem>>, vector<1x16x8xf32>
    tpu.vector_store %arg16[%c1_33, %c1_34, %c0_35], %83 {strides = array<i32>} : memref<20x18x8xf32, #tpu.memory_space<vmem>>, vector<1x16x8xf32>,
    %c0_36 = arith.constant 0 : index
    %c0_37 = arith.constant 0 : index
    %c0_38 = arith.constant 0 : index
    %c0_39 = arith.constant 0 : index
    %85 = vector.load %arg4[%c0_36, %c0_37, %c0_38, %c0_39] : memref<1x16x16x8xf32, #tpu.memory_space<vmem>>, vector<1x16x16x8xf32>
    %86 = vector.shape_cast %85 : vector<1x16x16x8xf32> to vector<16x16x8xf32>
    %87 = vector.extract_strided_slice %17 {offsets = [0, 0], sizes = [1, 8], strides = [1, 1]} : vector<4x8xf32> to vector<1x8xf32>
    %88 = vector.shape_cast %87 : vector<1x8xf32> to vector<1x1x8xf32>
    %89 = vector.broadcast %88 : vector<1x1x8xf32> to vector<16x16x8xf32>
    %90 = arith.mulf %89, %86 : vector<16x16x8xf32>
    %91 = vector.extract_strided_slice %17 {offsets = [1, 0], sizes = [1, 8], strides = [1, 1]} : vector<4x8xf32> to vector<1x8xf32>
    %92 = vector.shape_cast %91 : vector<1x8xf32> to vector<1x1x8xf32>
    %93 = vector.broadcast %92 : vector<1x1x8xf32> to vector<16x16x8xf32>
    %94 = arith.addf %90, %93 : vector<16x16x8xf32>
    %cst_40 = arith.constant 0.000000e+00 : f32
    %95 = vector.broadcast %cst_40 : f32 to vector<16x16x8xf32>
    %96 = arith.cmpf ogt, %94, %95 : vector<16x16x8xf32>
    %cst_41 = arith.constant 2.000000e-01 : f32
    %97 = vector.broadcast %cst_41 : f32 to vector<16x16x8xf32>
    %98 = arith.mulf %97, %94 : vector<16x16x8xf32>
    %99 = arith.select %96, %94, %98 : vector<16x16x8xi1>, vector<16x16x8xf32>
    %100 = vector.extract_strided_slice %17 {offsets = [2, 0], sizes = [1, 8], strides = [1, 1]} : vector<4x8xf32> to vector<1x8xf32>
    %101 = vector.shape_cast %100 : vector<1x8xf32> to vector<1x1x8xf32>
    %102 = vector.broadcast %101 : vector<1x1x8xf32> to vector<16x16x8xf32>
    %103 = arith.mulf %102, %99 : vector<16x16x8xf32>
    %104 = vector.extract_strided_slice %17 {offsets = [3, 0], sizes = [1, 8], strides = [1, 1]} : vector<4x8xf32> to vector<1x8xf32>
    %105 = vector.shape_cast %104 : vector<1x8xf32> to vector<1x1x8xf32>
    %106 = vector.broadcast %105 : vector<1x1x8xf32> to vector<16x16x8xf32>
    %107 = arith.addf %103, %106 : vector<16x16x8xf32>
    %cst_42 = arith.constant 0.000000e+00 : f32
    %108 = vector.broadcast %cst_42 : f32 to vector<16x16x8xf32>
    %109 = arith.cmpf ogt, %107, %108 : vector<16x16x8xf32>
    %cst_43 = arith.constant 2.000000e-01 : f32
    %110 = vector.broadcast %cst_43 : f32 to vector<16x16x8xf32>
    %111 = arith.mulf %110, %107 : vector<16x16x8xf32>
    %112 = arith.select %109, %107, %111 : vector<16x16x8xi1>, vector<16x16x8xf32>
    %c2 = arith.constant 2 : index
    %c1_44 = arith.constant 1 : index
    %c0_45 = arith.constant 0 : index
    %113 = vector.load %arg16[%c2, %c1_44, %c0_45] : memref<20x18x8xf32, #tpu.memory_space<vmem>>, vector<16x16x8xf32>
    tpu.vector_store %arg16[%c2, %c1_44, %c0_45], %112 {strides = array<i32>} : memref<20x18x8xf32, #tpu.memory_space<vmem>>, vector<16x16x8xf32>,
    %c0_46 = arith.constant 0 : index
    %c0_47 = arith.constant 0 : index
    %c0_48 = arith.constant 0 : index
    %c0_49 = arith.constant 0 : index
    %114 = vector.load %arg5[%c0_46, %c0_47, %c0_48, %c0_49] : memref<1x1x16x8xf32, #tpu.memory_space<vmem>>, vector<1x1x16x8xf32>
    %115 = vector.shape_cast %114 : vector<1x1x16x8xf32> to vector<1x16x8xf32>
    %116 = vector.extract_strided_slice %17 {offsets = [0, 0], sizes = [1, 8], strides = [1, 1]} : vector<4x8xf32> to vector<1x8xf32>
    %117 = vector.shape_cast %116 : vector<1x8xf32> to vector<1x1x8xf32>
    %118 = vector.broadcast %117 : vector<1x1x8xf32> to vector<1x16x8xf32>
    %119 = arith.mulf %118, %115 : vector<1x16x8xf32>
    %120 = vector.extract_strided_slice %17 {offsets = [1, 0], sizes = [1, 8], strides = [1, 1]} : vector<4x8xf32> to vector<1x8xf32>
    %121 = vector.shape_cast %120 : vector<1x8xf32> to vector<1x1x8xf32>
    %122 = vector.broadcast %121 : vector<1x1x8xf32> to vector<1x16x8xf32>
    %123 = arith.addf %119, %122 : vector<1x16x8xf32>
    %cst_50 = arith.constant 0.000000e+00 : f32
    %124 = vector.broadcast %cst_50 : f32 to vector<1x16x8xf32>
    %125 = arith.cmpf ogt, %123, %124 : vector<1x16x8xf32>
    %cst_51 = arith.constant 2.000000e-01 : f32
    %126 = vector.broadcast %cst_51 : f32 to vector<1x16x8xf32>
    %127 = arith.mulf %126, %123 : vector<1x16x8xf32>
    %128 = arith.select %125, %123, %127 : vector<1x16x8xi1>, vector<1x16x8xf32>
    %129 = vector.extract_strided_slice %17 {offsets = [2, 0], sizes = [1, 8], strides = [1, 1]} : vector<4x8xf32> to vector<1x8xf32>
    %130 = vector.shape_cast %129 : vector<1x8xf32> to vector<1x1x8xf32>
    %131 = vector.broadcast %130 : vector<1x1x8xf32> to vector<1x16x8xf32>
    %132 = arith.mulf %131, %128 : vector<1x16x8xf32>
    %133 = vector.extract_strided_slice %17 {offsets = [3, 0], sizes = [1, 8], strides = [1, 1]} : vector<4x8xf32> to vector<1x8xf32>
    %134 = vector.shape_cast %133 : vector<1x8xf32> to vector<1x1x8xf32>
    %135 = vector.broadcast %134 : vector<1x1x8xf32> to vector<1x16x8xf32>
    %136 = arith.addf %132, %135 : vector<1x16x8xf32>
    %cst_52 = arith.constant 0.000000e+00 : f32
    %137 = vector.broadcast %cst_52 : f32 to vector<1x16x8xf32>
    %138 = arith.cmpf ogt, %136, %137 : vector<1x16x8xf32>
    %cst_53 = arith.constant 2.000000e-01 : f32
    %139 = vector.broadcast %cst_53 : f32 to vector<1x16x8xf32>
    %140 = arith.mulf %139, %136 : vector<1x16x8xf32>
    %141 = arith.select %138, %136, %140 : vector<1x16x8xi1>, vector<1x16x8xf32>
    %142 = vector.broadcast %10 : f32 to vector<1x16x8xf32>
    %143 = arith.mulf %141, %142 : vector<1x16x8xf32>
    %c18 = arith.constant 18 : index
    %c1_54 = arith.constant 1 : index
    %c0_55 = arith.constant 0 : index
    %144 = vector.load %arg16[%c18, %c1_54, %c0_55] : memref<20x18x8xf32, #tpu.memory_space<vmem>>, vector<1x16x8xf32>
    tpu.vector_store %arg16[%c18, %c1_54, %c0_55], %143 {strides = array<i32>} : memref<20x18x8xf32, #tpu.memory_space<vmem>>, vector<1x16x8xf32>,
    %c0_56 = arith.constant 0 : index
    %c0_57 = arith.constant 0 : index
    %c0_58 = arith.constant 0 : index
    %c0_59 = arith.constant 0 : index
    %145 = vector.load %arg6[%c0_56, %c0_57, %c0_58, %c0_59] : memref<1x1x16x8xf32, #tpu.memory_space<vmem>>, vector<1x1x16x8xf32>
    %146 = vector.shape_cast %145 : vector<1x1x16x8xf32> to vector<1x16x8xf32>
    %147 = vector.extract_strided_slice %17 {offsets = [0, 0], sizes = [1, 8], strides = [1, 1]} : vector<4x8xf32> to vector<1x8xf32>
    %148 = vector.shape_cast %147 : vector<1x8xf32> to vector<1x1x8xf32>
    %149 = vector.broadcast %148 : vector<1x1x8xf32> to vector<1x16x8xf32>
    %150 = arith.mulf %149, %146 : vector<1x16x8xf32>
    %151 = vector.extract_strided_slice %17 {offsets = [1, 0], sizes = [1, 8], strides = [1, 1]} : vector<4x8xf32> to vector<1x8xf32>
    %152 = vector.shape_cast %151 : vector<1x8xf32> to vector<1x1x8xf32>
    %153 = vector.broadcast %152 : vector<1x1x8xf32> to vector<1x16x8xf32>
    %154 = arith.addf %150, %153 : vector<1x16x8xf32>
    %cst_60 = arith.constant 0.000000e+00 : f32
    %155 = vector.broadcast %cst_60 : f32 to vector<1x16x8xf32>
    %156 = arith.cmpf ogt, %154, %155 : vector<1x16x8xf32>
    %cst_61 = arith.constant 2.000000e-01 : f32
    %157 = vector.broadcast %cst_61 : f32 to vector<1x16x8xf32>
    %158 = arith.mulf %157, %154 : vector<1x16x8xf32>
    %159 = arith.select %156, %154, %158 : vector<1x16x8xi1>, vector<1x16x8xf32>
    %160 = vector.extract_strided_slice %17 {offsets = [2, 0], sizes = [1, 8], strides = [1, 1]} : vector<4x8xf32> to vector<1x8xf32>
    %161 = vector.shape_cast %160 : vector<1x8xf32> to vector<1x1x8xf32>
    %162 = vector.broadcast %161 : vector<1x1x8xf32> to vector<1x16x8xf32>
    %163 = arith.mulf %162, %159 : vector<1x16x8xf32>
    %164 = vector.extract_strided_slice %17 {offsets = [3, 0], sizes = [1, 8], strides = [1, 1]} : vector<4x8xf32> to vector<1x8xf32>
    %165 = vector.shape_cast %164 : vector<1x8xf32> to vector<1x1x8xf32>
    %166 = vector.broadcast %165 : vector<1x1x8xf32> to vector<1x16x8xf32>
    %167 = arith.addf %163, %166 : vector<1x16x8xf32>
    %cst_62 = arith.constant 0.000000e+00 : f32
    %168 = vector.broadcast %cst_62 : f32 to vector<1x16x8xf32>
    %169 = arith.cmpf ogt, %167, %168 : vector<1x16x8xf32>
    %cst_63 = arith.constant 2.000000e-01 : f32
    %170 = vector.broadcast %cst_63 : f32 to vector<1x16x8xf32>
    %171 = arith.mulf %170, %167 : vector<1x16x8xf32>
    %172 = arith.select %169, %167, %171 : vector<1x16x8xi1>, vector<1x16x8xf32>
    %173 = vector.broadcast %15 : f32 to vector<1x16x8xf32>
    %174 = arith.mulf %172, %173 : vector<1x16x8xf32>
    %c19 = arith.constant 19 : index
    %c1_64 = arith.constant 1 : index
    %c0_65 = arith.constant 0 : index
    %175 = vector.load %arg16[%c19, %c1_64, %c0_65] : memref<20x18x8xf32, #tpu.memory_space<vmem>>, vector<1x16x8xf32>
    tpu.vector_store %arg16[%c19, %c1_64, %c0_65], %174 {strides = array<i32>} : memref<20x18x8xf32, #tpu.memory_space<vmem>>, vector<1x16x8xf32>,
    %c0_66 = arith.constant 0 : index
    %c0_67 = arith.constant 0 : index
    %c0_68 = arith.constant 0 : index
    %176 = vector.load %arg16[%c0_66, %c0_67, %c0_68] : memref<20x18x8xf32, #tpu.memory_space<vmem>>, vector<18x16x8xf32>
    %177 = vector.shape_cast %176 : vector<18x16x8xf32> to vector<288x8xf32>
    %c0_69 = arith.constant 0 : index
    %c0_70 = arith.constant 0 : index
    %178 = vector.load %arg17[%c0_69, %c0_70] : memref<288x72xf32, #tpu.memory_space<vmem>>, vector<288x8xf32>
    tpu.vector_store %arg17[%c0_69, %c0_70], %177 {strides = array<i32>} : memref<288x72xf32, #tpu.memory_space<vmem>>, vector<288x8xf32>,
    %c0_71 = arith.constant 0 : index
    %c1_72 = arith.constant 1 : index
    %c0_73 = arith.constant 0 : index
    %179 = vector.load %arg16[%c0_71, %c1_72, %c0_73] : memref<20x18x8xf32, #tpu.memory_space<vmem>>, vector<18x16x8xf32>
    %180 = vector.shape_cast %179 : vector<18x16x8xf32> to vector<288x8xf32>
    %c0_74 = arith.constant 0 : index
    %c8 = arith.constant 8 : index
    %181 = vector.load %arg17[%c0_74, %c8] : memref<288x72xf32, #tpu.memory_space<vmem>>, vector<288x8xf32>
    tpu.vector_store %arg17[%c0_74, %c8], %180 {strides = array<i32>} : memref<288x72xf32, #tpu.memory_space<vmem>>, vector<288x8xf32>,
    %c0_75 = arith.constant 0 : index
    %c2_76 = arith.constant 2 : index
    %c0_77 = arith.constant 0 : index
    %182 = vector.load %arg16[%c0_75, %c2_76, %c0_77] : memref<20x18x8xf32, #tpu.memory_space<vmem>>, vector<18x16x8xf32>
    %183 = vector.shape_cast %182 : vector<18x16x8xf32> to vector<288x8xf32>
    %c0_78 = arith.constant 0 : index
    %c16 = arith.constant 16 : index
    %184 = vector.load %arg17[%c0_78, %c16] : memref<288x72xf32, #tpu.memory_space<vmem>>, vector<288x8xf32>
    tpu.vector_store %arg17[%c0_78, %c16], %183 {strides = array<i32>} : memref<288x72xf32, #tpu.memory_space<vmem>>, vector<288x8xf32>,
    %c1_79 = arith.constant 1 : index
    %c0_80 = arith.constant 0 : index
    %c0_81 = arith.constant 0 : index
    %185 = vector.load %arg16[%c1_79, %c0_80, %c0_81] : memref<20x18x8xf32, #tpu.memory_space<vmem>>, vector<18x16x8xf32>
    %186 = vector.shape_cast %185 : vector<18x16x8xf32> to vector<288x8xf32>
    %c0_82 = arith.constant 0 : index
    %c24 = arith.constant 24 : index
    %187 = vector.load %arg17[%c0_82, %c24] : memref<288x72xf32, #tpu.memory_space<vmem>>, vector<288x8xf32>
    tpu.vector_store %arg17[%c0_82, %c24], %186 {strides = array<i32>} : memref<288x72xf32, #tpu.memory_space<vmem>>, vector<288x8xf32>,
    %c1_83 = arith.constant 1 : index
    %c1_84 = arith.constant 1 : index
    %c0_85 = arith.constant 0 : index
    %188 = vector.load %arg16[%c1_83, %c1_84, %c0_85] : memref<20x18x8xf32, #tpu.memory_space<vmem>>, vector<18x16x8xf32>
    %189 = vector.shape_cast %188 : vector<18x16x8xf32> to vector<288x8xf32>
    %c0_86 = arith.constant 0 : index
    %c32 = arith.constant 32 : index
    %190 = vector.load %arg17[%c0_86, %c32] : memref<288x72xf32, #tpu.memory_space<vmem>>, vector<288x8xf32>
    tpu.vector_store %arg17[%c0_86, %c32], %189 {strides = array<i32>} : memref<288x72xf32, #tpu.memory_space<vmem>>, vector<288x8xf32>,
    %c1_87 = arith.constant 1 : index
    %c2_88 = arith.constant 2 : index
    %c0_89 = arith.constant 0 : index
    %191 = vector.load %arg16[%c1_87, %c2_88, %c0_89] : memref<20x18x8xf32, #tpu.memory_space<vmem>>, vector<18x16x8xf32>
    %192 = vector.shape_cast %191 : vector<18x16x8xf32> to vector<288x8xf32>
    %c0_90 = arith.constant 0 : index
    %c40 = arith.constant 40 : index
    %193 = vector.load %arg17[%c0_90, %c40] : memref<288x72xf32, #tpu.memory_space<vmem>>, vector<288x8xf32>
    tpu.vector_store %arg17[%c0_90, %c40], %192 {strides = array<i32>} : memref<288x72xf32, #tpu.memory_space<vmem>>, vector<288x8xf32>,
    %c2_91 = arith.constant 2 : index
    %c0_92 = arith.constant 0 : index
    %c0_93 = arith.constant 0 : index
    %194 = vector.load %arg16[%c2_91, %c0_92, %c0_93] : memref<20x18x8xf32, #tpu.memory_space<vmem>>, vector<18x16x8xf32>
    %195 = vector.shape_cast %194 : vector<18x16x8xf32> to vector<288x8xf32>
    %c0_94 = arith.constant 0 : index
    %c48 = arith.constant 48 : index
    %196 = vector.load %arg17[%c0_94, %c48] : memref<288x72xf32, #tpu.memory_space<vmem>>, vector<288x8xf32>
    tpu.vector_store %arg17[%c0_94, %c48], %195 {strides = array<i32>} : memref<288x72xf32, #tpu.memory_space<vmem>>, vector<288x8xf32>,
    %c2_95 = arith.constant 2 : index
    %c1_96 = arith.constant 1 : index
    %c0_97 = arith.constant 0 : index
    %197 = vector.load %arg16[%c2_95, %c1_96, %c0_97] : memref<20x18x8xf32, #tpu.memory_space<vmem>>, vector<18x16x8xf32>
    %198 = vector.shape_cast %197 : vector<18x16x8xf32> to vector<288x8xf32>
    %c0_98 = arith.constant 0 : index
    %c56 = arith.constant 56 : index
    %199 = vector.load %arg17[%c0_98, %c56] : memref<288x72xf32, #tpu.memory_space<vmem>>, vector<288x8xf32>
    tpu.vector_store %arg17[%c0_98, %c56], %198 {strides = array<i32>} : memref<288x72xf32, #tpu.memory_space<vmem>>, vector<288x8xf32>,
    %c2_99 = arith.constant 2 : index
    %c2_100 = arith.constant 2 : index
    %c0_101 = arith.constant 0 : index
    %200 = vector.load %arg16[%c2_99, %c2_100, %c0_101] : memref<20x18x8xf32, #tpu.memory_space<vmem>>, vector<18x16x8xf32>
    %201 = vector.shape_cast %200 : vector<18x16x8xf32> to vector<288x8xf32>
    %c0_102 = arith.constant 0 : index
    %c64 = arith.constant 64 : index
    %202 = vector.load %arg17[%c0_102, %c64] : memref<288x72xf32, #tpu.memory_space<vmem>>, vector<288x8xf32>
    tpu.vector_store %arg17[%c0_102, %c64], %201 {strides = array<i32>} : memref<288x72xf32, #tpu.memory_space<vmem>>, vector<288x8xf32>,
    %c0_103 = arith.constant 0 : index
    %c0_104 = arith.constant 0 : index
    %203 = vector.load %arg17[%c0_103, %c0_104] : memref<288x72xf32, #tpu.memory_space<vmem>>, vector<288x72xf32>
    %c0_105 = arith.constant 0 : index
    %c0_106 = arith.constant 0 : index
    %204 = vector.load %arg9[%c0_105, %c0_106] : memref<72x16xf32, #tpu.memory_space<vmem>>, vector<72x16xf32>
    %cst_107 = arith.constant dense<0.000000e+00> : vector<288x16xf32>
    %205 = tpu.matmul %203, %204, %cst_107 {dimension_numbers = #tpu.dot_dimension_numbers<[1], [0], [0], [1], [0, 0, 1, 1], [], []>} : vector<288x72xf32>, vector<72x16xf32>, vector<288x16xf32> -> vector<288x16xf32>
    %c0_108 = arith.constant 0 : index
    %c0_109 = arith.constant 0 : index
    %206 = vector.load %arg10[%c0_108, %c0_109] : memref<1x16xf32, #tpu.memory_space<vmem>>, vector<1x16xf32>
    %207 = vector.broadcast %206 : vector<1x16xf32> to vector<288x16xf32>
    %208 = arith.addf %205, %207 : vector<288x16xf32>
    %209 = vector.extract_strided_slice %19 {offsets = [0, 0], sizes = [1, 16], strides = [1, 1]} : vector<4x16xf32> to vector<1x16xf32>
    %210 = vector.broadcast %209 : vector<1x16xf32> to vector<288x16xf32>
    %211 = arith.mulf %210, %208 : vector<288x16xf32>
    %212 = vector.extract_strided_slice %19 {offsets = [1, 0], sizes = [1, 16], strides = [1, 1]} : vector<4x16xf32> to vector<1x16xf32>
    %213 = vector.broadcast %212 : vector<1x16xf32> to vector<288x16xf32>
    %214 = arith.addf %211, %213 : vector<288x16xf32>
    %cst_110 = arith.constant 0.000000e+00 : f32
    %215 = vector.broadcast %cst_110 : f32 to vector<288x16xf32>
    %216 = arith.cmpf ogt, %214, %215 : vector<288x16xf32>
    %cst_111 = arith.constant 2.000000e-01 : f32
    %217 = vector.broadcast %cst_111 : f32 to vector<288x16xf32>
    %218 = arith.mulf %217, %214 : vector<288x16xf32>
    %219 = arith.select %216, %214, %218 : vector<288x16xi1>, vector<288x16xf32>
    %220 = vector.extract_strided_slice %19 {offsets = [2, 0], sizes = [1, 16], strides = [1, 1]} : vector<4x16xf32> to vector<1x16xf32>
    %221 = vector.broadcast %220 : vector<1x16xf32> to vector<288x16xf32>
    %222 = arith.mulf %221, %219 : vector<288x16xf32>
    %223 = vector.extract_strided_slice %19 {offsets = [3, 0], sizes = [1, 16], strides = [1, 1]} : vector<4x16xf32> to vector<1x16xf32>
    %224 = vector.broadcast %223 : vector<1x16xf32> to vector<288x16xf32>
    %225 = arith.addf %222, %224 : vector<288x16xf32>
    %cst_112 = arith.constant 0.000000e+00 : f32
    %226 = vector.broadcast %cst_112 : f32 to vector<288x16xf32>
    %227 = arith.cmpf ogt, %225, %226 : vector<288x16xf32>
    %cst_113 = arith.constant 2.000000e-01 : f32
    %228 = vector.broadcast %cst_113 : f32 to vector<288x16xf32>
    %229 = arith.mulf %228, %225 : vector<288x16xf32>
    %230 = arith.select %227, %225, %229 : vector<288x16xi1>, vector<288x16xf32>
    %231 = vector.shape_cast %230 : vector<288x16xf32> to vector<18x16x16xf32>
    %cst_114 = arith.constant 0.000000e+00 : f32
    %232 = vector.broadcast %cst_114 : f32 to vector<18x1x16xf32>
    %c0_115 = arith.constant 0 : index
    %c0_116 = arith.constant 0 : index
    %c0_117 = arith.constant 0 : index
    %233 = vector.load %arg18[%c0_115, %c0_116, %c0_117] : memref<18x18x16xf32, #tpu.memory_space<vmem>>, vector<18x1x16xf32>
    tpu.vector_store %arg18[%c0_115, %c0_116, %c0_117], %232 {strides = array<i32>} : memref<18x18x16xf32, #tpu.memory_space<vmem>>, vector<18x1x16xf32>,
    %c0_118 = arith.constant 0 : index
    %c17_119 = arith.constant 17 : index
    %c0_120 = arith.constant 0 : index
    %234 = vector.load %arg18[%c0_118, %c17_119, %c0_120] : memref<18x18x16xf32, #tpu.memory_space<vmem>>, vector<18x1x16xf32>
    tpu.vector_store %arg18[%c0_118, %c17_119, %c0_120], %232 {strides = array<i32>} : memref<18x18x16xf32, #tpu.memory_space<vmem>>, vector<18x1x16xf32>,
    %235 = vector.extract_strided_slice %231 {offsets = [0, 0, 0], sizes = [1, 16, 16], strides = [1, 1, 1]} : vector<18x16x16xf32> to vector<1x16x16xf32>
    %236 = vector.broadcast %6 : f32 to vector<1x16x16xf32>
    %237 = arith.mulf %235, %236 : vector<1x16x16xf32>
    %c0_121 = arith.constant 0 : index
    %c1_122 = arith.constant 1 : index
    %c0_123 = arith.constant 0 : index
    %238 = vector.load %arg18[%c0_121, %c1_122, %c0_123] : memref<18x18x16xf32, #tpu.memory_space<vmem>>, vector<1x16x16xf32>
    tpu.vector_store %arg18[%c0_121, %c1_122, %c0_123], %237 {strides = array<i32>} : memref<18x18x16xf32, #tpu.memory_space<vmem>>, vector<1x16x16xf32>,
    %239 = vector.extract_strided_slice %231 {offsets = [1, 0, 0], sizes = [16, 16, 16], strides = [1, 1, 1]} : vector<18x16x16xf32> to vector<16x16x16xf32>
    %c1_124 = arith.constant 1 : index
    %c1_125 = arith.constant 1 : index
    %c0_126 = arith.constant 0 : index
    %240 = vector.load %arg18[%c1_124, %c1_125, %c0_126] : memref<18x18x16xf32, #tpu.memory_space<vmem>>, vector<16x16x16xf32>
    tpu.vector_store %arg18[%c1_124, %c1_125, %c0_126], %239 {strides = array<i32>} : memref<18x18x16xf32, #tpu.memory_space<vmem>>, vector<16x16x16xf32>,
    %241 = vector.extract_strided_slice %231 {offsets = [17, 0, 0], sizes = [1, 16, 16], strides = [1, 1, 1]} : vector<18x16x16xf32> to vector<1x16x16xf32>
    %242 = vector.broadcast %10 : f32 to vector<1x16x16xf32>
    %243 = arith.mulf %241, %242 : vector<1x16x16xf32>
    %c17_127 = arith.constant 17 : index
    %c1_128 = arith.constant 1 : index
    %c0_129 = arith.constant 0 : index
    %244 = vector.load %arg18[%c17_127, %c1_128, %c0_129] : memref<18x18x16xf32, #tpu.memory_space<vmem>>, vector<1x16x16xf32>
    tpu.vector_store %arg18[%c17_127, %c1_128, %c0_129], %243 {strides = array<i32>} : memref<18x18x16xf32, #tpu.memory_space<vmem>>, vector<1x16x16xf32>,
    %c0_130 = arith.constant 0 : index
    %c0_131 = arith.constant 0 : index
    %c0_132 = arith.constant 0 : index
    %245 = vector.load %arg18[%c0_130, %c0_131, %c0_132] : memref<18x18x16xf32, #tpu.memory_space<vmem>>, vector<16x16x16xf32>
    %246 = vector.shape_cast %245 : vector<16x16x16xf32> to vector<256x16xf32>
    %c0_133 = arith.constant 0 : index
    %c0_134 = arith.constant 0 : index
    %247 = vector.load %arg19[%c0_133, %c0_134] : memref<256x144xf32, #tpu.memory_space<vmem>>, vector<256x16xf32>
    tpu.vector_store %arg19[%c0_133, %c0_134], %246 {strides = array<i32>} : memref<256x144xf32, #tpu.memory_space<vmem>>, vector<256x16xf32>,
    %c0_135 = arith.constant 0 : index
    %c1_136 = arith.constant 1 : index
    %c0_137 = arith.constant 0 : index
    %248 = vector.load %arg18[%c0_135, %c1_136, %c0_137] : memref<18x18x16xf32, #tpu.memory_space<vmem>>, vector<16x16x16xf32>
    %249 = vector.shape_cast %248 : vector<16x16x16xf32> to vector<256x16xf32>
    %c0_138 = arith.constant 0 : index
    %c16_139 = arith.constant 16 : index
    %250 = vector.load %arg19[%c0_138, %c16_139] : memref<256x144xf32, #tpu.memory_space<vmem>>, vector<256x16xf32>
    tpu.vector_store %arg19[%c0_138, %c16_139], %249 {strides = array<i32>} : memref<256x144xf32, #tpu.memory_space<vmem>>, vector<256x16xf32>,
    %c0_140 = arith.constant 0 : index
    %c2_141 = arith.constant 2 : index
    %c0_142 = arith.constant 0 : index
    %251 = vector.load %arg18[%c0_140, %c2_141, %c0_142] : memref<18x18x16xf32, #tpu.memory_space<vmem>>, vector<16x16x16xf32>
    %252 = vector.shape_cast %251 : vector<16x16x16xf32> to vector<256x16xf32>
    %c0_143 = arith.constant 0 : index
    %c32_144 = arith.constant 32 : index
    %253 = vector.load %arg19[%c0_143, %c32_144] : memref<256x144xf32, #tpu.memory_space<vmem>>, vector<256x16xf32>
    tpu.vector_store %arg19[%c0_143, %c32_144], %252 {strides = array<i32>} : memref<256x144xf32, #tpu.memory_space<vmem>>, vector<256x16xf32>,
    %c1_145 = arith.constant 1 : index
    %c0_146 = arith.constant 0 : index
    %c0_147 = arith.constant 0 : index
    %254 = vector.load %arg18[%c1_145, %c0_146, %c0_147] : memref<18x18x16xf32, #tpu.memory_space<vmem>>, vector<16x16x16xf32>
    %255 = vector.shape_cast %254 : vector<16x16x16xf32> to vector<256x16xf32>
    %c0_148 = arith.constant 0 : index
    %c48_149 = arith.constant 48 : index
    %256 = vector.load %arg19[%c0_148, %c48_149] : memref<256x144xf32, #tpu.memory_space<vmem>>, vector<256x16xf32>
    tpu.vector_store %arg19[%c0_148, %c48_149], %255 {strides = array<i32>} : memref<256x144xf32, #tpu.memory_space<vmem>>, vector<256x16xf32>,
    %c1_150 = arith.constant 1 : index
    %c1_151 = arith.constant 1 : index
    %c0_152 = arith.constant 0 : index
    %257 = vector.load %arg18[%c1_150, %c1_151, %c0_152] : memref<18x18x16xf32, #tpu.memory_space<vmem>>, vector<16x16x16xf32>
    %258 = vector.shape_cast %257 : vector<16x16x16xf32> to vector<256x16xf32>
    %c0_153 = arith.constant 0 : index
    %c64_154 = arith.constant 64 : index
    %259 = vector.load %arg19[%c0_153, %c64_154] : memref<256x144xf32, #tpu.memory_space<vmem>>, vector<256x16xf32>
    tpu.vector_store %arg19[%c0_153, %c64_154], %258 {strides = array<i32>} : memref<256x144xf32, #tpu.memory_space<vmem>>, vector<256x16xf32>,
    %c1_155 = arith.constant 1 : index
    %c2_156 = arith.constant 2 : index
    %c0_157 = arith.constant 0 : index
    %260 = vector.load %arg18[%c1_155, %c2_156, %c0_157] : memref<18x18x16xf32, #tpu.memory_space<vmem>>, vector<16x16x16xf32>
    %261 = vector.shape_cast %260 : vector<16x16x16xf32> to vector<256x16xf32>
    %c0_158 = arith.constant 0 : index
    %c80 = arith.constant 80 : index
    %262 = vector.load %arg19[%c0_158, %c80] : memref<256x144xf32, #tpu.memory_space<vmem>>, vector<256x16xf32>
    tpu.vector_store %arg19[%c0_158, %c80], %261 {strides = array<i32>} : memref<256x144xf32, #tpu.memory_space<vmem>>, vector<256x16xf32>,
    %c2_159 = arith.constant 2 : index
    %c0_160 = arith.constant 0 : index
    %c0_161 = arith.constant 0 : index
    %263 = vector.load %arg18[%c2_159, %c0_160, %c0_161] : memref<18x18x16xf32, #tpu.memory_space<vmem>>, vector<16x16x16xf32>
    %264 = vector.shape_cast %263 : vector<16x16x16xf32> to vector<256x16xf32>
    %c0_162 = arith.constant 0 : index
    %c96 = arith.constant 96 : index
    %265 = vector.load %arg19[%c0_162, %c96] : memref<256x144xf32, #tpu.memory_space<vmem>>, vector<256x16xf32>
    tpu.vector_store %arg19[%c0_162, %c96], %264 {strides = array<i32>} : memref<256x144xf32, #tpu.memory_space<vmem>>, vector<256x16xf32>,
    %c2_163 = arith.constant 2 : index
    %c1_164 = arith.constant 1 : index
    %c0_165 = arith.constant 0 : index
    %266 = vector.load %arg18[%c2_163, %c1_164, %c0_165] : memref<18x18x16xf32, #tpu.memory_space<vmem>>, vector<16x16x16xf32>
    %267 = vector.shape_cast %266 : vector<16x16x16xf32> to vector<256x16xf32>
    %c0_166 = arith.constant 0 : index
    %c112 = arith.constant 112 : index
    %268 = vector.load %arg19[%c0_166, %c112] : memref<256x144xf32, #tpu.memory_space<vmem>>, vector<256x16xf32>
    tpu.vector_store %arg19[%c0_166, %c112], %267 {strides = array<i32>} : memref<256x144xf32, #tpu.memory_space<vmem>>, vector<256x16xf32>,
    %c2_167 = arith.constant 2 : index
    %c2_168 = arith.constant 2 : index
    %c0_169 = arith.constant 0 : index
    %269 = vector.load %arg18[%c2_167, %c2_168, %c0_169] : memref<18x18x16xf32, #tpu.memory_space<vmem>>, vector<16x16x16xf32>
    %270 = vector.shape_cast %269 : vector<16x16x16xf32> to vector<256x16xf32>
    %c0_170 = arith.constant 0 : index
    %c128 = arith.constant 128 : index
    %271 = vector.load %arg19[%c0_170, %c128] : memref<256x144xf32, #tpu.memory_space<vmem>>, vector<256x16xf32>
    tpu.vector_store %arg19[%c0_170, %c128], %270 {strides = array<i32>} : memref<256x144xf32, #tpu.memory_space<vmem>>, vector<256x16xf32>,
    %c0_171 = arith.constant 0 : index
    %c0_172 = arith.constant 0 : index
    %272 = vector.load %arg19[%c0_171, %c0_172] : memref<256x144xf32, #tpu.memory_space<vmem>>, vector<256x144xf32>
    %c0_173 = arith.constant 0 : index
    %c0_174 = arith.constant 0 : index
    %273 = vector.load %arg11[%c0_173, %c0_174] : memref<144x16xf32, #tpu.memory_space<vmem>>, vector<144x16xf32>
    %cst_175 = arith.constant dense<0.000000e+00> : vector<256x16xf32>
    %274 = tpu.matmul %272, %273, %cst_175 {dimension_numbers = #tpu.dot_dimension_numbers<[1], [0], [0], [1], [0, 0, 1, 1], [], []>} : vector<256x144xf32>, vector<144x16xf32>, vector<256x16xf32> -> vector<256x16xf32>
    %c0_176 = arith.constant 0 : index
    %c0_177 = arith.constant 0 : index
    %275 = vector.load %arg12[%c0_176, %c0_177] : memref<1x16xf32, #tpu.memory_space<vmem>>, vector<1x16xf32>
    %276 = vector.broadcast %275 : vector<1x16xf32> to vector<256x16xf32>
    %277 = arith.addf %274, %276 : vector<256x16xf32>
    %c0_178 = arith.constant 0 : index
    %c0_179 = arith.constant 0 : index
    %c0_180 = arith.constant 0 : index
    %c0_181 = arith.constant 0 : index
    %278 = vector.load %arg4[%c0_178, %c0_179, %c0_180, %c0_181] : memref<1x16x16x8xf32, #tpu.memory_space<vmem>>, vector<1x16x16x8xf32>
    %279 = vector.shape_cast %278 : vector<1x16x16x8xf32> to vector<16x16x8xf32>
    %280 = vector.shape_cast %279 : vector<16x16x8xf32> to vector<256x8xf32>
    %c0_182 = arith.constant 0 : index
    %c0_183 = arith.constant 0 : index
    %281 = vector.load %arg13[%c0_182, %c0_183] : memref<8x16xf32, #tpu.memory_space<vmem>>, vector<8x16xf32>
    %cst_184 = arith.constant dense<0.000000e+00> : vector<256x16xf32>
    %282 = tpu.matmul %280, %281, %cst_184 {dimension_numbers = #tpu.dot_dimension_numbers<[1], [0], [0], [1], [0, 0, 1, 1], [], []>} : vector<256x8xf32>, vector<8x16xf32>, vector<256x16xf32> -> vector<256x16xf32>
    %283 = arith.addf %277, %282 : vector<256x16xf32>
    %c0_185 = arith.constant 0 : index
    %c0_186 = arith.constant 0 : index
    %284 = vector.load %arg14[%c0_185, %c0_186] : memref<1x16xf32, #tpu.memory_space<vmem>>, vector<1x16xf32>
    %285 = vector.broadcast %284 : vector<1x16xf32> to vector<256x16xf32>
    %286 = arith.addf %283, %285 : vector<256x16xf32>
    %287 = tpu.transpose %286, [1, 0] : vector<256x16xf32> -> vector<16x256xf32>
    %c0_187 = arith.constant 0 : index
    %c0_188 = arith.constant 0 : index
    %c0_189 = arith.constant 0 : index
    %288 = vector.load %arg15[%c0_187, %c0_188, %c0_189] : memref<1x16x256xf32, #tpu.memory_space<vmem>>, vector<1x16x256xf32>
    %289 = vector.shape_cast %288 : vector<1x16x256xf32> to vector<16x256xf32>
    %290 = vector.shape_cast %287 : vector<16x256xf32> to vector<1x16x256xf32>
    tpu.vector_store %arg15[%c0_187, %c0_188, %c0_189], %290 {strides = array<i32>} : memref<1x16x256xf32, #tpu.memory_space<vmem>>, vector<1x16x256xf32>,
    return
  }
  func.func @transform_0(%arg0: i32, %arg1: i32) -> (i32, i32, i32, i32) {
    %c16_i32 = arith.constant 16 : i32
    %0 = arith.muli %arg1, %c16_i32 : i32
    %c2_i32 = arith.constant 2 : i32
    %1 = arith.subi %0, %c2_i32 : i32
    %c0_i32 = arith.constant 0 : i32
    %2 = arith.maxsi %1, %c0_i32 : i32
    %c0_i32_0 = arith.constant 0 : i32
    %c0_i32_1 = arith.constant 0 : i32
    %c0_i32_2 = arith.constant 0 : i32
    return %arg0, %2, %c0_i32_0, %c0_i32_1 : i32, i32, i32, i32
  }
  func.func @transform_1(%arg0: i32, %arg1: i32) -> (i32, i32, i32, i32) {
    %c16_i32 = arith.constant 16 : i32
    %0 = arith.muli %arg1, %c16_i32 : i32
    %c1_i32 = arith.constant 1 : i32
    %1 = arith.subi %0, %c1_i32 : i32
    %c0_i32 = arith.constant 0 : i32
    %2 = arith.maxsi %1, %c0_i32 : i32
    %c0_i32_0 = arith.constant 0 : i32
    %c0_i32_1 = arith.constant 0 : i32
    %c0_i32_2 = arith.constant 0 : i32
    return %arg0, %2, %c0_i32_0, %c0_i32_1 : i32, i32, i32, i32
  }
  func.func @transform_2(%arg0: i32, %arg1: i32) -> (i32, i32, i32, i32) {
    %c0_i32 = arith.constant 0 : i32
    %c0_i32_0 = arith.constant 0 : i32
    %c0_i32_1 = arith.constant 0 : i32
    return %arg0, %arg1, %c0_i32, %c0_i32_0 : i32, i32, i32, i32
  }
  func.func @transform_3(%arg0: i32, %arg1: i32) -> (i32, i32, i32, i32) {
    %c1_i32 = arith.constant 1 : i32
    %0 = arith.addi %arg1, %c1_i32 : i32
    %c16_i32 = arith.constant 16 : i32
    %1 = arith.muli %0, %c16_i32 : i32
    %c15_i32 = arith.constant 15 : i32
    %2 = arith.minsi %1, %c15_i32 : i32
    %c0_i32 = arith.constant 0 : i32
    %c0_i32_0 = arith.constant 0 : i32
    %c0_i32_1 = arith.constant 0 : i32
    return %arg0, %2, %c0_i32, %c0_i32_0 : i32, i32, i32, i32
  }
  func.func @transform_4(%arg0: i32, %arg1: i32) -> (i32, i32, i32, i32) {
    %c1_i32 = arith.constant 1 : i32
    %0 = arith.addi %arg1, %c1_i32 : i32
    %c16_i32 = arith.constant 16 : i32
    %1 = arith.muli %0, %c16_i32 : i32
    %c1_i32_0 = arith.constant 1 : i32
    %2 = arith.addi %1, %c1_i32_0 : i32
    %c15_i32 = arith.constant 15 : i32
    %3 = arith.minsi %2, %c15_i32 : i32
    %c0_i32 = arith.constant 0 : i32
    %c0_i32_1 = arith.constant 0 : i32
    %c0_i32_2 = arith.constant 0 : i32
    return %arg0, %3, %c0_i32, %c0_i32_1 : i32, i32, i32, i32
  }
  func.func @transform_5(%arg0: i32, %arg1: i32) -> (i32, i32, i32) {
    %c0_i32 = arith.constant 0 : i32
    %c0_i32_0 = arith.constant 0 : i32
    %c0_i32_1 = arith.constant 0 : i32
    return %arg0, %c0_i32, %c0_i32_0 : i32, i32, i32
  }
  func.func @transform_6(%arg0: i32, %arg1: i32) -> (i32, i32, i32) {
    %c0_i32 = arith.constant 0 : i32
    %c0_i32_0 = arith.constant 0 : i32
    %c0_i32_1 = arith.constant 0 : i32
    return %arg0, %c0_i32, %c0_i32_0 : i32, i32, i32
  }
  func.func @transform_7(%arg0: i32, %arg1: i32) -> (i32, i32) {
    %c0_i32 = arith.constant 0 : i32
    %c0_i32_0 = arith.constant 0 : i32
    %c0_i32_1 = arith.constant 0 : i32
    return %c0_i32, %c0_i32_0 : i32, i32
  }
  func.func @transform_8(%arg0: i32, %arg1: i32) -> (i32, i32) {
    %c0_i32 = arith.constant 0 : i32
    %c0_i32_0 = arith.constant 0 : i32
    %c0_i32_1 = arith.constant 0 : i32
    return %c0_i32, %c0_i32_0 : i32, i32
  }
  func.func @transform_9(%arg0: i32, %arg1: i32) -> (i32, i32) {
    %c0_i32 = arith.constant 0 : i32
    %c0_i32_0 = arith.constant 0 : i32
    %c0_i32_1 = arith.constant 0 : i32
    return %c0_i32, %c0_i32_0 : i32, i32
  }
  func.func @transform_10(%arg0: i32, %arg1: i32) -> (i32, i32) {
    %c0_i32 = arith.constant 0 : i32
    %c0_i32_0 = arith.constant 0 : i32
    %c0_i32_1 = arith.constant 0 : i32
    return %c0_i32, %c0_i32_0 : i32, i32
  }
  func.func @transform_11(%arg0: i32, %arg1: i32) -> (i32, i32) {
    %c0_i32 = arith.constant 0 : i32
    %c0_i32_0 = arith.constant 0 : i32
    %c0_i32_1 = arith.constant 0 : i32
    return %c0_i32, %c0_i32_0 : i32, i32
  }
  func.func @transform_12(%arg0: i32, %arg1: i32) -> (i32, i32) {
    %c0_i32 = arith.constant 0 : i32
    %c0_i32_0 = arith.constant 0 : i32
    %c0_i32_1 = arith.constant 0 : i32
    return %c0_i32, %c0_i32_0 : i32, i32
  }
  func.func @transform_13(%arg0: i32, %arg1: i32) -> (i32, i32, i32) {
    %c0_i32 = arith.constant 0 : i32
    %c0_i32_0 = arith.constant 0 : i32
    return %arg0, %c0_i32, %arg1 : i32, i32, i32
  }
}

</mosaic_0001>

<llo_original>
// kernel: g_block_pallas.4
$region0: #{g_block_pallas.4}
  #allocation0 [shape = 'u32[]', space=smem, size = 0x4, offset = 0x4, fixed_abs, tag = 'smem constant byte address 0x4 - core index']
  #allocation1 [shape = 'u32[144,128]{1,0:T(1,128)}', space=vmem, size = 0x12000, scoped, tag = 'internal scratch']
  %s0 = inlined_call_operand.vmem [shape: f32[2,32], index: 0, kind: input, shape index: {}]
  %s1 = inlined_call_operand.vmem [shape: f32[32,64], index: 1, kind: input, shape index: {}]
  %s2 = inlined_call_operand.vmem [shape: f32[1,64], index: 2, kind: input, shape index: {}]
  %s3 = inlined_call_operand.vmem [shape: f32[4,16,16], index: 3, kind: input, shape index: {}]
  %s4 = inlined_call_operand.vmem [shape: f32[4,1,16], index: 4, kind: input, shape index: {}]
  %s5 = inlined_call_operand.vmem [shape: f32[2,64], index: 5, kind: output, shape index: {}]
  %s6 = sld [smem:[#allocation0]]
  $region30: #{g_block_pallas.4} parent=0
    _
  %s8 = ssub.s32 1, %s6
  %s9 = scalar_select 0, %s8, %s6
  // Predicated region
  $region2: #{g_block_pallas.4} parent=0 // pred_check
    _
  $region3: #{g_block_pallas.4} parent=0 // pred_check_branch
    %11 = sbr.rel (0) target = $region5
  $region4: #{g_block_pallas.4} parent=0 // pred_region
    _
  $region5: #{g_block_pallas.4} parent=0 // pred_fallthru
    _
  // Predicated region
  $region6: #{g_block_pallas.4} parent=0 // pred_check
    _
  $region7: #{g_block_pallas.4} parent=0 // pred_check_branch
    %13 = sbr.rel (0) target = $region9
  $region8: #{g_block_pallas.4} parent=0 // pred_region
    _
  $region9: #{g_block_pallas.4} parent=0 // pred_fallthru
    _
  // Predicated region
  $region10: #{g_block_pallas.4} parent=0 // pred_check
    _
  $region11: #{g_block_pallas.4} parent=0 // pred_check_branch
    %15 = sbr.rel (0) target = $region13
  $region12: #{g_block_pallas.4} parent=0 // pred_region
    _
  $region13: #{g_block_pallas.4} parent=0 // pred_fallthru
    _
  // Predicated region
  $region14: #{g_block_pallas.4} parent=0 // pred_check
    _
  $region15: #{g_block_pallas.4} parent=0 // pred_check_branch
    %17 = sbr.rel (0) target = $region17
  $region16: #{g_block_pallas.4} parent=0 // pred_region
    _
  $region17: #{g_block_pallas.4} parent=0 // pred_fallthru
    _
  // Predicated region
  $region18: #{g_block_pallas.4} parent=0 // pred_check
    _
  $region19: #{g_block_pallas.4} parent=0 // pred_check_branch
    %19 = sbr.rel (0) target = $region21
  $region20: #{g_block_pallas.4} parent=0 // pred_region
    _
  $region21: #{g_block_pallas.4} parent=0 // pred_fallthru
    _
  %v20 = vld [vmem:[%s0] sm:$0x3]
  %v21 = vld [vmem:[%s1] sm:$0xff]
  %v22 = vld [vmem:[%s1 + $0x8] sm:$0xff]
  %v23 = vld [vmem:[%s1 + $0x10] sm:$0xff]
  %v24 = vld [vmem:[%s1 + $0x18] sm:$0xff]
  %v25 = vld [vmem:[%s2] sm:$0x1]
  %v27 = vlaneseq
  %v28 = vshrl.u32 %v27, 7
  %v29 = vsub.s32 0, %v28
  %v30 = vrot.slane %v25, %v29
  %vm32 = vcmask 261120
  %v34 = vsel %vm32, %v20, 0
  %36 = vmatprep.subr.mxu0 0.0
  %37 = vmatpush1.msra.mxu0 %v21
  %38 = vmatprep.subr.mxu0 0.0
  %39 = vmatpush1.msra.mxu0 %v22
  %40 = vmatprep.subr.mxu0 0.0
  %41 = vmatpush1.msra.mxu0 %v23
  %42 = vmatprep.subr.mxu0 0.0
  %43 = vmatpush1.msra.mxu0 %v24
  %44 = vmatprep.subr.mxu0 0.0
  %45 = vmatpush1.msra.mxu0 0.0
  %46 = vmatprep.subr.mxu0 0.0
  %47 = vmatpush1.msra.mxu0 0.0
  %48 = vmatprep.subr.mxu0 0.0
  %49 = vmatpush1.msra.mxu0 0.0
  %50 = vmatprep.subr.mxu0 0.0
  %51 = vmatpush1.msra.mxu0 0.0
  %52 = vmatprep.subr.mxu0 0.0
  %53 = vmatpush1.msra.mxu0 0.0
  %54 = vmatprep.subr.mxu0 0.0
  %55 = vmatpush1.msra.mxu0 0.0
  %56 = vmatprep.subr.mxu0 0.0
  %57 = vmatpush1.msra.mxu0 0.0
  %58 = vmatprep.subr.mxu0 0.0
  %59 = vmatpush1.msra.mxu0 0.0
  %60 = vmatprep.subr.mxu0 0.0
  %61 = vmatpush1.msra.mxu0 0.0
  %62 = vmatprep.subr.mxu0 0.0
  %63 = vmatpush1.msra.mxu0 0.0
  %64 = vmatprep.subr.mxu0 0.0
  %65 = vmatpush1.msra.mxu0 0.0
  %66 = vmatprep.subr.mxu0 0.0
  %67 = vmatpush1.msra.mxu0 0.0
  %68 = vmatprep.subr.mxu0 0.0
  %69 = vmatpush1.msra.mxu0 0.0
  %70 = vmatprep.subr.mxu0 0.0
  %71 = vmatpush1.msra.mxu0 0.0
  %72 = vmatprep.subr.mxu0 0.0
  %73 = vmatpush1.msra.mxu0 0.0
  %74 = vmatprep.subr.mxu0 0.0
  %75 = vmatpush1.msra.mxu0 0.0
  %76 = vmatprep.subr.mxu0 0.0
  %77 = vmatpush1.msra.mxu0 0.0
  %78 = vmatprep.subr.mxu0 0.0
  %79 = vmatpush1.msra.mxu0 0.0
  %80 = vmatprep.subr.mxu0 0.0
  %81 = vmatpush1.msra.mxu0 0.0
  %82 = vmatprep.subr.mxu0 0.0
  %83 = vmatpush1.msra.mxu0 0.0
  %84 = vmatprep.subr.mxu0 0.0
  %85 = vmatpush1.msra.mxu0 0.0
  %86 = vmatprep.subr.mxu0 0.0
  %87 = vmatpush1.msra.mxu0 0.0
  %88 = vmatprep.subr.mxu0 0.0
  %89 = vmatpush1.msra.mxu0 0.0
  %90 = vmatprep.subr.mxu0 0.0
  %91 = vmatpush1.msra.mxu0 0.0
  %92 = vmatprep.subr.mxu0 0.0
  %93 = vmatpush1.msra.mxu0 0.0
  %94 = vmatprep.subr.mxu0 0.0
  %95 = vmatpush1.msra.mxu0 0.0
  %96 = vmatprep.subr.mxu0 0.0
  %97 = vmatpush1.msra.mxu0 0.0
  %98 = vmatprep.subr.mxu0 0.0
  %99 = vmatpush1.msra.mxu0 0.0
  %100 = vmatprep.mubr.f32.mxu0 0.0
  %101 = vmatmul.mubr.f32.gmra.mrb[0].mxu0 %v34
  %v102 = vpop.f32.mrb[0].mxu0
  %v103 = vadd.f32 %v30, %v102
  %v104 = vpop.f32.mrb[0].mxu0
  %105 = vdwg.mxu0
  %v106 = vmax.f32 %v103, 0.0
  %v107 = vld [vmem:[%s3] sm:$0xff]
  %v108 = vld [vmem:[%s3 + $0x8] sm:$0xff]
  %v109 = vld [vmem:[%s4] sm:$0x1]
  %v111 = vlaneseq
  %v112 = vshrl.u32 %v111, 7
  %v113 = vsub.s32 0, %v112
  %v114 = vrot.slane %v109, %v113
  %vm116 = vcmask 130048
  %v118 = vsel %vm116, %v106, 0
  %120 = vmatprep.subr.mxu0 0.0
  %121 = vmatpush1.msra.mxu0 %v107
  %122 = vmatprep.subr.mxu0 0.0
  %123 = vmatpush1.msra.mxu0 %v108
  %124 = vmatprep.subr.mxu0 0.0
  %125 = vmatpush1.msra.mxu0 0.0
  %126 = vmatprep.subr.mxu0 0.0
  %127 = vmatpush1.msra.mxu0 0.0
  %128 = vmatprep.subr.mxu0 0.0
  %129 = vmatpush1.msra.mxu0 0.0
  %130 = vmatprep.subr.mxu0 0.0
  %131 = vmatpush1.msra.mxu0 0.0
  %132 = vmatprep.subr.mxu0 0.0
  %133 = vmatpush1.msra.mxu0 0.0
  %134 = vmatprep.subr.mxu0 0.0
  %135 = vmatpush1.msra.mxu0 0.0
  %136 = vmatprep.subr.mxu0 0.0
  %137 = vmatpush1.msra.mxu0 0.0
  %138 = vmatprep.subr.mxu0 0.0
  %139 = vmatpush1.msra.mxu0 0.0
  %140 = vmatprep.subr.mxu0 0.0
  %141 = vmatpush1.msra.mxu0 0.0
  %142 = vmatprep.subr.mxu0 0.0
  %143 = vmatpush1.msra.mxu0 0.0
  %144 = vmatprep.subr.mxu0 0.0
  %145 = vmatpush1.msra.mxu0 0.0
  %146 = vmatprep.subr.mxu0 0.0
  %147 = vmatpush1.msra.mxu0 0.0
  %148 = vmatprep.subr.mxu0 0.0
  %149 = vmatpush1.msra.mxu0 0.0
  %150 = vmatprep.subr.mxu0 0.0
  %151 = vmatpush1.msra.mxu0 0.0
  %152 = vmatprep.subr.mxu0 0.0
  %153 = vmatpush1.msra.mxu0 0.0
  %154 = vmatprep.subr.mxu0 0.0
  %155 = vmatpush1.msra.mxu0 0.0
  %156 = vmatprep.subr.mxu0 0.0
  %157 = vmatpush1.msra.mxu0 0.0
  %158 = vmatprep.subr.mxu0 0.0
  %159 = vmatpush1.msra.mxu0 0.0
  %160 = vmatprep.subr.mxu0 0.0
  %161 = vmatpush1.msra.mxu0 0.0
  %162 = vmatprep.subr.mxu0 0.0
  %163 = vmatpush1.msra.mxu0 0.0
  %164 = vmatprep.subr.mxu0 0.0
  %165 = vmatpush1.msra.mxu0 0.0
  %166 = vmatprep.subr.mxu0 0.0
  %167 = vmatpush1.msra.mxu0 0.0
  %168 = vmatprep.subr.mxu0 0.0
  %169 = vmatpush1.msra.mxu0 0.0
  %170 = vmatprep.subr.mxu0 0.0
  %171 = vmatpush1.msra.mxu0 0.0
  %172 = vmatprep.subr.mxu0 0.0
  %173 = vmatpush1.msra.mxu0 0.0
  %174 = vmatprep.subr.mxu0 0.0
  %175 = vmatpush1.msra.mxu0 0.0
  %176 = vmatprep.subr.mxu0 0.0
  %177 = vmatpush1.msra.mxu0 0.0
  %178 = vmatprep.subr.mxu0 0.0
  %179 = vmatpush1.msra.mxu0 0.0
  %180 = vmatprep.subr.mxu0 0.0
  %181 = vmatpush1.msra.mxu0 0.0
  %182 = vmatprep.subr.mxu0 0.0
  %183 = vmatpush1.msra.mxu0 0.0
  %184 = vmatprep.mubr.f32.mxu0 0.0
  %185 = vmatmul.mubr.f32.gmra.mrb[0].mxu0 %v118
  %v186 = vpop.f32.mrb[0].mxu0
  %v187 = vadd.f32 %v114, %v186
  %v188 = vpop.f32.mrb[0].mxu0
  %189 = vdwg.mxu0
  %vm190 = vcmask 123904
  %191 = vst.msk [vmem:[%s5] sm:$0x3] %vm190, %v187
  %s192 = scalar_lea.vmem %s3, 16
  %v193 = vld [vmem:[%s192] sm:$0xff]
  %v194 = vld [vmem:[%s192 + $0x8] sm:$0xff]
  %s195 = scalar_lea.vmem %s4, 1
  %v196 = vld [vmem:[%s195] sm:$0x1]
  %v198 = vlaneseq
  %v199 = vshrl.u32 %v198, 7
  %v200 = vsub.s32 0, %v199
  %v201 = vrot.slane %v196, %v200
  %203 = vrot.lane.b32.xlu0 %v106, 112
  %v204 = vpop.permute.xlu0 %203
  %v205 = vsel %vm116, %v204, 0
  %207 = vmatprep.subr.mxu0 0.0
  %208 = vmatpush1.msra.mxu0 %v193
  %209 = vmatprep.subr.mxu0 0.0
  %210 = vmatpush1.msra.mxu0 %v194
  %211 = vmatprep.subr.mxu0 0.0
  %212 = vmatpush1.msra.mxu0 0.0
  %213 = vmatprep.subr.mxu0 0.0
  %214 = vmatpush1.msra.mxu0 0.0
  %215 = vmatprep.subr.mxu0 0.0
  %216 = vmatpush1.msra.mxu0 0.0
  %217 = vmatprep.subr.mxu0 0.0
  %218 = vmatpush1.msra.mxu0 0.0
  %219 = vmatprep.subr.mxu0 0.0
  %220 = vmatpush1.msra.mxu0 0.0
  %221 = vmatprep.subr.mxu0 0.0
  %222 = vmatpush1.msra.mxu0 0.0
  %223 = vmatprep.subr.mxu0 0.0
  %224 = vmatpush1.msra.mxu0 0.0
  %225 = vmatprep.subr.mxu0 0.0
  %226 = vmatpush1.msra.mxu0 0.0
  %227 = vmatprep.subr.mxu0 0.0
  %228 = vmatpush1.msra.mxu0 0.0
  %229 = vmatprep.subr.mxu0 0.0
  %230 = vmatpush1.msra.mxu0 0.0
  %231 = vmatprep.subr.mxu0 0.0
  %232 = vmatpush1.msra.mxu0 0.0
  %233 = vmatprep.subr.mxu0 0.0
  %234 = vmatpush1.msra.mxu0 0.0
  %235 = vmatprep.subr.mxu0 0.0
  %236 = vmatpush1.msra.mxu0 0.0
  %237 = vmatprep.subr.mxu0 0.0
  %238 = vmatpush1.msra.mxu0 0.0
  %239 = vmatprep.subr.mxu0 0.0
  %240 = vmatpush1.msra.mxu0 0.0
  %241 = vmatprep.subr.mxu0 0.0
  %242 = vmatpush1.msra.mxu0 0.0
  %243 = vmatprep.subr.mxu0 0.0
  %244 = vmatpush1.msra.mxu0 0.0
  %245 = vmatprep.subr.mxu0 0.0
  %246 = vmatpush1.msra.mxu0 0.0
  %247 = vmatprep.subr.mxu0 0.0
  %248 = vmatpush1.msra.mxu0 0.0
  %249 = vmatprep.subr.mxu0 0.0
  %250 = vmatpush1.msra.mxu0 0.0
  %251 = vmatprep.subr.mxu0 0.0
  %252 = vmatpush1.msra.mxu0 0.0
  %253 = vmatprep.subr.mxu0 0.0
  %254 = vmatpush1.msra.mxu0 0.0
  %255 = vmatprep.subr.mxu0 0.0
  %256 = vmatpush1.msra.mxu0 0.0
  %257 = vmatprep.subr.mxu0 0.0
  %258 = vmatpush1.msra.mxu0 0.0
  %259 = vmatprep.subr.mxu0 0.0
  %260 = vmatpush1.msra.mxu0 0.0
  %261 = vmatprep.subr.mxu0 0.0
  %262 = vmatpush1.msra.mxu0 0.0
  %263 = vmatprep.subr.mxu0 0.0
  %264 = vmatpush1.msra.mxu0 0.0
  %265 = vmatprep.subr.mxu0 0.0
  %266 = vmatpush1.msra.mxu0 0.0
  %267 = vmatprep.subr.mxu0 0.0
  %268 = vmatpush1.msra.mxu0 0.0
  %269 = vmatprep.subr.mxu0 0.0
  %270 = vmatpush1.msra.mxu0 0.0
  %271 = vmatprep.mubr.f32.mxu0 0.0
  %272 = vmatmul.mubr.f32.gmra.mrb[0].mxu0 %v205
  %v273 = vpop.f32.mrb[0].mxu0
  %v274 = vadd.f32 %v201, %v273
  %v275 = vpop.f32.mrb[0].mxu0
  %276 = vdwg.mxu0
  %278 = vrot.lane.b32.xlu0 %v274, 16
  %v279 = vpop.permute.xlu0 %278
  %vm281 = vcmask 255104
  %282 = vst.msk [vmem:[%s5] sm:$0x3] %vm281, %v279
  %s283 = scalar_lea.vmem %s3, 32
  %v284 = vld [vmem:[%s283] sm:$0xff]
  %v285 = vld [vmem:[%s283 + $0x8] sm:$0xff]
  %s286 = scalar_lea.vmem %s4, 2
  %v287 = vld [vmem:[%s286] sm:$0x1]
  %v289 = vlaneseq
  %v290 = vshrl.u32 %v289, 7
  %v291 = vsub.s32 0, %v290
  %v292 = vrot.slane %v287, %v291
  %294 = vrot.lane.b32.xlu0 %v106, 96
  %v295 = vpop.permute.xlu0 %294
  %v296 = vsel %vm116, %v295, 0
  %298 = vmatprep.subr.mxu0 0.0
  %299 = vmatpush1.msra.mxu0 %v284
  %300 = vmatprep.subr.mxu0 0.0
  %301 = vmatpush1.msra.mxu0 %v285
  %302 = vmatprep.subr.mxu0 0.0
  %303 = vmatpush1.msra.mxu0 0.0
  %304 = vmatprep.subr.mxu0 0.0
  %305 = vmatpush1.msra.mxu0 0.0
  %306 = vmatprep.subr.mxu0 0.0
  %307 = vmatpush1.msra.mxu0 0.0
  %308 = vmatprep.subr.mxu0 0.0
  %309 = vmatpush1.msra.mxu0 0.0
  %310 = vmatprep.subr.mxu0 0.0
  %311 = vmatpush1.msra.mxu0 0.0
  %312 = vmatprep.subr.mxu0 0.0
  %313 = vmatpush1.msra.mxu0 0.0
  %314 = vmatprep.subr.mxu0 0.0
  %315 = vmatpush1.msra.mxu0 0.0
  %316 = vmatprep.subr.mxu0 0.0
  %317 = vmatpush1.msra.mxu0 0.0
  %318 = vmatprep.subr.mxu0 0.0
  %319 = vmatpush1.msra.mxu0 0.0
  %320 = vmatprep.subr.mxu0 0.0
  %321 = vmatpush1.msra.mxu0 0.0
  %322 = vmatprep.subr.mxu0 0.0
  %323 = vmatpush1.msra.mxu0 0.0
  %324 = vmatprep.subr.mxu0 0.0
  %325 = vmatpush1.msra.mxu0 0.0
  %326 = vmatprep.subr.mxu0 0.0
  %327 = vmatpush1.msra.mxu0 0.0
  %328 = vmatprep.subr.mxu0 0.0
  %329 = vmatpush1.msra.mxu0 0.0
  %330 = vmatprep.subr.mxu0 0.0
  %331 = vmatpush1.msra.mxu0 0.0
  %332 = vmatprep.subr.mxu0 0.0
  %333 = vmatpush1.msra.mxu0 0.0
  %334 = vmatprep.subr.mxu0 0.0
  %335 = vmatpush1.msra.mxu0 0.0
  %336 = vmatprep.subr.mxu0 0.0
  %337 = vmatpush1.msra.mxu0 0.0
  %338 = vmatprep.subr.mxu0 0.0
  %339 = vmatpush1.msra.mxu0 0.0
  %340 = vmatprep.subr.mxu0 0.0
  %341 = vmatpush1.msra.mxu0 0.0
  %342 = vmatprep.subr.mxu0 0.0
  %343 = vmatpush1.msra.mxu0 0.0
  %344 = vmatprep.subr.mxu0 0.0
  %345 = vmatpush1.msra.mxu0 0.0
  %346 = vmatprep.subr.mxu0 0.0
  %347 = vmatpush1.msra.mxu0 0.0
  %348 = vmatprep.subr.mxu0 0.0
  %349 = vmatpush1.msra.mxu0 0.0
  %350 = vmatprep.subr.mxu0 0.0
  %351 = vmatpush1.msra.mxu0 0.0
  %352 = vmatprep.subr.mxu0 0.0
  %353 = vmatpush1.msra.mxu0 0.0
  %354 = vmatprep.subr.mxu0 0.0
  %355 = vmatpush1.msra.mxu0 0.0
  %356 = vmatprep.subr.mxu0 0.0
  %357 = vmatpush1.msra.mxu0 0.0
  %358 = vmatprep.subr.mxu0 0.0
  %359 = vmatpush1.msra.mxu0 0.0
  %360 = vmatprep.subr.mxu0 0.0
  %361 = vmatpush1.msra.mxu0 0.0
  %362 = vmatprep.mubr.f32.mxu0 0.0
  %363 = vmatmul.mubr.f32.gmra.mrb[0].mxu0 %v296
  %v364 = vpop.f32.mrb[0].mxu0
  %v365 = vadd.f32 %v292, %v364
  %v366 = vpop.f32.mrb[0].mxu0
  %367 = vdwg.mxu0
  %369 = vrot.lane.b32.xlu0 %v365, 32
  %v370 = vpop.permute.xlu0 %369
  %vm372 = vcmask 386304
  %373 = vst.msk [vmem:[%s5] sm:$0x3] %vm372, %v370
  %s374 = scalar_lea.vmem %s3, 48
  %v375 = vld [vmem:[%s374] sm:$0xff]
  %v376 = vld [vmem:[%s374 + $0x8] sm:$0xff]
  %s377 = scalar_lea.vmem %s4, 3
  %v378 = vld [vmem:[%s377] sm:$0x1]
  %v380 = vlaneseq
  %v381 = vshrl.u32 %v380, 7
  %v382 = vsub.s32 0, %v381
  %v383 = vrot.slane %v378, %v382
  %385 = vrot.lane.b32.xlu0 %v106, 80
  %v386 = vpop.permute.xlu0 %385
  %v387 = vsel %vm116, %v386, 0
  %389 = vmatprep.subr.mxu0 0.0
  %390 = vmatpush1.msra.mxu0 %v375
  %391 = vmatprep.subr.mxu0 0.0
  %392 = vmatpush1.msra.mxu0 %v376
  %393 = vmatprep.subr.mxu0 0.0
  %394 = vmatpush1.msra.mxu0 0.0
  %395 = vmatprep.subr.mxu0 0.0
  %396 = vmatpush1.msra.mxu0 0.0
  %397 = vmatprep.subr.mxu0 0.0
  %398 = vmatpush1.msra.mxu0 0.0
  %399 = vmatprep.subr.mxu0 0.0
  %400 = vmatpush1.msra.mxu0 0.0
  %401 = vmatprep.subr.mxu0 0.0
  %402 = vmatpush1.msra.mxu0 0.0
  %403 = vmatprep.subr.mxu0 0.0
  %404 = vmatpush1.msra.mxu0 0.0
  %405 = vmatprep.subr.mxu0 0.0
  %406 = vmatpush1.msra.mxu0 0.0
  %407 = vmatprep.subr.mxu0 0.0
  %408 = vmatpush1.msra.mxu0 0.0
  %409 = vmatprep.subr.mxu0 0.0
  %410 = vmatpush1.msra.mxu0 0.0
  %411 = vmatprep.subr.mxu0 0.0
  %412 = vmatpush1.msra.mxu0 0.0
  %413 = vmatprep.subr.mxu0 0.0
  %414 = vmatpush1.msra.mxu0 0.0
  %415 = vmatprep.subr.mxu0 0.0
  %416 = vmatpush1.msra.mxu0 0.0
  %417 = vmatprep.subr.mxu0 0.0
  %418 = vmatpush1.msra.mxu0 0.0
  %419 = vmatprep.subr.mxu0 0.0
  %420 = vmatpush1.msra.mxu0 0.0
  %421 = vmatprep.subr.mxu0 0.0
  %422 = vmatpush1.msra.mxu0 0.0
  %423 = vmatprep.subr.mxu0 0.0
  %424 = vmatpush1.msra.mxu0 0.0
  %425 = vmatprep.subr.mxu0 0.0
  %426 = vmatpush1.msra.mxu0 0.0
  %427 = vmatprep.subr.mxu0 0.0
  %428 = vmatpush1.msra.mxu0 0.0
  %429 = vmatprep.subr.mxu0 0.0
  %430 = vmatpush1.msra.mxu0 0.0
  %431 = vmatprep.subr.mxu0 0.0
  %432 = vmatpush1.msra.mxu0 0.0
  %433 = vmatprep.subr.mxu0 0.0
  %434 = vmatpush1.msra.mxu0 0.0
  %435 = vmatprep.subr.mxu0 0.0
  %436 = vmatpush1.msra.mxu0 0.0
  %437 = vmatprep.subr.mxu0 0.0
  %438 = vmatpush1.msra.mxu0 0.0
  %439 = vmatprep.subr.mxu0 0.0
  %440 = vmatpush1.msra.mxu0 0.0
  %441 = vmatprep.subr.mxu0 0.0
  %442 = vmatpush1.msra.mxu0 0.0
  %443 = vmatprep.subr.mxu0 0.0
  %444 = vmatpush1.msra.mxu0 0.0
  %445 = vmatprep.subr.mxu0 0.0
  %446 = vmatpush1.msra.mxu0 0.0
  %447 = vmatprep.subr.mxu0 0.0
  %448 = vmatpush1.msra.mxu0 0.0
  %449 = vmatprep.subr.mxu0 0.0
  %450 = vmatpush1.msra.mxu0 0.0
  %451 = vmatprep.subr.mxu0 0.0
  %452 = vmatpush1.msra.mxu0 0.0
  %453 = vmatprep.mubr.f32.mxu0 0.0
  %454 = vmatmul.mubr.f32.gmra.mrb[0].mxu0 %v387
  %v455 = vpop.f32.mrb[0].mxu0
  %v456 = vadd.f32 %v383, %v455
  %v457 = vpop.f32.mrb[0].mxu0
  %458 = vdwg.mxu0
  %460 = vrot.lane.b32.xlu0 %v456, 48
  %v461 = vpop.permute.xlu0 %460
  %vm463 = vcmask 517504
  %464 = vst.msk [vmem:[%s5] sm:$0x3] %vm463, %v461
  // Predicated region
  $region22: #{g_block_pallas.4} parent=0 // pred_check
    _
  $region23: #{g_block_pallas.4} parent=0 // pred_check_branch
    %466 = sbr.rel (0) target = $region25
  $region24: #{g_block_pallas.4} parent=0 // pred_region
    _
  $region25: #{g_block_pallas.4} parent=0 // pred_fallthru
    _
  // Predicated region
  $region26: #{g_block_pallas.4} parent=0 // pred_check
    _
  $region27: #{g_block_pallas.4} parent=0 // pred_check_branch
    %468 = sbr.rel (0) target = $region29
  $region28: #{g_block_pallas.4} parent=0 // pred_region
    _
  $region29: #{g_block_pallas.4} parent=0 // pred_fallthru
    _

// kernel: g_block_pallas.3
$region0: #{g_block_pallas.3}
  #allocation0 [shape = 'u32[]', space=smem, size = 0x4, offset = 0x4, fixed_abs, tag = 'smem constant byte address 0x4 - core index']
  #allocation1 [shape = 'u32[144,128]{1,0:T(1,128)}', space=vmem, size = 0x12000, scoped, tag = 'internal scratch']
  %s0 = inlined_call_operand.vmem [shape: f32[2,32], index: 0, kind: input, shape index: {}]
  %s1 = inlined_call_operand.vmem [shape: f32[32,32], index: 1, kind: input, shape index: {}]
  %s2 = inlined_call_operand.vmem [shape: f32[1,32], index: 2, kind: input, shape index: {}]
  %s3 = inlined_call_operand.vmem [shape: f32[4,8,8], index: 3, kind: input, shape index: {}]
  %s4 = inlined_call_operand.vmem [shape: f32[4,1,8], index: 4, kind: input, shape index: {}]
  %s5 = inlined_call_operand.vmem [shape: f32[2,32], index: 5, kind: output, shape index: {}]
  %s6 = sld [smem:[#allocation0]]
  $region30: #{g_block_pallas.3} parent=0
    _
  %s8 = ssub.s32 1, %s6
  %s9 = scalar_select 0, %s8, %s6
  // Predicated region
  $region2: #{g_block_pallas.3} parent=0 // pred_check
    _
  $region3: #{g_block_pallas.3} parent=0 // pred_check_branch
    %11 = sbr.rel (0) target = $region5
  $region4: #{g_block_pallas.3} parent=0 // pred_region
    _
  $region5: #{g_block_pallas.3} parent=0 // pred_fallthru
    _
  // Predicated region
  $region6: #{g_block_pallas.3} parent=0 // pred_check
    _
  $region7: #{g_block_pallas.3} parent=0 // pred_check_branch
    %13 = sbr.rel (0) target = $region9
  $region8: #{g_block_pallas.3} parent=0 // pred_region
    _
  $region9: #{g_block_pallas.3} parent=0 // pred_fallthru
    _
  // Predicated region
  $region10: #{g_block_pallas.3} parent=0 // pred_check
    _
  $region11: #{g_block_pallas.3} parent=0 // pred_check_branch
    %15 = sbr.rel (0) target = $region13
  $region12: #{g_block_pallas.3} parent=0 // pred_region
    _
  $region13: #{g_block_pallas.3} parent=0 // pred_fallthru
    _
  // Predicated region
  $region14: #{g_block_pallas.3} parent=0 // pred_check
    _
  $region15: #{g_block_pallas.3} parent=0 // pred_check_branch
    %17 = sbr.rel (0) target = $region17
  $region16: #{g_block_pallas.3} parent=0 // pred_region
    _
  $region17: #{g_block_pallas.3} parent=0 // pred_fallthru
    _
  // Predicated region
  $region18: #{g_block_pallas.3} parent=0 // pred_check
    _
  $region19: #{g_block_pallas.3} parent=0 // pred_check_branch
    %19 = sbr.rel (0) target = $region21
  $region20: #{g_block_pallas.3} parent=0 // pred_region
    _
  $region21: #{g_block_pallas.3} parent=0 // pred_fallthru
    _
  %v20 = vld [vmem:[%s0] sm:$0x3]
  %v21 = vld [vmem:[%s1] sm:$0xff]
  %v22 = vld [vmem:[%s1 + $0x8] sm:$0xff]
  %v23 = vld [vmem:[%s1 + $0x10] sm:$0xff]
  %v24 = vld [vmem:[%s1 + $0x18] sm:$0xff]
  %v25 = vld [vmem:[%s2] sm:$0x1]
  %v27 = vlaneseq
  %v28 = vshrl.u32 %v27, 7
  %v29 = vsub.s32 0, %v28
  %v30 = vrot.slane %v25, %v29
  %vm32 = vcmask 261120
  %v34 = vsel %vm32, %v20, 0
  %36 = vmatprep.subr.mxu0 0.0
  %37 = vmatpush1.msra.mxu0 %v21
  %38 = vmatprep.subr.mxu0 0.0
  %39 = vmatpush1.msra.mxu0 %v22
  %40 = vmatprep.subr.mxu0 0.0
  %41 = vmatpush1.msra.mxu0 %v23
  %42 = vmatprep.subr.mxu0 0.0
  %43 = vmatpush1.msra.mxu0 %v24
  %44 = vmatprep.subr.mxu0 0.0
  %45 = vmatpush1.msra.mxu0 0.0
  %46 = vmatprep.subr.mxu0 0.0
  %47 = vmatpush1.msra.mxu0 0.0
  %48 = vmatprep.subr.mxu0 0.0
  %49 = vmatpush1.msra.mxu0 0.0
  %50 = vmatprep.subr.mxu0 0.0
  %51 = vmatpush1.msra.mxu0 0.0
  %52 = vmatprep.subr.mxu0 0.0
  %53 = vmatpush1.msra.mxu0 0.0
  %54 = vmatprep.subr.mxu0 0.0
  %55 = vmatpush1.msra.mxu0 0.0
  %56 = vmatprep.subr.mxu0 0.0
  %57 = vmatpush1.msra.mxu0 0.0
  %58 = vmatprep.subr.mxu0 0.0
  %59 = vmatpush1.msra.mxu0 0.0
  %60 = vmatprep.subr.mxu0 0.0
  %61 = vmatpush1.msra.mxu0 0.0
  %62 = vmatprep.subr.mxu0 0.0
  %63 = vmatpush1.msra.mxu0 0.0
  %64 = vmatprep.subr.mxu0 0.0
  %65 = vmatpush1.msra.mxu0 0.0
  %66 = vmatprep.subr.mxu0 0.0
  %67 = vmatpush1.msra.mxu0 0.0
  %68 = vmatprep.subr.mxu0 0.0
  %69 = vmatpush1.msra.mxu0 0.0
  %70 = vmatprep.subr.mxu0 0.0
  %71 = vmatpush1.msra.mxu0 0.0
  %72 = vmatprep.subr.mxu0 0.0
  %73 = vmatpush1.msra.mxu0 0.0
  %74 = vmatprep.subr.mxu0 0.0
  %75 = vmatpush1.msra.mxu0 0.0
  %76 = vmatprep.subr.mxu0 0.0
  %77 = vmatpush1.msra.mxu0 0.0
  %78 = vmatprep.subr.mxu0 0.0
  %79 = vmatpush1.msra.mxu0 0.0
  %80 = vmatprep.subr.mxu0 0.0
  %81 = vmatpush1.msra.mxu0 0.0
  %82 = vmatprep.subr.mxu0 0.0
  %83 = vmatpush1.msra.mxu0 0.0
  %84 = vmatprep.subr.mxu0 0.0
  %85 = vmatpush1.msra.mxu0 0.0
  %86 = vmatprep.subr.mxu0 0.0
  %87 = vmatpush1.msra.mxu0 0.0
  %88 = vmatprep.subr.mxu0 0.0
  %89 = vmatpush1.msra.mxu0 0.0
  %90 = vmatprep.subr.mxu0 0.0
  %91 = vmatpush1.msra.mxu0 0.0
  %92 = vmatprep.subr.mxu0 0.0
  %93 = vmatpush1.msra.mxu0 0.0
  %94 = vmatprep.subr.mxu0 0.0
  %95 = vmatpush1.msra.mxu0 0.0
  %96 = vmatprep.subr.mxu0 0.0
  %97 = vmatpush1.msra.mxu0 0.0
  %98 = vmatprep.subr.mxu0 0.0
  %99 = vmatpush1.msra.mxu0 0.0
  %100 = vmatprep.mubr.f32.mxu0 0.0
  %101 = vmatmul.mubr.f32.gmra.mrb[0].mxu0 %v34
  %v102 = vpop.f32.mrb[0].mxu0
  %v103 = vadd.f32 %v30, %v102
  %v104 = vpop.f32.mrb[0].mxu0
  %105 = vdwg.mxu0
  %v106 = vmax.f32 %v103, 0.0
  %v107 = vld [vmem:[%s3] sm:$0xff]
  %v108 = vld [vmem:[%s4] sm:$0x1]
  %v110 = vlaneseq
  %v111 = vshrl.u32 %v110, 7
  %v112 = vsub.s32 0, %v111
  %v113 = vrot.slane %v108, %v112
  %vm115 = vcmask 64512
  %v117 = vsel %vm115, %v106, 0
  %119 = vmatprep.subr.mxu0 0.0
  %120 = vmatpush1.msra.mxu0 %v107
  %121 = vmatprep.subr.mxu0 0.0
  %122 = vmatpush1.msra.mxu0 0.0
  %123 = vmatprep.subr.mxu0 0.0
  %124 = vmatpush1.msra.mxu0 0.0
  %125 = vmatprep.subr.mxu0 0.0
  %126 = vmatpush1.msra.mxu0 0.0
  %127 = vmatprep.subr.mxu0 0.0
  %128 = vmatpush1.msra.mxu0 0.0
  %129 = vmatprep.subr.mxu0 0.0
  %130 = vmatpush1.msra.mxu0 0.0
  %131 = vmatprep.subr.mxu0 0.0
  %132 = vmatpush1.msra.mxu0 0.0
  %133 = vmatprep.subr.mxu0 0.0
  %134 = vmatpush1.msra.mxu0 0.0
  %135 = vmatprep.subr.mxu0 0.0
  %136 = vmatpush1.msra.mxu0 0.0
  %137 = vmatprep.subr.mxu0 0.0
  %138 = vmatpush1.msra.mxu0 0.0
  %139 = vmatprep.subr.mxu0 0.0
  %140 = vmatpush1.msra.mxu0 0.0
  %141 = vmatprep.subr.mxu0 0.0
  %142 = vmatpush1.msra.mxu0 0.0
  %143 = vmatprep.subr.mxu0 0.0
  %144 = vmatpush1.msra.mxu0 0.0
  %145 = vmatprep.subr.mxu0 0.0
  %146 = vmatpush1.msra.mxu0 0.0
  %147 = vmatprep.subr.mxu0 0.0
  %148 = vmatpush1.msra.mxu0 0.0
  %149 = vmatprep.subr.mxu0 0.0
  %150 = vmatpush1.msra.mxu0 0.0
  %151 = vmatprep.subr.mxu0 0.0
  %152 = vmatpush1.msra.mxu0 0.0
  %153 = vmatprep.subr.mxu0 0.0
  %154 = vmatpush1.msra.mxu0 0.0
  %155 = vmatprep.subr.mxu0 0.0
  %156 = vmatpush1.msra.mxu0 0.0
  %157 = vmatprep.subr.mxu0 0.0
  %158 = vmatpush1.msra.mxu0 0.0
  %159 = vmatprep.subr.mxu0 0.0
  %160 = vmatpush1.msra.mxu0 0.0
  %161 = vmatprep.subr.mxu0 0.0
  %162 = vmatpush1.msra.mxu0 0.0
  %163 = vmatprep.subr.mxu0 0.0
  %164 = vmatpush1.msra.mxu0 0.0
  %165 = vmatprep.subr.mxu0 0.0
  %166 = vmatpush1.msra.mxu0 0.0
  %167 = vmatprep.subr.mxu0 0.0
  %168 = vmatpush1.msra.mxu0 0.0
  %169 = vmatprep.subr.mxu0 0.0
  %170 = vmatpush1.msra.mxu0 0.0
  %171 = vmatprep.subr.mxu0 0.0
  %172 = vmatpush1.msra.mxu0 0.0
  %173 = vmatprep.subr.mxu0 0.0
  %174 = vmatpush1.msra.mxu0 0.0
  %175 = vmatprep.subr.mxu0 0.0
  %176 = vmatpush1.msra.mxu0 0.0
  %177 = vmatprep.subr.mxu0 0.0
  %178 = vmatpush1.msra.mxu0 0.0
  %179 = vmatprep.subr.mxu0 0.0
  %180 = vmatpush1.msra.mxu0 0.0
  %181 = vmatprep.subr.mxu0 0.0
  %182 = vmatpush1.msra.mxu0 0.0
  %183 = vmatprep.mubr.f32.mxu0 0.0
  %184 = vmatmul.mubr.f32.gmra.mrb[0].mxu0 %v117
  %v185 = vpop.f32.mrb[0].mxu0
  %v186 = vadd.f32 %v113, %v185
  %v187 = vpop.f32.mrb[0].mxu0
  %188 = vdwg.mxu0
  %vm189 = vcmask 58368
  %190 = vst.msk [vmem:[%s5] sm:$0x3] %vm189, %v186
  %s191 = scalar_lea.vmem %s3, 8
  %v192 = vld [vmem:[%s191] sm:$0xff]
  %s193 = scalar_lea.vmem %s4, 1
  %v194 = vld [vmem:[%s193] sm:$0x1]
  %v196 = vlaneseq
  %v197 = vshrl.u32 %v196, 7
  %v198 = vsub.s32 0, %v197
  %v199 = vrot.slane %v194, %v198
  %201 = vrot.lane.b32.xlu0 %v106, 120
  %v202 = vpop.permute.xlu0 %201
  %v203 = vsel %vm115, %v202, 0
  %205 = vmatprep.subr.mxu0 0.0
  %206 = vmatpush1.msra.mxu0 %v192
  %207 = vmatprep.subr.mxu0 0.0
  %208 = vmatpush1.msra.mxu0 0.0
  %209 = vmatprep.subr.mxu0 0.0
  %210 = vmatpush1.msra.mxu0 0.0
  %211 = vmatprep.subr.mxu0 0.0
  %212 = vmatpush1.msra.mxu0 0.0
  %213 = vmatprep.subr.mxu0 0.0
  %214 = vmatpush1.msra.mxu0 0.0
  %215 = vmatprep.subr.mxu0 0.0
  %216 = vmatpush1.msra.mxu0 0.0
  %217 = vmatprep.subr.mxu0 0.0
  %218 = vmatpush1.msra.mxu0 0.0
  %219 = vmatprep.subr.mxu0 0.0
  %220 = vmatpush1.msra.mxu0 0.0
  %221 = vmatprep.subr.mxu0 0.0
  %222 = vmatpush1.msra.mxu0 0.0
  %223 = vmatprep.subr.mxu0 0.0
  %224 = vmatpush1.msra.mxu0 0.0
  %225 = vmatprep.subr.mxu0 0.0
  %226 = vmatpush1.msra.mxu0 0.0
  %227 = vmatprep.subr.mxu0 0.0
  %228 = vmatpush1.msra.mxu0 0.0
  %229 = vmatprep.subr.mxu0 0.0
  %230 = vmatpush1.msra.mxu0 0.0
  %231 = vmatprep.subr.mxu0 0.0
  %232 = vmatpush1.msra.mxu0 0.0
  %233 = vmatprep.subr.mxu0 0.0
  %234 = vmatpush1.msra.mxu0 0.0
  %235 = vmatprep.subr.mxu0 0.0
  %236 = vmatpush1.msra.mxu0 0.0
  %237 = vmatprep.subr.mxu0 0.0
  %238 = vmatpush1.msra.mxu0 0.0
  %239 = vmatprep.subr.mxu0 0.0
  %240 = vmatpush1.msra.mxu0 0.0
  %241 = vmatprep.subr.mxu0 0.0
  %242 = vmatpush1.msra.mxu0 0.0
  %243 = vmatprep.subr.mxu0 0.0
  %244 = vmatpush1.msra.mxu0 0.0
  %245 = vmatprep.subr.mxu0 0.0
  %246 = vmatpush1.msra.mxu0 0.0
  %247 = vmatprep.subr.mxu0 0.0
  %248 = vmatpush1.msra.mxu0 0.0
  %249 = vmatprep.subr.mxu0 0.0
  %250 = vmatpush1.msra.mxu0 0.0
  %251 = vmatprep.subr.mxu0 0.0
  %252 = vmatpush1.msra.mxu0 0.0
  %253 = vmatprep.subr.mxu0 0.0
  %254 = vmatpush1.msra.mxu0 0.0
  %255 = vmatprep.subr.mxu0 0.0
  %256 = vmatpush1.msra.mxu0 0.0
  %257 = vmatprep.subr.mxu0 0.0
  %258 = vmatpush1.msra.mxu0 0.0
  %259 = vmatprep.subr.mxu0 0.0
  %260 = vmatpush1.msra.mxu0 0.0
  %261 = vmatprep.subr.mxu0 0.0
  %262 = vmatpush1.msra.mxu0 0.0
  %263 = vmatprep.subr.mxu0 0.0
  %264 = vmatpush1.msra.mxu0 0.0
  %265 = vmatprep.subr.mxu0 0.0
  %266 = vmatpush1.msra.mxu0 0.0
  %267 = vmatprep.subr.mxu0 0.0
  %268 = vmatpush1.msra.mxu0 0.0
  %269 = vmatprep.mubr.f32.mxu0 0.0
  %270 = vmatmul.mubr.f32.gmra.mrb[0].mxu0 %v203
  %v271 = vpop.f32.mrb[0].mxu0
  %v272 = vadd.f32 %v199, %v271
  %v273 = vpop.f32.mrb[0].mxu0
  %274 = vdwg.mxu0
  %276 = vrot.lane.b32.xlu0 %v272, 8
  %v277 = vpop.permute.xlu0 %276
  %vm279 = vcmask 123968
  %280 = vst.msk [vmem:[%s5] sm:$0x3] %vm279, %v277
  %s281 = scalar_lea.vmem %s3, 16
  %v282 = vld [vmem:[%s281] sm:$0xff]
  %s283 = scalar_lea.vmem %s4, 2
  %v284 = vld [vmem:[%s283] sm:$0x1]
  %v286 = vlaneseq
  %v287 = vshrl.u32 %v286, 7
  %v288 = vsub.s32 0, %v287
  %v289 = vrot.slane %v284, %v288
  %291 = vrot.lane.b32.xlu0 %v106, 112
  %v292 = vpop.permute.xlu0 %291
  %v293 = vsel %vm115, %v292, 0
  %295 = vmatprep.subr.mxu0 0.0
  %296 = vmatpush1.msra.mxu0 %v282
  %297 = vmatprep.subr.mxu0 0.0
  %298 = vmatpush1.msra.mxu0 0.0
  %299 = vmatprep.subr.mxu0 0.0
  %300 = vmatpush1.msra.mxu0 0.0
  %301 = vmatprep.subr.mxu0 0.0
  %302 = vmatpush1.msra.mxu0 0.0
  %303 = vmatprep.subr.mxu0 0.0
  %304 = vmatpush1.msra.mxu0 0.0
  %305 = vmatprep.subr.mxu0 0.0
  %306 = vmatpush1.msra.mxu0 0.0
  %307 = vmatprep.subr.mxu0 0.0
  %308 = vmatpush1.msra.mxu0 0.0
  %309 = vmatprep.subr.mxu0 0.0
  %310 = vmatpush1.msra.mxu0 0.0
  %311 = vmatprep.subr.mxu0 0.0
  %312 = vmatpush1.msra.mxu0 0.0
  %313 = vmatprep.subr.mxu0 0.0
  %314 = vmatpush1.msra.mxu0 0.0
  %315 = vmatprep.subr.mxu0 0.0
  %316 = vmatpush1.msra.mxu0 0.0
  %317 = vmatprep.subr.mxu0 0.0
  %318 = vmatpush1.msra.mxu0 0.0
  %319 = vmatprep.subr.mxu0 0.0
  %320 = vmatpush1.msra.mxu0 0.0
  %321 = vmatprep.subr.mxu0 0.0
  %322 = vmatpush1.msra.mxu0 0.0
  %323 = vmatprep.subr.mxu0 0.0
  %324 = vmatpush1.msra.mxu0 0.0
  %325 = vmatprep.subr.mxu0 0.0
  %326 = vmatpush1.msra.mxu0 0.0
  %327 = vmatprep.subr.mxu0 0.0
  %328 = vmatpush1.msra.mxu0 0.0
  %329 = vmatprep.subr.mxu0 0.0
  %330 = vmatpush1.msra.mxu0 0.0
  %331 = vmatprep.subr.mxu0 0.0
  %332 = vmatpush1.msra.mxu0 0.0
  %333 = vmatprep.subr.mxu0 0.0
  %334 = vmatpush1.msra.mxu0 0.0
  %335 = vmatprep.subr.mxu0 0.0
  %336 = vmatpush1.msra.mxu0 0.0
  %337 = vmatprep.subr.mxu0 0.0
  %338 = vmatpush1.msra.mxu0 0.0
  %339 = vmatprep.subr.mxu0 0.0
  %340 = vmatpush1.msra.mxu0 0.0
  %341 = vmatprep.subr.mxu0 0.0
  %342 = vmatpush1.msra.mxu0 0.0
  %343 = vmatprep.subr.mxu0 0.0
  %344 = vmatpush1.msra.mxu0 0.0
  %345 = vmatprep.subr.mxu0 0.0
  %346 = vmatpush1.msra.mxu0 0.0
  %347 = vmatprep.subr.mxu0 0.0
  %348 = vmatpush1.msra.mxu0 0.0
  %349 = vmatprep.subr.mxu0 0.0
  %350 = vmatpush1.msra.mxu0 0.0
  %351 = vmatprep.subr.mxu0 0.0
  %352 = vmatpush1.msra.mxu0 0.0
  %353 = vmatprep.subr.mxu0 0.0
  %354 = vmatpush1.msra.mxu0 0.0
  %355 = vmatprep.subr.mxu0 0.0
  %356 = vmatpush1.msra.mxu0 0.0
  %357 = vmatprep.subr.mxu0 0.0
  %358 = vmatpush1.msra.mxu0 0.0
  %359 = vmatprep.mubr.f32.mxu0 0.0
  %360 = vmatmul.mubr.f32.gmra.mrb[0].mxu0 %v293
  %v361 = vpop.f32.mrb[0].mxu0
  %v362 = vadd.f32 %v289, %v361
  %v363 = vpop.f32.mrb[0].mxu0
  %364 = vdwg.mxu0
  %366 = vrot.lane.b32.xlu0 %v362, 16
  %v367 = vpop.permute.xlu0 %366
  %vm369 = vcmask 189568
  %370 = vst.msk [vmem:[%s5] sm:$0x3] %vm369, %v367
  %s371 = scalar_lea.vmem %s3, 24
  %v372 = vld [vmem:[%s371] sm:$0xff]
  %s373 = scalar_lea.vmem %s4, 3
  %v374 = vld [vmem:[%s373] sm:$0x1]
  %v376 = vlaneseq
  %v377 = vshrl.u32 %v376, 7
  %v378 = vsub.s32 0, %v377
  %v379 = vrot.slane %v374, %v378
  %381 = vrot.lane.b32.xlu0 %v106, 104
  %v382 = vpop.permute.xlu0 %381
  %v383 = vsel %vm115, %v382, 0
  %385 = vmatprep.subr.mxu0 0.0
  %386 = vmatpush1.msra.mxu0 %v372
  %387 = vmatprep.subr.mxu0 0.0
  %388 = vmatpush1.msra.mxu0 0.0
  %389 = vmatprep.subr.mxu0 0.0
  %390 = vmatpush1.msra.mxu0 0.0
  %391 = vmatprep.subr.mxu0 0.0
  %392 = vmatpush1.msra.mxu0 0.0
  %393 = vmatprep.subr.mxu0 0.0
  %394 = vmatpush1.msra.mxu0 0.0
  %395 = vmatprep.subr.mxu0 0.0
  %396 = vmatpush1.msra.mxu0 0.0
  %397 = vmatprep.subr.mxu0 0.0
  %398 = vmatpush1.msra.mxu0 0.0
  %399 = vmatprep.subr.mxu0 0.0
  %400 = vmatpush1.msra.mxu0 0.0
  %401 = vmatprep.subr.mxu0 0.0
  %402 = vmatpush1.msra.mxu0 0.0
  %403 = vmatprep.subr.mxu0 0.0
  %404 = vmatpush1.msra.mxu0 0.0
  %405 = vmatprep.subr.mxu0 0.0
  %406 = vmatpush1.msra.mxu0 0.0
  %407 = vmatprep.subr.mxu0 0.0
  %408 = vmatpush1.msra.mxu0 0.0
  %409 = vmatprep.subr.mxu0 0.0
  %410 = vmatpush1.msra.mxu0 0.0
  %411 = vmatprep.subr.mxu0 0.0
  %412 = vmatpush1.msra.mxu0 0.0
  %413 = vmatprep.subr.mxu0 0.0
  %414 = vmatpush1.msra.mxu0 0.0
  %415 = vmatprep.subr.mxu0 0.0
  %416 = vmatpush1.msra.mxu0 0.0
  %417 = vmatprep.subr.mxu0 0.0
  %418 = vmatpush1.msra.mxu0 0.0
  %419 = vmatprep.subr.mxu0 0.0
  %420 = vmatpush1.msra.mxu0 0.0
  %421 = vmatprep.subr.mxu0 0.0
  %422 = vmatpush1.msra.mxu0 0.0
  %423 = vmatprep.subr.mxu0 0.0
  %424 = vmatpush1.msra.mxu0 0.0
  %425 = vmatprep.subr.mxu0 0.0
  %426 = vmatpush1.msra.mxu0 0.0
  %427 = vmatprep.subr.mxu0 0.0
  %428 = vmatpush1.msra.mxu0 0.0
  %429 = vmatprep.subr.mxu0 0.0
  %430 = vmatpush1.msra.mxu0 0.0
  %431 = vmatprep.subr.mxu0 0.0
  %432 = vmatpush1.msra.mxu0 0.0
  %433 = vmatprep.subr.mxu0 0.0
  %434 = vmatpush1.msra.mxu0 0.0
  %435 = vmatprep.subr.mxu0 0.0
  %436 = vmatpush1.msra.mxu0 0.0
  %437 = vmatprep.subr.mxu0 0.0
  %438 = vmatpush1.msra.mxu0 0.0
  %439 = vmatprep.subr.mxu0 0.0
  %440 = vmatpush1.msra.mxu0 0.0
  %441 = vmatprep.subr.mxu0 0.0
  %442 = vmatpush1.msra.mxu0 0.0
  %443 = vmatprep.subr.mxu0 0.0
  %444 = vmatpush1.msra.mxu0 0.0
  %445 = vmatprep.subr.mxu0 0.0
  %446 = vmatpush1.msra.mxu0 0.0
  %447 = vmatprep.subr.mxu0 0.0
  %448 = vmatpush1.msra.mxu0 0.0
  %449 = vmatprep.mubr.f32.mxu0 0.0
  %450 = vmatmul.mubr.f32.gmra.mrb[0].mxu0 %v383
  %v451 = vpop.f32.mrb[0].mxu0
  %v452 = vadd.f32 %v379, %v451
  %v453 = vpop.f32.mrb[0].mxu0
  %454 = vdwg.mxu0
  %456 = vrot.lane.b32.xlu0 %v452, 24
  %v457 = vpop.permute.xlu0 %456
  %vm459 = vcmask 255168
  %460 = vst.msk [vmem:[%s5] sm:$0x3] %vm459, %v457
  // Predicated region
  $region22: #{g_block_pallas.3} parent=0 // pred_check
    _
  $region23: #{g_block_pallas.3} parent=0 // pred_check_branch
    %462 = sbr.rel (0) target = $region25
  $region24: #{g_block_pallas.3} parent=0 // pred_region
    _
  $region25: #{g_block_pallas.3} parent=0 // pred_fallthru
    _
  // Predicated region
  $region26: #{g_block_pallas.3} parent=0 // pred_check
    _
  $region27: #{g_block_pallas.3} parent=0 // pred_check_branch
    %464 = sbr.rel (0) target = $region29
  $region28: #{g_block_pallas.3} parent=0 // pred_region
    _
  $region29: #{g_block_pallas.3} parent=0 // pred_fallthru
    _

// kernel: g_block_pallas.5
$region0: #{g_block_pallas.5}
  #allocation0 [shape = 'u32[]', space=smem, size = 0x4, offset = 0x4, fixed_abs, tag = 'smem constant byte address 0x4 - core index']
  #allocation1 [shape = 'u32[144,128]{1,0:T(1,128)}', space=vmem, size = 0x12000, scoped, tag = 'internal scratch']
  #allocation2 [shape = 'f32[20,18,8]{2,1,0:T(8,128)}', space=vmem, size = 0x3c000, scoped, tag = 'scratch operand']
  #allocation3 [shape = 'f32[288,72]{1,0:T(8,128)}', space=vmem, size = 0x24000, scoped, tag = 'scratch operand']
  #allocation4 [shape = 'f32[18,18,16]{2,1,0:T(8,128)}', space=vmem, size = 0x36000, scoped, tag = 'scratch operand']
  #allocation5 [shape = 'f32[256,144]{1,0:T(8,128)}', space=vmem, size = 0x40000, scoped, tag = 'scratch operand']
  %s0 = inlined_call_operand.vmem [shape: f32[2,16,16,8], index: 0, kind: input, shape index: {}, may-alias: {0,1,2,3,4}]
  %s1 = inlined_call_operand.vmem [shape: f32[2,16,16,8], index: 1, kind: input, shape index: {}, may-alias: {0,1,2,3,4}]
  %s2 = inlined_call_operand.vmem [shape: f32[2,16,16,8], index: 2, kind: input, shape index: {}, may-alias: {0,1,2,3,4}]
  %s3 = inlined_call_operand.vmem [shape: f32[2,16,16,8], index: 3, kind: input, shape index: {}, may-alias: {0,1,2,3,4}]
  %s4 = inlined_call_operand.vmem [shape: f32[2,16,16,8], index: 4, kind: input, shape index: {}, may-alias: {0,1,2,3,4}]
  %s5 = inlined_call_operand.vmem [shape: f32[2,4,8], index: 5, kind: input, shape index: {}]
  %s6 = inlined_call_operand.vmem [shape: f32[2,4,16], index: 6, kind: input, shape index: {}]
  %s7 = inlined_call_operand.vmem [shape: f32[72,16], index: 7, kind: input, shape index: {}]
  %s8 = inlined_call_operand.vmem [shape: f32[1,16], index: 8, kind: input, shape index: {}]
  %s9 = inlined_call_operand.vmem [shape: f32[144,16], index: 9, kind: input, shape index: {}]
  %s10 = inlined_call_operand.vmem [shape: f32[1,16], index: 10, kind: input, shape index: {}]
  %s11 = inlined_call_operand.vmem [shape: f32[8,16], index: 11, kind: input, shape index: {}]
  %s12 = inlined_call_operand.vmem [shape: f32[1,16], index: 12, kind: input, shape index: {}]
  %s13 = inlined_call_operand.vmem [shape: f32[2,16,256], index: 13, kind: output, shape index: {}]
  %s14 = sld [smem:[#allocation0]]
  $region85: #{g_block_pallas.5} parent=0
    _
  %s16 = ssub.s32 1, %s14
  %s17 = scalar_select 0, %s16, %s14
  loop: start=0, step=1, limit=4
  $region2: #{g_block_pallas.5} parent=0 // loop_pre_header
    _
  $region3: #{g_block_pallas.5} parent=0 // loop_header
    %s19 = sphi 0, %s23
    %p20 = scmp.ge.s32.totalorder %s19, 4
    %s26 = sphi 0, %s38
    %s27 = sphi 0, %s34
    %s28 = sphi 0, %s26
    %s29 = sphi 0, %s27
    %s30 = sphi 0, %s28
    %s31 = sphi 0, %s29
    %s51 = sphi 0, %s53
    %s54 = sphi 0, %s51
    %s55 = sphi 0, %s54
    %s71 = sphi 0, %s55
    %s87 = sphi 0, %s89
    %s90 = sphi 0, %s87
    %s91 = sphi 0, %s90
    %s107 = sphi 0, %s91
    %s115 = sphi 0, %s117
    %s118 = sphi 0, %s115
    %s119 = sphi 0, %s118
    %s135 = sphi 0, %s119
    %s151 = sphi 0, %s153
    %s154 = sphi 0, %s151
    %s155 = sphi 0, %s154
    %s171 = sphi 0, %s155
    %s189 = sphi 0, %s191
    %s192 = sphi 0, %s189
    %s193 = sphi 0, %s192
    %s209 = sphi 0, %s193
    %s215 = sphi 0, %s217
    %s218 = sphi 0, %s215
    %s219 = sphi 0, %s218
    %s235 = sphi 0, %s219
    %s241 = sphi 0, %s243
    %s244 = sphi 0, %s241
    %s245 = sphi 0, %s244
    %s261 = sphi 0, %s245
    %s265 = sphi 0, %s265
    %s267 = sphi 0, %s265
    %s268 = sphi 0, %s267
    %s282 = sphi 0, %s268
    %s286 = sphi 0, %s286
    %s288 = sphi 0, %s286
    %s289 = sphi 0, %s288
    %s303 = sphi 0, %s289
    %s307 = sphi 0, %s307
    %s309 = sphi 0, %s307
    %s310 = sphi 0, %s309
    %s324 = sphi 0, %s310
    %s328 = sphi 0, %s328
    %s330 = sphi 0, %s328
    %s331 = sphi 0, %s330
    %s345 = sphi 0, %s331
    %s349 = sphi 0, %s349
    %s351 = sphi 0, %s349
    %s352 = sphi 0, %s351
    %s366 = sphi 0, %s352
    %s370 = sphi 0, %s370
    %s372 = sphi 0, %s370
    %s373 = sphi 0, %s372
    %s387 = sphi 0, %s373
    %s395 = sphi 0, %s397
    %s398 = sphi 0, %s395
    %s399 = sphi 0, %s398
    %s415 = sphi 0, %s399
  $region4: #{g_block_pallas.5} parent=0 // loop_header_branch
    %22 = sbr.rel (%p20) target = $region8
  $region5: #{g_block_pallas.5} parent=0 // loop_body
    %s24 = ssub.s32 %s19, 1
    %s25 = ssub.s32 %s19, 2
    %s32 = sadd.s32 1, %s27
    %p33 = scmp.ge.s32.totalorder %s32, 1
    %s34 = scalar_select %p33, 0, %s32
    %s35 = sadd.s32 1, %s26
    %s36 = scalar_select %p33, %s35, %s26
    %p37 = scmp.ge.s32.totalorder %s36, 2
    %s38 = scalar_select %p37, 0, %s36
    %s39 = smul.u32 %s27, 16
    %s40 = ssub.s32 %s39, 2
    %p41 = scmp.gt.s32.totalorder %s40, 0
    %s42 = scalar_select %p41, %s40, 0
    %s43 = smul.u32 %s34, 16
    %s44 = ssub.s32 %s43, 2
    %p45 = scmp.gt.s32.totalorder %s44, 0
    %s46 = scalar_select %p45, %s44, 0
    %s47 = ssub.s32 %s26, %s38
    %s48 = ssub.s32 %s42, %s46
    %s49 = sor.u32 %s47, %s48
    %p50 = scmp.eq.s32.totalorder %s49, 0
    %s52 = sadd.s32 %s51, 1
    %s53 = scalar_select %p50, %s51, %s52
    %p56 = pneg %p50
    %p57 = scmp.eq.s32.totalorder %s19, 1
    %p58 = por %p56, %p57
    %p59 = scmp.ne.s32.totalorder %s51, %s54
    %p60 = scmp.eq.s32.totalorder %s19, 0
    %p61 = por %p59, %p60
    %p62 = scmp.ne.s32.totalorder %s51, %s54
    %p63 = scmp.eq.s32.totalorder %s24, 1
    %p64 = por %p62, %p63
    %p65 = scmp.ne.s32.totalorder %s54, %s55
    %p66 = scmp.eq.s32.totalorder %s24, 0
    %p67 = por %p65, %p66
    %p68 = scmp.ne.s32.totalorder %s54, %s55
    %p69 = scmp.eq.s32.totalorder %s25, 1
    %p70 = por %p68, %p69
    %p72 = scmp.ne.s32.totalorder %s55, %s71
    %p73 = scmp.eq.s32.totalorder %s25, 0
    %p74 = por %p72, %p73
    %s75 = smul.u32 %s27, 16
    %s76 = ssub.s32 %s75, 1
    %p77 = scmp.gt.s32.totalorder %s76, 0
    %s78 = scalar_select %p77, %s76, 0
    %s79 = smul.u32 %s34, 16
    %s80 = ssub.s32 %s79, 1
    %p81 = scmp.gt.s32.totalorder %s80, 0
    %s82 = scalar_select %p81, %s80, 0
    %s83 = ssub.s32 %s26, %s38
    %s84 = ssub.s32 %s78, %s82
    %s85 = sor.u32 %s83, %s84
    %p86 = scmp.eq.s32.totalorder %s85, 0
    %s88 = sadd.s32 %s87, 1
    %s89 = scalar_select %p86, %s87, %s88
    %p92 = pneg %p86
    %p93 = scmp.eq.s32.totalorder %s19, 1
    %p94 = por %p92, %p93
    %p95 = scmp.ne.s32.totalorder %s87, %s90
    %p96 = scmp.eq.s32.totalorder %s19, 0
    %p97 = por %p95, %p96
    %p98 = scmp.ne.s32.totalorder %s87, %s90
    %p99 = scmp.eq.s32.totalorder %s24, 1
    %p100 = por %p98, %p99
    %p101 = scmp.ne.s32.totalorder %s90, %s91
    %p102 = scmp.eq.s32.totalorder %s24, 0
    %p103 = por %p101, %p102
    %p104 = scmp.ne.s32.totalorder %s90, %s91
    %p105 = scmp.eq.s32.totalorder %s25, 1
    %p106 = por %p104, %p105
    %p108 = scmp.ne.s32.totalorder %s91, %s107
    %p109 = scmp.eq.s32.totalorder %s25, 0
    %p110 = por %p108, %p109
    %s111 = ssub.s32 %s26, %s38
    %s112 = ssub.s32 %s27, %s34
    %s113 = sor.u32 %s111, %s112
    %p114 = scmp.eq.s32.totalorder %s113, 0
    %s116 = sadd.s32 %s115, 1
    %s117 = scalar_select %p114, %s115, %s116
    %p120 = pneg %p114
    %p121 = scmp.eq.s32.totalorder %s19, 1
    %p122 = por %p120, %p121
    %p123 = scmp.ne.s32.totalorder %s115, %s118
    %p124 = scmp.eq.s32.totalorder %s19, 0
    %p125 = por %p123, %p124
    %p126 = scmp.ne.s32.totalorder %s115, %s118
    %p127 = scmp.eq.s32.totalorder %s24, 1
    %p128 = por %p126, %p127
    %p129 = scmp.ne.s32.totalorder %s118, %s119
    %p130 = scmp.eq.s32.totalorder %s24, 0
    %p131 = por %p129, %p130
    %p132 = scmp.ne.s32.totalorder %s118, %s119
    %p133 = scmp.eq.s32.totalorder %s25, 1
    %p134 = por %p132, %p133
    %p136 = scmp.ne.s32.totalorder %s119, %s135
    %p137 = scmp.eq.s32.totalorder %s25, 0
    %p138 = por %p136, %p137
    %s139 = sadd.s32 %s27, 1
    %s140 = smul.u32 %s139, 16
    %p141 = scmp.lt.s32.totalorder %s140, 15
    %s142 = scalar_select %p141, %s140, 15
    %s143 = sadd.s32 %s34, 1
    %s144 = smul.u32 %s143, 16
    %p145 = scmp.lt.s32.totalorder %s144, 15
    %s146 = scalar_select %p145, %s144, 15
    %s147 = ssub.s32 %s26, %s38
    %s148 = ssub.s32 %s142, %s146
    %s149 = sor.u32 %s147, %s148
    %p150 = scmp.eq.s32.totalorder %s149, 0
    %s152 = sadd.s32 %s151, 1
    %s153 = scalar_select %p150, %s151, %s152
    %p156 = pneg %p150
    %p157 = scmp.eq.s32.totalorder %s19, 1
    %p158 = por %p156, %p157
    %p159 = scmp.ne.s32.totalorder %s151, %s154
    %p160 = scmp.eq.s32.totalorder %s19, 0
    %p161 = por %p159, %p160
    %p162 = scmp.ne.s32.totalorder %s151, %s154
    %p163 = scmp.eq.s32.totalorder %s24, 1
    %p164 = por %p162, %p163
    %p165 = scmp.ne.s32.totalorder %s154, %s155
    %p166 = scmp.eq.s32.totalorder %s24, 0
    %p167 = por %p165, %p166
    %p168 = scmp.ne.s32.totalorder %s154, %s155
    %p169 = scmp.eq.s32.totalorder %s25, 1
    %p170 = por %p168, %p169
    %p172 = scmp.ne.s32.totalorder %s155, %s171
    %p173 = scmp.eq.s32.totalorder %s25, 0
    %p174 = por %p172, %p173
    %s175 = sadd.s32 %s27, 1
    %s176 = smul.u32 %s175, 16
    %s177 = sadd.s32 %s176, 1
    %p178 = scmp.lt.s32.totalorder %s177, 15
    %s179 = scalar_select %p178, %s177, 15
    %s180 = sadd.s32 %s34, 1
    %s181 = smul.u32 %s180, 16
    %s182 = sadd.s32 %s181, 1
    %p183 = scmp.lt.s32.totalorder %s182, 15
    %s184 = scalar_select %p183, %s182, 15
    %s185 = ssub.s32 %s26, %s38
    %s186 = ssub.s32 %s179, %s184
    %s187 = sor.u32 %s185, %s186
    %p188 = scmp.eq.s32.totalorder %s187, 0
    %s190 = sadd.s32 %s189, 1
    %s191 = scalar_select %p188, %s189, %s190
    %p194 = pneg %p188
    %p195 = scmp.eq.s32.totalorder %s19, 1
    %p196 = por %p194, %p195
    %p197 = scmp.ne.s32.totalorder %s189, %s192
    %p198 = scmp.eq.s32.totalorder %s19, 0
    %p199 = por %p197, %p198
    %p200 = scmp.ne.s32.totalorder %s189, %s192
    %p201 = scmp.eq.s32.totalorder %s24, 1
    %p202 = por %p200, %p201
    %p203 = scmp.ne.s32.totalorder %s192, %s193
    %p204 = scmp.eq.s32.totalorder %s24, 0
    %p205 = por %p203, %p204
    %p206 = scmp.ne.s32.totalorder %s192, %s193
    %p207 = scmp.eq.s32.totalorder %s25, 1
    %p208 = por %p206, %p207
    %p210 = scmp.ne.s32.totalorder %s193, %s209
    %p211 = scmp.eq.s32.totalorder %s25, 0
    %p212 = por %p210, %p211
    %s213 = ssub.s32 %s26, %s38
    %p214 = scmp.eq.s32.totalorder %s213, 0
    %s216 = sadd.s32 %s215, 1
    %s217 = scalar_select %p214, %s215, %s216
    %p220 = pneg %p214
    %p221 = scmp.eq.s32.totalorder %s19, 1
    %p222 = por %p220, %p221
    %p223 = scmp.ne.s32.totalorder %s215, %s218
    %p224 = scmp.eq.s32.totalorder %s19, 0
    %p225 = por %p223, %p224
    %p226 = scmp.ne.s32.totalorder %s215, %s218
    %p227 = scmp.eq.s32.totalorder %s24, 1
    %p228 = por %p226, %p227
    %p229 = scmp.ne.s32.totalorder %s218, %s219
    %p230 = scmp.eq.s32.totalorder %s24, 0
    %p231 = por %p229, %p230
    %p232 = scmp.ne.s32.totalorder %s218, %s219
    %p233 = scmp.eq.s32.totalorder %s25, 1
    %p234 = por %p232, %p233
    %p236 = scmp.ne.s32.totalorder %s219, %s235
    %p237 = scmp.eq.s32.totalorder %s25, 0
    %p238 = por %p236, %p237
    %s239 = ssub.s32 %s26, %s38
    %p240 = scmp.eq.s32.totalorder %s239, 0
    %s242 = sadd.s32 %s241, 1
    %s243 = scalar_select %p240, %s241, %s242
    %p246 = pneg %p240
    %p247 = scmp.eq.s32.totalorder %s19, 1
    %p248 = por %p246, %p247
    %p249 = scmp.ne.s32.totalorder %s241, %s244
    %p250 = scmp.eq.s32.totalorder %s19, 0
    %p251 = por %p249, %p250
    %p252 = scmp.ne.s32.totalorder %s241, %s244
    %p253 = scmp.eq.s32.totalorder %s24, 1
    %p254 = por %p252, %p253
    %p255 = scmp.ne.s32.totalorder %s244, %s245
    %p256 = scmp.eq.s32.totalorder %s24, 0
    %p257 = por %p255, %p256
    %p258 = scmp.ne.s32.totalorder %s244, %s245
    %p259 = scmp.eq.s32.totalorder %s25, 1
    %p260 = por %p258, %p259
    %p262 = scmp.ne.s32.totalorder %s245, %s261
    %p263 = scmp.eq.s32.totalorder %s25, 0
    %p264 = por %p262, %p263
    %s266 = sadd.s32 %s265, 1
    %p269 = scmp.eq.s32.totalorder %s19, 1
    %p270 = scmp.ne.s32.totalorder %s265, %s267
    %p271 = scmp.eq.s32.totalorder %s19, 0
    %p272 = por %p270, %p271
    %p273 = scmp.ne.s32.totalorder %s265, %s267
    %p274 = scmp.eq.s32.totalorder %s24, 1
    %p275 = por %p273, %p274
    %p276 = scmp.ne.s32.totalorder %s267, %s268
    %p277 = scmp.eq.s32.totalorder %s24, 0
    %p278 = por %p276, %p277
    %p279 = scmp.ne.s32.totalorder %s267, %s268
    %p280 = scmp.eq.s32.totalorder %s25, 1
    %p281 = por %p279, %p280
    %p283 = scmp.ne.s32.totalorder %s268, %s282
    %p284 = scmp.eq.s32.totalorder %s25, 0
    %p285 = por %p283, %p284
    %s287 = sadd.s32 %s286, 1
    %p290 = scmp.eq.s32.totalorder %s19, 1
    %p291 = scmp.ne.s32.totalorder %s286, %s288
    %p292 = scmp.eq.s32.totalorder %s19, 0
    %p293 = por %p291, %p292
    %p294 = scmp.ne.s32.totalorder %s286, %s288
    %p295 = scmp.eq.s32.totalorder %s24, 1
    %p296 = por %p294, %p295
    %p297 = scmp.ne.s32.totalorder %s288, %s289
    %p298 = scmp.eq.s32.totalorder %s24, 0
    %p299 = por %p297, %p298
    %p300 = scmp.ne.s32.totalorder %s288, %s289
    %p301 = scmp.eq.s32.totalorder %s25, 1
    %p302 = por %p300, %p301
    %p304 = scmp.ne.s32.totalorder %s289, %s303
    %p305 = scmp.eq.s32.totalorder %s25, 0
    %p306 = por %p304, %p305
    %s308 = sadd.s32 %s307, 1
    %p311 = scmp.eq.s32.totalorder %s19, 1
    %p312 = scmp.ne.s32.totalorder %s307, %s309
    %p313 = scmp.eq.s32.totalorder %s19, 0
    %p314 = por %p312, %p313
    %p315 = scmp.ne.s32.totalorder %s307, %s309
    %p316 = scmp.eq.s32.totalorder %s24, 1
    %p317 = por %p315, %p316
    %p318 = scmp.ne.s32.totalorder %s309, %s310
    %p319 = scmp.eq.s32.totalorder %s24, 0
    %p320 = por %p318, %p319
    %p321 = scmp.ne.s32.totalorder %s309, %s310
    %p322 = scmp.eq.s32.totalorder %s25, 1
    %p323 = por %p321, %p322
    %p325 = scmp.ne.s32.totalorder %s310, %s324
    %p326 = scmp.eq.s32.totalorder %s25, 0
    %p327 = por %p325, %p326
    %s329 = sadd.s32 %s328, 1
    %p332 = scmp.eq.s32.totalorder %s19, 1
    %p333 = scmp.ne.s32.totalorder %s328, %s330
    %p334 = scmp.eq.s32.totalorder %s19, 0
    %p335 = por %p333, %p334
    %p336 = scmp.ne.s32.totalorder %s328, %s330
    %p337 = scmp.eq.s32.totalorder %s24, 1
    %p338 = por %p336, %p337
    %p339 = scmp.ne.s32.totalorder %s330, %s331
    %p340 = scmp.eq.s32.totalorder %s24, 0
    %p341 = por %p339, %p340
    %p342 = scmp.ne.s32.totalorder %s330, %s331
    %p343 = scmp.eq.s32.totalorder %s25, 1
    %p344 = por %p342, %p343
    %p346 = scmp.ne.s32.totalorder %s331, %s345
    %p347 = scmp.eq.s32.totalorder %s25, 0
    %p348 = por %p346, %p347
    %s350 = sadd.s32 %s349, 1
    %p353 = scmp.eq.s32.totalorder %s19, 1
    %p354 = scmp.ne.s32.totalorder %s349, %s351
    %p355 = scmp.eq.s32.totalorder %s19, 0
    %p356 = por %p354, %p355
    %p357 = scmp.ne.s32.totalorder %s349, %s351
    %p358 = scmp.eq.s32.totalorder %s24, 1
    %p359 = por %p357, %p358
    %p360 = scmp.ne.s32.totalorder %s351, %s352
    %p361 = scmp.eq.s32.totalorder %s24, 0
    %p362 = por %p360, %p361
    %p363 = scmp.ne.s32.totalorder %s351, %s352
    %p364 = scmp.eq.s32.totalorder %s25, 1
    %p365 = por %p363, %p364
    %p367 = scmp.ne.s32.totalorder %s352, %s366
    %p368 = scmp.eq.s32.totalorder %s25, 0
    %p369 = por %p367, %p368
    %s371 = sadd.s32 %s370, 1
    %p374 = scmp.eq.s32.totalorder %s19, 1
    %p375 = scmp.ne.s32.totalorder %s370, %s372
    %p376 = scmp.eq.s32.totalorder %s19, 0
    %p377 = por %p375, %p376
    %p378 = scmp.ne.s32.totalorder %s370, %s372
    %p379 = scmp.eq.s32.totalorder %s24, 1
    %p380 = por %p378, %p379
    %p381 = scmp.ne.s32.totalorder %s372, %s373
    %p382 = scmp.eq.s32.totalorder %s24, 0
    %p383 = por %p381, %p382
    %p384 = scmp.ne.s32.totalorder %s372, %s373
    %p385 = scmp.eq.s32.totalorder %s25, 1
    %p386 = por %p384, %p385
    %p388 = scmp.ne.s32.totalorder %s373, %s387
    %p389 = scmp.eq.s32.totalorder %s25, 0
    %p390 = por %p388, %p389
    %s391 = ssub.s32 %s26, %s38
    %s392 = ssub.s32 %s27, %s34
    %s393 = sor.u32 %s391, %s392
    %p394 = scmp.eq.s32.totalorder %s393, 0
    %s396 = sadd.s32 %s395, 1
    %s397 = scalar_select %p394, %s395, %s396
    %p400 = pneg %p394
    %p401 = scmp.eq.s32.totalorder %s19, 1
    %p402 = por %p400, %p401
    %p403 = scmp.ne.s32.totalorder %s395, %s398
    %p404 = scmp.eq.s32.totalorder %s19, 0
    %p405 = por %p403, %p404
    %p406 = scmp.ne.s32.totalorder %s395, %s398
    %p407 = scmp.eq.s32.totalorder %s24, 1
    %p408 = por %p406, %p407
    %p409 = scmp.ne.s32.totalorder %s398, %s399
    %p410 = scmp.eq.s32.totalorder %s24, 0
    %p411 = por %p409, %p410
    %p412 = scmp.ne.s32.totalorder %s398, %s399
    %p413 = scmp.eq.s32.totalorder %s25, 1
    %p414 = por %p412, %p413
    %p416 = scmp.ne.s32.totalorder %s399, %s415
    %p417 = scmp.eq.s32.totalorder %s25, 0
    %p418 = por %p416, %p417
    %p419 = scmp.le.s32.totalorder 1, %s19
    %p420 = scmp.lt.s32.totalorder %s19, 3
    %p421 = pnand %p419, %p420
    %p422 = pneg %p421
    // Predicated region
    $region9: #{g_block_pallas.5} parent=5 // pred_check
      _
    $region10: #{g_block_pallas.5} parent=5 // pred_check_branch
      %424 = sbr.rel (%p421) target = $region12
    $region11: #{g_block_pallas.5} parent=5 // pred_region
      %s425 = ssub.s32 %s19, 1
      // Predicated region
      $region13: #{g_block_pallas.5} parent=11 // pred_check
        %p426 = pneg %p278
      $region14: #{g_block_pallas.5} parent=11 // pred_check_branch
        %428 = sbr.rel (%p426) target = $region16
      $region15: #{g_block_pallas.5} parent=11 // pred_region
        _
      $region16: #{g_block_pallas.5} parent=11 // pred_fallthru
        _
      // Predicated region
      $region17: #{g_block_pallas.5} parent=11 // pred_check
        %p429 = pneg %p299
      $region18: #{g_block_pallas.5} parent=11 // pred_check_branch
        %431 = sbr.rel (%p429) target = $region20
      $region19: #{g_block_pallas.5} parent=11 // pred_region
        _
      $region20: #{g_block_pallas.5} parent=11 // pred_fallthru
        _
      // Predicated region
      $region21: #{g_block_pallas.5} parent=11 // pred_check
        %p432 = pneg %p320
      $region22: #{g_block_pallas.5} parent=11 // pred_check_branch
        %434 = sbr.rel (%p432) target = $region24
      $region23: #{g_block_pallas.5} parent=11 // pred_region
        _
      $region24: #{g_block_pallas.5} parent=11 // pred_fallthru
        _
      // Predicated region
      $region25: #{g_block_pallas.5} parent=11 // pred_check
        %p435 = pneg %p341
      $region26: #{g_block_pallas.5} parent=11 // pred_check_branch
        %437 = sbr.rel (%p435) target = $region28
      $region27: #{g_block_pallas.5} parent=11 // pred_region
        _
      $region28: #{g_block_pallas.5} parent=11 // pred_fallthru
        _
      // Predicated region
      $region29: #{g_block_pallas.5} parent=11 // pred_check
        %p438 = pneg %p362
      $region30: #{g_block_pallas.5} parent=11 // pred_check_branch
        %440 = sbr.rel (%p438) target = $region32
      $region31: #{g_block_pallas.5} parent=11 // pred_region
        _
      $region32: #{g_block_pallas.5} parent=11 // pred_fallthru
        _
      // Predicated region
      $region33: #{g_block_pallas.5} parent=11 // pred_check
        %p441 = pneg %p383
      $region34: #{g_block_pallas.5} parent=11 // pred_check_branch
        %443 = sbr.rel (%p441) target = $region36
      $region35: #{g_block_pallas.5} parent=11 // pred_region
        _
      $region36: #{g_block_pallas.5} parent=11 // pred_fallthru
        _
    $region12: #{g_block_pallas.5} parent=5 // pred_fallthru
      _
    %p444 = scmp.lt.s32.totalorder %s19, 2
    // Predicated region
    $region37: #{g_block_pallas.5} parent=5 // pred_check
      %p445 = pneg %p444
    $region38: #{g_block_pallas.5} parent=5 // pred_check_branch
      %447 = sbr.rel (%p445) target = $region40
    $region39: #{g_block_pallas.5} parent=5 // pred_region
      // Predicated region
      $region41: #{g_block_pallas.5} parent=39 // pred_check
        %p448 = pneg %p61
      $region42: #{g_block_pallas.5} parent=39 // pred_check_branch
        %450 = sbr.rel (%p448) target = $region44
      $region43: #{g_block_pallas.5} parent=39 // pred_region
        %s451 = smul.u32 %s27, 16
        %s452 = ssub.s32 %s451, 2
        %p453 = scmp.gt.s32.totalorder %s452, 0
        %s454 = scalar_select %p453, %s452, 0
        %p455 = scmp.lt.s32.totalorder %s26, 1
        %s456 = scalar_select %p455, %s26, 1
        %p457 = scmp.lt.s32.totalorder %s454, 15
        %s458 = scalar_select %p457, %s454, 15
        %s459 = smul.addr %s458, 2
        %s460 = smul.addr %s456, 32
        %s461 = sadd.s32 %s459, %s460
        %s462 = smul.addr %s461, 8
        %s463 = scalar_lea.vmem %s0, %s462
        %s464 = smul.u32 %s27, 16
        %s465 = ssub.s32 %s464, 2
        %p466 = scmp.gt.s32.totalorder %s465, 0
        %s467 = scalar_select %p466, %s465, 0
      $region44: #{g_block_pallas.5} parent=39 // pred_fallthru
        _
      // Predicated region
      $region45: #{g_block_pallas.5} parent=39 // pred_check
        %p468 = pneg %p97
      $region46: #{g_block_pallas.5} parent=39 // pred_check_branch
        %470 = sbr.rel (%p468) target = $region48
      $region47: #{g_block_pallas.5} parent=39 // pred_region
        %s471 = smul.u32 %s27, 16
        %s472 = ssub.s32 %s471, 1
        %p473 = scmp.gt.s32.totalorder %s472, 0
        %s474 = scalar_select %p473, %s472, 0
        %p475 = scmp.lt.s32.totalorder %s26, 1
        %s476 = scalar_select %p475, %s26, 1
        %p477 = scmp.lt.s32.totalorder %s474, 15
        %s478 = scalar_select %p477, %s474, 15
        %s479 = smul.addr %s478, 2
        %s480 = smul.addr %s476, 32
        %s481 = sadd.s32 %s479, %s480
        %s482 = smul.addr %s481, 8
        %s483 = scalar_lea.vmem %s1, %s482
        %s484 = smul.u32 %s27, 16
        %s485 = ssub.s32 %s484, 1
        %p486 = scmp.gt.s32.totalorder %s485, 0
        %s487 = scalar_select %p486, %s485, 0
      $region48: #{g_block_pallas.5} parent=39 // pred_fallthru
        _
      // Predicated region
      $region49: #{g_block_pallas.5} parent=39 // pred_check
        %p488 = pneg %p125
      $region50: #{g_block_pallas.5} parent=39 // pred_check_branch
        %490 = sbr.rel (%p488) target = $region52
      $region51: #{g_block_pallas.5} parent=39 // pred_region
        %s491 = smul.u32 16, %s27
        %p492 = scmp.lt.s32.totalorder %s26, 1
        %s493 = scalar_select %p492, %s26, 1
        %p494 = scmp.lt.s32.totalorder %s491, 15
        %s495 = scalar_select %p494, %s491, 15
        %s496 = smul.addr %s495, 2
        %s497 = smul.addr %s493, 32
        %s498 = sadd.s32 %s496, %s497
        %s499 = smul.addr %s498, 8
        %s500 = scalar_lea.vmem %s2, %s499
        %s501 = smul.u32 16, %s27
      $region52: #{g_block_pallas.5} parent=39 // pred_fallthru
        _
      // Predicated region
      $region53: #{g_block_pallas.5} parent=39 // pred_check
        %p502 = pneg %p161
      $region54: #{g_block_pallas.5} parent=39 // pred_check_branch
        %504 = sbr.rel (%p502) target = $region56
      $region55: #{g_block_pallas.5} parent=39 // pred_region
        %s505 = sadd.s32 %s27, 1
        %s506 = smul.u32 %s505, 16
        %p507 = scmp.lt.s32.totalorder %s506, 15
        %s508 = scalar_select %p507, %s506, 15
        %p509 = scmp.lt.s32.totalorder %s26, 1
        %s510 = scalar_select %p509, %s26, 1
        %p511 = scmp.lt.s32.totalorder %s508, 15
        %s512 = scalar_select %p511, %s508, 15
        %s513 = smul.addr %s512, 2
        %s514 = smul.addr %s510, 32
        %s515 = sadd.s32 %s513, %s514
        %s516 = smul.addr %s515, 8
        %s517 = scalar_lea.vmem %s3, %s516
        %s518 = sadd.s32 %s27, 1
        %s519 = smul.u32 %s518, 16
        %p520 = scmp.lt.s32.totalorder %s519, 15
        %s521 = scalar_select %p520, %s519, 15
      $region56: #{g_block_pallas.5} parent=39 // pred_fallthru
        _
      // Predicated region
      $region57: #{g_block_pallas.5} parent=39 // pred_check
        %p522 = pneg %p199
      $region58: #{g_block_pallas.5} parent=39 // pred_check_branch
        %524 = sbr.rel (%p522) target = $region60
      $region59: #{g_block_pallas.5} parent=39 // pred_region
        %s525 = sadd.s32 %s27, 1
        %s526 = smul.u32 %s525, 16
        %s527 = sadd.s32 %s526, 1
        %p528 = scmp.lt.s32.totalorder %s527, 15
        %s529 = scalar_select %p528, %s527, 15
        %p530 = scmp.lt.s32.totalorder %s26, 1
        %s531 = scalar_select %p530, %s26, 1
        %p532 = scmp.lt.s32.totalorder %s529, 15
        %s533 = scalar_select %p532, %s529, 15
        %s534 = smul.addr %s533, 2
        %s535 = smul.addr %s531, 32
        %s536 = sadd.s32 %s534, %s535
        %s537 = smul.addr %s536, 8
        %s538 = scalar_lea.vmem %s4, %s537
        %s539 = sadd.s32 %s27, 1
        %s540 = smul.u32 %s539, 16
        %s541 = sadd.s32 %s540, 1
        %p542 = scmp.lt.s32.totalorder %s541, 15
        %s543 = scalar_select %p542, %s541, 15
      $region60: #{g_block_pallas.5} parent=39 // pred_fallthru
        _
      // Predicated region
      $region61: #{g_block_pallas.5} parent=39 // pred_check
        %p544 = pneg %p225
      $region62: #{g_block_pallas.5} parent=39 // pred_check_branch
        %546 = sbr.rel (%p544) target = $region64
      $region63: #{g_block_pallas.5} parent=39 // pred_region
        %p547 = scmp.lt.s32.totalorder %s26, 1
        %s548 = scalar_select %p547, %s26, 1
        %s549 = smul.addr %s548, 4
        %s550 = scalar_lea.vmem %s5, %s549
      $region64: #{g_block_pallas.5} parent=39 // pred_fallthru
        _
      // Predicated region
      $region65: #{g_block_pallas.5} parent=39 // pred_check
        %p551 = pneg %p251
      $region66: #{g_block_pallas.5} parent=39 // pred_check_branch
        %553 = sbr.rel (%p551) target = $region68
      $region67: #{g_block_pallas.5} parent=39 // pred_region
        %p554 = scmp.lt.s32.totalorder %s26, 1
        %s555 = scalar_select %p554, %s26, 1
        %s556 = smul.addr %s555, 4
        %s557 = scalar_lea.vmem %s6, %s556
      $region68: #{g_block_pallas.5} parent=39 // pred_fallthru
        _
    $region40: #{g_block_pallas.5} parent=5 // pred_fallthru
      _
    %p558 = scmp.le.s32.totalorder 1, %s19
    %p559 = scmp.lt.s32.totalorder %s19, 3
    %p560 = pnand %p558, %p559
    %p561 = pneg %p560
    // Predicated region
    $region69: #{g_block_pallas.5} parent=5 // pred_check
      _
    $region70: #{g_block_pallas.5} parent=5 // pred_check_branch
      %563 = sbr.rel (%p560) target = $region72
    $region71: #{g_block_pallas.5} parent=5 // pred_region
      %s564 = ssub.s32 %s19, 1
      %s565 = smul.u32 %s29, 16
      %s566 = ssub.s32 %s565, 2
      %p567 = scmp.gt.s32.totalorder %s566, 0
      %s568 = scalar_select %p567, %s566, 0
      %p569 = scmp.lt.s32.totalorder %s28, 1
      %s570 = scalar_select %p569, %s28, 1
      %p571 = scmp.lt.s32.totalorder %s568, 15
      %s572 = scalar_select %p571, %s568, 15
      %s573 = smul.addr %s572, 2
      %s574 = smul.addr %s570, 32
      %s575 = sadd.s32 %s573, %s574
      %s576 = smul.addr %s575, 8
      %s577 = scalar_lea.vmem %s0, %s576
      %p578 = pneg %p67
      %p579 = pneg %p64
      %s580 = smul.u32 %s29, 16
      %s581 = ssub.s32 %s580, 1
      %p582 = scmp.gt.s32.totalorder %s581, 0
      %s583 = scalar_select %p582, %s581, 0
      %p584 = scmp.lt.s32.totalorder %s28, 1
      %s585 = scalar_select %p584, %s28, 1
      %p586 = scmp.lt.s32.totalorder %s583, 15
      %s587 = scalar_select %p586, %s583, 15
      %s588 = smul.addr %s587, 2
      %s589 = smul.addr %s585, 32
      %s590 = sadd.s32 %s588, %s589
      %s591 = smul.addr %s590, 8
      %s592 = scalar_lea.vmem %s1, %s591
      %p593 = pneg %p103
      %p594 = pneg %p100
      %s595 = smul.u32 16, %s29
      %p596 = scmp.lt.s32.totalorder %s28, 1
      %s597 = scalar_select %p596, %s28, 1
      %p598 = scmp.lt.s32.totalorder %s595, 15
      %s599 = scalar_select %p598, %s595, 15
      %s600 = smul.addr %s599, 2
      %s601 = smul.addr %s597, 32
      %s602 = sadd.s32 %s600, %s601
      %s603 = smul.addr %s602, 8
      %s604 = scalar_lea.vmem %s2, %s603
      %p605 = pneg %p131
      %p606 = pneg %p128
      %s607 = sadd.s32 %s29, 1
      %s608 = smul.u32 %s607, 16
      %p609 = scmp.lt.s32.totalorder %s608, 15
      %s610 = scalar_select %p609, %s608, 15
      %p611 = scmp.lt.s32.totalorder %s28, 1
      %s612 = scalar_select %p611, %s28, 1
      %p613 = scmp.lt.s32.totalorder %s610, 15
      %s614 = scalar_select %p613, %s610, 15
      %s615 = smul.addr %s614, 2
      %s616 = smul.addr %s612, 32
      %s617 = sadd.s32 %s615, %s616
      %s618 = smul.addr %s617, 8
      %s619 = scalar_lea.vmem %s3, %s618
      %p620 = pneg %p167
      %p621 = pneg %p164
      %s622 = sadd.s32 %s29, 1
      %s623 = smul.u32 %s622, 16
      %s624 = sadd.s32 %s623, 1
      %p625 = scmp.lt.s32.totalorder %s624, 15
      %s626 = scalar_select %p625, %s624, 15
      %p627 = scmp.lt.s32.totalorder %s28, 1
      %s628 = scalar_select %p627, %s28, 1
      %p629 = scmp.lt.s32.totalorder %s626, 15
      %s630 = scalar_select %p629, %s626, 15
      %s631 = smul.addr %s630, 2
      %s632 = smul.addr %s628, 32
      %s633 = sadd.s32 %s631, %s632
      %s634 = smul.addr %s633, 8
      %s635 = scalar_lea.vmem %s4, %s634
      %p636 = pneg %p205
      %p637 = pneg %p202
      %p638 = scmp.lt.s32.totalorder %s28, 1
      %s639 = scalar_select %p638, %s28, 1
      %s640 = smul.addr %s639, 4
      %s641 = scalar_lea.vmem %s5, %s640
      %p642 = pneg %p231
      %p643 = pneg %p228
      %p644 = scmp.lt.s32.totalorder %s28, 1
      %s645 = scalar_select %p644, %s28, 1
      %s646 = smul.addr %s645, 4
      %s647 = scalar_lea.vmem %s6, %s646
      %p648 = pneg %p257
      %p649 = pneg %p254
      %p650 = pneg %p278
      %p651 = pneg %p275
      %p652 = pneg %p299
      %p653 = pneg %p296
      %p654 = pneg %p320
      %p655 = pneg %p317
      %p656 = pneg %p341
      %p657 = pneg %p338
      %p658 = pneg %p362
      %p659 = pneg %p359
      %p660 = pneg %p383
      %p661 = pneg %p380
      %p662 = pneg %p411
      %p663 = pneg %p408
      %s664 = smul.u32 2, %s29
      %p665 = scmp.lt.s32.totalorder %s28, 1
      %s666 = scalar_select %p665, %s28, 1
      %p667 = scmp.lt.s32.totalorder %s664, 1
      %s668 = scalar_select %p667, %s664, 1
      %s669 = smul.addr %s666, 4
      %s670 = sadd.s32 %s668, %s669
      %s671 = smul.addr %s670, 8
      %s672 = scalar_lea.vmem %s13, %s671
      %s673 = smul.u32 %s29, 16
      %s674 = ssub.s32 %s673, 2
      %p675 = scmp.gt.s32.totalorder %s674, 0
      %s676 = scalar_select %p675, %s674, 0
      %p677 = scmp.lt.s32.totalorder %s28, 1
      %s678 = scalar_select %p677, %s28, 1
      %p679 = scmp.lt.s32.totalorder %s676, 15
      %s680 = scalar_select %p679, %s676, 15
      %s681 = smul.addr %s680, 2
      %s682 = smul.addr %s678, 32
      %s683 = sadd.s32 %s681, %s682
      %s684 = smul.addr %s683, 8
      %s685 = scalar_lea.vmem %s0, %s684
      %s686 = smul.u32 %s29, 16
      %s687 = ssub.s32 %s686, 2
      %p688 = scmp.gt.s32.totalorder %s687, 0
      %s689 = scalar_select %p688, %s687, 0
      %s690 = smul.u32 %s29, 16
      %s691 = ssub.s32 %s690, 1
      %p692 = scmp.gt.s32.totalorder %s691, 0
      %s693 = scalar_select %p692, %s691, 0
      %p694 = scmp.lt.s32.totalorder %s28, 1
      %s695 = scalar_select %p694, %s28, 1
      %p696 = scmp.lt.s32.totalorder %s693, 15
      %s697 = scalar_select %p696, %s693, 15
      %s698 = smul.addr %s697, 2
      %s699 = smul.addr %s695, 32
      %s700 = sadd.s32 %s698, %s699
      %s701 = smul.addr %s700, 8
      %s702 = scalar_lea.vmem %s1, %s701
      %s703 = smul.u32 %s29, 16
      %s704 = ssub.s32 %s703, 1
      %p705 = scmp.gt.s32.totalorder %s704, 0
      %s706 = scalar_select %p705, %s704, 0
      %s707 = smul.u32 16, %s29
      %p708 = scmp.lt.s32.totalorder %s28, 1
      %s709 = scalar_select %p708, %s28, 1
      %p710 = scmp.lt.s32.totalorder %s707, 15
      %s711 = scalar_select %p710, %s707, 15
      %s712 = smul.addr %s711, 2
      %s713 = smul.addr %s709, 32
      %s714 = sadd.s32 %s712, %s713
      %s715 = smul.addr %s714, 8
      %s716 = scalar_lea.vmem %s2, %s715
      %s717 = smul.u32 16, %s29
      %s718 = sadd.s32 %s29, 1
      %s719 = smul.u32 %s718, 16
      %p720 = scmp.lt.s32.totalorder %s719, 15
      %s721 = scalar_select %p720, %s719, 15
      %p722 = scmp.lt.s32.totalorder %s28, 1
      %s723 = scalar_select %p722, %s28, 1
      %p724 = scmp.lt.s32.totalorder %s721, 15
      %s725 = scalar_select %p724, %s721, 15
      %s726 = smul.addr %s725, 2
      %s727 = smul.addr %s723, 32
      %s728 = sadd.s32 %s726, %s727
      %s729 = smul.addr %s728, 8
      %s730 = scalar_lea.vmem %s3, %s729
      %s731 = sadd.s32 %s29, 1
      %s732 = smul.u32 %s731, 16
      %p733 = scmp.lt.s32.totalorder %s732, 15
      %s734 = scalar_select %p733, %s732, 15
      %s735 = sadd.s32 %s29, 1
      %s736 = smul.u32 %s735, 16
      %s737 = sadd.s32 %s736, 1
      %p738 = scmp.lt.s32.totalorder %s737, 15
      %s739 = scalar_select %p738, %s737, 15
      %p740 = scmp.lt.s32.totalorder %s28, 1
      %s741 = scalar_select %p740, %s28, 1
      %p742 = scmp.lt.s32.totalorder %s739, 15
      %s743 = scalar_select %p742, %s739, 15
      %s744 = smul.addr %s743, 2
      %s745 = smul.addr %s741, 32
      %s746 = sadd.s32 %s744, %s745
      %s747 = smul.addr %s746, 8
      %s748 = scalar_lea.vmem %s4, %s747
      %s749 = sadd.s32 %s29, 1
      %s750 = smul.u32 %s749, 16
      %s751 = sadd.s32 %s750, 1
      %p752 = scmp.lt.s32.totalorder %s751, 15
      %s753 = scalar_select %p752, %s751, 15
      %p754 = scmp.lt.s32.totalorder %s28, 1
      %s755 = scalar_select %p754, %s28, 1
      %s756 = smul.addr %s755, 4
      %s757 = scalar_lea.vmem %s5, %s756
      %p758 = scmp.lt.s32.totalorder %s28, 1
      %s759 = scalar_select %p758, %s28, 1
      %s760 = smul.addr %s759, 4
      %s761 = scalar_lea.vmem %s6, %s760
      %s762 = smul.u32 2, %s29
      %p763 = scmp.lt.s32.totalorder %s28, 1
      %s764 = scalar_select %p763, %s28, 1
      %p765 = scmp.lt.s32.totalorder %s762, 1
      %s766 = scalar_select %p765, %s762, 1
      %s767 = smul.addr %s764, 4
      %s768 = sadd.s32 %s766, %s767
      %s769 = smul.addr %s768, 8
      %s770 = scalar_lea.vmem %s13, %s769
      %s771 = smul.u32 2, %s29
      %s772 = smul.u32 %s29, 16
      %p773 = scmp.ge.s32.totalorder %s772, 2
      %s774 = scalar_select %p773, 1, 0
      %s775 = scvt.s32.f32 %s774
      %p776 = scmp.ge.s32.totalorder %s772, 1
      %s777 = scalar_select %p776, 1, 0
      %s778 = scvt.s32.f32 %s777
      %s779 = sadd.s32 %s772, 16
      %p780 = scmp.lt.s32.totalorder %s779, 16
      %s781 = scalar_select %p780, 1, 0
      %s782 = scvt.s32.f32 %s781
      %s783 = sadd.s32 %s772, 17
      %p784 = scmp.lt.s32.totalorder %s783, 16
      %s785 = scalar_select %p784, 1, 0
      %s786 = scvt.s32.f32 %s785
      %v787 = vld [vmem:[%s757] sm:$0xf]
      %v788 = vld [vmem:[%s761] sm:$0xf]
      %vm789 = vcmask 57344
      %790 = vst.msk [vmem:[#allocation2] sm:$0x1] %vm789, 0.0
      %791 = vst.msk [vmem:[#allocation2 + $0x18] sm:$0x1] %vm789, 0.0
      %792 = vst.msk [vmem:[#allocation2 + $0x30] sm:$0x1] %vm789, 0.0
      %793 = vst.msk [vmem:[#allocation2 + $0x48] sm:$0x1] %vm789, 0.0
      %794 = vst.msk [vmem:[#allocation2 + $0x60] sm:$0x1] %vm789, 0.0
      %795 = vst.msk [vmem:[#allocation2 + $0x78] sm:$0x1] %vm789, 0.0
      %796 = vst.msk [vmem:[#allocation2 + $0x90] sm:$0x1] %vm789, 0.0
      %797 = vst.msk [vmem:[#allocation2 + $0xa8] sm:$0x1] %vm789, 0.0
      %798 = vst.msk [vmem:[#allocation2 + $0xc0] sm:$0x1] %vm789, 0.0
      %799 = vst.msk [vmem:[#allocation2 + $0xd8] sm:$0x1] %vm789, 0.0
      %800 = vst.msk [vmem:[#allocation2 + $0xf0] sm:$0x1] %vm789, 0.0
      %801 = vst.msk [vmem:[#allocation2 + $0x108] sm:$0x1] %vm789, 0.0
      %802 = vst.msk [vmem:[#allocation2 + $0x120] sm:$0x1] %vm789, 0.0
      %803 = vst.msk [vmem:[#allocation2 + $0x138] sm:$0x1] %vm789, 0.0
      %804 = vst.msk [vmem:[#allocation2 + $0x150] sm:$0x1] %vm789, 0.0
      %805 = vst.msk [vmem:[#allocation2 + $0x168] sm:$0x1] %vm789, 0.0
      %806 = vst.msk [vmem:[#allocation2 + $0x180] sm:$0x1] %vm789, 0.0
      %807 = vst.msk [vmem:[#allocation2 + $0x198] sm:$0x1] %vm789, 0.0
      %808 = vst.msk [vmem:[#allocation2 + $0x1b0] sm:$0x1] %vm789, 0.0
      %809 = vst.msk [vmem:[#allocation2 + $0x1c8] sm:$0x1] %vm789, 0.0
      %810 = vst.msk [vmem:[#allocation2 + $0x11] sm:$0x1] %vm789, 0.0
      %811 = vst.msk [vmem:[#allocation2 + $0x29] sm:$0x1] %vm789, 0.0
      %812 = vst.msk [vmem:[#allocation2 + $0x41] sm:$0x1] %vm789, 0.0
      %813 = vst.msk [vmem:[#allocation2 + $0x59] sm:$0x1] %vm789, 0.0
      %814 = vst.msk [vmem:[#allocation2 + $0x71] sm:$0x1] %vm789, 0.0
      %815 = vst.msk [vmem:[#allocation2 + $0x89] sm:$0x1] %vm789, 0.0
      %816 = vst.msk [vmem:[#allocation2 + $0xa1] sm:$0x1] %vm789, 0.0
      %817 = vst.msk [vmem:[#allocation2 + $0xb9] sm:$0x1] %vm789, 0.0
      %818 = vst.msk [vmem:[#allocation2 + $0xd1] sm:$0x1] %vm789, 0.0
      %819 = vst.msk [vmem:[#allocation2 + $0xe9] sm:$0x1] %vm789, 0.0
      %820 = vst.msk [vmem:[#allocation2 + $0x101] sm:$0x1] %vm789, 0.0
      %821 = vst.msk [vmem:[#allocation2 + $0x119] sm:$0x1] %vm789, 0.0
      %822 = vst.msk [vmem:[#allocation2 + $0x131] sm:$0x1] %vm789, 0.0
      %823 = vst.msk [vmem:[#allocation2 + $0x149] sm:$0x1] %vm789, 0.0
      %824 = vst.msk [vmem:[#allocation2 + $0x161] sm:$0x1] %vm789, 0.0
      %825 = vst.msk [vmem:[#allocation2 + $0x179] sm:$0x1] %vm789, 0.0
      %826 = vst.msk [vmem:[#allocation2 + $0x191] sm:$0x1] %vm789, 0.0
      %827 = vst.msk [vmem:[#allocation2 + $0x1a9] sm:$0x1] %vm789, 0.0
      %828 = vst.msk [vmem:[#allocation2 + $0x1c1] sm:$0x1] %vm789, 0.0
      %829 = vst.msk [vmem:[#allocation2 + $0x1d9] sm:$0x1] %vm789, 0.0
      %v830 = vld [vmem:[%s685] sm:$0xff]
      %v831 = vld [vmem:[%s685 + $0x8] sm:$0xff]
      %v832 = vlaneseq
      %v833 = vshrl.u32 %v832, 7
      %v834 = vsub.s32 0, %v833
      %v835 = vrot.slane %v787, %v834
      %v836 = vmul.f32 %v835, %v830
      %v837 = vmul.f32 %v835, %v831
      %v838 = vlaneseq
      %v839 = vshrl.u32 %v838, 7
      %v840 = vsub.s32 1, %v839
      %v841 = vrot.slane %v787, %v840
      %v842 = vadd.f32 %v836, %v841
      %v843 = vadd.f32 %v837, %v841
      %vm844 = vcmp.gt.f32.partialorder %v842, 0.0
      %vm845 = vcmp.gt.f32.partialorder %v843, 0.0
      %v846 = vmul.f32 %v842, 0.2
      %v847 = vmul.f32 %v843, 0.2
      %v848 = vsel %vm844, %v842, %v846
      %v849 = vsel %vm845, %v843, %v847
      %v850 = vlaneseq
      %v851 = vshrl.u32 %v850, 7
      %v852 = vsub.s32 2, %v851
      %v853 = vrot.slane %v787, %v852
      %v854 = vmul.f32 %v853, %v848
      %v855 = vmul.f32 %v853, %v849
      %v856 = vlaneseq
      %v857 = vshrl.u32 %v856, 7
      %v858 = vsub.s32 3, %v857
      %v859 = vrot.slane %v787, %v858
      %v860 = vadd.f32 %v854, %v859
      %v861 = vadd.f32 %v855, %v859
      %vm862 = vcmp.gt.f32.partialorder %v860, 0.0
      %vm863 = vcmp.gt.f32.partialorder %v861, 0.0
      %v864 = vmul.f32 %v860, 0.2
      %v865 = vmul.f32 %v861, 0.2
      %v866 = vsel %vm862, %v860, %v864
      %v867 = vsel %vm863, %v861, %v865
      %v868 = vstv %s775
      %v869 = vmul.f32 %v866, %v868
      %v870 = vmul.f32 %v867, %v868
      %vm871 = vcmask 64512
      %872 = vst.msk [vmem:[#allocation2 + $0x1] sm:$0xff] %vm871, %v869
      %873 = vst.msk [vmem:[#allocation2 + $0x9] sm:$0xff] %vm871, %v870
      %v874 = vld [vmem:[%s702] sm:$0xff]
      %v875 = vld [vmem:[%s702 + $0x8] sm:$0xff]
      %v876 = vmul.f32 %v835, %v874
      %v877 = vmul.f32 %v835, %v875
      %v878 = vadd.f32 %v876, %v841
      %v879 = vadd.f32 %v877, %v841
      %vm880 = vcmp.gt.f32.partialorder %v878, 0.0
      %vm881 = vcmp.gt.f32.partialorder %v879, 0.0
      %v882 = vmul.f32 %v878, 0.2
      %v883 = vmul.f32 %v879, 0.2
      %v884 = vsel %vm880, %v878, %v882
      %v885 = vsel %vm881, %v879, %v883
      %v886 = vmul.f32 %v853, %v884
      %v887 = vmul.f32 %v853, %v885
      %v888 = vadd.f32 %v886, %v859
      %v889 = vadd.f32 %v887, %v859
      %vm890 = vcmp.gt.f32.partialorder %v888, 0.0
      %vm891 = vcmp.gt.f32.partialorder %v889, 0.0
      %v892 = vmul.f32 %v888, 0.2
      %v893 = vmul.f32 %v889, 0.2
      %v894 = vsel %vm890, %v888, %v892
      %v895 = vsel %vm891, %v889, %v893
      %v896 = vstv %s778
      %v897 = vmul.f32 %v894, %v896
      %v898 = vmul.f32 %v895, %v896
      %s899 = scalar_lea.vmem [#allocation2], 24
      %900 = vst.msk [vmem:[%s899 + $0x1] sm:$0xff] %vm871, %v897
      %901 = vst.msk [vmem:[%s899 + $0x9] sm:$0xff] %vm871, %v898
      %v902 = vld [vmem:[%s716] sm:$0xff]
      %v903 = vld [vmem:[%s716 + $0x8] sm:$0xff]
      %v904 = vld [vmem:[%s716 + $0x10] sm:$0xff]
      %v905 = vld [vmem:[%s716 + $0x18] sm:$0xff]
      %v906 = vld [vmem:[%s716 + $0x20] sm:$0xff]
      %v907 = vld [vmem:[%s716 + $0x28] sm:$0xff]
      %v908 = vld [vmem:[%s716 + $0x30] sm:$0xff]
      %v909 = vld [vmem:[%s716 + $0x38] sm:$0xff]
      %v910 = vld [vmem:[%s716 + $0x40] sm:$0xff]
      %v911 = vld [vmem:[%s716 + $0x48] sm:$0xff]
      %v912 = vld [vmem:[%s716 + $0x50] sm:$0xff]
      %v913 = vld [vmem:[%s716 + $0x58] sm:$0xff]
      %v914 = vld [vmem:[%s716 + $0x60] sm:$0xff]
      %v915 = vld [vmem:[%s716 + $0x68] sm:$0xff]
      %v916 = vld [vmem:[%s716 + $0x70] sm:$0xff]
      %v917 = vld [vmem:[%s716 + $0x78] sm:$0xff]
      %v918 = vld [vmem:[%s716 + $0x80] sm:$0xff]
      %v919 = vld [vmem:[%s716 + $0x88] sm:$0xff]
      %v920 = vld [vmem:[%s716 + $0x90] sm:$0xff]
      %v921 = vld [vmem:[%s716 + $0x98] sm:$0xff]
      %v922 = vld [vmem:[%s716 + $0xa0] sm:$0xff]
      %v923 = vld [vmem:[%s716 + $0xa8] sm:$0xff]
      %v924 = vld [vmem:[%s716 + $0xb0] sm:$0xff]
      %v925 = vld [vmem:[%s716 + $0xb8] sm:$0xff]
      %v926 = vld [vmem:[%s716 + $0xc0] sm:$0xff]
      %v927 = vld [vmem:[%s716 + $0xc8] sm:$0xff]
      %v928 = vld [vmem:[%s716 + $0xd0] sm:$0xff]
      %v929 = vld [vmem:[%s716 + $0xd8] sm:$0xff]
      %v930 = vld [vmem:[%s716 + $0xe0] sm:$0xff]
      %v931 = vld [vmem:[%s716 + $0xe8] sm:$0xff]
      %v932 = vld [vmem:[%s716 + $0xf0] sm:$0xff]
      %v933 = vld [vmem:[%s716 + $0xf8] sm:$0xff]
      %v934 = vmul.f32 %v835, %v902
      %v935 = vmul.f32 %v835, %v903
      %v936 = vmul.f32 %v835, %v904
      %v937 = vmul.f32 %v835, %v905
      %v938 = vmul.f32 %v835, %v906
      %v939 = vmul.f32 %v835, %v907
      %v940 = vmul.f32 %v835, %v908
      %v941 = vmul.f32 %v835, %v909
      %v942 = vmul.f32 %v835, %v910
      %v943 = vmul.f32 %v835, %v911
      %v944 = vmul.f32 %v835, %v912
      %v945 = vmul.f32 %v835, %v913
      %v946 = vmul.f32 %v835, %v914
      %v947 = vmul.f32 %v835, %v915
      %v948 = vmul.f32 %v835, %v916
      %v949 = vmul.f32 %v835, %v917
      %v950 = vmul.f32 %v835, %v918
      %v951 = vmul.f32 %v835, %v919
      %v952 = vmul.f32 %v835, %v920
      %v953 = vmul.f32 %v835, %v921
      %v954 = vmul.f32 %v835, %v922
      %v955 = vmul.f32 %v835, %v923
      %v956 = vmul.f32 %v835, %v924
      %v957 = vmul.f32 %v835, %v925
      %v958 = vmul.f32 %v835, %v926
      %v959 = vmul.f32 %v835, %v927
      %v960 = vmul.f32 %v835, %v928
      %v961 = vmul.f32 %v835, %v929
      %v962 = vmul.f32 %v835, %v930
      %v963 = vmul.f32 %v835, %v931
      %v964 = vmul.f32 %v835, %v932
      %v965 = vmul.f32 %v835, %v933
      %v966 = vadd.f32 %v934, %v841
      %v967 = vadd.f32 %v935, %v841
      %v968 = vadd.f32 %v936, %v841
      %v969 = vadd.f32 %v937, %v841
      %v970 = vadd.f32 %v938, %v841
      %v971 = vadd.f32 %v939, %v841
      %v972 = vadd.f32 %v940, %v841
      %v973 = vadd.f32 %v941, %v841
      %v974 = vadd.f32 %v942, %v841
      %v975 = vadd.f32 %v943, %v841
      %v976 = vadd.f32 %v944, %v841
      %v977 = vadd.f32 %v945, %v841
      %v978 = vadd.f32 %v946, %v841
      %v979 = vadd.f32 %v947, %v841
      %v980 = vadd.f32 %v948, %v841
      %v981 = vadd.f32 %v949, %v841
      %v982 = vadd.f32 %v950, %v841
      %v983 = vadd.f32 %v951, %v841
      %v984 = vadd.f32 %v952, %v841
      %v985 = vadd.f32 %v953, %v841
      %v986 = vadd.f32 %v954, %v841
      %v987 = vadd.f32 %v955, %v841
      %v988 = vadd.f32 %v956, %v841
      %v989 = vadd.f32 %v957, %v841
      %v990 = vadd.f32 %v958, %v841
      %v991 = vadd.f32 %v959, %v841
      %v992 = vadd.f32 %v960, %v841
      %v993 = vadd.f32 %v961, %v841
      %v994 = vadd.f32 %v962, %v841
      %v995 = vadd.f32 %v963, %v841
      %v996 = vadd.f32 %v964, %v841
      %v997 = vadd.f32 %v965, %v841
      %vm998 = vcmp.gt.f32.partialorder %v966, 0.0
      %vm999 = vcmp.gt.f32.partialorder %v967, 0.0
      %vm1000 = vcmp.gt.f32.partialorder %v968, 0.0
      %vm1001 = vcmp.gt.f32.partialorder %v969, 0.0
      %vm1002 = vcmp.gt.f32.partialorder %v970, 0.0
      %vm1003 = vcmp.gt.f32.partialorder %v971, 0.0
      %vm1004 = vcmp.gt.f32.partialorder %v972, 0.0
      %vm1005 = vcmp.gt.f32.partialorder %v973, 0.0
      %vm1006 = vcmp.gt.f32.partialorder %v974, 0.0
      %vm1007 = vcmp.gt.f32.partialorder %v975, 0.0
      %vm1008 = vcmp.gt.f32.partialorder %v976, 0.0
      %vm1009 = vcmp.gt.f32.partialorder %v977, 0.0
      %vm1010 = vcmp.gt.f32.partialorder %v978, 0.0
      %vm1011 = vcmp.gt.f32.partialorder %v979, 0.0
      %vm1012 = vcmp.gt.f32.partialorder %v980, 0.0
      %vm1013 = vcmp.gt.f32.partialorder %v981, 0.0
      %vm1014 = vcmp.gt.f32.partialorder %v982, 0.0
      %vm1015 = vcmp.gt.f32.partialorder %v983, 0.0
      %vm1016 = vcmp.gt.f32.partialorder %v984, 0.0
      %vm1017 = vcmp.gt.f32.partialorder %v985, 0.0
      %vm1018 = vcmp.gt.f32.partialorder %v986, 0.0
      %vm1019 = vcmp.gt.f32.partialorder %v987, 0.0
      %vm1020 = vcmp.gt.f32.partialorder %v988, 0.0
      %vm1021 = vcmp.gt.f32.partialorder %v989, 0.0
      %vm1022 = vcmp.gt.f32.partialorder %v990, 0.0
      %vm1023 = vcmp.gt.f32.partialorder %v991, 0.0
      %vm1024 = vcmp.gt.f32.partialorder %v992, 0.0
      %vm1025 = vcmp.gt.f32.partialorder %v993, 0.0
      %vm1026 = vcmp.gt.f32.partialorder %v994, 0.0
      %vm1027 = vcmp.gt.f32.partialorder %v995, 0.0
      %vm1028 = vcmp.gt.f32.partialorder %v996, 0.0
      %vm1029 = vcmp.gt.f32.partialorder %v997, 0.0
      %v1030 = vmul.f32 %v966, 0.2
      %v1031 = vmul.f32 %v967, 0.2
      %v1032 = vmul.f32 %v968, 0.2
      %v1033 = vmul.f32 %v969, 0.2
      %v1034 = vmul.f32 %v970, 0.2
      %v1035 = vmul.f32 %v971, 0.2
      %v1036 = vmul.f32 %v972, 0.2
      %v1037 = vmul.f32 %v973, 0.2
      %v1038 = vmul.f32 %v974, 0.2
      %v1039 = vmul.f32 %v975, 0.2
      %v1040 = vmul.f32 %v976, 0.2
      %v1041 = vmul.f32 %v977, 0.2
      %v1042 = vmul.f32 %v978, 0.2
      %v1043 = vmul.f32 %v979, 0.2
      %v1044 = vmul.f32 %v980, 0.2
      %v1045 = vmul.f32 %v981, 0.2
      %v1046 = vmul.f32 %v982, 0.2
      %v1047 = vmul.f32 %v983, 0.2
      %v1048 = vmul.f32 %v984, 0.2
      %v1049 = vmul.f32 %v985, 0.2
      %v1050 = vmul.f32 %v986, 0.2
      %v1051 = vmul.f32 %v987, 0.2
      %v1052 = vmul.f32 %v988, 0.2
      %v1053 = vmul.f32 %v989, 0.2
      %v1054 = vmul.f32 %v990, 0.2
      %v1055 = vmul.f32 %v991, 0.2
      %v1056 = vmul.f32 %v992, 0.2
      %v1057 = vmul.f32 %v993, 0.2
      %v1058 = vmul.f32 %v994, 0.2
      %v1059 = vmul.f32 %v995, 0.2
      %v1060 = vmul.f32 %v996, 0.2
      %v1061 = vmul.f32 %v997, 0.2
      %v1062 = vsel %vm998, %v966, %v1030
      %v1063 = vsel %vm999, %v967, %v1031
      %v1064 = vsel %vm1000, %v968, %v1032
      %v1065 = vsel %vm1001, %v969, %v1033
      %v1066 = vsel %vm1002, %v970, %v1034
      %v1067 = vsel %vm1003, %v971, %v1035
      %v1068 = vsel %vm1004, %v972, %v1036
      %v1069 = vsel %vm1005, %v973, %v1037
      %v1070 = vsel %vm1006, %v974, %v1038
      %v1071 = vsel %vm1007, %v975, %v1039
      %v1072 = vsel %vm1008, %v976, %v1040
      %v1073 = vsel %vm1009, %v977, %v1041
      %v1074 = vsel %vm1010, %v978, %v1042
      %v1075 = vsel %vm1011, %v979, %v1043
      %v1076 = vsel %vm1012, %v980, %v1044
      %v1077 = vsel %vm1013, %v981, %v1045
      %v1078 = vsel %vm1014, %v982, %v1046
      %v1079 = vsel %vm1015, %v983, %v1047
      %v1080 = vsel %vm1016, %v984, %v1048
      %v1081 = vsel %vm1017, %v985, %v1049
      %v1082 = vsel %vm1018, %v986, %v1050
      %v1083 = vsel %vm1019, %v987, %v1051
      %v1084 = vsel %vm1020, %v988, %v1052
      %v1085 = vsel %vm1021, %v989, %v1053
      %v1086 = vsel %vm1022, %v990, %v1054
      %v1087 = vsel %vm1023, %v991, %v1055
      %v1088 = vsel %vm1024, %v992, %v1056
      %v1089 = vsel %vm1025, %v993, %v1057
      %v1090 = vsel %vm1026, %v994, %v1058
      %v1091 = vsel %vm1027, %v995, %v1059
      %v1092 = vsel %vm1028, %v996, %v1060
      %v1093 = vsel %vm1029, %v997, %v1061
      %v1094 = vmul.f32 %v853, %v1062
      %v1095 = vmul.f32 %v853, %v1063
      %v1096 = vmul.f32 %v853, %v1064
      %v1097 = vmul.f32 %v853, %v1065
      %v1098 = vmul.f32 %v853, %v1066
      %v1099 = vmul.f32 %v853, %v1067
      %v1100 = vmul.f32 %v853, %v1068
      %v1101 = vmul.f32 %v853, %v1069
      %v1102 = vmul.f32 %v853, %v1070
      %v1103 = vmul.f32 %v853, %v1071
      %v1104 = vmul.f32 %v853, %v1072
      %v1105 = vmul.f32 %v853, %v1073
      %v1106 = vmul.f32 %v853, %v1074
      %v1107 = vmul.f32 %v853, %v1075
      %v1108 = vmul.f32 %v853, %v1076
      %v1109 = vmul.f32 %v853, %v1077
      %v1110 = vmul.f32 %v853, %v1078
      %v1111 = vmul.f32 %v853, %v1079
      %v1112 = vmul.f32 %v853, %v1080
      %v1113 = vmul.f32 %v853, %v1081
      %v1114 = vmul.f32 %v853, %v1082
      %v1115 = vmul.f32 %v853, %v1083
      %v1116 = vmul.f32 %v853, %v1084
      %v1117 = vmul.f32 %v853, %v1085
      %v1118 = vmul.f32 %v853, %v1086
      %v1119 = vmul.f32 %v853, %v1087
      %v1120 = vmul.f32 %v853, %v1088
      %v1121 = vmul.f32 %v853, %v1089
      %v1122 = vmul.f32 %v853, %v1090
      %v1123 = vmul.f32 %v853, %v1091
      %v1124 = vmul.f32 %v853, %v1092
      %v1125 = vmul.f32 %v853, %v1093
      %v1126 = vadd.f32 %v1094, %v859
      %v1127 = vadd.f32 %v1095, %v859
      %v1128 = vadd.f32 %v1096, %v859
      %v1129 = vadd.f32 %v1097, %v859
      %v1130 = vadd.f32 %v1098, %v859
      %v1131 = vadd.f32 %v1099, %v859
      %v1132 = vadd.f32 %v1100, %v859
      %v1133 = vadd.f32 %v1101, %v859
      %v1134 = vadd.f32 %v1102, %v859
      %v1135 = vadd.f32 %v1103, %v859
      %v1136 = vadd.f32 %v1104, %v859
      %v1137 = vadd.f32 %v1105, %v859
      %v1138 = vadd.f32 %v1106, %v859
      %v1139 = vadd.f32 %v1107, %v859
      %v1140 = vadd.f32 %v1108, %v859
      %v1141 = vadd.f32 %v1109, %v859
      %v1142 = vadd.f32 %v1110, %v859
      %v1143 = vadd.f32 %v1111, %v859
      %v1144 = vadd.f32 %v1112, %v859
      %v1145 = vadd.f32 %v1113, %v859
      %v1146 = vadd.f32 %v1114, %v859
      %v1147 = vadd.f32 %v1115, %v859
      %v1148 = vadd.f32 %v1116, %v859
      %v1149 = vadd.f32 %v1117, %v859
      %v1150 = vadd.f32 %v1118, %v859
      %v1151 = vadd.f32 %v1119, %v859
      %v1152 = vadd.f32 %v1120, %v859
      %v1153 = vadd.f32 %v1121, %v859
      %v1154 = vadd.f32 %v1122, %v859
      %v1155 = vadd.f32 %v1123, %v859
      %v1156 = vadd.f32 %v1124, %v859
      %v1157 = vadd.f32 %v1125, %v859
      %vm1158 = vcmp.gt.f32.partialorder %v1126, 0.0
      %vm1159 = vcmp.gt.f32.partialorder %v1127, 0.0
      %vm1160 = vcmp.gt.f32.partialorder %v1128, 0.0
      %vm1161 = vcmp.gt.f32.partialorder %v1129, 0.0
      %vm1162 = vcmp.gt.f32.partialorder %v1130, 0.0
      %vm1163 = vcmp.gt.f32.partialorder %v1131, 0.0
      %vm1164 = vcmp.gt.f32.partialorder %v1132, 0.0
      %vm1165 = vcmp.gt.f32.partialorder %v1133, 0.0
      %vm1166 = vcmp.gt.f32.partialorder %v1134, 0.0
      %vm1167 = vcmp.gt.f32.partialorder %v1135, 0.0
      %vm1168 = vcmp.gt.f32.partialorder %v1136, 0.0
      %vm1169 = vcmp.gt.f32.partialorder %v1137, 0.0
      %vm1170 = vcmp.gt.f32.partialorder %v1138, 0.0
      %vm1171 = vcmp.gt.f32.partialorder %v1139, 0.0
      %vm1172 = vcmp.gt.f32.partialorder %v1140, 0.0
      %vm1173 = vcmp.gt.f32.partialorder %v1141, 0.0
      %vm1174 = vcmp.gt.f32.partialorder %v1142, 0.0
      %vm1175 = vcmp.gt.f32.partialorder %v1143, 0.0
      %vm1176 = vcmp.gt.f32.partialorder %v1144, 0.0
      %vm1177 = vcmp.gt.f32.partialorder %v1145, 0.0
      %vm1178 = vcmp.gt.f32.partialorder %v1146, 0.0
      %vm1179 = vcmp.gt.f32.partialorder %v1147, 0.0
      %vm1180 = vcmp.gt.f32.partialorder %v1148, 0.0
      %vm1181 = vcmp.gt.f32.partialorder %v1149, 0.0
      %vm1182 = vcmp.gt.f32.partialorder %v1150, 0.0
      %vm1183 = vcmp.gt.f32.partialorder %v1151, 0.0
      %vm1184 = vcmp.gt.f32.partialorder %v1152, 0.0
      %vm1185 = vcmp.gt.f32.partialorder %v1153, 0.0
      %vm1186 = vcmp.gt.f32.partialorder %v1154, 0.0
      %vm1187 = vcmp.gt.f32.partialorder %v1155, 0.0
      %vm1188 = vcmp.gt.f32.partialorder %v1156, 0.0
      %vm1189 = vcmp.gt.f32.partialorder %v1157, 0.0
      %v1190 = vmul.f32 %v1126, 0.2
      %v1191 = vmul.f32 %v1127, 0.2
      %v1192 = vmul.f32 %v1128, 0.2
      %v1193 = vmul.f32 %v1129, 0.2
      %v1194 = vmul.f32 %v1130, 0.2
      %v1195 = vmul.f32 %v1131, 0.2
      %v1196 = vmul.f32 %v1132, 0.2
      %v1197 = vmul.f32 %v1133, 0.2
      %v1198 = vmul.f32 %v1134, 0.2
      %v1199 = vmul.f32 %v1135, 0.2
      %v1200 = vmul.f32 %v1136, 0.2
      %v1201 = vmul.f32 %v1137, 0.2
      %v1202 = vmul.f32 %v1138, 0.2
      %v1203 = vmul.f32 %v1139, 0.2
      %v1204 = vmul.f32 %v1140, 0.2
      %v1205 = vmul.f32 %v1141, 0.2
      %v1206 = vmul.f32 %v1142, 0.2
      %v1207 = vmul.f32 %v1143, 0.2
      %v1208 = vmul.f32 %v1144, 0.2
      %v1209 = vmul.f32 %v1145, 0.2
      %v1210 = vmul.f32 %v1146, 0.2
      %v1211 = vmul.f32 %v1147, 0.2
      %v1212 = vmul.f32 %v1148, 0.2
      %v1213 = vmul.f32 %v1149, 0.2
      %v1214 = vmul.f32 %v1150, 0.2
      %v1215 = vmul.f32 %v1151, 0.2
      %v1216 = vmul.f32 %v1152, 0.2
      %v1217 = vmul.f32 %v1153, 0.2
      %v1218 = vmul.f32 %v1154, 0.2
      %v1219 = vmul.f32 %v1155, 0.2
      %v1220 = vmul.f32 %v1156, 0.2
      %v1221 = vmul.f32 %v1157, 0.2
      %v1222 = vsel %vm1158, %v1126, %v1190
      %v1223 = vsel %vm1159, %v1127, %v1191
      %v1224 = vsel %vm1160, %v1128, %v1192
      %v1225 = vsel %vm1161, %v1129, %v1193
      %v1226 = vsel %vm1162, %v1130, %v1194
      %v1227 = vsel %vm1163, %v1131, %v1195
      %v1228 = vsel %vm1164, %v1132, %v1196
      %v1229 = vsel %vm1165, %v1133, %v1197
      %v1230 = vsel %vm1166, %v1134, %v1198
      %v1231 = vsel %vm1167, %v1135, %v1199
      %v1232 = vsel %vm1168, %v1136, %v1200
      %v1233 = vsel %vm1169, %v1137, %v1201
      %v1234 = vsel %vm1170, %v1138, %v1202
      %v1235 = vsel %vm1171, %v1139, %v1203
      %v1236 = vsel %vm1172, %v1140, %v1204
      %v1237 = vsel %vm1173, %v1141, %v1205
      %v1238 = vsel %vm1174, %v1142, %v1206
      %v1239 = vsel %vm1175, %v1143, %v1207
      %v1240 = vsel %vm1176, %v1144, %v1208
      %v1241 = vsel %vm1177, %v1145, %v1209
      %v1242 = vsel %vm1178, %v1146, %v1210
      %v1243 = vsel %vm1179, %v1147, %v1211
      %v1244 = vsel %vm1180, %v1148, %v1212
      %v1245 = vsel %vm1181, %v1149, %v1213
      %v1246 = vsel %vm1182, %v1150, %v1214
      %v1247 = vsel %vm1183, %v1151, %v1215
      %v1248 = vsel %vm1184, %v1152, %v1216
      %v1249 = vsel %vm1185, %v1153, %v1217
      %v1250 = vsel %vm1186, %v1154, %v1218
      %v1251 = vsel %vm1187, %v1155, %v1219
      %v1252 = vsel %vm1188, %v1156, %v1220
      %v1253 = vsel %vm1189, %v1157, %v1221
      %s1254 = scalar_lea.vmem [#allocation2], 48
      %1255 = vst.msk [vmem:[%s1254 + $0x1] sm:$0xff] %vm871, %v1222
      %1256 = vst.msk [vmem:[%s1254 + $0x9] sm:$0xff] %vm871, %v1223
      %1257 = vst.msk [vmem:[%s1254 + $0x19] sm:$0xff] %vm871, %v1224
      %1258 = vst.msk [vmem:[%s1254 + $0x21] sm:$0xff] %vm871, %v1225
      %1259 = vst.msk [vmem:[%s1254 + $0x31] sm:$0xff] %vm871, %v1226
      %1260 = vst.msk [vmem:[%s1254 + $0x39] sm:$0xff] %vm871, %v1227
      %1261 = vst.msk [vmem:[%s1254 + $0x49] sm:$0xff] %vm871, %v1228
      %1262 = vst.msk [vmem:[%s1254 + $0x51] sm:$0xff] %vm871, %v1229
      %1263 = vst.msk [vmem:[%s1254 + $0x61] sm:$0xff] %vm871, %v1230
      %1264 = vst.msk [vmem:[%s1254 + $0x69] sm:$0xff] %vm871, %v1231
      %1265 = vst.msk [vmem:[%s1254 + $0x79] sm:$0xff] %vm871, %v1232
      %1266 = vst.msk [vmem:[%s1254 + $0x81] sm:$0xff] %vm871, %v1233
      %1267 = vst.msk [vmem:[%s1254 + $0x91] sm:$0xff] %vm871, %v1234
      %1268 = vst.msk [vmem:[%s1254 + $0x99] sm:$0xff] %vm871, %v1235
      %1269 = vst.msk [vmem:[%s1254 + $0xa9] sm:$0xff] %vm871, %v1236
      %1270 = vst.msk [vmem:[%s1254 + $0xb1] sm:$0xff] %vm871, %v1237
      %1271 = vst.msk [vmem:[%s1254 + $0xc1] sm:$0xff] %vm871, %v1238
      %1272 = vst.msk [vmem:[%s1254 + $0xc9] sm:$0xff] %vm871, %v1239
      %1273 = vst.msk [vmem:[%s1254 + $0xd9] sm:$0xff] %vm871, %v1240
      %1274 = vst.msk [vmem:[%s1254 + $0xe1] sm:$0xff] %vm871, %v1241
      %1275 = vst.msk [vmem:[%s1254 + $0xf1] sm:$0xff] %vm871, %v1242
      %1276 = vst.msk [vmem:[%s1254 + $0xf9] sm:$0xff] %vm871, %v1243
      %1277 = vst.msk [vmem:[%s1254 + $0x109] sm:$0xff] %vm871, %v1244
      %1278 = vst.msk [vmem:[%s1254 + $0x111] sm:$0xff] %vm871, %v1245
      %1279 = vst.msk [vmem:[%s1254 + $0x121] sm:$0xff] %vm871, %v1246
      %1280 = vst.msk [vmem:[%s1254 + $0x129] sm:$0xff] %vm871, %v1247
      %1281 = vst.msk [vmem:[%s1254 + $0x139] sm:$0xff] %vm871, %v1248
      %1282 = vst.msk [vmem:[%s1254 + $0x141] sm:$0xff] %vm871, %v1249
      %1283 = vst.msk [vmem:[%s1254 + $0x151] sm:$0xff] %vm871, %v1250
      %1284 = vst.msk [vmem:[%s1254 + $0x159] sm:$0xff] %vm871, %v1251
      %1285 = vst.msk [vmem:[%s1254 + $0x169] sm:$0xff] %vm871, %v1252
      %1286 = vst.msk [vmem:[%s1254 + $0x171] sm:$0xff] %vm871, %v1253
      %v1287 = vld [vmem:[%s730] sm:$0xff]
      %v1288 = vld [vmem:[%s730 + $0x8] sm:$0xff]
      %v1289 = vmul.f32 %v835, %v1287
      %v1290 = vmul.f32 %v835, %v1288
      %v1291 = vadd.f32 %v1289, %v841
      %v1292 = vadd.f32 %v1290, %v841
      %vm1293 = vcmp.gt.f32.partialorder %v1291, 0.0
      %vm1294 = vcmp.gt.f32.partialorder %v1292, 0.0
      %v1295 = vmul.f32 %v1291, 0.2
      %v1296 = vmul.f32 %v1292, 0.2
      %v1297 = vsel %vm1293, %v1291, %v1295
      %v1298 = vsel %vm1294, %v1292, %v1296
      %v1299 = vmul.f32 %v853, %v1297
      %v1300 = vmul.f32 %v853, %v1298
      %v1301 = vadd.f32 %v1299, %v859
      %v1302 = vadd.f32 %v1300, %v859
      %vm1303 = vcmp.gt.f32.partialorder %v1301, 0.0
      %vm1304 = vcmp.gt.f32.partialorder %v1302, 0.0
      %v1305 = vmul.f32 %v1301, 0.2
      %v1306 = vmul.f32 %v1302, 0.2
      %v1307 = vsel %vm1303, %v1301, %v1305
      %v1308 = vsel %vm1304, %v1302, %v1306
      %v1309 = vstv %s782
      %v1310 = vmul.f32 %v1307, %v1309
      %v1311 = vmul.f32 %v1308, %v1309
      %s1312 = scalar_lea.vmem [#allocation2], 432
      %1313 = vst.msk [vmem:[%s1312 + $0x1] sm:$0xff] %vm871, %v1310
      %1314 = vst.msk [vmem:[%s1312 + $0x9] sm:$0xff] %vm871, %v1311
      %v1315 = vld [vmem:[%s748] sm:$0xff]
      %v1316 = vld [vmem:[%s748 + $0x8] sm:$0xff]
      %v1317 = vmul.f32 %v835, %v1315
      %v1318 = vmul.f32 %v835, %v1316
      %v1319 = vadd.f32 %v1317, %v841
      %v1320 = vadd.f32 %v1318, %v841
      %vm1321 = vcmp.gt.f32.partialorder %v1319, 0.0
      %vm1322 = vcmp.gt.f32.partialorder %v1320, 0.0
      %v1323 = vmul.f32 %v1319, 0.2
      %v1324 = vmul.f32 %v1320, 0.2
      %v1325 = vsel %vm1321, %v1319, %v1323
      %v1326 = vsel %vm1322, %v1320, %v1324
      %v1327 = vmul.f32 %v853, %v1325
      %v1328 = vmul.f32 %v853, %v1326
      %v1329 = vadd.f32 %v1327, %v859
      %v1330 = vadd.f32 %v1328, %v859
      %vm1331 = vcmp.gt.f32.partialorder %v1329, 0.0
      %vm1332 = vcmp.gt.f32.partialorder %v1330, 0.0
      %v1333 = vmul.f32 %v1329, 0.2
      %v1334 = vmul.f32 %v1330, 0.2
      %v1335 = vsel %vm1331, %v1329, %v1333
      %v1336 = vsel %vm1332, %v1330, %v1334
      %v1337 = vstv %s786
      %v1338 = vmul.f32 %v1335, %v1337
      %v1339 = vmul.f32 %v1336, %v1337
      %s1340 = scalar_lea.vmem [#allocation2], 456
      %1341 = vst.msk [vmem:[%s1340 + $0x1] sm:$0xff] %vm871, %v1338
      %1342 = vst.msk [vmem:[%s1340 + $0x9] sm:$0xff] %vm871, %v1339
      %v1343 = vld [vmem:[#allocation2] sm:$0xff]
      %v1344 = vld [vmem:[#allocation2 + $0x8] sm:$0xff]
      %v1345 = vld [vmem:[#allocation2 + $0x18] sm:$0xff]
      %v1346 = vld [vmem:[#allocation2 + $0x20] sm:$0xff]
      %v1347 = vld [vmem:[#allocation2 + $0x30] sm:$0xff]
      %v1348 = vld [vmem:[#allocation2 + $0x38] sm:$0xff]
      %v1349 = vld [vmem:[#allocation2 + $0x48] sm:$0xff]
      %v1350 = vld [vmem:[#allocation2 + $0x50] sm:$0xff]
      %v1351 = vld [vmem:[#allocation2 + $0x60] sm:$0xff]
      %v1352 = vld [vmem:[#allocation2 + $0x68] sm:$0xff]
      %v1353 = vld [vmem:[#allocation2 + $0x78] sm:$0xff]
      %v1354 = vld [vmem:[#allocation2 + $0x80] sm:$0xff]
      %v1355 = vld [vmem:[#allocation2 + $0x90] sm:$0xff]
      %v1356 = vld [vmem:[#allocation2 + $0x98] sm:$0xff]
      %v1357 = vld [vmem:[#allocation2 + $0xa8] sm:$0xff]
      %v1358 = vld [vmem:[#allocation2 + $0xb0] sm:$0xff]
      %v1359 = vld [vmem:[#allocation2 + $0xc0] sm:$0xff]
      %v1360 = vld [vmem:[#allocation2 + $0xc8] sm:$0xff]
      %v1361 = vld [vmem:[#allocation2 + $0xd8] sm:$0xff]
      %v1362 = vld [vmem:[#allocation2 + $0xe0] sm:$0xff]
      %v1363 = vld [vmem:[#allocation2 + $0xf0] sm:$0xff]
      %v1364 = vld [vmem:[#allocation2 + $0xf8] sm:$0xff]
      %v1365 = vld [vmem:[#allocation2 + $0x108] sm:$0xff]
      %v1366 = vld [vmem:[#allocation2 + $0x110] sm:$0xff]
      %v1367 = vld [vmem:[#allocation2 + $0x120] sm:$0xff]
      %v1368 = vld [vmem:[#allocation2 + $0x128] sm:$0xff]
      %v1369 = vld [vmem:[#allocation2 + $0x138] sm:$0xff]
      %v1370 = vld [vmem:[#allocation2 + $0x140] sm:$0xff]
      %v1371 = vld [vmem:[#allocation2 + $0x150] sm:$0xff]
      %v1372 = vld [vmem:[#allocation2 + $0x158] sm:$0xff]
      %v1373 = vld [vmem:[#allocation2 + $0x168] sm:$0xff]
      %v1374 = vld [vmem:[#allocation2 + $0x170] sm:$0xff]
      %v1375 = vld [vmem:[#allocation2 + $0x180] sm:$0xff]
      %v1376 = vld [vmem:[#allocation2 + $0x188] sm:$0xff]
      %v1377 = vld [vmem:[#allocation2 + $0x198] sm:$0xff]
      %v1378 = vld [vmem:[#allocation2 + $0x1a0] sm:$0xff]
      %1379 = vst.msk [vmem:[#allocation3] sm:$0xff] %vm871, %v1343
      %1380 = vst.msk [vmem:[#allocation3 + $0x8] sm:$0xff] %vm871, %v1344
      %1381 = vst.msk [vmem:[#allocation3 + $0x10] sm:$0xff] %vm871, %v1345
      %1382 = vst.msk [vmem:[#allocation3 + $0x18] sm:$0xff] %vm871, %v1346
      %1383 = vst.msk [vmem:[#allocation3 + $0x20] sm:$0xff] %vm871, %v1347
      %1384 = vst.msk [vmem:[#allocation3 + $0x28] sm:$0xff] %vm871, %v1348
      %1385 = vst.msk [vmem:[#allocation3 + $0x30] sm:$0xff] %vm871, %v1349
      %1386 = vst.msk [vmem:[#allocation3 + $0x38] sm:$0xff] %vm871, %v1350
      %1387 = vst.msk [vmem:[#allocation3 + $0x40] sm:$0xff] %vm871, %v1351
      %1388 = vst.msk [vmem:[#allocation3 + $0x48] sm:$0xff] %vm871, %v1352
      %1389 = vst.msk [vmem:[#allocation3 + $0x50] sm:$0xff] %vm871, %v1353
      %1390 = vst.msk [vmem:[#allocation3 + $0x58] sm:$0xff] %vm871, %v1354
      %1391 = vst.msk [vmem:[#allocation3 + $0x60] sm:$0xff] %vm871, %v1355
      %1392 = vst.msk [vmem:[#allocation3 + $0x68] sm:$0xff] %vm871, %v1356
      %1393 = vst.msk [vmem:[#allocation3 + $0x70] sm:$0xff] %vm871, %v1357
      %1394 = vst.msk [vmem:[#allocation3 + $0x78] sm:$0xff] %vm871, %v1358
      %1395 = vst.msk [vmem:[#allocation3 + $0x80] sm:$0xff] %vm871, %v1359
      %1396 = vst.msk [vmem:[#allocation3 + $0x88] sm:$0xff] %vm871, %v1360
      %1397 = vst.msk [vmem:[#allocation3 + $0x90] sm:$0xff] %vm871, %v1361
      %1398 = vst.msk [vmem:[#allocation3 + $0x98] sm:$0xff] %vm871, %v1362
      %1399 = vst.msk [vmem:[#allocation3 + $0xa0] sm:$0xff] %vm871, %v1363
      %1400 = vst.msk [vmem:[#allocation3 + $0xa8] sm:$0xff] %vm871, %v1364
      %1401 = vst.msk [vmem:[#allocation3 + $0xb0] sm:$0xff] %vm871, %v1365
      %1402 = vst.msk [vmem:[#allocation3 + $0xb8] sm:$0xff] %vm871, %v1366
      %1403 = vst.msk [vmem:[#allocation3 + $0xc0] sm:$0xff] %vm871, %v1367
      %1404 = vst.msk [vmem:[#allocation3 + $0xc8] sm:$0xff] %vm871, %v1368
      %1405 = vst.msk [vmem:[#allocation3 + $0xd0] sm:$0xff] %vm871, %v1369
      %1406 = vst.msk [vmem:[#allocation3 + $0xd8] sm:$0xff] %vm871, %v1370
      %1407 = vst.msk [vmem:[#allocation3 + $0xe0] sm:$0xff] %vm871, %v1371
      %1408 = vst.msk [vmem:[#allocation3 + $0xe8] sm:$0xff] %vm871, %v1372
      %1409 = vst.msk [vmem:[#allocation3 + $0xf0] sm:$0xff] %vm871, %v1373
      %1410 = vst.msk [vmem:[#allocation3 + $0xf8] sm:$0xff] %vm871, %v1374
      %1411 = vst.msk [vmem:[#allocation3 + $0x100] sm:$0xff] %vm871, %v1375
      %1412 = vst.msk [vmem:[#allocation3 + $0x108] sm:$0xff] %vm871, %v1376
      %1413 = vst.msk [vmem:[#allocation3 + $0x110] sm:$0xff] %vm871, %v1377
      %1414 = vst.msk [vmem:[#allocation3 + $0x118] sm:$0xff] %vm871, %v1378
      %v1415 = vld [vmem:[#allocation2 + $0x1] sm:$0xff]
      %v1416 = vld [vmem:[#allocation2 + $0x9] sm:$0xff]
      %v1417 = vld [vmem:[#allocation2 + $0x19] sm:$0xff]
      %v1418 = vld [vmem:[#allocation2 + $0x21] sm:$0xff]
      %v1419 = vld [vmem:[#allocation2 + $0x31] sm:$0xff]
      %v1420 = vld [vmem:[#allocation2 + $0x39] sm:$0xff]
      %v1421 = vld [vmem:[#allocation2 + $0x49] sm:$0xff]
      %v1422 = vld [vmem:[#allocation2 + $0x51] sm:$0xff]
      %v1423 = vld [vmem:[#allocation2 + $0x61] sm:$0xff]
      %v1424 = vld [vmem:[#allocation2 + $0x69] sm:$0xff]
      %v1425 = vld [vmem:[#allocation2 + $0x79] sm:$0xff]
      %v1426 = vld [vmem:[#allocation2 + $0x81] sm:$0xff]
      %v1427 = vld [vmem:[#allocation2 + $0x91] sm:$0xff]
      %v1428 = vld [vmem:[#allocation2 + $0x99] sm:$0xff]
      %v1429 = vld [vmem:[#allocation2 + $0xa9] sm:$0xff]
      %v1430 = vld [vmem:[#allocation2 + $0xb1] sm:$0xff]
      %v1431 = vld [vmem:[#allocation2 + $0xc1] sm:$0xff]
      %v1432 = vld [vmem:[#allocation2 + $0xc9] sm:$0xff]
      %v1433 = vld [vmem:[#allocation2 + $0xd9] sm:$0xff]
      %v1434 = vld [vmem:[#allocation2 + $0xe1] sm:$0xff]
      %v1435 = vld [vmem:[#allocation2 + $0xf1] sm:$0xff]
      %v1436 = vld [vmem:[#allocation2 + $0xf9] sm:$0xff]
      %v1437 = vld [vmem:[#allocation2 + $0x109] sm:$0xff]
      %v1438 = vld [vmem:[#allocation2 + $0x111] sm:$0xff]
      %v1439 = vld [vmem:[#allocation2 + $0x121] sm:$0xff]
      %v1440 = vld [vmem:[#allocation2 + $0x129] sm:$0xff]
      %v1441 = vld [vmem:[#allocation2 + $0x139] sm:$0xff]
      %v1442 = vld [vmem:[#allocation2 + $0x141] sm:$0xff]
      %v1443 = vld [vmem:[#allocation2 + $0x151] sm:$0xff]
      %v1444 = vld [vmem:[#allocation2 + $0x159] sm:$0xff]
      %v1445 = vld [vmem:[#allocation2 + $0x169] sm:$0xff]
      %v1446 = vld [vmem:[#allocation2 + $0x171] sm:$0xff]
      %v1447 = vld [vmem:[#allocation2 + $0x181] sm:$0xff]
      %v1448 = vld [vmem:[#allocation2 + $0x189] sm:$0xff]
      %v1449 = vld [vmem:[#allocation2 + $0x199] sm:$0xff]
      %v1450 = vld [vmem:[#allocation2 + $0x1a1] sm:$0xff]
      %1487 = vrot.lane.b32.xlu0 %v1415, 8
      %v1488 = vpop.permute.xlu0 %1487
      %1489 = vrot.lane.b32.xlu0 %v1416, 8
      %v1490 = vpop.permute.xlu0 %1489
      %1491 = vrot.lane.b32.xlu0 %v1417, 8
      %v1492 = vpop.permute.xlu0 %1491
      %1493 = vrot.lane.b32.xlu0 %v1418, 8
      %v1494 = vpop.permute.xlu0 %1493
      %1495 = vrot.lane.b32.xlu0 %v1419, 8
      %v1496 = vpop.permute.xlu0 %1495
      %1497 = vrot.lane.b32.xlu0 %v1420, 8
      %v1498 = vpop.permute.xlu0 %1497
      %1499 = vrot.lane.b32.xlu0 %v1421, 8
      %v1500 = vpop.permute.xlu0 %1499
      %1501 = vrot.lane.b32.xlu0 %v1422, 8
      %v1502 = vpop.permute.xlu0 %1501
      %1503 = vrot.lane.b32.xlu0 %v1423, 8
      %v1504 = vpop.permute.xlu0 %1503
      %1505 = vrot.lane.b32.xlu0 %v1424, 8
      %v1506 = vpop.permute.xlu0 %1505
      %1507 = vrot.lane.b32.xlu0 %v1425, 8
      %v1508 = vpop.permute.xlu0 %1507
      %1509 = vrot.lane.b32.xlu0 %v1426, 8
      %v1510 = vpop.permute.xlu0 %1509
      %1511 = vrot.lane.b32.xlu0 %v1427, 8
      %v1512 = vpop.permute.xlu0 %1511
      %1513 = vrot.lane.b32.xlu0 %v1428, 8
      %v1514 = vpop.permute.xlu0 %1513
      %1515 = vrot.lane.b32.xlu0 %v1429, 8
      %v1516 = vpop.permute.xlu0 %1515
      %1517 = vrot.lane.b32.xlu0 %v1430, 8
      %v1518 = vpop.permute.xlu0 %1517
      %1519 = vrot.lane.b32.xlu0 %v1431, 8
      %v1520 = vpop.permute.xlu0 %1519
      %1521 = vrot.lane.b32.xlu0 %v1432, 8
      %v1522 = vpop.permute.xlu0 %1521
      %1523 = vrot.lane.b32.xlu0 %v1433, 8
      %v1524 = vpop.permute.xlu0 %1523
      %1525 = vrot.lane.b32.xlu0 %v1434, 8
      %v1526 = vpop.permute.xlu0 %1525
      %1527 = vrot.lane.b32.xlu0 %v1435, 8
      %v1528 = vpop.permute.xlu0 %1527
      %1529 = vrot.lane.b32.xlu0 %v1436, 8
      %v1530 = vpop.permute.xlu0 %1529
      %1531 = vrot.lane.b32.xlu0 %v1437, 8
      %v1532 = vpop.permute.xlu0 %1531
      %1533 = vrot.lane.b32.xlu0 %v1438, 8
      %v1534 = vpop.permute.xlu0 %1533
      %1535 = vrot.lane.b32.xlu0 %v1439, 8
      %v1536 = vpop.permute.xlu0 %1535
      %1537 = vrot.lane.b32.xlu0 %v1440, 8
      %v1538 = vpop.permute.xlu0 %1537
      %1539 = vrot.lane.b32.xlu0 %v1441, 8
      %v1540 = vpop.permute.xlu0 %1539
      %1541 = vrot.lane.b32.xlu0 %v1442, 8
      %v1542 = vpop.permute.xlu0 %1541
      %1543 = vrot.lane.b32.xlu0 %v1443, 8
      %v1544 = vpop.permute.xlu0 %1543
      %1545 = vrot.lane.b32.xlu0 %v1444, 8
      %v1546 = vpop.permute.xlu0 %1545
      %1547 = vrot.lane.b32.xlu0 %v1445, 8
      %v1548 = vpop.permute.xlu0 %1547
      %1549 = vrot.lane.b32.xlu0 %v1446, 8
      %v1550 = vpop.permute.xlu0 %1549
      %1551 = vrot.lane.b32.xlu0 %v1447, 8
      %v1552 = vpop.permute.xlu0 %1551
      %1553 = vrot.lane.b32.xlu0 %v1448, 8
      %v1554 = vpop.permute.xlu0 %1553
      %1555 = vrot.lane.b32.xlu0 %v1449, 8
      %v1556 = vpop.permute.xlu0 %1555
      %1557 = vrot.lane.b32.xlu0 %v1450, 8
      %v1558 = vpop.permute.xlu0 %1557
      %vm1595 = vcmask 130112
      %1596 = vst.msk [vmem:[#allocation3] sm:$0xff] %vm1595, %v1488
      %1597 = vst.msk [vmem:[#allocation3 + $0x8] sm:$0xff] %vm1595, %v1490
      %1598 = vst.msk [vmem:[#allocation3 + $0x10] sm:$0xff] %vm1595, %v1492
      %1599 = vst.msk [vmem:[#allocation3 + $0x18] sm:$0xff] %vm1595, %v1494
      %1600 = vst.msk [vmem:[#allocation3 + $0x20] sm:$0xff] %vm1595, %v1496
      %1601 = vst.msk [vmem:[#allocation3 + $0x28] sm:$0xff] %vm1595, %v1498
      %1602 = vst.msk [vmem:[#allocation3 + $0x30] sm:$0xff] %vm1595, %v1500
      %1603 = vst.msk [vmem:[#allocation3 + $0x38] sm:$0xff] %vm1595, %v1502
      %1604 = vst.msk [vmem:[#allocation3 + $0x40] sm:$0xff] %vm1595, %v1504
      %1605 = vst.msk [vmem:[#allocation3 + $0x48] sm:$0xff] %vm1595, %v1506
      %1606 = vst.msk [vmem:[#allocation3 + $0x50] sm:$0xff] %vm1595, %v1508
      %1607 = vst.msk [vmem:[#allocation3 + $0x58] sm:$0xff] %vm1595, %v1510
      %1608 = vst.msk [vmem:[#allocation3 + $0x60] sm:$0xff] %vm1595, %v1512
      %1609 = vst.msk [vmem:[#allocation3 + $0x68] sm:$0xff] %vm1595, %v1514
      %1610 = vst.msk [vmem:[#allocation3 + $0x70] sm:$0xff] %vm1595, %v1516
      %1611 = vst.msk [vmem:[#allocation3 + $0x78] sm:$0xff] %vm1595, %v1518
      %1612 = vst.msk [vmem:[#allocation3 + $0x80] sm:$0xff] %vm1595, %v1520
      %1613 = vst.msk [vmem:[#allocation3 + $0x88] sm:$0xff] %vm1595, %v1522
      %1614 = vst.msk [vmem:[#allocation3 + $0x90] sm:$0xff] %vm1595, %v1524
      %1615 = vst.msk [vmem:[#allocation3 + $0x98] sm:$0xff] %vm1595, %v1526
      %1616 = vst.msk [vmem:[#allocation3 + $0xa0] sm:$0xff] %vm1595, %v1528
      %1617 = vst.msk [vmem:[#allocation3 + $0xa8] sm:$0xff] %vm1595, %v1530
      %1618 = vst.msk [vmem:[#allocation3 + $0xb0] sm:$0xff] %vm1595, %v1532
      %1619 = vst.msk [vmem:[#allocation3 + $0xb8] sm:$0xff] %vm1595, %v1534
      %1620 = vst.msk [vmem:[#allocation3 + $0xc0] sm:$0xff] %vm1595, %v1536
      %1621 = vst.msk [vmem:[#allocation3 + $0xc8] sm:$0xff] %vm1595, %v1538
      %1622 = vst.msk [vmem:[#allocation3 + $0xd0] sm:$0xff] %vm1595, %v1540
      %1623 = vst.msk [vmem:[#allocation3 + $0xd8] sm:$0xff] %vm1595, %v1542
      %1624 = vst.msk [vmem:[#allocation3 + $0xe0] sm:$0xff] %vm1595, %v1544
      %1625 = vst.msk [vmem:[#allocation3 + $0xe8] sm:$0xff] %vm1595, %v1546
      %1626 = vst.msk [vmem:[#allocation3 + $0xf0] sm:$0xff] %vm1595, %v1548
      %1627 = vst.msk [vmem:[#allocation3 + $0xf8] sm:$0xff] %vm1595, %v1550
      %1628 = vst.msk [vmem:[#allocation3 + $0x100] sm:$0xff] %vm1595, %v1552
      %1629 = vst.msk [vmem:[#allocation3 + $0x108] sm:$0xff] %vm1595, %v1554
      %1630 = vst.msk [vmem:[#allocation3 + $0x110] sm:$0xff] %vm1595, %v1556
      %1631 = vst.msk [vmem:[#allocation3 + $0x118] sm:$0xff] %vm1595, %v1558
      %v1632 = vld [vmem:[#allocation2 + $0x2] sm:$0xff]
      %v1633 = vld [vmem:[#allocation2 + $0xa] sm:$0xff]
      %v1634 = vld [vmem:[#allocation2 + $0x1a] sm:$0xff]
      %v1635 = vld [vmem:[#allocation2 + $0x22] sm:$0xff]
      %v1636 = vld [vmem:[#allocation2 + $0x32] sm:$0xff]
      %v1637 = vld [vmem:[#allocation2 + $0x3a] sm:$0xff]
      %v1638 = vld [vmem:[#allocation2 + $0x4a] sm:$0xff]
      %v1639 = vld [vmem:[#allocation2 + $0x52] sm:$0xff]
      %v1640 = vld [vmem:[#allocation2 + $0x62] sm:$0xff]
      %v1641 = vld [vmem:[#allocation2 + $0x6a] sm:$0xff]
      %v1642 = vld [vmem:[#allocation2 + $0x7a] sm:$0xff]
      %v1643 = vld [vmem:[#allocation2 + $0x82] sm:$0xff]
      %v1644 = vld [vmem:[#allocation2 + $0x92] sm:$0xff]
      %v1645 = vld [vmem:[#allocation2 + $0x9a] sm:$0xff]
      %v1646 = vld [vmem:[#allocation2 + $0xaa] sm:$0xff]
      %v1647 = vld [vmem:[#allocation2 + $0xb2] sm:$0xff]
      %v1648 = vld [vmem:[#allocation2 + $0xc2] sm:$0xff]
      %v1649 = vld [vmem:[#allocation2 + $0xca] sm:$0xff]
      %v1650 = vld [vmem:[#allocation2 + $0xda] sm:$0xff]
      %v1651 = vld [vmem:[#allocation2 + $0xe2] sm:$0xff]
      %v1652 = vld [vmem:[#allocation2 + $0xf2] sm:$0xff]
      %v1653 = vld [vmem:[#allocation2 + $0xfa] sm:$0xff]
      %v1654 = vld [vmem:[#allocation2 + $0x10a] sm:$0xff]
      %v1655 = vld [vmem:[#allocation2 + $0x112] sm:$0xff]
      %v1656 = vld [vmem:[#allocation2 + $0x122] sm:$0xff]
      %v1657 = vld [vmem:[#allocation2 + $0x12a] sm:$0xff]
      %v1658 = vld [vmem:[#allocation2 + $0x13a] sm:$0xff]
      %v1659 = vld [vmem:[#allocation2 + $0x142] sm:$0xff]
      %v1660 = vld [vmem:[#allocation2 + $0x152] sm:$0xff]
      %v1661 = vld [vmem:[#allocation2 + $0x15a] sm:$0xff]
      %v1662 = vld [vmem:[#allocation2 + $0x16a] sm:$0xff]
      %v1663 = vld [vmem:[#allocation2 + $0x172] sm:$0xff]
      %v1664 = vld [vmem:[#allocation2 + $0x182] sm:$0xff]
      %v1665 = vld [vmem:[#allocation2 + $0x18a] sm:$0xff]
      %v1666 = vld [vmem:[#allocation2 + $0x19a] sm:$0xff]
      %v1667 = vld [vmem:[#allocation2 + $0x1a2] sm:$0xff]
      %1704 = vrot.lane.b32.xlu0 %v1632, 16
      %v1705 = vpop.permute.xlu0 %1704
      %1706 = vrot.lane.b32.xlu0 %v1633, 16
      %v1707 = vpop.permute.xlu0 %1706
      %1708 = vrot.lane.b32.xlu0 %v1634, 16
      %v1709 = vpop.permute.xlu0 %1708
      %1710 = vrot.lane.b32.xlu0 %v1635, 16
      %v1711 = vpop.permute.xlu0 %1710
      %1712 = vrot.lane.b32.xlu0 %v1636, 16
      %v1713 = vpop.permute.xlu0 %1712
      %1714 = vrot.lane.b32.xlu0 %v1637, 16
      %v1715 = vpop.permute.xlu0 %1714
      %1716 = vrot.lane.b32.xlu0 %v1638, 16
      %v1717 = vpop.permute.xlu0 %1716
      %1718 = vrot.lane.b32.xlu0 %v1639, 16
      %v1719 = vpop.permute.xlu0 %1718
      %1720 = vrot.lane.b32.xlu0 %v1640, 16
      %v1721 = vpop.permute.xlu0 %1720
      %1722 = vrot.lane.b32.xlu0 %v1641, 16
      %v1723 = vpop.permute.xlu0 %1722
      %1724 = vrot.lane.b32.xlu0 %v1642, 16
      %v1725 = vpop.permute.xlu0 %1724
      %1726 = vrot.lane.b32.xlu0 %v1643, 16
      %v1727 = vpop.permute.xlu0 %1726
      %1728 = vrot.lane.b32.xlu0 %v1644, 16
      %v1729 = vpop.permute.xlu0 %1728
      %1730 = vrot.lane.b32.xlu0 %v1645, 16
      %v1731 = vpop.permute.xlu0 %1730
      %1732 = vrot.lane.b32.xlu0 %v1646, 16
      %v1733 = vpop.permute.xlu0 %1732
      %1734 = vrot.lane.b32.xlu0 %v1647, 16
      %v1735 = vpop.permute.xlu0 %1734
      %1736 = vrot.lane.b32.xlu0 %v1648, 16
      %v1737 = vpop.permute.xlu0 %1736
      %1738 = vrot.lane.b32.xlu0 %v1649, 16
      %v1739 = vpop.permute.xlu0 %1738
      %1740 = vrot.lane.b32.xlu0 %v1650, 16
      %v1741 = vpop.permute.xlu0 %1740
      %1742 = vrot.lane.b32.xlu0 %v1651, 16
      %v1743 = vpop.permute.xlu0 %1742
      %1744 = vrot.lane.b32.xlu0 %v1652, 16
      %v1745 = vpop.permute.xlu0 %1744
      %1746 = vrot.lane.b32.xlu0 %v1653, 16
      %v1747 = vpop.permute.xlu0 %1746
      %1748 = vrot.lane.b32.xlu0 %v1654, 16
      %v1749 = vpop.permute.xlu0 %1748
      %1750 = vrot.lane.b32.xlu0 %v1655, 16
      %v1751 = vpop.permute.xlu0 %1750
      %1752 = vrot.lane.b32.xlu0 %v1656, 16
      %v1753 = vpop.permute.xlu0 %1752
      %1754 = vrot.lane.b32.xlu0 %v1657, 16
      %v1755 = vpop.permute.xlu0 %1754
      %1756 = vrot.lane.b32.xlu0 %v1658, 16
      %v1757 = vpop.permute.xlu0 %1756
      %1758 = vrot.lane.b32.xlu0 %v1659, 16
      %v1759 = vpop.permute.xlu0 %1758
      %1760 = vrot.lane.b32.xlu0 %v1660, 16
      %v1761 = vpop.permute.xlu0 %1760
      %1762 = vrot.lane.b32.xlu0 %v1661, 16
      %v1763 = vpop.permute.xlu0 %1762
      %1764 = vrot.lane.b32.xlu0 %v1662, 16
      %v1765 = vpop.permute.xlu0 %1764
      %1766 = vrot.lane.b32.xlu0 %v1663, 16
      %v1767 = vpop.permute.xlu0 %1766
      %1768 = vrot.lane.b32.xlu0 %v1664, 16
      %v1769 = vpop.permute.xlu0 %1768
      %1770 = vrot.lane.b32.xlu0 %v1665, 16
      %v1771 = vpop.permute.xlu0 %1770
      %1772 = vrot.lane.b32.xlu0 %v1666, 16
      %v1773 = vpop.permute.xlu0 %1772
      %1774 = vrot.lane.b32.xlu0 %v1667, 16
      %v1775 = vpop.permute.xlu0 %1774
      %vm1812 = vcmask 195712
      %1813 = vst.msk [vmem:[#allocation3] sm:$0xff] %vm1812, %v1705
      %1814 = vst.msk [vmem:[#allocation3 + $0x8] sm:$0xff] %vm1812, %v1707
      %1815 = vst.msk [vmem:[#allocation3 + $0x10] sm:$0xff] %vm1812, %v1709
      %1816 = vst.msk [vmem:[#allocation3 + $0x18] sm:$0xff] %vm1812, %v1711
      %1817 = vst.msk [vmem:[#allocation3 + $0x20] sm:$0xff] %vm1812, %v1713
      %1818 = vst.msk [vmem:[#allocation3 + $0x28] sm:$0xff] %vm1812, %v1715
      %1819 = vst.msk [vmem:[#allocation3 + $0x30] sm:$0xff] %vm1812, %v1717
      %1820 = vst.msk [vmem:[#allocation3 + $0x38] sm:$0xff] %vm1812, %v1719
      %1821 = vst.msk [vmem:[#allocation3 + $0x40] sm:$0xff] %vm1812, %v1721
      %1822 = vst.msk [vmem:[#allocation3 + $0x48] sm:$0xff] %vm1812, %v1723
      %1823 = vst.msk [vmem:[#allocation3 + $0x50] sm:$0xff] %vm1812, %v1725
      %1824 = vst.msk [vmem:[#allocation3 + $0x58] sm:$0xff] %vm1812, %v1727
      %1825 = vst.msk [vmem:[#allocation3 + $0x60] sm:$0xff] %vm1812, %v1729
      %1826 = vst.msk [vmem:[#allocation3 + $0x68] sm:$0xff] %vm1812, %v1731
      %1827 = vst.msk [vmem:[#allocation3 + $0x70] sm:$0xff] %vm1812, %v1733
      %1828 = vst.msk [vmem:[#allocation3 + $0x78] sm:$0xff] %vm1812, %v1735
      %1829 = vst.msk [vmem:[#allocation3 + $0x80] sm:$0xff] %vm1812, %v1737
      %1830 = vst.msk [vmem:[#allocation3 + $0x88] sm:$0xff] %vm1812, %v1739
      %1831 = vst.msk [vmem:[#allocation3 + $0x90] sm:$0xff] %vm1812, %v1741
      %1832 = vst.msk [vmem:[#allocation3 + $0x98] sm:$0xff] %vm1812, %v1743
      %1833 = vst.msk [vmem:[#allocation3 + $0xa0] sm:$0xff] %vm1812, %v1745
      %1834 = vst.msk [vmem:[#allocation3 + $0xa8] sm:$0xff] %vm1812, %v1747
      %1835 = vst.msk [vmem:[#allocation3 + $0xb0] sm:$0xff] %vm1812, %v1749
      %1836 = vst.msk [vmem:[#allocation3 + $0xb8] sm:$0xff] %vm1812, %v1751
      %1837 = vst.msk [vmem:[#allocation3 + $0xc0] sm:$0xff] %vm1812, %v1753
      %1838 = vst.msk [vmem:[#allocation3 + $0xc8] sm:$0xff] %vm1812, %v1755
      %1839 = vst.msk [vmem:[#allocation3 + $0xd0] sm:$0xff] %vm1812, %v1757
      %1840 = vst.msk [vmem:[#allocation3 + $0xd8] sm:$0xff] %vm1812, %v1759
      %1841 = vst.msk [vmem:[#allocation3 + $0xe0] sm:$0xff] %vm1812, %v1761
      %1842 = vst.msk [vmem:[#allocation3 + $0xe8] sm:$0xff] %vm1812, %v1763
      %1843 = vst.msk [vmem:[#allocation3 + $0xf0] sm:$0xff] %vm1812, %v1765
      %1844 = vst.msk [vmem:[#allocation3 + $0xf8] sm:$0xff] %vm1812, %v1767
      %1845 = vst.msk [vmem:[#allocation3 + $0x100] sm:$0xff] %vm1812, %v1769
      %1846 = vst.msk [vmem:[#allocation3 + $0x108] sm:$0xff] %vm1812, %v1771
      %1847 = vst.msk [vmem:[#allocation3 + $0x110] sm:$0xff] %vm1812, %v1773
      %1848 = vst.msk [vmem:[#allocation3 + $0x118] sm:$0xff] %vm1812, %v1775
      %v1849 = vld [vmem:[%s899] sm:$0xff]
      %v1850 = vld [vmem:[%s899 + $0x8] sm:$0xff]
      %v1851 = vld [vmem:[%s899 + $0x18] sm:$0xff]
      %v1852 = vld [vmem:[%s899 + $0x20] sm:$0xff]
      %v1853 = vld [vmem:[%s899 + $0x30] sm:$0xff]
      %v1854 = vld [vmem:[%s899 + $0x38] sm:$0xff]
      %v1855 = vld [vmem:[%s899 + $0x48] sm:$0xff]
      %v1856 = vld [vmem:[%s899 + $0x50] sm:$0xff]
      %v1857 = vld [vmem:[%s899 + $0x60] sm:$0xff]
      %v1858 = vld [vmem:[%s899 + $0x68] sm:$0xff]
      %v1859 = vld [vmem:[%s899 + $0x78] sm:$0xff]
      %v1860 = vld [vmem:[%s899 + $0x80] sm:$0xff]
      %v1861 = vld [vmem:[%s899 + $0x90] sm:$0xff]
      %v1862 = vld [vmem:[%s899 + $0x98] sm:$0xff]
      %v1863 = vld [vmem:[%s899 + $0xa8] sm:$0xff]
      %v1864 = vld [vmem:[%s899 + $0xb0] sm:$0xff]
      %v1865 = vld [vmem:[%s899 + $0xc0] sm:$0xff]
      %v1866 = vld [vmem:[%s899 + $0xc8] sm:$0xff]
      %v1867 = vld [vmem:[%s899 + $0xd8] sm:$0xff]
      %v1868 = vld [vmem:[%s899 + $0xe0] sm:$0xff]
      %v1869 = vld [vmem:[%s899 + $0xf0] sm:$0xff]
      %v1870 = vld [vmem:[%s899 + $0xf8] sm:$0xff]
      %v1871 = vld [vmem:[%s899 + $0x108] sm:$0xff]
      %v1872 = vld [vmem:[%s899 + $0x110] sm:$0xff]
      %v1873 = vld [vmem:[%s899 + $0x120] sm:$0xff]
      %v1874 = vld [vmem:[%s899 + $0x128] sm:$0xff]
      %v1875 = vld [vmem:[%s899 + $0x138] sm:$0xff]
      %v1876 = vld [vmem:[%s899 + $0x140] sm:$0xff]
      %v1877 = vld [vmem:[%s899 + $0x150] sm:$0xff]
      %v1878 = vld [vmem:[%s899 + $0x158] sm:$0xff]
      %v1879 = vld [vmem:[%s899 + $0x168] sm:$0xff]
      %v1880 = vld [vmem:[%s899 + $0x170] sm:$0xff]
      %v1881 = vld [vmem:[%s899 + $0x180] sm:$0xff]
      %v1882 = vld [vmem:[%s899 + $0x188] sm:$0xff]
      %v1883 = vld [vmem:[%s899 + $0x198] sm:$0xff]
      %v1884 = vld [vmem:[%s899 + $0x1a0] sm:$0xff]
      %1921 = vrot.lane.b32.xlu0 %v1849, 24
      %v1922 = vpop.permute.xlu0 %1921
      %1923 = vrot.lane.b32.xlu0 %v1850, 24
      %v1924 = vpop.permute.xlu0 %1923
      %1925 = vrot.lane.b32.xlu0 %v1851, 24
      %v1926 = vpop.permute.xlu0 %1925
      %1927 = vrot.lane.b32.xlu0 %v1852, 24
      %v1928 = vpop.permute.xlu0 %1927
      %1929 = vrot.lane.b32.xlu0 %v1853, 24
      %v1930 = vpop.permute.xlu0 %1929
      %1931 = vrot.lane.b32.xlu0 %v1854, 24
      %v1932 = vpop.permute.xlu0 %1931
      %1933 = vrot.lane.b32.xlu0 %v1855, 24
      %v1934 = vpop.permute.xlu0 %1933
      %1935 = vrot.lane.b32.xlu0 %v1856, 24
      %v1936 = vpop.permute.xlu0 %1935
      %1937 = vrot.lane.b32.xlu0 %v1857, 24
      %v1938 = vpop.permute.xlu0 %1937
      %1939 = vrot.lane.b32.xlu0 %v1858, 24
      %v1940 = vpop.permute.xlu0 %1939
      %1941 = vrot.lane.b32.xlu0 %v1859, 24
      %v1942 = vpop.permute.xlu0 %1941
      %1943 = vrot.lane.b32.xlu0 %v1860, 24
      %v1944 = vpop.permute.xlu0 %1943
      %1945 = vrot.lane.b32.xlu0 %v1861, 24
      %v1946 = vpop.permute.xlu0 %1945
      %1947 = vrot.lane.b32.xlu0 %v1862, 24
      %v1948 = vpop.permute.xlu0 %1947
      %1949 = vrot.lane.b32.xlu0 %v1863, 24
      %v1950 = vpop.permute.xlu0 %1949
      %1951 = vrot.lane.b32.xlu0 %v1864, 24
      %v1952 = vpop.permute.xlu0 %1951
      %1953 = vrot.lane.b32.xlu0 %v1865, 24
      %v1954 = vpop.permute.xlu0 %1953
      %1955 = vrot.lane.b32.xlu0 %v1866, 24
      %v1956 = vpop.permute.xlu0 %1955
      %1957 = vrot.lane.b32.xlu0 %v1867, 24
      %v1958 = vpop.permute.xlu0 %1957
      %1959 = vrot.lane.b32.xlu0 %v1868, 24
      %v1960 = vpop.permute.xlu0 %1959
      %1961 = vrot.lane.b32.xlu0 %v1869, 24
      %v1962 = vpop.permute.xlu0 %1961
      %1963 = vrot.lane.b32.xlu0 %v1870, 24
      %v1964 = vpop.permute.xlu0 %1963
      %1965 = vrot.lane.b32.xlu0 %v1871, 24
      %v1966 = vpop.permute.xlu0 %1965
      %1967 = vrot.lane.b32.xlu0 %v1872, 24
      %v1968 = vpop.permute.xlu0 %1967
      %1969 = vrot.lane.b32.xlu0 %v1873, 24
      %v1970 = vpop.permute.xlu0 %1969
      %1971 = vrot.lane.b32.xlu0 %v1874, 24
      %v1972 = vpop.permute.xlu0 %1971
      %1973 = vrot.lane.b32.xlu0 %v1875, 24
      %v1974 = vpop.permute.xlu0 %1973
      %1975 = vrot.lane.b32.xlu0 %v1876, 24
      %v1976 = vpop.permute.xlu0 %1975
      %1977 = vrot.lane.b32.xlu0 %v1877, 24
      %v1978 = vpop.permute.xlu0 %1977
      %1979 = vrot.lane.b32.xlu0 %v1878, 24
      %v1980 = vpop.permute.xlu0 %1979
      %1981 = vrot.lane.b32.xlu0 %v1879, 24
      %v1982 = vpop.permute.xlu0 %1981
      %1983 = vrot.lane.b32.xlu0 %v1880, 24
      %v1984 = vpop.permute.xlu0 %1983
      %1985 = vrot.lane.b32.xlu0 %v1881, 24
      %v1986 = vpop.permute.xlu0 %1985
      %1987 = vrot.lane.b32.xlu0 %v1882, 24
      %v1988 = vpop.permute.xlu0 %1987
      %1989 = vrot.lane.b32.xlu0 %v1883, 24
      %v1990 = vpop.permute.xlu0 %1989
      %1991 = vrot.lane.b32.xlu0 %v1884, 24
      %v1992 = vpop.permute.xlu0 %1991
      %vm2029 = vcmask 261312
      %2030 = vst.msk [vmem:[#allocation3] sm:$0xff] %vm2029, %v1922
      %2031 = vst.msk [vmem:[#allocation3 + $0x8] sm:$0xff] %vm2029, %v1924
      %2032 = vst.msk [vmem:[#allocation3 + $0x10] sm:$0xff] %vm2029, %v1926
      %2033 = vst.msk [vmem:[#allocation3 + $0x18] sm:$0xff] %vm2029, %v1928
      %2034 = vst.msk [vmem:[#allocation3 + $0x20] sm:$0xff] %vm2029, %v1930
      %2035 = vst.msk [vmem:[#allocation3 + $0x28] sm:$0xff] %vm2029, %v1932
      %2036 = vst.msk [vmem:[#allocation3 + $0x30] sm:$0xff] %vm2029, %v1934
      %2037 = vst.msk [vmem:[#allocation3 + $0x38] sm:$0xff] %vm2029, %v1936
      %2038 = vst.msk [vmem:[#allocation3 + $0x40] sm:$0xff] %vm2029, %v1938
      %2039 = vst.msk [vmem:[#allocation3 + $0x48] sm:$0xff] %vm2029, %v1940
      %2040 = vst.msk [vmem:[#allocation3 + $0x50] sm:$0xff] %vm2029, %v1942
      %2041 = vst.msk [vmem:[#allocation3 + $0x58] sm:$0xff] %vm2029, %v1944
      %2042 = vst.msk [vmem:[#allocation3 + $0x60] sm:$0xff] %vm2029, %v1946
      %2043 = vst.msk [vmem:[#allocation3 + $0x68] sm:$0xff] %vm2029, %v1948
      %2044 = vst.msk [vmem:[#allocation3 + $0x70] sm:$0xff] %vm2029, %v1950
      %2045 = vst.msk [vmem:[#allocation3 + $0x78] sm:$0xff] %vm2029, %v1952
      %2046 = vst.msk [vmem:[#allocation3 + $0x80] sm:$0xff] %vm2029, %v1954
      %2047 = vst.msk [vmem:[#allocation3 + $0x88] sm:$0xff] %vm2029, %v1956
      %2048 = vst.msk [vmem:[#allocation3 + $0x90] sm:$0xff] %vm2029, %v1958
      %2049 = vst.msk [vmem:[#allocation3 + $0x98] sm:$0xff] %vm2029, %v1960
      %2050 = vst.msk [vmem:[#allocation3 + $0xa0] sm:$0xff] %vm2029, %v1962
      %2051 = vst.msk [vmem:[#allocation3 + $0xa8] sm:$0xff] %vm2029, %v1964
      %2052 = vst.msk [vmem:[#allocation3 + $0xb0] sm:$0xff] %vm2029, %v1966
      %2053 = vst.msk [vmem:[#allocation3 + $0xb8] sm:$0xff] %vm2029, %v1968
      %2054 = vst.msk [vmem:[#allocation3 + $0xc0] sm:$0xff] %vm2029, %v1970
      %2055 = vst.msk [vmem:[#allocation3 + $0xc8] sm:$0xff] %vm2029, %v1972
      %2056 = vst.msk [vmem:[#allocation3 + $0xd0] sm:$0xff] %vm2029, %v1974
      %2057 = vst.msk [vmem:[#allocation3 + $0xd8] sm:$0xff] %vm2029, %v1976
      %2058 = vst.msk [vmem:[#allocation3 + $0xe0] sm:$0xff] %vm2029, %v1978
      %2059 = vst.msk [vmem:[#allocation3 + $0xe8] sm:$0xff] %vm2029, %v1980
      %2060 = vst.msk [vmem:[#allocation3 + $0xf0] sm:$0xff] %vm2029, %v1982
      %2061 = vst.msk [vmem:[#allocation3 + $0xf8] sm:$0xff] %vm2029, %v1984
      %2062 = vst.msk [vmem:[#allocation3 + $0x100] sm:$0xff] %vm2029, %v1986
      %2063 = vst.msk [vmem:[#allocation3 + $0x108] sm:$0xff] %vm2029, %v1988
      %2064 = vst.msk [vmem:[#allocation3 + $0x110] sm:$0xff] %vm2029, %v1990
      %2065 = vst.msk [vmem:[#allocation3 + $0x118] sm:$0xff] %vm2029, %v1992
      %v2066 = vld [vmem:[%s899 + $0x1] sm:$0xff]
      %v2067 = vld [vmem:[%s899 + $0x9] sm:$0xff]
      %v2068 = vld [vmem:[%s899 + $0x19] sm:$0xff]
      %v2069 = vld [vmem:[%s899 + $0x21] sm:$0xff]
      %v2070 = vld [vmem:[%s899 + $0x31] sm:$0xff]
      %v2071 = vld [vmem:[%s899 + $0x39] sm:$0xff]
      %v2072 = vld [vmem:[%s899 + $0x49] sm:$0xff]
      %v2073 = vld [vmem:[%s899 + $0x51] sm:$0xff]
      %v2074 = vld [vmem:[%s899 + $0x61] sm:$0xff]
      %v2075 = vld [vmem:[%s899 + $0x69] sm:$0xff]
      %v2076 = vld [vmem:[%s899 + $0x79] sm:$0xff]
      %v2077 = vld [vmem:[%s899 + $0x81] sm:$0xff]
      %v2078 = vld [vmem:[%s899 + $0x91] sm:$0xff]
      %v2079 = vld [vmem:[%s899 + $0x99] sm:$0xff]
      %v2080 = vld [vmem:[%s899 + $0xa9] sm:$0xff]
      %v2081 = vld [vmem:[%s899 + $0xb1] sm:$0xff]
      %v2082 = vld [vmem:[%s899 + $0xc1] sm:$0xff]
      %v2083 = vld [vmem:[%s899 + $0xc9] sm:$0xff]
      %v2084 = vld [vmem:[%s899 + $0xd9] sm:$0xff]
      %v2085 = vld [vmem:[%s899 + $0xe1] sm:$0xff]
      %v2086 = vld [vmem:[%s899 + $0xf1] sm:$0xff]
      %v2087 = vld [vmem:[%s899 + $0xf9] sm:$0xff]
      %v2088 = vld [vmem:[%s899 + $0x109] sm:$0xff]
      %v2089 = vld [vmem:[%s899 + $0x111] sm:$0xff]
      %v2090 = vld [vmem:[%s899 + $0x121] sm:$0xff]
      %v2091 = vld [vmem:[%s899 + $0x129] sm:$0xff]
      %v2092 = vld [vmem:[%s899 + $0x139] sm:$0xff]
      %v2093 = vld [vmem:[%s899 + $0x141] sm:$0xff]
      %v2094 = vld [vmem:[%s899 + $0x151] sm:$0xff]
      %v2095 = vld [vmem:[%s899 + $0x159] sm:$0xff]
      %v2096 = vld [vmem:[%s899 + $0x169] sm:$0xff]
      %v2097 = vld [vmem:[%s899 + $0x171] sm:$0xff]
      %v2098 = vld [vmem:[%s899 + $0x181] sm:$0xff]
      %v2099 = vld [vmem:[%s899 + $0x189] sm:$0xff]
      %v2100 = vld [vmem:[%s899 + $0x199] sm:$0xff]
      %v2101 = vld [vmem:[%s899 + $0x1a1] sm:$0xff]
      %2138 = vrot.lane.b32.xlu0 %v2066, 32
      %v2139 = vpop.permute.xlu0 %2138
      %2140 = vrot.lane.b32.xlu0 %v2067, 32
      %v2141 = vpop.permute.xlu0 %2140
      %2142 = vrot.lane.b32.xlu0 %v2068, 32
      %v2143 = vpop.permute.xlu0 %2142
      %2144 = vrot.lane.b32.xlu0 %v2069, 32
      %v2145 = vpop.permute.xlu0 %2144
      %2146 = vrot.lane.b32.xlu0 %v2070, 32
      %v2147 = vpop.permute.xlu0 %2146
      %2148 = vrot.lane.b32.xlu0 %v2071, 32
      %v2149 = vpop.permute.xlu0 %2148
      %2150 = vrot.lane.b32.xlu0 %v2072, 32
      %v2151 = vpop.permute.xlu0 %2150
      %2152 = vrot.lane.b32.xlu0 %v2073, 32
      %v2153 = vpop.permute.xlu0 %2152
      %2154 = vrot.lane.b32.xlu0 %v2074, 32
      %v2155 = vpop.permute.xlu0 %2154
      %2156 = vrot.lane.b32.xlu0 %v2075, 32
      %v2157 = vpop.permute.xlu0 %2156
      %2158 = vrot.lane.b32.xlu0 %v2076, 32
      %v2159 = vpop.permute.xlu0 %2158
      %2160 = vrot.lane.b32.xlu0 %v2077, 32
      %v2161 = vpop.permute.xlu0 %2160
      %2162 = vrot.lane.b32.xlu0 %v2078, 32
      %v2163 = vpop.permute.xlu0 %2162
      %2164 = vrot.lane.b32.xlu0 %v2079, 32
      %v2165 = vpop.permute.xlu0 %2164
      %2166 = vrot.lane.b32.xlu0 %v2080, 32
      %v2167 = vpop.permute.xlu0 %2166
      %2168 = vrot.lane.b32.xlu0 %v2081, 32
      %v2169 = vpop.permute.xlu0 %2168
      %2170 = vrot.lane.b32.xlu0 %v2082, 32
      %v2171 = vpop.permute.xlu0 %2170
      %2172 = vrot.lane.b32.xlu0 %v2083, 32
      %v2173 = vpop.permute.xlu0 %2172
      %2174 = vrot.lane.b32.xlu0 %v2084, 32
      %v2175 = vpop.permute.xlu0 %2174
      %2176 = vrot.lane.b32.xlu0 %v2085, 32
      %v2177 = vpop.permute.xlu0 %2176
      %2178 = vrot.lane.b32.xlu0 %v2086, 32
      %v2179 = vpop.permute.xlu0 %2178
      %2180 = vrot.lane.b32.xlu0 %v2087, 32
      %v2181 = vpop.permute.xlu0 %2180
      %2182 = vrot.lane.b32.xlu0 %v2088, 32
      %v2183 = vpop.permute.xlu0 %2182
      %2184 = vrot.lane.b32.xlu0 %v2089, 32
      %v2185 = vpop.permute.xlu0 %2184
      %2186 = vrot.lane.b32.xlu0 %v2090, 32
      %v2187 = vpop.permute.xlu0 %2186
      %2188 = vrot.lane.b32.xlu0 %v2091, 32
      %v2189 = vpop.permute.xlu0 %2188
      %2190 = vrot.lane.b32.xlu0 %v2092, 32
      %v2191 = vpop.permute.xlu0 %2190
      %2192 = vrot.lane.b32.xlu0 %v2093, 32
      %v2193 = vpop.permute.xlu0 %2192
      %2194 = vrot.lane.b32.xlu0 %v2094, 32
      %v2195 = vpop.permute.xlu0 %2194
      %2196 = vrot.lane.b32.xlu0 %v2095, 32
      %v2197 = vpop.permute.xlu0 %2196
      %2198 = vrot.lane.b32.xlu0 %v2096, 32
      %v2199 = vpop.permute.xlu0 %2198
      %2200 = vrot.lane.b32.xlu0 %v2097, 32
      %v2201 = vpop.permute.xlu0 %2200
      %2202 = vrot.lane.b32.xlu0 %v2098, 32
      %v2203 = vpop.permute.xlu0 %2202
      %2204 = vrot.lane.b32.xlu0 %v2099, 32
      %v2205 = vpop.permute.xlu0 %2204
      %2206 = vrot.lane.b32.xlu0 %v2100, 32
      %v2207 = vpop.permute.xlu0 %2206
      %2208 = vrot.lane.b32.xlu0 %v2101, 32
      %v2209 = vpop.permute.xlu0 %2208
      %vm2246 = vcmask 326912
      %2247 = vst.msk [vmem:[#allocation3] sm:$0xff] %vm2246, %v2139
      %2248 = vst.msk [vmem:[#allocation3 + $0x8] sm:$0xff] %vm2246, %v2141
      %2249 = vst.msk [vmem:[#allocation3 + $0x10] sm:$0xff] %vm2246, %v2143
      %2250 = vst.msk [vmem:[#allocation3 + $0x18] sm:$0xff] %vm2246, %v2145
      %2251 = vst.msk [vmem:[#allocation3 + $0x20] sm:$0xff] %vm2246, %v2147
      %2252 = vst.msk [vmem:[#allocation3 + $0x28] sm:$0xff] %vm2246, %v2149
      %2253 = vst.msk [vmem:[#allocation3 + $0x30] sm:$0xff] %vm2246, %v2151
      %2254 = vst.msk [vmem:[#allocation3 + $0x38] sm:$0xff] %vm2246, %v2153
      %2255 = vst.msk [vmem:[#allocation3 + $0x40] sm:$0xff] %vm2246, %v2155
      %2256 = vst.msk [vmem:[#allocation3 + $0x48] sm:$0xff] %vm2246, %v2157
      %2257 = vst.msk [vmem:[#allocation3 + $0x50] sm:$0xff] %vm2246, %v2159
      %2258 = vst.msk [vmem:[#allocation3 + $0x58] sm:$0xff] %vm2246, %v2161
      %2259 = vst.msk [vmem:[#allocation3 + $0x60] sm:$0xff] %vm2246, %v2163
      %2260 = vst.msk [vmem:[#allocation3 + $0x68] sm:$0xff] %vm2246, %v2165
      %2261 = vst.msk [vmem:[#allocation3 + $0x70] sm:$0xff] %vm2246, %v2167
      %2262 = vst.msk [vmem:[#allocation3 + $0x78] sm:$0xff] %vm2246, %v2169
      %2263 = vst.msk [vmem:[#allocation3 + $0x80] sm:$0xff] %vm2246, %v2171
      %2264 = vst.msk [vmem:[#allocation3 + $0x88] sm:$0xff] %vm2246, %v2173
      %2265 = vst.msk [vmem:[#allocation3 + $0x90] sm:$0xff] %vm2246, %v2175
      %2266 = vst.msk [vmem:[#allocation3 + $0x98] sm:$0xff] %vm2246, %v2177
      %2267 = vst.msk [vmem:[#allocation3 + $0xa0] sm:$0xff] %vm2246, %v2179
      %2268 = vst.msk [vmem:[#allocation3 + $0xa8] sm:$0xff] %vm2246, %v2181
      %2269 = vst.msk [vmem:[#allocation3 + $0xb0] sm:$0xff] %vm2246, %v2183
      %2270 = vst.msk [vmem:[#allocation3 + $0xb8] sm:$0xff] %vm2246, %v2185
      %2271 = vst.msk [vmem:[#allocation3 + $0xc0] sm:$0xff] %vm2246, %v2187
      %2272 = vst.msk [vmem:[#allocation3 + $0xc8] sm:$0xff] %vm2246, %v2189
      %2273 = vst.msk [vmem:[#allocation3 + $0xd0] sm:$0xff] %vm2246, %v2191
      %2274 = vst.msk [vmem:[#allocation3 + $0xd8] sm:$0xff] %vm2246, %v2193
      %2275 = vst.msk [vmem:[#allocation3 + $0xe0] sm:$0xff] %vm2246, %v2195
      %2276 = vst.msk [vmem:[#allocation3 + $0xe8] sm:$0xff] %vm2246, %v2197
      %2277 = vst.msk [vmem:[#allocation3 + $0xf0] sm:$0xff] %vm2246, %v2199
      %2278 = vst.msk [vmem:[#allocation3 + $0xf8] sm:$0xff] %vm2246, %v2201
      %2279 = vst.msk [vmem:[#allocation3 + $0x100] sm:$0xff] %vm2246, %v2203
      %2280 = vst.msk [vmem:[#allocation3 + $0x108] sm:$0xff] %vm2246, %v2205
      %2281 = vst.msk [vmem:[#allocation3 + $0x110] sm:$0xff] %vm2246, %v2207
      %2282 = vst.msk [vmem:[#allocation3 + $0x118] sm:$0xff] %vm2246, %v2209
      %v2283 = vld [vmem:[%s899 + $0x2] sm:$0xff]
      %v2284 = vld [vmem:[%s899 + $0xa] sm:$0xff]
      %v2285 = vld [vmem:[%s899 + $0x1a] sm:$0xff]
      %v2286 = vld [vmem:[%s899 + $0x22] sm:$0xff]
      %v2287 = vld [vmem:[%s899 + $0x32] sm:$0xff]
      %v2288 = vld [vmem:[%s899 + $0x3a] sm:$0xff]
      %v2289 = vld [vmem:[%s899 + $0x4a] sm:$0xff]
      %v2290 = vld [vmem:[%s899 + $0x52] sm:$0xff]
      %v2291 = vld [vmem:[%s899 + $0x62] sm:$0xff]
      %v2292 = vld [vmem:[%s899 + $0x6a] sm:$0xff]
      %v2293 = vld [vmem:[%s899 + $0x7a] sm:$0xff]
      %v2294 = vld [vmem:[%s899 + $0x82] sm:$0xff]
      %v2295 = vld [vmem:[%s899 + $0x92] sm:$0xff]
      %v2296 = vld [vmem:[%s899 + $0x9a] sm:$0xff]
      %v2297 = vld [vmem:[%s899 + $0xaa] sm:$0xff]
      %v2298 = vld [vmem:[%s899 + $0xb2] sm:$0xff]
      %v2299 = vld [vmem:[%s899 + $0xc2] sm:$0xff]
      %v2300 = vld [vmem:[%s899 + $0xca] sm:$0xff]
      %v2301 = vld [vmem:[%s899 + $0xda] sm:$0xff]
      %v2302 = vld [vmem:[%s899 + $0xe2] sm:$0xff]
      %v2303 = vld [vmem:[%s899 + $0xf2] sm:$0xff]
      %v2304 = vld [vmem:[%s899 + $0xfa] sm:$0xff]
      %v2305 = vld [vmem:[%s899 + $0x10a] sm:$0xff]
      %v2306 = vld [vmem:[%s899 + $0x112] sm:$0xff]
      %v2307 = vld [vmem:[%s899 + $0x122] sm:$0xff]
      %v2308 = vld [vmem:[%s899 + $0x12a] sm:$0xff]
      %v2309 = vld [vmem:[%s899 + $0x13a] sm:$0xff]
      %v2310 = vld [vmem:[%s899 + $0x142] sm:$0xff]
      %v2311 = vld [vmem:[%s899 + $0x152] sm:$0xff]
      %v2312 = vld [vmem:[%s899 + $0x15a] sm:$0xff]
      %v2313 = vld [vmem:[%s899 + $0x16a] sm:$0xff]
      %v2314 = vld [vmem:[%s899 + $0x172] sm:$0xff]
      %v2315 = vld [vmem:[%s899 + $0x182] sm:$0xff]
      %v2316 = vld [vmem:[%s899 + $0x18a] sm:$0xff]
      %v2317 = vld [vmem:[%s899 + $0x19a] sm:$0xff]
      %v2318 = vld [vmem:[%s899 + $0x1a2] sm:$0xff]
      %2355 = vrot.lane.b32.xlu0 %v2283, 40
      %v2356 = vpop.permute.xlu0 %2355
      %2357 = vrot.lane.b32.xlu0 %v2284, 40
      %v2358 = vpop.permute.xlu0 %2357
      %2359 = vrot.lane.b32.xlu0 %v2285, 40
      %v2360 = vpop.permute.xlu0 %2359
      %2361 = vrot.lane.b32.xlu0 %v2286, 40
      %v2362 = vpop.permute.xlu0 %2361
      %2363 = vrot.lane.b32.xlu0 %v2287, 40
      %v2364 = vpop.permute.xlu0 %2363
      %2365 = vrot.lane.b32.xlu0 %v2288, 40
      %v2366 = vpop.permute.xlu0 %2365
      %2367 = vrot.lane.b32.xlu0 %v2289, 40
      %v2368 = vpop.permute.xlu0 %2367
      %2369 = vrot.lane.b32.xlu0 %v2290, 40
      %v2370 = vpop.permute.xlu0 %2369
      %2371 = vrot.lane.b32.xlu0 %v2291, 40
      %v2372 = vpop.permute.xlu0 %2371
      %2373 = vrot.lane.b32.xlu0 %v2292, 40
      %v2374 = vpop.permute.xlu0 %2373
      %2375 = vrot.lane.b32.xlu0 %v2293, 40
      %v2376 = vpop.permute.xlu0 %2375
      %2377 = vrot.lane.b32.xlu0 %v2294, 40
      %v2378 = vpop.permute.xlu0 %2377
      %2379 = vrot.lane.b32.xlu0 %v2295, 40
      %v2380 = vpop.permute.xlu0 %2379
      %2381 = vrot.lane.b32.xlu0 %v2296, 40
      %v2382 = vpop.permute.xlu0 %2381
      %2383 = vrot.lane.b32.xlu0 %v2297, 40
      %v2384 = vpop.permute.xlu0 %2383
      %2385 = vrot.lane.b32.xlu0 %v2298, 40
      %v2386 = vpop.permute.xlu0 %2385
      %2387 = vrot.lane.b32.xlu0 %v2299, 40
      %v2388 = vpop.permute.xlu0 %2387
      %2389 = vrot.lane.b32.xlu0 %v2300, 40
      %v2390 = vpop.permute.xlu0 %2389
      %2391 = vrot.lane.b32.xlu0 %v2301, 40
      %v2392 = vpop.permute.xlu0 %2391
      %2393 = vrot.lane.b32.xlu0 %v2302, 40
      %v2394 = vpop.permute.xlu0 %2393
      %2395 = vrot.lane.b32.xlu0 %v2303, 40
      %v2396 = vpop.permute.xlu0 %2395
      %2397 = vrot.lane.b32.xlu0 %v2304, 40
      %v2398 = vpop.permute.xlu0 %2397
      %2399 = vrot.lane.b32.xlu0 %v2305, 40
      %v2400 = vpop.permute.xlu0 %2399
      %2401 = vrot.lane.b32.xlu0 %v2306, 40
      %v2402 = vpop.permute.xlu0 %2401
      %2403 = vrot.lane.b32.xlu0 %v2307, 40
      %v2404 = vpop.permute.xlu0 %2403
      %2405 = vrot.lane.b32.xlu0 %v2308, 40
      %v2406 = vpop.permute.xlu0 %2405
      %2407 = vrot.lane.b32.xlu0 %v2309, 40
      %v2408 = vpop.permute.xlu0 %2407
      %2409 = vrot.lane.b32.xlu0 %v2310, 40
      %v2410 = vpop.permute.xlu0 %2409
      %2411 = vrot.lane.b32.xlu0 %v2311, 40
      %v2412 = vpop.permute.xlu0 %2411
      %2413 = vrot.lane.b32.xlu0 %v2312, 40
      %v2414 = vpop.permute.xlu0 %2413
      %2415 = vrot.lane.b32.xlu0 %v2313, 40
      %v2416 = vpop.permute.xlu0 %2415
      %2417 = vrot.lane.b32.xlu0 %v2314, 40
      %v2418 = vpop.permute.xlu0 %2417
      %2419 = vrot.lane.b32.xlu0 %v2315, 40
      %v2420 = vpop.permute.xlu0 %2419
      %2421 = vrot.lane.b32.xlu0 %v2316, 40
      %v2422 = vpop.permute.xlu0 %2421
      %2423 = vrot.lane.b32.xlu0 %v2317, 40
      %v2424 = vpop.permute.xlu0 %2423
      %2425 = vrot.lane.b32.xlu0 %v2318, 40
      %v2426 = vpop.permute.xlu0 %2425
      %vm2463 = vcmask 392512
      %2464 = vst.msk [vmem:[#allocation3] sm:$0xff] %vm2463, %v2356
      %2465 = vst.msk [vmem:[#allocation3 + $0x8] sm:$0xff] %vm2463, %v2358
      %2466 = vst.msk [vmem:[#allocation3 + $0x10] sm:$0xff] %vm2463, %v2360
      %2467 = vst.msk [vmem:[#allocation3 + $0x18] sm:$0xff] %vm2463, %v2362
      %2468 = vst.msk [vmem:[#allocation3 + $0x20] sm:$0xff] %vm2463, %v2364
      %2469 = vst.msk [vmem:[#allocation3 + $0x28] sm:$0xff] %vm2463, %v2366
      %2470 = vst.msk [vmem:[#allocation3 + $0x30] sm:$0xff] %vm2463, %v2368
      %2471 = vst.msk [vmem:[#allocation3 + $0x38] sm:$0xff] %vm2463, %v2370
      %2472 = vst.msk [vmem:[#allocation3 + $0x40] sm:$0xff] %vm2463, %v2372
      %2473 = vst.msk [vmem:[#allocation3 + $0x48] sm:$0xff] %vm2463, %v2374
      %2474 = vst.msk [vmem:[#allocation3 + $0x50] sm:$0xff] %vm2463, %v2376
      %2475 = vst.msk [vmem:[#allocation3 + $0x58] sm:$0xff] %vm2463, %v2378
      %2476 = vst.msk [vmem:[#allocation3 + $0x60] sm:$0xff] %vm2463, %v2380
      %2477 = vst.msk [vmem:[#allocation3 + $0x68] sm:$0xff] %vm2463, %v2382
      %2478 = vst.msk [vmem:[#allocation3 + $0x70] sm:$0xff] %vm2463, %v2384
      %2479 = vst.msk [vmem:[#allocation3 + $0x78] sm:$0xff] %vm2463, %v2386
      %2480 = vst.msk [vmem:[#allocation3 + $0x80] sm:$0xff] %vm2463, %v2388
      %2481 = vst.msk [vmem:[#allocation3 + $0x88] sm:$0xff] %vm2463, %v2390
      %2482 = vst.msk [vmem:[#allocation3 + $0x90] sm:$0xff] %vm2463, %v2392
      %2483 = vst.msk [vmem:[#allocation3 + $0x98] sm:$0xff] %vm2463, %v2394
      %2484 = vst.msk [vmem:[#allocation3 + $0xa0] sm:$0xff] %vm2463, %v2396
      %2485 = vst.msk [vmem:[#allocation3 + $0xa8] sm:$0xff] %vm2463, %v2398
      %2486 = vst.msk [vmem:[#allocation3 + $0xb0] sm:$0xff] %vm2463, %v2400
      %2487 = vst.msk [vmem:[#allocation3 + $0xb8] sm:$0xff] %vm2463, %v2402
      %2488 = vst.msk [vmem:[#allocation3 + $0xc0] sm:$0xff] %vm2463, %v2404
      %2489 = vst.msk [vmem:[#allocation3 + $0xc8] sm:$0xff] %vm2463, %v2406
      %2490 = vst.msk [vmem:[#allocation3 + $0xd0] sm:$0xff] %vm2463, %v2408
      %2491 = vst.msk [vmem:[#allocation3 + $0xd8] sm:$0xff] %vm2463, %v2410
      %2492 = vst.msk [vmem:[#allocation3 + $0xe0] sm:$0xff] %vm2463, %v2412
      %2493 = vst.msk [vmem:[#allocation3 + $0xe8] sm:$0xff] %vm2463, %v2414
      %2494 = vst.msk [vmem:[#allocation3 + $0xf0] sm:$0xff] %vm2463, %v2416
      %2495 = vst.msk [vmem:[#allocation3 + $0xf8] sm:$0xff] %vm2463, %v2418
      %2496 = vst.msk [vmem:[#allocation3 + $0x100] sm:$0xff] %vm2463, %v2420
      %2497 = vst.msk [vmem:[#allocation3 + $0x108] sm:$0xff] %vm2463, %v2422
      %2498 = vst.msk [vmem:[#allocation3 + $0x110] sm:$0xff] %vm2463, %v2424
      %2499 = vst.msk [vmem:[#allocation3 + $0x118] sm:$0xff] %vm2463, %v2426
      %v2500 = vld [vmem:[%s1254] sm:$0xff]
      %v2501 = vld [vmem:[%s1254 + $0x8] sm:$0xff]
      %v2502 = vld [vmem:[%s1254 + $0x18] sm:$0xff]
      %v2503 = vld [vmem:[%s1254 + $0x20] sm:$0xff]
      %v2504 = vld [vmem:[%s1254 + $0x30] sm:$0xff]
      %v2505 = vld [vmem:[%s1254 + $0x38] sm:$0xff]
      %v2506 = vld [vmem:[%s1254 + $0x48] sm:$0xff]
      %v2507 = vld [vmem:[%s1254 + $0x50] sm:$0xff]
      %v2508 = vld [vmem:[%s1254 + $0x60] sm:$0xff]
      %v2509 = vld [vmem:[%s1254 + $0x68] sm:$0xff]
      %v2510 = vld [vmem:[%s1254 + $0x78] sm:$0xff]
      %v2511 = vld [vmem:[%s1254 + $0x80] sm:$0xff]
      %v2512 = vld [vmem:[%s1254 + $0x90] sm:$0xff]
      %v2513 = vld [vmem:[%s1254 + $0x98] sm:$0xff]
      %v2514 = vld [vmem:[%s1254 + $0xa8] sm:$0xff]
      %v2515 = vld [vmem:[%s1254 + $0xb0] sm:$0xff]
      %v2516 = vld [vmem:[%s1254 + $0xc0] sm:$0xff]
      %v2517 = vld [vmem:[%s1254 + $0xc8] sm:$0xff]
      %v2518 = vld [vmem:[%s1254 + $0xd8] sm:$0xff]
      %v2519 = vld [vmem:[%s1254 + $0xe0] sm:$0xff]
      %v2520 = vld [vmem:[%s1254 + $0xf0] sm:$0xff]
      %v2521 = vld [vmem:[%s1254 + $0xf8] sm:$0xff]
      %v2522 = vld [vmem:[%s1254 + $0x108] sm:$0xff]
      %v2523 = vld [vmem:[%s1254 + $0x110] sm:$0xff]
      %v2524 = vld [vmem:[%s1254 + $0x120] sm:$0xff]
      %v2525 = vld [vmem:[%s1254 + $0x128] sm:$0xff]
      %v2526 = vld [vmem:[%s1254 + $0x138] sm:$0xff]
      %v2527 = vld [vmem:[%s1254 + $0x140] sm:$0xff]
      %v2528 = vld [vmem:[%s1254 + $0x150] sm:$0xff]
      %v2529 = vld [vmem:[%s1254 + $0x158] sm:$0xff]
      %v2530 = vld [vmem:[%s1254 + $0x168] sm:$0xff]
      %v2531 = vld [vmem:[%s1254 + $0x170] sm:$0xff]
      %v2532 = vld [vmem:[%s1254 + $0x180] sm:$0xff]
      %v2533 = vld [vmem:[%s1254 + $0x188] sm:$0xff]
      %v2534 = vld [vmem:[%s1254 + $0x198] sm:$0xff]
      %v2535 = vld [vmem:[%s1254 + $0x1a0] sm:$0xff]
      %2572 = vrot.lane.b32.xlu0 %v2500, 48
      %v2573 = vpop.permute.xlu0 %2572
      %2574 = vrot.lane.b32.xlu0 %v2501, 48
      %v2575 = vpop.permute.xlu0 %2574
      %2576 = vrot.lane.b32.xlu0 %v2502, 48
      %v2577 = vpop.permute.xlu0 %2576
      %2578 = vrot.lane.b32.xlu0 %v2503, 48
      %v2579 = vpop.permute.xlu0 %2578
      %2580 = vrot.lane.b32.xlu0 %v2504, 48
      %v2581 = vpop.permute.xlu0 %2580
      %2582 = vrot.lane.b32.xlu0 %v2505, 48
      %v2583 = vpop.permute.xlu0 %2582
      %2584 = vrot.lane.b32.xlu0 %v2506, 48
      %v2585 = vpop.permute.xlu0 %2584
      %2586 = vrot.lane.b32.xlu0 %v2507, 48
      %v2587 = vpop.permute.xlu0 %2586
      %2588 = vrot.lane.b32.xlu0 %v2508, 48
      %v2589 = vpop.permute.xlu0 %2588
      %2590 = vrot.lane.b32.xlu0 %v2509, 48
      %v2591 = vpop.permute.xlu0 %2590
      %2592 = vrot.lane.b32.xlu0 %v2510, 48
      %v2593 = vpop.permute.xlu0 %2592
      %2594 = vrot.lane.b32.xlu0 %v2511, 48
      %v2595 = vpop.permute.xlu0 %2594
      %2596 = vrot.lane.b32.xlu0 %v2512, 48
      %v2597 = vpop.permute.xlu0 %2596
      %2598 = vrot.lane.b32.xlu0 %v2513, 48
      %v2599 = vpop.permute.xlu0 %2598
      %2600 = vrot.lane.b32.xlu0 %v2514, 48
      %v2601 = vpop.permute.xlu0 %2600
      %2602 = vrot.lane.b32.xlu0 %v2515, 48
      %v2603 = vpop.permute.xlu0 %2602
      %2604 = vrot.lane.b32.xlu0 %v2516, 48
      %v2605 = vpop.permute.xlu0 %2604
      %2606 = vrot.lane.b32.xlu0 %v2517, 48
      %v2607 = vpop.permute.xlu0 %2606
      %2608 = vrot.lane.b32.xlu0 %v2518, 48
      %v2609 = vpop.permute.xlu0 %2608
      %2610 = vrot.lane.b32.xlu0 %v2519, 48
      %v2611 = vpop.permute.xlu0 %2610
      %2612 = vrot.lane.b32.xlu0 %v2520, 48
      %v2613 = vpop.permute.xlu0 %2612
      %2614 = vrot.lane.b32.xlu0 %v2521, 48
      %v2615 = vpop.permute.xlu0 %2614
      %2616 = vrot.lane.b32.xlu0 %v2522, 48
      %v2617 = vpop.permute.xlu0 %2616
      %2618 = vrot.lane.b32.xlu0 %v2523, 48
      %v2619 = vpop.permute.xlu0 %2618
      %2620 = vrot.lane.b32.xlu0 %v2524, 48
      %v2621 = vpop.permute.xlu0 %2620
      %2622 = vrot.lane.b32.xlu0 %v2525, 48
      %v2623 = vpop.permute.xlu0 %2622
      %2624 = vrot.lane.b32.xlu0 %v2526, 48
      %v2625 = vpop.permute.xlu0 %2624
      %2626 = vrot.lane.b32.xlu0 %v2527, 48
      %v2627 = vpop.permute.xlu0 %2626
      %2628 = vrot.lane.b32.xlu0 %v2528, 48
      %v2629 = vpop.permute.xlu0 %2628
      %2630 = vrot.lane.b32.xlu0 %v2529, 48
      %v2631 = vpop.permute.xlu0 %2630
      %2632 = vrot.lane.b32.xlu0 %v2530, 48
      %v2633 = vpop.permute.xlu0 %2632
      %2634 = vrot.lane.b32.xlu0 %v2531, 48
      %v2635 = vpop.permute.xlu0 %2634
      %2636 = vrot.lane.b32.xlu0 %v2532, 48
      %v2637 = vpop.permute.xlu0 %2636
      %2638 = vrot.lane.b32.xlu0 %v2533, 48
      %v2639 = vpop.permute.xlu0 %2638
      %2640 = vrot.lane.b32.xlu0 %v2534, 48
      %v2641 = vpop.permute.xlu0 %2640
      %2642 = vrot.lane.b32.xlu0 %v2535, 48
      %v2643 = vpop.permute.xlu0 %2642
      %vm2680 = vcmask 458112
      %2681 = vst.msk [vmem:[#allocation3] sm:$0xff] %vm2680, %v2573
      %2682 = vst.msk [vmem:[#allocation3 + $0x8] sm:$0xff] %vm2680, %v2575
      %2683 = vst.msk [vmem:[#allocation3 + $0x10] sm:$0xff] %vm2680, %v2577
      %2684 = vst.msk [vmem:[#allocation3 + $0x18] sm:$0xff] %vm2680, %v2579
      %2685 = vst.msk [vmem:[#allocation3 + $0x20] sm:$0xff] %vm2680, %v2581
      %2686 = vst.msk [vmem:[#allocation3 + $0x28] sm:$0xff] %vm2680, %v2583
      %2687 = vst.msk [vmem:[#allocation3 + $0x30] sm:$0xff] %vm2680, %v2585
      %2688 = vst.msk [vmem:[#allocation3 + $0x38] sm:$0xff] %vm2680, %v2587
      %2689 = vst.msk [vmem:[#allocation3 + $0x40] sm:$0xff] %vm2680, %v2589
      %2690 = vst.msk [vmem:[#allocation3 + $0x48] sm:$0xff] %vm2680, %v2591
      %2691 = vst.msk [vmem:[#allocation3 + $0x50] sm:$0xff] %vm2680, %v2593
      %2692 = vst.msk [vmem:[#allocation3 + $0x58] sm:$0xff] %vm2680, %v2595
      %2693 = vst.msk [vmem:[#allocation3 + $0x60] sm:$0xff] %vm2680, %v2597
      %2694 = vst.msk [vmem:[#allocation3 + $0x68] sm:$0xff] %vm2680, %v2599
      %2695 = vst.msk [vmem:[#allocation3 + $0x70] sm:$0xff] %vm2680, %v2601
      %2696 = vst.msk [vmem:[#allocation3 + $0x78] sm:$0xff] %vm2680, %v2603
      %2697 = vst.msk [vmem:[#allocation3 + $0x80] sm:$0xff] %vm2680, %v2605
      %2698 = vst.msk [vmem:[#allocation3 + $0x88] sm:$0xff] %vm2680, %v2607
      %2699 = vst.msk [vmem:[#allocation3 + $0x90] sm:$0xff] %vm2680, %v2609
      %2700 = vst.msk [vmem:[#allocation3 + $0x98] sm:$0xff] %vm2680, %v2611
      %2701 = vst.msk [vmem:[#allocation3 + $0xa0] sm:$0xff] %vm2680, %v2613
      %2702 = vst.msk [vmem:[#allocation3 + $0xa8] sm:$0xff] %vm2680, %v2615
      %2703 = vst.msk [vmem:[#allocation3 + $0xb0] sm:$0xff] %vm2680, %v2617
      %2704 = vst.msk [vmem:[#allocation3 + $0xb8] sm:$0xff] %vm2680, %v2619
      %2705 = vst.msk [vmem:[#allocation3 + $0xc0] sm:$0xff] %vm2680, %v2621
      %2706 = vst.msk [vmem:[#allocation3 + $0xc8] sm:$0xff] %vm2680, %v2623
      %2707 = vst.msk [vmem:[#allocation3 + $0xd0] sm:$0xff] %vm2680, %v2625
      %2708 = vst.msk [vmem:[#allocation3 + $0xd8] sm:$0xff] %vm2680, %v2627
      %2709 = vst.msk [vmem:[#allocation3 + $0xe0] sm:$0xff] %vm2680, %v2629
      %2710 = vst.msk [vmem:[#allocation3 + $0xe8] sm:$0xff] %vm2680, %v2631
      %2711 = vst.msk [vmem:[#allocation3 + $0xf0] sm:$0xff] %vm2680, %v2633
      %2712 = vst.msk [vmem:[#allocation3 + $0xf8] sm:$0xff] %vm2680, %v2635
      %2713 = vst.msk [vmem:[#allocation3 + $0x100] sm:$0xff] %vm2680, %v2637
      %2714 = vst.msk [vmem:[#allocation3 + $0x108] sm:$0xff] %vm2680, %v2639
      %2715 = vst.msk [vmem:[#allocation3 + $0x110] sm:$0xff] %vm2680, %v2641
      %2716 = vst.msk [vmem:[#allocation3 + $0x118] sm:$0xff] %vm2680, %v2643
      %v2717 = vld [vmem:[%s1254 + $0x1] sm:$0xff]
      %v2718 = vld [vmem:[%s1254 + $0x9] sm:$0xff]
      %v2719 = vld [vmem:[%s1254 + $0x19] sm:$0xff]
      %v2720 = vld [vmem:[%s1254 + $0x21] sm:$0xff]
      %v2721 = vld [vmem:[%s1254 + $0x31] sm:$0xff]
      %v2722 = vld [vmem:[%s1254 + $0x39] sm:$0xff]
      %v2723 = vld [vmem:[%s1254 + $0x49] sm:$0xff]
      %v2724 = vld [vmem:[%s1254 + $0x51] sm:$0xff]
      %v2725 = vld [vmem:[%s1254 + $0x61] sm:$0xff]
      %v2726 = vld [vmem:[%s1254 + $0x69] sm:$0xff]
      %v2727 = vld [vmem:[%s1254 + $0x79] sm:$0xff]
      %v2728 = vld [vmem:[%s1254 + $0x81] sm:$0xff]
      %v2729 = vld [vmem:[%s1254 + $0x91] sm:$0xff]
      %v2730 = vld [vmem:[%s1254 + $0x99] sm:$0xff]
      %v2731 = vld [vmem:[%s1254 + $0xa9] sm:$0xff]
      %v2732 = vld [vmem:[%s1254 + $0xb1] sm:$0xff]
      %v2733 = vld [vmem:[%s1254 + $0xc1] sm:$0xff]
      %v2734 = vld [vmem:[%s1254 + $0xc9] sm:$0xff]
      %v2735 = vld [vmem:[%s1254 + $0xd9] sm:$0xff]
      %v2736 = vld [vmem:[%s1254 + $0xe1] sm:$0xff]
      %v2737 = vld [vmem:[%s1254 + $0xf1] sm:$0xff]
      %v2738 = vld [vmem:[%s1254 + $0xf9] sm:$0xff]
      %v2739 = vld [vmem:[%s1254 + $0x109] sm:$0xff]
      %v2740 = vld [vmem:[%s1254 + $0x111] sm:$0xff]
      %v2741 = vld [vmem:[%s1254 + $0x121] sm:$0xff]
      %v2742 = vld [vmem:[%s1254 + $0x129] sm:$0xff]
      %v2743 = vld [vmem:[%s1254 + $0x139] sm:$0xff]
      %v2744 = vld [vmem:[%s1254 + $0x141] sm:$0xff]
      %v2745 = vld [vmem:[%s1254 + $0x151] sm:$0xff]
      %v2746 = vld [vmem:[%s1254 + $0x159] sm:$0xff]
      %v2747 = vld [vmem:[%s1254 + $0x169] sm:$0xff]
      %v2748 = vld [vmem:[%s1254 + $0x171] sm:$0xff]
      %v2749 = vld [vmem:[%s1254 + $0x181] sm:$0xff]
      %v2750 = vld [vmem:[%s1254 + $0x189] sm:$0xff]
      %v2751 = vld [vmem:[%s1254 + $0x199] sm:$0xff]
      %v2752 = vld [vmem:[%s1254 + $0x1a1] sm:$0xff]
      %2789 = vrot.lane.b32.xlu0 %v2717, 56
      %v2790 = vpop.permute.xlu0 %2789
      %2791 = vrot.lane.b32.xlu0 %v2718, 56
      %v2792 = vpop.permute.xlu0 %2791
      %2793 = vrot.lane.b32.xlu0 %v2719, 56
      %v2794 = vpop.permute.xlu0 %2793
      %2795 = vrot.lane.b32.xlu0 %v2720, 56
      %v2796 = vpop.permute.xlu0 %2795
      %2797 = vrot.lane.b32.xlu0 %v2721, 56
      %v2798 = vpop.permute.xlu0 %2797
      %2799 = vrot.lane.b32.xlu0 %v2722, 56
      %v2800 = vpop.permute.xlu0 %2799
      %2801 = vrot.lane.b32.xlu0 %v2723, 56
      %v2802 = vpop.permute.xlu0 %2801
      %2803 = vrot.lane.b32.xlu0 %v2724, 56
      %v2804 = vpop.permute.xlu0 %2803
      %2805 = vrot.lane.b32.xlu0 %v2725, 56
      %v2806 = vpop.permute.xlu0 %2805
      %2807 = vrot.lane.b32.xlu0 %v2726, 56
      %v2808 = vpop.permute.xlu0 %2807
      %2809 = vrot.lane.b32.xlu0 %v2727, 56
      %v2810 = vpop.permute.xlu0 %2809
      %2811 = vrot.lane.b32.xlu0 %v2728, 56
      %v2812 = vpop.permute.xlu0 %2811
      %2813 = vrot.lane.b32.xlu0 %v2729, 56
      %v2814 = vpop.permute.xlu0 %2813
      %2815 = vrot.lane.b32.xlu0 %v2730, 56
      %v2816 = vpop.permute.xlu0 %2815
      %2817 = vrot.lane.b32.xlu0 %v2731, 56
      %v2818 = vpop.permute.xlu0 %2817
      %2819 = vrot.lane.b32.xlu0 %v2732, 56
      %v2820 = vpop.permute.xlu0 %2819
      %2821 = vrot.lane.b32.xlu0 %v2733, 56
      %v2822 = vpop.permute.xlu0 %2821
      %2823 = vrot.lane.b32.xlu0 %v2734, 56
      %v2824 = vpop.permute.xlu0 %2823
      %2825 = vrot.lane.b32.xlu0 %v2735, 56
      %v2826 = vpop.permute.xlu0 %2825
      %2827 = vrot.lane.b32.xlu0 %v2736, 56
      %v2828 = vpop.permute.xlu0 %2827
      %2829 = vrot.lane.b32.xlu0 %v2737, 56
      %v2830 = vpop.permute.xlu0 %2829
      %2831 = vrot.lane.b32.xlu0 %v2738, 56
      %v2832 = vpop.permute.xlu0 %2831
      %2833 = vrot.lane.b32.xlu0 %v2739, 56
      %v2834 = vpop.permute.xlu0 %2833
      %2835 = vrot.lane.b32.xlu0 %v2740, 56
      %v2836 = vpop.permute.xlu0 %2835
      %2837 = vrot.lane.b32.xlu0 %v2741, 56
      %v2838 = vpop.permute.xlu0 %2837
      %2839 = vrot.lane.b32.xlu0 %v2742, 56
      %v2840 = vpop.permute.xlu0 %2839
      %2841 = vrot.lane.b32.xlu0 %v2743, 56
      %v2842 = vpop.permute.xlu0 %2841
      %2843 = vrot.lane.b32.xlu0 %v2744, 56
      %v2844 = vpop.permute.xlu0 %2843
      %2845 = vrot.lane.b32.xlu0 %v2745, 56
      %v2846 = vpop.permute.xlu0 %2845
      %2847 = vrot.lane.b32.xlu0 %v2746, 56
      %v2848 = vpop.permute.xlu0 %2847
      %2849 = vrot.lane.b32.xlu0 %v2747, 56
      %v2850 = vpop.permute.xlu0 %2849
      %2851 = vrot.lane.b32.xlu0 %v2748, 56
      %v2852 = vpop.permute.xlu0 %2851
      %2853 = vrot.lane.b32.xlu0 %v2749, 56
      %v2854 = vpop.permute.xlu0 %2853
      %2855 = vrot.lane.b32.xlu0 %v2750, 56
      %v2856 = vpop.permute.xlu0 %2855
      %2857 = vrot.lane.b32.xlu0 %v2751, 56
      %v2858 = vpop.permute.xlu0 %2857
      %2859 = vrot.lane.b32.xlu0 %v2752, 56
      %v2860 = vpop.permute.xlu0 %2859
      %vm2897 = vcmask 523712
      %2898 = vst.msk [vmem:[#allocation3] sm:$0xff] %vm2897, %v2790
      %2899 = vst.msk [vmem:[#allocation3 + $0x8] sm:$0xff] %vm2897, %v2792
      %2900 = vst.msk [vmem:[#allocation3 + $0x10] sm:$0xff] %vm2897, %v2794
      %2901 = vst.msk [vmem:[#allocation3 + $0x18] sm:$0xff] %vm2897, %v2796
      %2902 = vst.msk [vmem:[#allocation3 + $0x20] sm:$0xff] %vm2897, %v2798
      %2903 = vst.msk [vmem:[#allocation3 + $0x28] sm:$0xff] %vm2897, %v2800
      %2904 = vst.msk [vmem:[#allocation3 + $0x30] sm:$0xff] %vm2897, %v2802
      %2905 = vst.msk [vmem:[#allocation3 + $0x38] sm:$0xff] %vm2897, %v2804
      %2906 = vst.msk [vmem:[#allocation3 + $0x40] sm:$0xff] %vm2897, %v2806
      %2907 = vst.msk [vmem:[#allocation3 + $0x48] sm:$0xff] %vm2897, %v2808
      %2908 = vst.msk [vmem:[#allocation3 + $0x50] sm:$0xff] %vm2897, %v2810
      %2909 = vst.msk [vmem:[#allocation3 + $0x58] sm:$0xff] %vm2897, %v2812
      %2910 = vst.msk [vmem:[#allocation3 + $0x60] sm:$0xff] %vm2897, %v2814
      %2911 = vst.msk [vmem:[#allocation3 + $0x68] sm:$0xff] %vm2897, %v2816
      %2912 = vst.msk [vmem:[#allocation3 + $0x70] sm:$0xff] %vm2897, %v2818
      %2913 = vst.msk [vmem:[#allocation3 + $0x78] sm:$0xff] %vm2897, %v2820
      %2914 = vst.msk [vmem:[#allocation3 + $0x80] sm:$0xff] %vm2897, %v2822
      %2915 = vst.msk [vmem:[#allocation3 + $0x88] sm:$0xff] %vm2897, %v2824
      %2916 = vst.msk [vmem:[#allocation3 + $0x90] sm:$0xff] %vm2897, %v2826
      %2917 = vst.msk [vmem:[#allocation3 + $0x98] sm:$0xff] %vm2897, %v2828
      %2918 = vst.msk [vmem:[#allocation3 + $0xa0] sm:$0xff] %vm2897, %v2830
      %2919 = vst.msk [vmem:[#allocation3 + $0xa8] sm:$0xff] %vm2897, %v2832
      %2920 = vst.msk [vmem:[#allocation3 + $0xb0] sm:$0xff] %vm2897, %v2834
      %2921 = vst.msk [vmem:[#allocation3 + $0xb8] sm:$0xff] %vm2897, %v2836
      %2922 = vst.msk [vmem:[#allocation3 + $0xc0] sm:$0xff] %vm2897, %v2838
      %2923 = vst.msk [vmem:[#allocation3 + $0xc8] sm:$0xff] %vm2897, %v2840
      %2924 = vst.msk [vmem:[#allocation3 + $0xd0] sm:$0xff] %vm2897, %v2842
      %2925 = vst.msk [vmem:[#allocation3 + $0xd8] sm:$0xff] %vm2897, %v2844
      %2926 = vst.msk [vmem:[#allocation3 + $0xe0] sm:$0xff] %vm2897, %v2846
      %2927 = vst.msk [vmem:[#allocation3 + $0xe8] sm:$0xff] %vm2897, %v2848
      %2928 = vst.msk [vmem:[#allocation3 + $0xf0] sm:$0xff] %vm2897, %v2850
      %2929 = vst.msk [vmem:[#allocation3 + $0xf8] sm:$0xff] %vm2897, %v2852
      %2930 = vst.msk [vmem:[#allocation3 + $0x100] sm:$0xff] %vm2897, %v2854
      %2931 = vst.msk [vmem:[#allocation3 + $0x108] sm:$0xff] %vm2897, %v2856
      %2932 = vst.msk [vmem:[#allocation3 + $0x110] sm:$0xff] %vm2897, %v2858
      %2933 = vst.msk [vmem:[#allocation3 + $0x118] sm:$0xff] %vm2897, %v2860
      %v2934 = vld [vmem:[%s1254 + $0x2] sm:$0xff]
      %v2935 = vld [vmem:[%s1254 + $0xa] sm:$0xff]
      %v2936 = vld [vmem:[%s1254 + $0x1a] sm:$0xff]
      %v2937 = vld [vmem:[%s1254 + $0x22] sm:$0xff]
      %v2938 = vld [vmem:[%s1254 + $0x32] sm:$0xff]
      %v2939 = vld [vmem:[%s1254 + $0x3a] sm:$0xff]
      %v2940 = vld [vmem:[%s1254 + $0x4a] sm:$0xff]
      %v2941 = vld [vmem:[%s1254 + $0x52] sm:$0xff]
      %v2942 = vld [vmem:[%s1254 + $0x62] sm:$0xff]
      %v2943 = vld [vmem:[%s1254 + $0x6a] sm:$0xff]
      %v2944 = vld [vmem:[%s1254 + $0x7a] sm:$0xff]
      %v2945 = vld [vmem:[%s1254 + $0x82] sm:$0xff]
      %v2946 = vld [vmem:[%s1254 + $0x92] sm:$0xff]
      %v2947 = vld [vmem:[%s1254 + $0x9a] sm:$0xff]
      %v2948 = vld [vmem:[%s1254 + $0xaa] sm:$0xff]
      %v2949 = vld [vmem:[%s1254 + $0xb2] sm:$0xff]
      %v2950 = vld [vmem:[%s1254 + $0xc2] sm:$0xff]
      %v2951 = vld [vmem:[%s1254 + $0xca] sm:$0xff]
      %v2952 = vld [vmem:[%s1254 + $0xda] sm:$0xff]
      %v2953 = vld [vmem:[%s1254 + $0xe2] sm:$0xff]
      %v2954 = vld [vmem:[%s1254 + $0xf2] sm:$0xff]
      %v2955 = vld [vmem:[%s1254 + $0xfa] sm:$0xff]
      %v2956 = vld [vmem:[%s1254 + $0x10a] sm:$0xff]
      %v2957 = vld [vmem:[%s1254 + $0x112] sm:$0xff]
      %v2958 = vld [vmem:[%s1254 + $0x122] sm:$0xff]
      %v2959 = vld [vmem:[%s1254 + $0x12a] sm:$0xff]
      %v2960 = vld [vmem:[%s1254 + $0x13a] sm:$0xff]
      %v2961 = vld [vmem:[%s1254 + $0x142] sm:$0xff]
      %v2962 = vld [vmem:[%s1254 + $0x152] sm:$0xff]
      %v2963 = vld [vmem:[%s1254 + $0x15a] sm:$0xff]
      %v2964 = vld [vmem:[%s1254 + $0x16a] sm:$0xff]
      %v2965 = vld [vmem:[%s1254 + $0x172] sm:$0xff]
      %v2966 = vld [vmem:[%s1254 + $0x182] sm:$0xff]
      %v2967 = vld [vmem:[%s1254 + $0x18a] sm:$0xff]
      %v2968 = vld [vmem:[%s1254 + $0x19a] sm:$0xff]
      %v2969 = vld [vmem:[%s1254 + $0x1a2] sm:$0xff]
      %3006 = vrot.lane.b32.xlu0 %v2934, 64
      %v3007 = vpop.permute.xlu0 %3006
      %3008 = vrot.lane.b32.xlu0 %v2935, 64
      %v3009 = vpop.permute.xlu0 %3008
      %3010 = vrot.lane.b32.xlu0 %v2936, 64
      %v3011 = vpop.permute.xlu0 %3010
      %3012 = vrot.lane.b32.xlu0 %v2937, 64
      %v3013 = vpop.permute.xlu0 %3012
      %3014 = vrot.lane.b32.xlu0 %v2938, 64
      %v3015 = vpop.permute.xlu0 %3014
      %3016 = vrot.lane.b32.xlu0 %v2939, 64
      %v3017 = vpop.permute.xlu0 %3016
      %3018 = vrot.lane.b32.xlu0 %v2940, 64
      %v3019 = vpop.permute.xlu0 %3018
      %3020 = vrot.lane.b32.xlu0 %v2941, 64
      %v3021 = vpop.permute.xlu0 %3020
      %3022 = vrot.lane.b32.xlu0 %v2942, 64
      %v3023 = vpop.permute.xlu0 %3022
      %3024 = vrot.lane.b32.xlu0 %v2943, 64
      %v3025 = vpop.permute.xlu0 %3024
      %3026 = vrot.lane.b32.xlu0 %v2944, 64
      %v3027 = vpop.permute.xlu0 %3026
      %3028 = vrot.lane.b32.xlu0 %v2945, 64
      %v3029 = vpop.permute.xlu0 %3028
      %3030 = vrot.lane.b32.xlu0 %v2946, 64
      %v3031 = vpop.permute.xlu0 %3030
      %3032 = vrot.lane.b32.xlu0 %v2947, 64
      %v3033 = vpop.permute.xlu0 %3032
      %3034 = vrot.lane.b32.xlu0 %v2948, 64
      %v3035 = vpop.permute.xlu0 %3034
      %3036 = vrot.lane.b32.xlu0 %v2949, 64
      %v3037 = vpop.permute.xlu0 %3036
      %3038 = vrot.lane.b32.xlu0 %v2950, 64
      %v3039 = vpop.permute.xlu0 %3038
      %3040 = vrot.lane.b32.xlu0 %v2951, 64
      %v3041 = vpop.permute.xlu0 %3040
      %3042 = vrot.lane.b32.xlu0 %v2952, 64
      %v3043 = vpop.permute.xlu0 %3042
      %3044 = vrot.lane.b32.xlu0 %v2953, 64
      %v3045 = vpop.permute.xlu0 %3044
      %3046 = vrot.lane.b32.xlu0 %v2954, 64
      %v3047 = vpop.permute.xlu0 %3046
      %3048 = vrot.lane.b32.xlu0 %v2955, 64
      %v3049 = vpop.permute.xlu0 %3048
      %3050 = vrot.lane.b32.xlu0 %v2956, 64
      %v3051 = vpop.permute.xlu0 %3050
      %3052 = vrot.lane.b32.xlu0 %v2957, 64
      %v3053 = vpop.permute.xlu0 %3052
      %3054 = vrot.lane.b32.xlu0 %v2958, 64
      %v3055 = vpop.permute.xlu0 %3054
      %3056 = vrot.lane.b32.xlu0 %v2959, 64
      %v3057 = vpop.permute.xlu0 %3056
      %3058 = vrot.lane.b32.xlu0 %v2960, 64
      %v3059 = vpop.permute.xlu0 %3058
      %3060 = vrot.lane.b32.xlu0 %v2961, 64
      %v3061 = vpop.permute.xlu0 %3060
      %3062 = vrot.lane.b32.xlu0 %v2962, 64
      %v3063 = vpop.permute.xlu0 %3062
      %3064 = vrot.lane.b32.xlu0 %v2963, 64
      %v3065 = vpop.permute.xlu0 %3064
      %3066 = vrot.lane.b32.xlu0 %v2964, 64
      %v3067 = vpop.permute.xlu0 %3066
      %3068 = vrot.lane.b32.xlu0 %v2965, 64
      %v3069 = vpop.permute.xlu0 %3068
      %3070 = vrot.lane.b32.xlu0 %v2966, 64
      %v3071 = vpop.permute.xlu0 %3070
      %3072 = vrot.lane.b32.xlu0 %v2967, 64
      %v3073 = vpop.permute.xlu0 %3072
      %3074 = vrot.lane.b32.xlu0 %v2968, 64
      %v3075 = vpop.permute.xlu0 %3074
      %3076 = vrot.lane.b32.xlu0 %v2969, 64
      %v3077 = vpop.permute.xlu0 %3076
      %vm3114 = vcmask 589312
      %3115 = vst.msk [vmem:[#allocation3] sm:$0xff] %vm3114, %v3007
      %3116 = vst.msk [vmem:[#allocation3 + $0x8] sm:$0xff] %vm3114, %v3009
      %3117 = vst.msk [vmem:[#allocation3 + $0x10] sm:$0xff] %vm3114, %v3011
      %3118 = vst.msk [vmem:[#allocation3 + $0x18] sm:$0xff] %vm3114, %v3013
      %3119 = vst.msk [vmem:[#allocation3 + $0x20] sm:$0xff] %vm3114, %v3015
      %3120 = vst.msk [vmem:[#allocation3 + $0x28] sm:$0xff] %vm3114, %v3017
      %3121 = vst.msk [vmem:[#allocation3 + $0x30] sm:$0xff] %vm3114, %v3019
      %3122 = vst.msk [vmem:[#allocation3 + $0x38] sm:$0xff] %vm3114, %v3021
      %3123 = vst.msk [vmem:[#allocation3 + $0x40] sm:$0xff] %vm3114, %v3023
      %3124 = vst.msk [vmem:[#allocation3 + $0x48] sm:$0xff] %vm3114, %v3025
      %3125 = vst.msk [vmem:[#allocation3 + $0x50] sm:$0xff] %vm3114, %v3027
      %3126 = vst.msk [vmem:[#allocation3 + $0x58] sm:$0xff] %vm3114, %v3029
      %3127 = vst.msk [vmem:[#allocation3 + $0x60] sm:$0xff] %vm3114, %v3031
      %3128 = vst.msk [vmem:[#allocation3 + $0x68] sm:$0xff] %vm3114, %v3033
      %3129 = vst.msk [vmem:[#allocation3 + $0x70] sm:$0xff] %vm3114, %v3035
      %3130 = vst.msk [vmem:[#allocation3 + $0x78] sm:$0xff] %vm3114, %v3037
      %3131 = vst.msk [vmem:[#allocation3 + $0x80] sm:$0xff] %vm3114, %v3039
      %3132 = vst.msk [vmem:[#allocation3 + $0x88] sm:$0xff] %vm3114, %v3041
      %3133 = vst.msk [vmem:[#allocation3 + $0x90] sm:$0xff] %vm3114, %v3043
      %3134 = vst.msk [vmem:[#allocation3 + $0x98] sm:$0xff] %vm3114, %v3045
      %3135 = vst.msk [vmem:[#allocation3 + $0xa0] sm:$0xff] %vm3114, %v3047
      %3136 = vst.msk [vmem:[#allocation3 + $0xa8] sm:$0xff] %vm3114, %v3049
      %3137 = vst.msk [vmem:[#allocation3 + $0xb0] sm:$0xff] %vm3114, %v3051
      %3138 = vst.msk [vmem:[#allocation3 + $0xb8] sm:$0xff] %vm3114, %v3053
      %3139 = vst.msk [vmem:[#allocation3 + $0xc0] sm:$0xff] %vm3114, %v3055
      %3140 = vst.msk [vmem:[#allocation3 + $0xc8] sm:$0xff] %vm3114, %v3057
      %3141 = vst.msk [vmem:[#allocation3 + $0xd0] sm:$0xff] %vm3114, %v3059
      %3142 = vst.msk [vmem:[#allocation3 + $0xd8] sm:$0xff] %vm3114, %v3061
      %3143 = vst.msk [vmem:[#allocation3 + $0xe0] sm:$0xff] %vm3114, %v3063
      %3144 = vst.msk [vmem:[#allocation3 + $0xe8] sm:$0xff] %vm3114, %v3065
      %3145 = vst.msk [vmem:[#allocation3 + $0xf0] sm:$0xff] %vm3114, %v3067
      %3146 = vst.msk [vmem:[#allocation3 + $0xf8] sm:$0xff] %vm3114, %v3069
      %3147 = vst.msk [vmem:[#allocation3 + $0x100] sm:$0xff] %vm3114, %v3071
      %3148 = vst.msk [vmem:[#allocation3 + $0x108] sm:$0xff] %vm3114, %v3073
      %3149 = vst.msk [vmem:[#allocation3 + $0x110] sm:$0xff] %vm3114, %v3075
      %3150 = vst.msk [vmem:[#allocation3 + $0x118] sm:$0xff] %vm3114, %v3077
      %v3151 = vld [vmem:[#allocation3] sm:$0xff]
      %v3152 = vld [vmem:[#allocation3 + $0x8] sm:$0xff]
      %v3153 = vld [vmem:[#allocation3 + $0x10] sm:$0xff]
      %v3154 = vld [vmem:[#allocation3 + $0x18] sm:$0xff]
      %v3155 = vld [vmem:[#allocation3 + $0x20] sm:$0xff]
      %v3156 = vld [vmem:[#allocation3 + $0x28] sm:$0xff]
      %v3157 = vld [vmem:[#allocation3 + $0x30] sm:$0xff]
      %v3158 = vld [vmem:[#allocation3 + $0x38] sm:$0xff]
      %v3159 = vld [vmem:[#allocation3 + $0x40] sm:$0xff]
      %v3160 = vld [vmem:[#allocation3 + $0x48] sm:$0xff]
      %v3161 = vld [vmem:[#allocation3 + $0x50] sm:$0xff]
      %v3162 = vld [vmem:[#allocation3 + $0x58] sm:$0xff]
      %v3163 = vld [vmem:[#allocation3 + $0x60] sm:$0xff]
      %v3164 = vld [vmem:[#allocation3 + $0x68] sm:$0xff]
      %v3165 = vld [vmem:[#allocation3 + $0x70] sm:$0xff]
      %v3166 = vld [vmem:[#allocation3 + $0x78] sm:$0xff]
      %v3167 = vld [vmem:[#allocation3 + $0x80] sm:$0xff]
      %v3168 = vld [vmem:[#allocation3 + $0x88] sm:$0xff]
      %v3169 = vld [vmem:[#allocation3 + $0x90] sm:$0xff]
      %v3170 = vld [vmem:[#allocation3 + $0x98] sm:$0xff]
      %v3171 = vld [vmem:[#allocation3 + $0xa0] sm:$0xff]
      %v3172 = vld [vmem:[#allocation3 + $0xa8] sm:$0xff]
      %v3173 = vld [vmem:[#allocation3 + $0xb0] sm:$0xff]
      %v3174 = vld [vmem:[#allocation3 + $0xb8] sm:$0xff]
      %v3175 = vld [vmem:[#allocation3 + $0xc0] sm:$0xff]
      %v3176 = vld [vmem:[#allocation3 + $0xc8] sm:$0xff]
      %v3177 = vld [vmem:[#allocation3 + $0xd0] sm:$0xff]
      %v3178 = vld [vmem:[#allocation3 + $0xd8] sm:$0xff]
      %v3179 = vld [vmem:[#allocation3 + $0xe0] sm:$0xff]
      %v3180 = vld [vmem:[#allocation3 + $0xe8] sm:$0xff]
      %v3181 = vld [vmem:[#allocation3 + $0xf0] sm:$0xff]
      %v3182 = vld [vmem:[#allocation3 + $0xf8] sm:$0xff]
      %v3183 = vld [vmem:[#allocation3 + $0x100] sm:$0xff]
      %v3184 = vld [vmem:[#allocation3 + $0x108] sm:$0xff]
      %v3185 = vld [vmem:[#allocation3 + $0x110] sm:$0xff]
      %v3186 = vld [vmem:[#allocation3 + $0x118] sm:$0xff]
      %v3187 = vld [vmem:[%s7] sm:$0xff]
      %v3188 = vld [vmem:[%s7 + $0x8] sm:$0xff]
      %v3189 = vld [vmem:[%s7 + $0x10] sm:$0xff]
      %v3190 = vld [vmem:[%s7 + $0x18] sm:$0xff]
      %v3191 = vld [vmem:[%s7 + $0x20] sm:$0xff]
      %v3192 = vld [vmem:[%s7 + $0x28] sm:$0xff]
      %v3193 = vld [vmem:[%s7 + $0x30] sm:$0xff]
      %v3194 = vld [vmem:[%s7 + $0x38] sm:$0xff]
      %v3195 = vld [vmem:[%s7 + $0x40] sm:$0xff]
      %v3196 = vld [vmem:[%s8] sm:$0x1]
      %v3198 = vlaneseq
      %v3199 = vshrl.u32 %v3198, 7
      %v3200 = vsub.s32 0, %v3199
      %v3201 = vrot.slane %v3196, %v3200
      %vm3203 = vcmask 588800
      %v3205 = vsel %vm3203, %v3151, 0
      %v3208 = vsel %vm3203, %v3152, 0
      %v3211 = vsel %vm3203, %v3153, 0
      %v3214 = vsel %vm3203, %v3154, 0
      %v3217 = vsel %vm3203, %v3155, 0
      %v3220 = vsel %vm3203, %v3156, 0
      %v3223 = vsel %vm3203, %v3157, 0
      %v3226 = vsel %vm3203, %v3158, 0
      %v3229 = vsel %vm3203, %v3159, 0
      %v3232 = vsel %vm3203, %v3160, 0
      %v3235 = vsel %vm3203, %v3161, 0
      %v3238 = vsel %vm3203, %v3162, 0
      %v3241 = vsel %vm3203, %v3163, 0
      %v3244 = vsel %vm3203, %v3164, 0
      %v3247 = vsel %vm3203, %v3165, 0
      %v3250 = vsel %vm3203, %v3166, 0
      %v3253 = vsel %vm3203, %v3167, 0
      %v3256 = vsel %vm3203, %v3168, 0
      %v3259 = vsel %vm3203, %v3169, 0
      %v3262 = vsel %vm3203, %v3170, 0
      %v3265 = vsel %vm3203, %v3171, 0
      %v3268 = vsel %vm3203, %v3172, 0
      %v3271 = vsel %vm3203, %v3173, 0
      %v3274 = vsel %vm3203, %v3174, 0
      %v3277 = vsel %vm3203, %v3175, 0
      %v3280 = vsel %vm3203, %v3176, 0
      %v3283 = vsel %vm3203, %v3177, 0
      %v3286 = vsel %vm3203, %v3178, 0
      %v3289 = vsel %vm3203, %v3179, 0
      %v3292 = vsel %vm3203, %v3180, 0
      %v3295 = vsel %vm3203, %v3181, 0
      %v3298 = vsel %vm3203, %v3182, 0
      %v3301 = vsel %vm3203, %v3183, 0
      %v3304 = vsel %vm3203, %v3184, 0
      %v3307 = vsel %vm3203, %v3185, 0
      %v3310 = vsel %vm3203, %v3186, 0
      %3312 = vmatprep.subr.mxu0 0.0
      %3313 = vmatpush1.msra.mxu0 %v3187
      %3314 = vmatprep.subr.mxu0 0.0
      %3315 = vmatpush1.msra.mxu0 %v3188
      %3316 = vmatprep.subr.mxu0 0.0
      %3317 = vmatpush1.msra.mxu0 %v3189
      %3318 = vmatprep.subr.mxu0 0.0
      %3319 = vmatpush1.msra.mxu0 %v3190
      %3320 = vmatprep.subr.mxu0 0.0
      %3321 = vmatpush1.msra.mxu0 %v3191
      %3322 = vmatprep.subr.mxu0 0.0
      %3323 = vmatpush1.msra.mxu0 %v3192
      %3324 = vmatprep.subr.mxu0 0.0
      %3325 = vmatpush1.msra.mxu0 %v3193
      %3326 = vmatprep.subr.mxu0 0.0
      %3327 = vmatpush1.msra.mxu0 %v3194
      %3328 = vmatprep.subr.mxu0 0.0
      %3329 = vmatpush1.msra.mxu0 %v3195
      %3330 = vmatprep.subr.mxu0 0.0
      %3331 = vmatpush1.msra.mxu0 0.0
      %3332 = vmatprep.subr.mxu0 0.0
      %3333 = vmatpush1.msra.mxu0 0.0
      %3334 = vmatprep.subr.mxu0 0.0
      %3335 = vmatpush1.msra.mxu0 0.0
      %3336 = vmatprep.subr.mxu0 0.0
      %3337 = vmatpush1.msra.mxu0 0.0
      %3338 = vmatprep.subr.mxu0 0.0
      %3339 = vmatpush1.msra.mxu0 0.0
      %3340 = vmatprep.subr.mxu0 0.0
      %3341 = vmatpush1.msra.mxu0 0.0
      %3342 = vmatprep.subr.mxu0 0.0
      %3343 = vmatpush1.msra.mxu0 0.0
      %3344 = vmatprep.subr.mxu0 0.0
      %3345 = vmatpush1.msra.mxu0 0.0
      %3346 = vmatprep.subr.mxu0 0.0
      %3347 = vmatpush1.msra.mxu0 0.0
      %3348 = vmatprep.subr.mxu0 0.0
      %3349 = vmatpush1.msra.mxu0 0.0
      %3350 = vmatprep.subr.mxu0 0.0
      %3351 = vmatpush1.msra.mxu0 0.0
      %3352 = vmatprep.subr.mxu0 0.0
      %3353 = vmatpush1.msra.mxu0 0.0
      %3354 = vmatprep.subr.mxu0 0.0
      %3355 = vmatpush1.msra.mxu0 0.0
      %3356 = vmatprep.subr.mxu0 0.0
      %3357 = vmatpush1.msra.mxu0 0.0
      %3358 = vmatprep.subr.mxu0 0.0
      %3359 = vmatpush1.msra.mxu0 0.0
      %3360 = vmatprep.subr.mxu0 0.0
      %3361 = vmatpush1.msra.mxu0 0.0
      %3362 = vmatprep.subr.mxu0 0.0
      %3363 = vmatpush1.msra.mxu0 0.0
      %3364 = vmatprep.subr.mxu0 0.0
      %3365 = vmatpush1.msra.mxu0 0.0
      %3366 = vmatprep.subr.mxu0 0.0
      %3367 = vmatpush1.msra.mxu0 0.0
      %3368 = vmatprep.subr.mxu0 0.0
      %3369 = vmatpush1.msra.mxu0 0.0
      %3370 = vmatprep.subr.mxu0 0.0
      %3371 = vmatpush1.msra.mxu0 0.0
      %3372 = vmatprep.subr.mxu0 0.0
      %3373 = vmatpush1.msra.mxu0 0.0
      %3374 = vmatprep.subr.mxu0 0.0
      %3375 = vmatpush1.msra.mxu0 0.0
      %3376 = vmatprep.mubr.f32.mxu0 0.0
      %3377 = vmatmul.mubr.f32.gmra.mrb[0].mxu0 %v3205
      %v3378 = vpop.f32.mrb[0].mxu0
      %v3379 = vadd.f32 %v3201, %v3378
      %v3380 = vpop.f32.mrb[0].mxu0
      %3381 = vmatprep.mubr.f32.mxu0 0.0
      %3382 = vmatmul.mubr.f32.gmra.mrb[0].mxu0 %v3208
      %v3383 = vpop.f32.mrb[0].mxu0
      %v3384 = vadd.f32 %v3201, %v3383
      %v3385 = vpop.f32.mrb[0].mxu0
      %3386 = vmatprep.mubr.f32.mxu0 0.0
      %3387 = vmatmul.mubr.f32.gmra.mrb[0].mxu0 %v3211
      %v3388 = vpop.f32.mrb[0].mxu0
      %v3389 = vadd.f32 %v3201, %v3388
      %v3390 = vpop.f32.mrb[0].mxu0
      %3391 = vmatprep.mubr.f32.mxu0 0.0
      %3392 = vmatmul.mubr.f32.gmra.mrb[0].mxu0 %v3214
      %v3393 = vpop.f32.mrb[0].mxu0
      %v3394 = vadd.f32 %v3201, %v3393
      %v3395 = vpop.f32.mrb[0].mxu0
      %3396 = vmatprep.mubr.f32.mxu0 0.0
      %3397 = vmatmul.mubr.f32.gmra.mrb[0].mxu0 %v3217
      %v3398 = vpop.f32.mrb[0].mxu0
      %v3399 = vadd.f32 %v3201, %v3398
      %v3400 = vpop.f32.mrb[0].mxu0
      %3401 = vmatprep.mubr.f32.mxu0 0.0
      %3402 = vmatmul.mubr.f32.gmra.mrb[0].mxu0 %v3220
      %v3403 = vpop.f32.mrb[0].mxu0
      %v3404 = vadd.f32 %v3201, %v3403
      %v3405 = vpop.f32.mrb[0].mxu0
      %3406 = vmatprep.mubr.f32.mxu0 0.0
      %3407 = vmatmul.mubr.f32.gmra.mrb[0].mxu0 %v3223
      %v3408 = vpop.f32.mrb[0].mxu0
      %v3409 = vadd.f32 %v3201, %v3408
      %v3410 = vpop.f32.mrb[0].mxu0
      %3411 = vmatprep.mubr.f32.mxu0 0.0
      %3412 = vmatmul.mubr.f32.gmra.mrb[0].mxu0 %v3226
      %v3413 = vpop.f32.mrb[0].mxu0
      %v3414 = vadd.f32 %v3201, %v3413
      %v3415 = vpop.f32.mrb[0].mxu0
      %3416 = vmatprep.mubr.f32.mxu0 0.0
      %3417 = vmatmul.mubr.f32.gmra.mrb[0].mxu0 %v3229
      %v3418 = vpop.f32.mrb[0].mxu0
      %v3419 = vadd.f32 %v3201, %v3418
      %v3420 = vpop.f32.mrb[0].mxu0
      %3421 = vmatprep.mubr.f32.mxu0 0.0
      %3422 = vmatmul.mubr.f32.gmra.mrb[0].mxu0 %v3232
      %v3423 = vpop.f32.mrb[0].mxu0
      %v3424 = vadd.f32 %v3201, %v3423
      %v3425 = vpop.f32.mrb[0].mxu0
      %3426 = vmatprep.mubr.f32.mxu0 0.0
      %3427 = vmatmul.mubr.f32.gmra.mrb[0].mxu0 %v3235
      %v3428 = vpop.f32.mrb[0].mxu0
      %v3429 = vadd.f32 %v3201, %v3428
      %v3430 = vpop.f32.mrb[0].mxu0
      %3431 = vmatprep.mubr.f32.mxu0 0.0
      %3432 = vmatmul.mubr.f32.gmra.mrb[0].mxu0 %v3238
      %v3433 = vpop.f32.mrb[0].mxu0
      %v3434 = vadd.f32 %v3201, %v3433
      %v3435 = vpop.f32.mrb[0].mxu0
      %3436 = vmatprep.mubr.f32.mxu0 0.0
      %3437 = vmatmul.mubr.f32.gmra.mrb[0].mxu0 %v3241
      %v3438 = vpop.f32.mrb[0].mxu0
      %v3439 = vadd.f32 %v3201, %v3438
      %v3440 = vpop.f32.mrb[0].mxu0
      %3441 = vmatprep.mubr.f32.mxu0 0.0
      %3442 = vmatmul.mubr.f32.gmra.mrb[0].mxu0 %v3244
      %v3443 = vpop.f32.mrb[0].mxu0
      %v3444 = vadd.f32 %v3201, %v3443
      %v3445 = vpop.f32.mrb[0].mxu0
      %3446 = vmatprep.mubr.f32.mxu0 0.0
      %3447 = vmatmul.mubr.f32.gmra.mrb[0].mxu0 %v3247
      %v3448 = vpop.f32.mrb[0].mxu0
      %v3449 = vadd.f32 %v3201, %v3448
      %v3450 = vpop.f32.mrb[0].mxu0
      %3451 = vmatprep.mubr.f32.mxu0 0.0
      %3452 = vmatmul.mubr.f32.gmra.mrb[0].mxu0 %v3250
      %v3453 = vpop.f32.mrb[0].mxu0
      %v3454 = vadd.f32 %v3201, %v3453
      %v3455 = vpop.f32.mrb[0].mxu0
      %3456 = vmatprep.mubr.f32.mxu0 0.0
      %3457 = vmatmul.mubr.f32.gmra.mrb[0].mxu0 %v3253
      %v3458 = vpop.f32.mrb[0].mxu0
      %v3459 = vadd.f32 %v3201, %v3458
      %v3460 = vpop.f32.mrb[0].mxu0
      %3461 = vmatprep.mubr.f32.mxu0 0.0
      %3462 = vmatmul.mubr.f32.gmra.mrb[0].mxu0 %v3256
      %v3463 = vpop.f32.mrb[0].mxu0
      %v3464 = vadd.f32 %v3201, %v3463
      %v3465 = vpop.f32.mrb[0].mxu0
      %3466 = vmatprep.mubr.f32.mxu0 0.0
      %3467 = vmatmul.mubr.f32.gmra.mrb[0].mxu0 %v3259
      %v3468 = vpop.f32.mrb[0].mxu0
      %v3469 = vadd.f32 %v3201, %v3468
      %v3470 = vpop.f32.mrb[0].mxu0
      %3471 = vmatprep.mubr.f32.mxu0 0.0
      %3472 = vmatmul.mubr.f32.gmra.mrb[0].mxu0 %v3262
      %v3473 = vpop.f32.mrb[0].mxu0
      %v3474 = vadd.f32 %v3201, %v3473
      %v3475 = vpop.f32.mrb[0].mxu0
      %3476 = vmatprep.mubr.f32.mxu0 0.0
      %3477 = vmatmul.mubr.f32.gmra.mrb[0].mxu0 %v3265
      %v3478 = vpop.f32.mrb[0].mxu0
      %v3479 = vadd.f32 %v3201, %v3478
      %v3480 = vpop.f32.mrb[0].mxu0
      %3481 = vmatprep.mubr.f32.mxu0 0.0
      %3482 = vmatmul.mubr.f32.gmra.mrb[0].mxu0 %v3268
      %v3483 = vpop.f32.mrb[0].mxu0
      %v3484 = vadd.f32 %v3201, %v3483
      %v3485 = vpop.f32.mrb[0].mxu0
      %3486 = vmatprep.mubr.f32.mxu0 0.0
      %3487 = vmatmul.mubr.f32.gmra.mrb[0].mxu0 %v3271
      %v3488 = vpop.f32.mrb[0].mxu0
      %v3489 = vadd.f32 %v3201, %v3488
      %v3490 = vpop.f32.mrb[0].mxu0
      %3491 = vmatprep.mubr.f32.mxu0 0.0
      %3492 = vmatmul.mubr.f32.gmra.mrb[0].mxu0 %v3274
      %v3493 = vpop.f32.mrb[0].mxu0
      %v3494 = vadd.f32 %v3201, %v3493
      %v3495 = vpop.f32.mrb[0].mxu0
      %3496 = vmatprep.mubr.f32.mxu0 0.0
      %3497 = vmatmul.mubr.f32.gmra.mrb[0].mxu0 %v3277
      %v3498 = vpop.f32.mrb[0].mxu0
      %v3499 = vadd.f32 %v3201, %v3498
      %v3500 = vpop.f32.mrb[0].mxu0
      %3501 = vmatprep.mubr.f32.mxu0 0.0
      %3502 = vmatmul.mubr.f32.gmra.mrb[0].mxu0 %v3280
      %v3503 = vpop.f32.mrb[0].mxu0
      %v3504 = vadd.f32 %v3201, %v3503
      %v3505 = vpop.f32.mrb[0].mxu0
      %3506 = vmatprep.mubr.f32.mxu0 0.0
      %3507 = vmatmul.mubr.f32.gmra.mrb[0].mxu0 %v3283
      %v3508 = vpop.f32.mrb[0].mxu0
      %v3509 = vadd.f32 %v3201, %v3508
      %v3510 = vpop.f32.mrb[0].mxu0
      %3511 = vmatprep.mubr.f32.mxu0 0.0
      %3512 = vmatmul.mubr.f32.gmra.mrb[0].mxu0 %v3286
      %v3513 = vpop.f32.mrb[0].mxu0
      %v3514 = vadd.f32 %v3201, %v3513
      %v3515 = vpop.f32.mrb[0].mxu0
      %3516 = vmatprep.mubr.f32.mxu0 0.0
      %3517 = vmatmul.mubr.f32.gmra.mrb[0].mxu0 %v3289
      %v3518 = vpop.f32.mrb[0].mxu0
      %v3519 = vadd.f32 %v3201, %v3518
      %v3520 = vpop.f32.mrb[0].mxu0
      %3521 = vmatprep.mubr.f32.mxu0 0.0
      %3522 = vmatmul.mubr.f32.gmra.mrb[0].mxu0 %v3292
      %v3523 = vpop.f32.mrb[0].mxu0
      %v3524 = vadd.f32 %v3201, %v3523
      %v3525 = vpop.f32.mrb[0].mxu0
      %3526 = vmatprep.mubr.f32.mxu0 0.0
      %3527 = vmatmul.mubr.f32.gmra.mrb[0].mxu0 %v3295
      %v3528 = vpop.f32.mrb[0].mxu0
      %v3529 = vadd.f32 %v3201, %v3528
      %v3530 = vpop.f32.mrb[0].mxu0
      %3531 = vmatprep.mubr.f32.mxu0 0.0
      %3532 = vmatmul.mubr.f32.gmra.mrb[0].mxu0 %v3298
      %v3533 = vpop.f32.mrb[0].mxu0
      %v3534 = vadd.f32 %v3201, %v3533
      %v3535 = vpop.f32.mrb[0].mxu0
      %3536 = vmatprep.mubr.f32.mxu0 0.0
      %3537 = vmatmul.mubr.f32.gmra.mrb[0].mxu0 %v3301
      %v3538 = vpop.f32.mrb[0].mxu0
      %v3539 = vadd.f32 %v3201, %v3538
      %v3540 = vpop.f32.mrb[0].mxu0
      %3541 = vmatprep.mubr.f32.mxu0 0.0
      %3542 = vmatmul.mubr.f32.gmra.mrb[0].mxu0 %v3304
      %v3543 = vpop.f32.mrb[0].mxu0
      %v3544 = vadd.f32 %v3201, %v3543
      %v3545 = vpop.f32.mrb[0].mxu0
      %3546 = vmatprep.mubr.f32.mxu0 0.0
      %3547 = vmatmul.mubr.f32.gmra.mrb[0].mxu0 %v3307
      %v3548 = vpop.f32.mrb[0].mxu0
      %v3549 = vadd.f32 %v3201, %v3548
      %v3550 = vpop.f32.mrb[0].mxu0
      %3551 = vmatprep.mubr.f32.mxu0 0.0
      %3552 = vmatmul.mubr.f32.gmra.mrb[0].mxu0 %v3310
      %v3553 = vpop.f32.mrb[0].mxu0
      %v3554 = vadd.f32 %v3201, %v3553
      %v3555 = vpop.f32.mrb[0].mxu0
      %3556 = vdwg.mxu0
      %v3557 = vlaneseq
      %v3558 = vshrl.u32 %v3557, 7
      %v3559 = vsub.s32 0, %v3558
      %v3560 = vrot.slane %v788, %v3559
      %v3561 = vmul.f32 %v3560, %v3379
      %v3562 = vmul.f32 %v3560, %v3384
      %v3563 = vmul.f32 %v3560, %v3389
      %v3564 = vmul.f32 %v3560, %v3394
      %v3565 = vmul.f32 %v3560, %v3399
      %v3566 = vmul.f32 %v3560, %v3404
      %v3567 = vmul.f32 %v3560, %v3409
      %v3568 = vmul.f32 %v3560, %v3414
      %v3569 = vmul.f32 %v3560, %v3419
      %v3570 = vmul.f32 %v3560, %v3424
      %v3571 = vmul.f32 %v3560, %v3429
      %v3572 = vmul.f32 %v3560, %v3434
      %v3573 = vmul.f32 %v3560, %v3439
      %v3574 = vmul.f32 %v3560, %v3444
      %v3575 = vmul.f32 %v3560, %v3449
      %v3576 = vmul.f32 %v3560, %v3454
      %v3577 = vmul.f32 %v3560, %v3459
      %v3578 = vmul.f32 %v3560, %v3464
      %v3579 = vmul.f32 %v3560, %v3469
      %v3580 = vmul.f32 %v3560, %v3474
      %v3581 = vmul.f32 %v3560, %v3479
      %v3582 = vmul.f32 %v3560, %v3484
      %v3583 = vmul.f32 %v3560, %v3489
      %v3584 = vmul.f32 %v3560, %v3494
      %v3585 = vmul.f32 %v3560, %v3499
      %v3586 = vmul.f32 %v3560, %v3504
      %v3587 = vmul.f32 %v3560, %v3509
      %v3588 = vmul.f32 %v3560, %v3514
      %v3589 = vmul.f32 %v3560, %v3519
      %v3590 = vmul.f32 %v3560, %v3524
      %v3591 = vmul.f32 %v3560, %v3529
      %v3592 = vmul.f32 %v3560, %v3534
      %v3593 = vmul.f32 %v3560, %v3539
      %v3594 = vmul.f32 %v3560, %v3544
      %v3595 = vmul.f32 %v3560, %v3549
      %v3596 = vmul.f32 %v3560, %v3554
      %v3597 = vlaneseq
      %v3598 = vshrl.u32 %v3597, 7
      %v3599 = vsub.s32 1, %v3598
      %v3600 = vrot.slane %v788, %v3599
      %v3601 = vadd.f32 %v3561, %v3600
      %v3602 = vadd.f32 %v3562, %v3600
      %v3603 = vadd.f32 %v3563, %v3600
      %v3604 = vadd.f32 %v3564, %v3600
      %v3605 = vadd.f32 %v3565, %v3600
      %v3606 = vadd.f32 %v3566, %v3600
      %v3607 = vadd.f32 %v3567, %v3600
      %v3608 = vadd.f32 %v3568, %v3600
      %v3609 = vadd.f32 %v3569, %v3600
      %v3610 = vadd.f32 %v3570, %v3600
      %v3611 = vadd.f32 %v3571, %v3600
      %v3612 = vadd.f32 %v3572, %v3600
      %v3613 = vadd.f32 %v3573, %v3600
      %v3614 = vadd.f32 %v3574, %v3600
      %v3615 = vadd.f32 %v3575, %v3600
      %v3616 = vadd.f32 %v3576, %v3600
      %v3617 = vadd.f32 %v3577, %v3600
      %v3618 = vadd.f32 %v3578, %v3600
      %v3619 = vadd.f32 %v3579, %v3600
      %v3620 = vadd.f32 %v3580, %v3600
      %v3621 = vadd.f32 %v3581, %v3600
      %v3622 = vadd.f32 %v3582, %v3600
      %v3623 = vadd.f32 %v3583, %v3600
      %v3624 = vadd.f32 %v3584, %v3600
      %v3625 = vadd.f32 %v3585, %v3600
      %v3626 = vadd.f32 %v3586, %v3600
      %v3627 = vadd.f32 %v3587, %v3600
      %v3628 = vadd.f32 %v3588, %v3600
      %v3629 = vadd.f32 %v3589, %v3600
      %v3630 = vadd.f32 %v3590, %v3600
      %v3631 = vadd.f32 %v3591, %v3600
      %v3632 = vadd.f32 %v3592, %v3600
      %v3633 = vadd.f32 %v3593, %v3600
      %v3634 = vadd.f32 %v3594, %v3600
      %v3635 = vadd.f32 %v3595, %v3600
      %v3636 = vadd.f32 %v3596, %v3600
      %vm3637 = vcmp.gt.f32.partialorder %v3601, 0.0
      %vm3638 = vcmp.gt.f32.partialorder %v3602, 0.0
      %vm3639 = vcmp.gt.f32.partialorder %v3603, 0.0
      %vm3640 = vcmp.gt.f32.partialorder %v3604, 0.0
      %vm3641 = vcmp.gt.f32.partialorder %v3605, 0.0
      %vm3642 = vcmp.gt.f32.partialorder %v3606, 0.0
      %vm3643 = vcmp.gt.f32.partialorder %v3607, 0.0
      %vm3644 = vcmp.gt.f32.partialorder %v3608, 0.0
      %vm3645 = vcmp.gt.f32.partialorder %v3609, 0.0
      %vm3646 = vcmp.gt.f32.partialorder %v3610, 0.0
      %vm3647 = vcmp.gt.f32.partialorder %v3611, 0.0
      %vm3648 = vcmp.gt.f32.partialorder %v3612, 0.0
      %vm3649 = vcmp.gt.f32.partialorder %v3613, 0.0
      %vm3650 = vcmp.gt.f32.partialorder %v3614, 0.0
      %vm3651 = vcmp.gt.f32.partialorder %v3615, 0.0
      %vm3652 = vcmp.gt.f32.partialorder %v3616, 0.0
      %vm3653 = vcmp.gt.f32.partialorder %v3617, 0.0
      %vm3654 = vcmp.gt.f32.partialorder %v3618, 0.0
      %vm3655 = vcmp.gt.f32.partialorder %v3619, 0.0
      %vm3656 = vcmp.gt.f32.partialorder %v3620, 0.0
      %vm3657 = vcmp.gt.f32.partialorder %v3621, 0.0
      %vm3658 = vcmp.gt.f32.partialorder %v3622, 0.0
      %vm3659 = vcmp.gt.f32.partialorder %v3623, 0.0
      %vm3660 = vcmp.gt.f32.partialorder %v3624, 0.0
      %vm3661 = vcmp.gt.f32.partialorder %v3625, 0.0
      %vm3662 = vcmp.gt.f32.partialorder %v3626, 0.0
      %vm3663 = vcmp.gt.f32.partialorder %v3627, 0.0
      %vm3664 = vcmp.gt.f32.partialorder %v3628, 0.0
      %vm3665 = vcmp.gt.f32.partialorder %v3629, 0.0
      %vm3666 = vcmp.gt.f32.partialorder %v3630, 0.0
      %vm3667 = vcmp.gt.f32.partialorder %v3631, 0.0
      %vm3668 = vcmp.gt.f32.partialorder %v3632, 0.0
      %vm3669 = vcmp.gt.f32.partialorder %v3633, 0.0
      %vm3670 = vcmp.gt.f32.partialorder %v3634, 0.0
      %vm3671 = vcmp.gt.f32.partialorder %v3635, 0.0
      %vm3672 = vcmp.gt.f32.partialorder %v3636, 0.0
      %v3673 = vmul.f32 %v3601, 0.2
      %v3674 = vmul.f32 %v3602, 0.2
      %v3675 = vmul.f32 %v3603, 0.2
      %v3676 = vmul.f32 %v3604, 0.2
      %v3677 = vmul.f32 %v3605, 0.2
      %v3678 = vmul.f32 %v3606, 0.2
      %v3679 = vmul.f32 %v3607, 0.2
      %v3680 = vmul.f32 %v3608, 0.2
      %v3681 = vmul.f32 %v3609, 0.2
      %v3682 = vmul.f32 %v3610, 0.2
      %v3683 = vmul.f32 %v3611, 0.2
      %v3684 = vmul.f32 %v3612, 0.2
      %v3685 = vmul.f32 %v3613, 0.2
      %v3686 = vmul.f32 %v3614, 0.2
      %v3687 = vmul.f32 %v3615, 0.2
      %v3688 = vmul.f32 %v3616, 0.2
      %v3689 = vmul.f32 %v3617, 0.2
      %v3690 = vmul.f32 %v3618, 0.2
      %v3691 = vmul.f32 %v3619, 0.2
      %v3692 = vmul.f32 %v3620, 0.2
      %v3693 = vmul.f32 %v3621, 0.2
      %v3694 = vmul.f32 %v3622, 0.2
      %v3695 = vmul.f32 %v3623, 0.2
      %v3696 = vmul.f32 %v3624, 0.2
      %v3697 = vmul.f32 %v3625, 0.2
      %v3698 = vmul.f32 %v3626, 0.2
      %v3699 = vmul.f32 %v3627, 0.2
      %v3700 = vmul.f32 %v3628, 0.2
      %v3701 = vmul.f32 %v3629, 0.2
      %v3702 = vmul.f32 %v3630, 0.2
      %v3703 = vmul.f32 %v3631, 0.2
      %v3704 = vmul.f32 %v3632, 0.2
      %v3705 = vmul.f32 %v3633, 0.2
      %v3706 = vmul.f32 %v3634, 0.2
      %v3707 = vmul.f32 %v3635, 0.2
      %v3708 = vmul.f32 %v3636, 0.2
      %v3709 = vsel %vm3637, %v3601, %v3673
      %v3710 = vsel %vm3638, %v3602, %v3674
      %v3711 = vsel %vm3639, %v3603, %v3675
      %v3712 = vsel %vm3640, %v3604, %v3676
      %v3713 = vsel %vm3641, %v3605, %v3677
      %v3714 = vsel %vm3642, %v3606, %v3678
      %v3715 = vsel %vm3643, %v3607, %v3679
      %v3716 = vsel %vm3644, %v3608, %v3680
      %v3717 = vsel %vm3645, %v3609, %v3681
      %v3718 = vsel %vm3646, %v3610, %v3682
      %v3719 = vsel %vm3647, %v3611, %v3683
      %v3720 = vsel %vm3648, %v3612, %v3684
      %v3721 = vsel %vm3649, %v3613, %v3685
      %v3722 = vsel %vm3650, %v3614, %v3686
      %v3723 = vsel %vm3651, %v3615, %v3687
      %v3724 = vsel %vm3652, %v3616, %v3688
      %v3725 = vsel %vm3653, %v3617, %v3689
      %v3726 = vsel %vm3654, %v3618, %v3690
      %v3727 = vsel %vm3655, %v3619, %v3691
      %v3728 = vsel %vm3656, %v3620, %v3692
      %v3729 = vsel %vm3657, %v3621, %v3693
      %v3730 = vsel %vm3658, %v3622, %v3694
      %v3731 = vsel %vm3659, %v3623, %v3695
      %v3732 = vsel %vm3660, %v3624, %v3696
      %v3733 = vsel %vm3661, %v3625, %v3697
      %v3734 = vsel %vm3662, %v3626, %v3698
      %v3735 = vsel %vm3663, %v3627, %v3699
      %v3736 = vsel %vm3664, %v3628, %v3700
      %v3737 = vsel %vm3665, %v3629, %v3701
      %v3738 = vsel %vm3666, %v3630, %v3702
      %v3739 = vsel %vm3667, %v3631, %v3703
      %v3740 = vsel %vm3668, %v3632, %v3704
      %v3741 = vsel %vm3669, %v3633, %v3705
      %v3742 = vsel %vm3670, %v3634, %v3706
      %v3743 = vsel %vm3671, %v3635, %v3707
      %v3744 = vsel %vm3672, %v3636, %v3708
      %v3745 = vlaneseq
      %v3746 = vshrl.u32 %v3745, 7
      %v3747 = vsub.s32 2, %v3746
      %v3748 = vrot.slane %v788, %v3747
      %v3749 = vmul.f32 %v3748, %v3709
      %v3750 = vmul.f32 %v3748, %v3710
      %v3751 = vmul.f32 %v3748, %v3711
      %v3752 = vmul.f32 %v3748, %v3712
      %v3753 = vmul.f32 %v3748, %v3713
      %v3754 = vmul.f32 %v3748, %v3714
      %v3755 = vmul.f32 %v3748, %v3715
      %v3756 = vmul.f32 %v3748, %v3716
      %v3757 = vmul.f32 %v3748, %v3717
      %v3758 = vmul.f32 %v3748, %v3718
      %v3759 = vmul.f32 %v3748, %v3719
      %v3760 = vmul.f32 %v3748, %v3720
      %v3761 = vmul.f32 %v3748, %v3721
      %v3762 = vmul.f32 %v3748, %v3722
      %v3763 = vmul.f32 %v3748, %v3723
      %v3764 = vmul.f32 %v3748, %v3724
      %v3765 = vmul.f32 %v3748, %v3725
      %v3766 = vmul.f32 %v3748, %v3726
      %v3767 = vmul.f32 %v3748, %v3727
      %v3768 = vmul.f32 %v3748, %v3728
      %v3769 = vmul.f32 %v3748, %v3729
      %v3770 = vmul.f32 %v3748, %v3730
      %v3771 = vmul.f32 %v3748, %v3731
      %v3772 = vmul.f32 %v3748, %v3732
      %v3773 = vmul.f32 %v3748, %v3733
      %v3774 = vmul.f32 %v3748, %v3734
      %v3775 = vmul.f32 %v3748, %v3735
      %v3776 = vmul.f32 %v3748, %v3736
      %v3777 = vmul.f32 %v3748, %v3737
      %v3778 = vmul.f32 %v3748, %v3738
      %v3779 = vmul.f32 %v3748, %v3739
      %v3780 = vmul.f32 %v3748, %v3740
      %v3781 = vmul.f32 %v3748, %v3741
      %v3782 = vmul.f32 %v3748, %v3742
      %v3783 = vmul.f32 %v3748, %v3743
      %v3784 = vmul.f32 %v3748, %v3744
      %v3785 = vlaneseq
      %v3786 = vshrl.u32 %v3785, 7
      %v3787 = vsub.s32 3, %v3786
      %v3788 = vrot.slane %v788, %v3787
      %v3789 = vadd.f32 %v3749, %v3788
      %v3790 = vadd.f32 %v3750, %v3788
      %v3791 = vadd.f32 %v3751, %v3788
      %v3792 = vadd.f32 %v3752, %v3788
      %v3793 = vadd.f32 %v3753, %v3788
      %v3794 = vadd.f32 %v3754, %v3788
      %v3795 = vadd.f32 %v3755, %v3788
      %v3796 = vadd.f32 %v3756, %v3788
      %v3797 = vadd.f32 %v3757, %v3788
      %v3798 = vadd.f32 %v3758, %v3788
      %v3799 = vadd.f32 %v3759, %v3788
      %v3800 = vadd.f32 %v3760, %v3788
      %v3801 = vadd.f32 %v3761, %v3788
      %v3802 = vadd.f32 %v3762, %v3788
      %v3803 = vadd.f32 %v3763, %v3788
      %v3804 = vadd.f32 %v3764, %v3788
      %v3805 = vadd.f32 %v3765, %v3788
      %v3806 = vadd.f32 %v3766, %v3788
      %v3807 = vadd.f32 %v3767, %v3788
      %v3808 = vadd.f32 %v3768, %v3788
      %v3809 = vadd.f32 %v3769, %v3788
      %v3810 = vadd.f32 %v3770, %v3788
      %v3811 = vadd.f32 %v3771, %v3788
      %v3812 = vadd.f32 %v3772, %v3788
      %v3813 = vadd.f32 %v3773, %v3788
      %v3814 = vadd.f32 %v3774, %v3788
      %v3815 = vadd.f32 %v3775, %v3788
      %v3816 = vadd.f32 %v3776, %v3788
      %v3817 = vadd.f32 %v3777, %v3788
      %v3818 = vadd.f32 %v3778, %v3788
      %v3819 = vadd.f32 %v3779, %v3788
      %v3820 = vadd.f32 %v3780, %v3788
      %v3821 = vadd.f32 %v3781, %v3788
      %v3822 = vadd.f32 %v3782, %v3788
      %v3823 = vadd.f32 %v3783, %v3788
      %v3824 = vadd.f32 %v3784, %v3788
      %vm3825 = vcmp.gt.f32.partialorder %v3789, 0.0
      %vm3826 = vcmp.gt.f32.partialorder %v3790, 0.0
      %vm3827 = vcmp.gt.f32.partialorder %v3791, 0.0
      %vm3828 = vcmp.gt.f32.partialorder %v3792, 0.0
      %vm3829 = vcmp.gt.f32.partialorder %v3793, 0.0
      %vm3830 = vcmp.gt.f32.partialorder %v3794, 0.0
      %vm3831 = vcmp.gt.f32.partialorder %v3795, 0.0
      %vm3832 = vcmp.gt.f32.partialorder %v3796, 0.0
      %vm3833 = vcmp.gt.f32.partialorder %v3797, 0.0
      %vm3834 = vcmp.gt.f32.partialorder %v3798, 0.0
      %vm3835 = vcmp.gt.f32.partialorder %v3799, 0.0
      %vm3836 = vcmp.gt.f32.partialorder %v3800, 0.0
      %vm3837 = vcmp.gt.f32.partialorder %v3801, 0.0
      %vm3838 = vcmp.gt.f32.partialorder %v3802, 0.0
      %vm3839 = vcmp.gt.f32.partialorder %v3803, 0.0
      %vm3840 = vcmp.gt.f32.partialorder %v3804, 0.0
      %vm3841 = vcmp.gt.f32.partialorder %v3805, 0.0
      %vm3842 = vcmp.gt.f32.partialorder %v3806, 0.0
      %vm3843 = vcmp.gt.f32.partialorder %v3807, 0.0
      %vm3844 = vcmp.gt.f32.partialorder %v3808, 0.0
      %vm3845 = vcmp.gt.f32.partialorder %v3809, 0.0
      %vm3846 = vcmp.gt.f32.partialorder %v3810, 0.0
      %vm3847 = vcmp.gt.f32.partialorder %v3811, 0.0
      %vm3848 = vcmp.gt.f32.partialorder %v3812, 0.0
      %vm3849 = vcmp.gt.f32.partialorder %v3813, 0.0
      %vm3850 = vcmp.gt.f32.partialorder %v3814, 0.0
      %vm3851 = vcmp.gt.f32.partialorder %v3815, 0.0
      %vm3852 = vcmp.gt.f32.partialorder %v3816, 0.0
      %vm3853 = vcmp.gt.f32.partialorder %v3817, 0.0
      %vm3854 = vcmp.gt.f32.partialorder %v3818, 0.0
      %vm3855 = vcmp.gt.f32.partialorder %v3819, 0.0
      %vm3856 = vcmp.gt.f32.partialorder %v3820, 0.0
      %vm3857 = vcmp.gt.f32.partialorder %v3821, 0.0
      %vm3858 = vcmp.gt.f32.partialorder %v3822, 0.0
      %vm3859 = vcmp.gt.f32.partialorder %v3823, 0.0
      %vm3860 = vcmp.gt.f32.partialorder %v3824, 0.0
      %v3861 = vmul.f32 %v3789, 0.2
      %v3862 = vmul.f32 %v3790, 0.2
      %v3863 = vmul.f32 %v3791, 0.2
      %v3864 = vmul.f32 %v3792, 0.2
      %v3865 = vmul.f32 %v3793, 0.2
      %v3866 = vmul.f32 %v3794, 0.2
      %v3867 = vmul.f32 %v3795, 0.2
      %v3868 = vmul.f32 %v3796, 0.2
      %v3869 = vmul.f32 %v3797, 0.2
      %v3870 = vmul.f32 %v3798, 0.2
      %v3871 = vmul.f32 %v3799, 0.2
      %v3872 = vmul.f32 %v3800, 0.2
      %v3873 = vmul.f32 %v3801, 0.2
      %v3874 = vmul.f32 %v3802, 0.2
      %v3875 = vmul.f32 %v3803, 0.2
      %v3876 = vmul.f32 %v3804, 0.2
      %v3877 = vmul.f32 %v3805, 0.2
      %v3878 = vmul.f32 %v3806, 0.2
      %v3879 = vmul.f32 %v3807, 0.2
      %v3880 = vmul.f32 %v3808, 0.2
      %v3881 = vmul.f32 %v3809, 0.2
      %v3882 = vmul.f32 %v3810, 0.2
      %v3883 = vmul.f32 %v3811, 0.2
      %v3884 = vmul.f32 %v3812, 0.2
      %v3885 = vmul.f32 %v3813, 0.2
      %v3886 = vmul.f32 %v3814, 0.2
      %v3887 = vmul.f32 %v3815, 0.2
      %v3888 = vmul.f32 %v3816, 0.2
      %v3889 = vmul.f32 %v3817, 0.2
      %v3890 = vmul.f32 %v3818, 0.2
      %v3891 = vmul.f32 %v3819, 0.2
      %v3892 = vmul.f32 %v3820, 0.2
      %v3893 = vmul.f32 %v3821, 0.2
      %v3894 = vmul.f32 %v3822, 0.2
      %v3895 = vmul.f32 %v3823, 0.2
      %v3896 = vmul.f32 %v3824, 0.2
      %v3897 = vsel %vm3825, %v3789, %v3861
      %v3898 = vsel %vm3826, %v3790, %v3862
      %v3899 = vsel %vm3827, %v3791, %v3863
      %v3900 = vsel %vm3828, %v3792, %v3864
      %v3901 = vsel %vm3829, %v3793, %v3865
      %v3902 = vsel %vm3830, %v3794, %v3866
      %v3903 = vsel %vm3831, %v3795, %v3867
      %v3904 = vsel %vm3832, %v3796, %v3868
      %v3905 = vsel %vm3833, %v3797, %v3869
      %v3906 = vsel %vm3834, %v3798, %v3870
      %v3907 = vsel %vm3835, %v3799, %v3871
      %v3908 = vsel %vm3836, %v3800, %v3872
      %v3909 = vsel %vm3837, %v3801, %v3873
      %v3910 = vsel %vm3838, %v3802, %v3874
      %v3911 = vsel %vm3839, %v3803, %v3875
      %v3912 = vsel %vm3840, %v3804, %v3876
      %v3913 = vsel %vm3841, %v3805, %v3877
      %v3914 = vsel %vm3842, %v3806, %v3878
      %v3915 = vsel %vm3843, %v3807, %v3879
      %v3916 = vsel %vm3844, %v3808, %v3880
      %v3917 = vsel %vm3845, %v3809, %v3881
      %v3918 = vsel %vm3846, %v3810, %v3882
      %v3919 = vsel %vm3847, %v3811, %v3883
      %v3920 = vsel %vm3848, %v3812, %v3884
      %v3921 = vsel %vm3849, %v3813, %v3885
      %v3922 = vsel %vm3850, %v3814, %v3886
      %v3923 = vsel %vm3851, %v3815, %v3887
      %v3924 = vsel %vm3852, %v3816, %v3888
      %v3925 = vsel %vm3853, %v3817, %v3889
      %v3926 = vsel %vm3854, %v3818, %v3890
      %v3927 = vsel %vm3855, %v3819, %v3891
      %v3928 = vsel %vm3856, %v3820, %v3892
      %v3929 = vsel %vm3857, %v3821, %v3893
      %v3930 = vsel %vm3858, %v3822, %v3894
      %v3931 = vsel %vm3859, %v3823, %v3895
      %v3932 = vsel %vm3860, %v3824, %v3896
      %vm3933 = vcmask 122880
      %3934 = vst.msk [vmem:[#allocation4] sm:$0x1] %vm3933, 0.0
      %3935 = vst.msk [vmem:[#allocation4 + $0x18] sm:$0x1] %vm3933, 0.0
      %3936 = vst.msk [vmem:[#allocation4 + $0x30] sm:$0x1] %vm3933, 0.0
      %3937 = vst.msk [vmem:[#allocation4 + $0x48] sm:$0x1] %vm3933, 0.0
      %3938 = vst.msk [vmem:[#allocation4 + $0x60] sm:$0x1] %vm3933, 0.0
      %3939 = vst.msk [vmem:[#allocation4 + $0x78] sm:$0x1] %vm3933, 0.0
      %3940 = vst.msk [vmem:[#allocation4 + $0x90] sm:$0x1] %vm3933, 0.0
      %3941 = vst.msk [vmem:[#allocation4 + $0xa8] sm:$0x1] %vm3933, 0.0
      %3942 = vst.msk [vmem:[#allocation4 + $0xc0] sm:$0x1] %vm3933, 0.0
      %3943 = vst.msk [vmem:[#allocation4 + $0xd8] sm:$0x1] %vm3933, 0.0
      %3944 = vst.msk [vmem:[#allocation4 + $0xf0] sm:$0x1] %vm3933, 0.0
      %3945 = vst.msk [vmem:[#allocation4 + $0x108] sm:$0x1] %vm3933, 0.0
      %3946 = vst.msk [vmem:[#allocation4 + $0x120] sm:$0x1] %vm3933, 0.0
      %3947 = vst.msk [vmem:[#allocation4 + $0x138] sm:$0x1] %vm3933, 0.0
      %3948 = vst.msk [vmem:[#allocation4 + $0x150] sm:$0x1] %vm3933, 0.0
      %3949 = vst.msk [vmem:[#allocation4 + $0x168] sm:$0x1] %vm3933, 0.0
      %3950 = vst.msk [vmem:[#allocation4 + $0x180] sm:$0x1] %vm3933, 0.0
      %3951 = vst.msk [vmem:[#allocation4 + $0x198] sm:$0x1] %vm3933, 0.0
      %3952 = vst.msk [vmem:[#allocation4 + $0x11] sm:$0x1] %vm3933, 0.0
      %3953 = vst.msk [vmem:[#allocation4 + $0x29] sm:$0x1] %vm3933, 0.0
      %3954 = vst.msk [vmem:[#allocation4 + $0x41] sm:$0x1] %vm3933, 0.0
      %3955 = vst.msk [vmem:[#allocation4 + $0x59] sm:$0x1] %vm3933, 0.0
      %3956 = vst.msk [vmem:[#allocation4 + $0x71] sm:$0x1] %vm3933, 0.0
      %3957 = vst.msk [vmem:[#allocation4 + $0x89] sm:$0x1] %vm3933, 0.0
      %3958 = vst.msk [vmem:[#allocation4 + $0xa1] sm:$0x1] %vm3933, 0.0
      %3959 = vst.msk [vmem:[#allocation4 + $0xb9] sm:$0x1] %vm3933, 0.0
      %3960 = vst.msk [vmem:[#allocation4 + $0xd1] sm:$0x1] %vm3933, 0.0
      %3961 = vst.msk [vmem:[#allocation4 + $0xe9] sm:$0x1] %vm3933, 0.0
      %3962 = vst.msk [vmem:[#allocation4 + $0x101] sm:$0x1] %vm3933, 0.0
      %3963 = vst.msk [vmem:[#allocation4 + $0x119] sm:$0x1] %vm3933, 0.0
      %3964 = vst.msk [vmem:[#allocation4 + $0x131] sm:$0x1] %vm3933, 0.0
      %3965 = vst.msk [vmem:[#allocation4 + $0x149] sm:$0x1] %vm3933, 0.0
      %3966 = vst.msk [vmem:[#allocation4 + $0x161] sm:$0x1] %vm3933, 0.0
      %3967 = vst.msk [vmem:[#allocation4 + $0x179] sm:$0x1] %vm3933, 0.0
      %3968 = vst.msk [vmem:[#allocation4 + $0x191] sm:$0x1] %vm3933, 0.0
      %3969 = vst.msk [vmem:[#allocation4 + $0x1a9] sm:$0x1] %vm3933, 0.0
      %v3970 = vmul.f32 %v3897, %v896
      %v3971 = vmul.f32 %v3898, %v896
      %vm3972 = vcmask 130048
      %3973 = vst.msk [vmem:[#allocation4 + $0x1] sm:$0xff] %vm3972, %v3970
      %3974 = vst.msk [vmem:[#allocation4 + $0x9] sm:$0xff] %vm3972, %v3971
      %s3975 = scalar_lea.vmem [#allocation4], 24
      %3976 = vst.msk [vmem:[%s3975 + $0x1] sm:$0xff] %vm3972, %v3899
      %3977 = vst.msk [vmem:[%s3975 + $0x9] sm:$0xff] %vm3972, %v3900
      %3978 = vst.msk [vmem:[%s3975 + $0x19] sm:$0xff] %vm3972, %v3901
      %3979 = vst.msk [vmem:[%s3975 + $0x21] sm:$0xff] %vm3972, %v3902
      %3980 = vst.msk [vmem:[%s3975 + $0x31] sm:$0xff] %vm3972, %v3903
      %3981 = vst.msk [vmem:[%s3975 + $0x39] sm:$0xff] %vm3972, %v3904
      %3982 = vst.msk [vmem:[%s3975 + $0x49] sm:$0xff] %vm3972, %v3905
      %3983 = vst.msk [vmem:[%s3975 + $0x51] sm:$0xff] %vm3972, %v3906
      %3984 = vst.msk [vmem:[%s3975 + $0x61] sm:$0xff] %vm3972, %v3907
      %3985 = vst.msk [vmem:[%s3975 + $0x69] sm:$0xff] %vm3972, %v3908
      %3986 = vst.msk [vmem:[%s3975 + $0x79] sm:$0xff] %vm3972, %v3909
      %3987 = vst.msk [vmem:[%s3975 + $0x81] sm:$0xff] %vm3972, %v3910
      %3988 = vst.msk [vmem:[%s3975 + $0x91] sm:$0xff] %vm3972, %v3911
      %3989 = vst.msk [vmem:[%s3975 + $0x99] sm:$0xff] %vm3972, %v3912
      %3990 = vst.msk [vmem:[%s3975 + $0xa9] sm:$0xff] %vm3972, %v3913
      %3991 = vst.msk [vmem:[%s3975 + $0xb1] sm:$0xff] %vm3972, %v3914
      %3992 = vst.msk [vmem:[%s3975 + $0xc1] sm:$0xff] %vm3972, %v3915
      %3993 = vst.msk [vmem:[%s3975 + $0xc9] sm:$0xff] %vm3972, %v3916
      %3994 = vst.msk [vmem:[%s3975 + $0xd9] sm:$0xff] %vm3972, %v3917
      %3995 = vst.msk [vmem:[%s3975 + $0xe1] sm:$0xff] %vm3972, %v3918
      %3996 = vst.msk [vmem:[%s3975 + $0xf1] sm:$0xff] %vm3972, %v3919
      %3997 = vst.msk [vmem:[%s3975 + $0xf9] sm:$0xff] %vm3972, %v3920
      %3998 = vst.msk [vmem:[%s3975 + $0x109] sm:$0xff] %vm3972, %v3921
      %3999 = vst.msk [vmem:[%s3975 + $0x111] sm:$0xff] %vm3972, %v3922
      %4000 = vst.msk [vmem:[%s3975 + $0x121] sm:$0xff] %vm3972, %v3923
      %4001 = vst.msk [vmem:[%s3975 + $0x129] sm:$0xff] %vm3972, %v3924
      %4002 = vst.msk [vmem:[%s3975 + $0x139] sm:$0xff] %vm3972, %v3925
      %4003 = vst.msk [vmem:[%s3975 + $0x141] sm:$0xff] %vm3972, %v3926
      %4004 = vst.msk [vmem:[%s3975 + $0x151] sm:$0xff] %vm3972, %v3927
      %4005 = vst.msk [vmem:[%s3975 + $0x159] sm:$0xff] %vm3972, %v3928
      %4006 = vst.msk [vmem:[%s3975 + $0x169] sm:$0xff] %vm3972, %v3929
      %4007 = vst.msk [vmem:[%s3975 + $0x171] sm:$0xff] %vm3972, %v3930
      %v4008 = vmul.f32 %v3931, %v1309
      %v4009 = vmul.f32 %v3932, %v1309
      %s4010 = scalar_lea.vmem [#allocation4], 408
      %4011 = vst.msk [vmem:[%s4010 + $0x1] sm:$0xff] %vm3972, %v4008
      %4012 = vst.msk [vmem:[%s4010 + $0x9] sm:$0xff] %vm3972, %v4009
      %v4013 = vld [vmem:[#allocation4] sm:$0xff]
      %v4014 = vld [vmem:[#allocation4 + $0x8] sm:$0xff]
      %v4015 = vld [vmem:[#allocation4 + $0x18] sm:$0xff]
      %v4016 = vld [vmem:[#allocation4 + $0x20] sm:$0xff]
      %v4017 = vld [vmem:[#allocation4 + $0x30] sm:$0xff]
      %v4018 = vld [vmem:[#allocation4 + $0x38] sm:$0xff]
      %v4019 = vld [vmem:[#allocation4 + $0x48] sm:$0xff]
      %v4020 = vld [vmem:[#allocation4 + $0x50] sm:$0xff]
      %v4021 = vld [vmem:[#allocation4 + $0x60] sm:$0xff]
      %v4022 = vld [vmem:[#allocation4 + $0x68] sm:$0xff]
      %v4023 = vld [vmem:[#allocation4 + $0x78] sm:$0xff]
      %v4024 = vld [vmem:[#allocation4 + $0x80] sm:$0xff]
      %v4025 = vld [vmem:[#allocation4 + $0x90] sm:$0xff]
      %v4026 = vld [vmem:[#allocation4 + $0x98] sm:$0xff]
      %v4027 = vld [vmem:[#allocation4 + $0xa8] sm:$0xff]
      %v4028 = vld [vmem:[#allocation4 + $0xb0] sm:$0xff]
      %v4029 = vld [vmem:[#allocation4 + $0xc0] sm:$0xff]
      %v4030 = vld [vmem:[#allocation4 + $0xc8] sm:$0xff]
      %v4031 = vld [vmem:[#allocation4 + $0xd8] sm:$0xff]
      %v4032 = vld [vmem:[#allocation4 + $0xe0] sm:$0xff]
      %v4033 = vld [vmem:[#allocation4 + $0xf0] sm:$0xff]
      %v4034 = vld [vmem:[#allocation4 + $0xf8] sm:$0xff]
      %v4035 = vld [vmem:[#allocation4 + $0x108] sm:$0xff]
      %v4036 = vld [vmem:[#allocation4 + $0x110] sm:$0xff]
      %v4037 = vld [vmem:[#allocation4 + $0x120] sm:$0xff]
      %v4038 = vld [vmem:[#allocation4 + $0x128] sm:$0xff]
      %v4039 = vld [vmem:[#allocation4 + $0x138] sm:$0xff]
      %v4040 = vld [vmem:[#allocation4 + $0x140] sm:$0xff]
      %v4041 = vld [vmem:[#allocation4 + $0x150] sm:$0xff]
      %v4042 = vld [vmem:[#allocation4 + $0x158] sm:$0xff]
      %v4043 = vld [vmem:[#allocation4 + $0x168] sm:$0xff]
      %v4044 = vld [vmem:[#allocation4 + $0x170] sm:$0xff]
      %4045 = vst.msk [vmem:[#allocation5] sm:$0xff] %vm3972, %v4013
      %4046 = vst.msk [vmem:[#allocation5 + $0x10] sm:$0xff] %vm3972, %v4014
      %4047 = vst.msk [vmem:[#allocation5 + $0x20] sm:$0xff] %vm3972, %v4015
      %4048 = vst.msk [vmem:[#allocation5 + $0x30] sm:$0xff] %vm3972, %v4016
      %4049 = vst.msk [vmem:[#allocation5 + $0x40] sm:$0xff] %vm3972, %v4017
      %4050 = vst.msk [vmem:[#allocation5 + $0x50] sm:$0xff] %vm3972, %v4018
      %4051 = vst.msk [vmem:[#allocation5 + $0x60] sm:$0xff] %vm3972, %v4019
      %4052 = vst.msk [vmem:[#allocation5 + $0x70] sm:$0xff] %vm3972, %v4020
      %4053 = vst.msk [vmem:[#allocation5 + $0x80] sm:$0xff] %vm3972, %v4021
      %4054 = vst.msk [vmem:[#allocation5 + $0x90] sm:$0xff] %vm3972, %v4022
      %4055 = vst.msk [vmem:[#allocation5 + $0xa0] sm:$0xff] %vm3972, %v4023
      %4056 = vst.msk [vmem:[#allocation5 + $0xb0] sm:$0xff] %vm3972, %v4024
      %4057 = vst.msk [vmem:[#allocation5 + $0xc0] sm:$0xff] %vm3972, %v4025
      %4058 = vst.msk [vmem:[#allocation5 + $0xd0] sm:$0xff] %vm3972, %v4026
      %4059 = vst.msk [vmem:[#allocation5 + $0xe0] sm:$0xff] %vm3972, %v4027
      %4060 = vst.msk [vmem:[#allocation5 + $0xf0] sm:$0xff] %vm3972, %v4028
      %4061 = vst.msk [vmem:[#allocation5 + $0x100] sm:$0xff] %vm3972, %v4029
      %4062 = vst.msk [vmem:[#allocation5 + $0x110] sm:$0xff] %vm3972, %v4030
      %4063 = vst.msk [vmem:[#allocation5 + $0x120] sm:$0xff] %vm3972, %v4031
      %4064 = vst.msk [vmem:[#allocation5 + $0x130] sm:$0xff] %vm3972, %v4032
      %4065 = vst.msk [vmem:[#allocation5 + $0x140] sm:$0xff] %vm3972, %v4033
      %4066 = vst.msk [vmem:[#allocation5 + $0x150] sm:$0xff] %vm3972, %v4034
      %4067 = vst.msk [vmem:[#allocation5 + $0x160] sm:$0xff] %vm3972, %v4035
      %4068 = vst.msk [vmem:[#allocation5 + $0x170] sm:$0xff] %vm3972, %v4036
      %4069 = vst.msk [vmem:[#allocation5 + $0x180] sm:$0xff] %vm3972, %v4037
      %4070 = vst.msk [vmem:[#allocation5 + $0x190] sm:$0xff] %vm3972, %v4038
      %4071 = vst.msk [vmem:[#allocation5 + $0x1a0] sm:$0xff] %vm3972, %v4039
      %4072 = vst.msk [vmem:[#allocation5 + $0x1b0] sm:$0xff] %vm3972, %v4040
      %4073 = vst.msk [vmem:[#allocation5 + $0x1c0] sm:$0xff] %vm3972, %v4041
      %4074 = vst.msk [vmem:[#allocation5 + $0x1d0] sm:$0xff] %vm3972, %v4042
      %4075 = vst.msk [vmem:[#allocation5 + $0x1e0] sm:$0xff] %vm3972, %v4043
      %4076 = vst.msk [vmem:[#allocation5 + $0x1f0] sm:$0xff] %vm3972, %v4044
      %v4077 = vld [vmem:[#allocation4 + $0x1] sm:$0xff]
      %v4078 = vld [vmem:[#allocation4 + $0x9] sm:$0xff]
      %v4079 = vld [vmem:[#allocation4 + $0x19] sm:$0xff]
      %v4080 = vld [vmem:[#allocation4 + $0x21] sm:$0xff]
      %v4081 = vld [vmem:[#allocation4 + $0x31] sm:$0xff]
      %v4082 = vld [vmem:[#allocation4 + $0x39] sm:$0xff]
      %v4083 = vld [vmem:[#allocation4 + $0x49] sm:$0xff]
      %v4084 = vld [vmem:[#allocation4 + $0x51] sm:$0xff]
      %v4085 = vld [vmem:[#allocation4 + $0x61] sm:$0xff]
      %v4086 = vld [vmem:[#allocation4 + $0x69] sm:$0xff]
      %v4087 = vld [vmem:[#allocation4 + $0x79] sm:$0xff]
      %v4088 = vld [vmem:[#allocation4 + $0x81] sm:$0xff]
      %v4089 = vld [vmem:[#allocation4 + $0x91] sm:$0xff]
      %v4090 = vld [vmem:[#allocation4 + $0x99] sm:$0xff]
      %v4091 = vld [vmem:[#allocation4 + $0xa9] sm:$0xff]
      %v4092 = vld [vmem:[#allocation4 + $0xb1] sm:$0xff]
      %v4093 = vld [vmem:[#allocation4 + $0xc1] sm:$0xff]
      %v4094 = vld [vmem:[#allocation4 + $0xc9] sm:$0xff]
      %v4095 = vld [vmem:[#allocation4 + $0xd9] sm:$0xff]
      %v4096 = vld [vmem:[#allocation4 + $0xe1] sm:$0xff]
      %v4097 = vld [vmem:[#allocation4 + $0xf1] sm:$0xff]
      %v4098 = vld [vmem:[#allocation4 + $0xf9] sm:$0xff]
      %v4099 = vld [vmem:[#allocation4 + $0x109] sm:$0xff]
      %v4100 = vld [vmem:[#allocation4 + $0x111] sm:$0xff]
      %v4101 = vld [vmem:[#allocation4 + $0x121] sm:$0xff]
      %v4102 = vld [vmem:[#allocation4 + $0x129] sm:$0xff]
      %v4103 = vld [vmem:[#allocation4 + $0x139] sm:$0xff]
      %v4104 = vld [vmem:[#allocation4 + $0x141] sm:$0xff]
      %v4105 = vld [vmem:[#allocation4 + $0x151] sm:$0xff]
      %v4106 = vld [vmem:[#allocation4 + $0x159] sm:$0xff]
      %v4107 = vld [vmem:[#allocation4 + $0x169] sm:$0xff]
      %v4108 = vld [vmem:[#allocation4 + $0x171] sm:$0xff]
      %4141 = vrot.lane.b32.xlu0 %v4077, 16
      %v4142 = vpop.permute.xlu0 %4141
      %4143 = vrot.lane.b32.xlu0 %v4078, 16
      %v4144 = vpop.permute.xlu0 %4143
      %4145 = vrot.lane.b32.xlu0 %v4079, 16
      %v4146 = vpop.permute.xlu0 %4145
      %4147 = vrot.lane.b32.xlu0 %v4080, 16
      %v4148 = vpop.permute.xlu0 %4147
      %4149 = vrot.lane.b32.xlu0 %v4081, 16
      %v4150 = vpop.permute.xlu0 %4149
      %4151 = vrot.lane.b32.xlu0 %v4082, 16
      %v4152 = vpop.permute.xlu0 %4151
      %4153 = vrot.lane.b32.xlu0 %v4083, 16
      %v4154 = vpop.permute.xlu0 %4153
      %4155 = vrot.lane.b32.xlu0 %v4084, 16
      %v4156 = vpop.permute.xlu0 %4155
      %4157 = vrot.lane.b32.xlu0 %v4085, 16
      %v4158 = vpop.permute.xlu0 %4157
      %4159 = vrot.lane.b32.xlu0 %v4086, 16
      %v4160 = vpop.permute.xlu0 %4159
      %4161 = vrot.lane.b32.xlu0 %v4087, 16
      %v4162 = vpop.permute.xlu0 %4161
      %4163 = vrot.lane.b32.xlu0 %v4088, 16
      %v4164 = vpop.permute.xlu0 %4163
      %4165 = vrot.lane.b32.xlu0 %v4089, 16
      %v4166 = vpop.permute.xlu0 %4165
      %4167 = vrot.lane.b32.xlu0 %v4090, 16
      %v4168 = vpop.permute.xlu0 %4167
      %4169 = vrot.lane.b32.xlu0 %v4091, 16
      %v4170 = vpop.permute.xlu0 %4169
      %4171 = vrot.lane.b32.xlu0 %v4092, 16
      %v4172 = vpop.permute.xlu0 %4171
      %4173 = vrot.lane.b32.xlu0 %v4093, 16
      %v4174 = vpop.permute.xlu0 %4173
      %4175 = vrot.lane.b32.xlu0 %v4094, 16
      %v4176 = vpop.permute.xlu0 %4175
      %4177 = vrot.lane.b32.xlu0 %v4095, 16
      %v4178 = vpop.permute.xlu0 %4177
      %4179 = vrot.lane.b32.xlu0 %v4096, 16
      %v4180 = vpop.permute.xlu0 %4179
      %4181 = vrot.lane.b32.xlu0 %v4097, 16
      %v4182 = vpop.permute.xlu0 %4181
      %4183 = vrot.lane.b32.xlu0 %v4098, 16
      %v4184 = vpop.permute.xlu0 %4183
      %4185 = vrot.lane.b32.xlu0 %v4099, 16
      %v4186 = vpop.permute.xlu0 %4185
      %4187 = vrot.lane.b32.xlu0 %v4100, 16
      %v4188 = vpop.permute.xlu0 %4187
      %4189 = vrot.lane.b32.xlu0 %v4101, 16
      %v4190 = vpop.permute.xlu0 %4189
      %4191 = vrot.lane.b32.xlu0 %v4102, 16
      %v4192 = vpop.permute.xlu0 %4191
      %4193 = vrot.lane.b32.xlu0 %v4103, 16
      %v4194 = vpop.permute.xlu0 %4193
      %4195 = vrot.lane.b32.xlu0 %v4104, 16
      %v4196 = vpop.permute.xlu0 %4195
      %4197 = vrot.lane.b32.xlu0 %v4105, 16
      %v4198 = vpop.permute.xlu0 %4197
      %4199 = vrot.lane.b32.xlu0 %v4106, 16
      %v4200 = vpop.permute.xlu0 %4199
      %4201 = vrot.lane.b32.xlu0 %v4107, 16
      %v4202 = vpop.permute.xlu0 %4201
      %4203 = vrot.lane.b32.xlu0 %v4108, 16
      %v4204 = vpop.permute.xlu0 %4203
      %vm4237 = vcmask 261248
      %4238 = vst.msk [vmem:[#allocation5] sm:$0xff] %vm4237, %v4142
      %4239 = vst.msk [vmem:[#allocation5 + $0x10] sm:$0xff] %vm4237, %v4144
      %4240 = vst.msk [vmem:[#allocation5 + $0x20] sm:$0xff] %vm4237, %v4146
      %4241 = vst.msk [vmem:[#allocation5 + $0x30] sm:$0xff] %vm4237, %v4148
      %4242 = vst.msk [vmem:[#allocation5 + $0x40] sm:$0xff] %vm4237, %v4150
      %4243 = vst.msk [vmem:[#allocation5 + $0x50] sm:$0xff] %vm4237, %v4152
      %4244 = vst.msk [vmem:[#allocation5 + $0x60] sm:$0xff] %vm4237, %v4154
      %4245 = vst.msk [vmem:[#allocation5 + $0x70] sm:$0xff] %vm4237, %v4156
      %4246 = vst.msk [vmem:[#allocation5 + $0x80] sm:$0xff] %vm4237, %v4158
      %4247 = vst.msk [vmem:[#allocation5 + $0x90] sm:$0xff] %vm4237, %v4160
      %4248 = vst.msk [vmem:[#allocation5 + $0xa0] sm:$0xff] %vm4237, %v4162
      %4249 = vst.msk [vmem:[#allocation5 + $0xb0] sm:$0xff] %vm4237, %v4164
      %4250 = vst.msk [vmem:[#allocation5 + $0xc0] sm:$0xff] %vm4237, %v4166
      %4251 = vst.msk [vmem:[#allocation5 + $0xd0] sm:$0xff] %vm4237, %v4168
      %4252 = vst.msk [vmem:[#allocation5 + $0xe0] sm:$0xff] %vm4237, %v4170
      %4253 = vst.msk [vmem:[#allocation5 + $0xf0] sm:$0xff] %vm4237, %v4172
      %4254 = vst.msk [vmem:[#allocation5 + $0x100] sm:$0xff] %vm4237, %v4174
      %4255 = vst.msk [vmem:[#allocation5 + $0x110] sm:$0xff] %vm4237, %v4176
      %4256 = vst.msk [vmem:[#allocation5 + $0x120] sm:$0xff] %vm4237, %v4178
      %4257 = vst.msk [vmem:[#allocation5 + $0x130] sm:$0xff] %vm4237, %v4180
      %4258 = vst.msk [vmem:[#allocation5 + $0x140] sm:$0xff] %vm4237, %v4182
      %4259 = vst.msk [vmem:[#allocation5 + $0x150] sm:$0xff] %vm4237, %v4184
      %4260 = vst.msk [vmem:[#allocation5 + $0x160] sm:$0xff] %vm4237, %v4186
      %4261 = vst.msk [vmem:[#allocation5 + $0x170] sm:$0xff] %vm4237, %v4188
      %4262 = vst.msk [vmem:[#allocation5 + $0x180] sm:$0xff] %vm4237, %v4190
      %4263 = vst.msk [vmem:[#allocation5 + $0x190] sm:$0xff] %vm4237, %v4192
      %4264 = vst.msk [vmem:[#allocation5 + $0x1a0] sm:$0xff] %vm4237, %v4194
      %4265 = vst.msk [vmem:[#allocation5 + $0x1b0] sm:$0xff] %vm4237, %v4196
      %4266 = vst.msk [vmem:[#allocation5 + $0x1c0] sm:$0xff] %vm4237, %v4198
      %4267 = vst.msk [vmem:[#allocation5 + $0x1d0] sm:$0xff] %vm4237, %v4200
      %4268 = vst.msk [vmem:[#allocation5 + $0x1e0] sm:$0xff] %vm4237, %v4202
      %4269 = vst.msk [vmem:[#allocation5 + $0x1f0] sm:$0xff] %vm4237, %v4204
      %v4270 = vld [vmem:[#allocation4 + $0x2] sm:$0xff]
      %v4271 = vld [vmem:[#allocation4 + $0xa] sm:$0xff]
      %v4272 = vld [vmem:[#allocation4 + $0x1a] sm:$0xff]
      %v4273 = vld [vmem:[#allocation4 + $0x22] sm:$0xff]
      %v4274 = vld [vmem:[#allocation4 + $0x32] sm:$0xff]
      %v4275 = vld [vmem:[#allocation4 + $0x3a] sm:$0xff]
      %v4276 = vld [vmem:[#allocation4 + $0x4a] sm:$0xff]
      %v4277 = vld [vmem:[#allocation4 + $0x52] sm:$0xff]
      %v4278 = vld [vmem:[#allocation4 + $0x62] sm:$0xff]
      %v4279 = vld [vmem:[#allocation4 + $0x6a] sm:$0xff]
      %v4280 = vld [vmem:[#allocation4 + $0x7a] sm:$0xff]
      %v4281 = vld [vmem:[#allocation4 + $0x82] sm:$0xff]
      %v4282 = vld [vmem:[#allocation4 + $0x92] sm:$0xff]
      %v4283 = vld [vmem:[#allocation4 + $0x9a] sm:$0xff]
      %v4284 = vld [vmem:[#allocation4 + $0xaa] sm:$0xff]
      %v4285 = vld [vmem:[#allocation4 + $0xb2] sm:$0xff]
      %v4286 = vld [vmem:[#allocation4 + $0xc2] sm:$0xff]
      %v4287 = vld [vmem:[#allocation4 + $0xca] sm:$0xff]
      %v4288 = vld [vmem:[#allocation4 + $0xda] sm:$0xff]
      %v4289 = vld [vmem:[#allocation4 + $0xe2] sm:$0xff]
      %v4290 = vld [vmem:[#allocation4 + $0xf2] sm:$0xff]
      %v4291 = vld [vmem:[#allocation4 + $0xfa] sm:$0xff]
      %v4292 = vld [vmem:[#allocation4 + $0x10a] sm:$0xff]
      %v4293 = vld [vmem:[#allocation4 + $0x112] sm:$0xff]
      %v4294 = vld [vmem:[#allocation4 + $0x122] sm:$0xff]
      %v4295 = vld [vmem:[#allocation4 + $0x12a] sm:$0xff]
      %v4296 = vld [vmem:[#allocation4 + $0x13a] sm:$0xff]
      %v4297 = vld [vmem:[#allocation4 + $0x142] sm:$0xff]
      %v4298 = vld [vmem:[#allocation4 + $0x152] sm:$0xff]
      %v4299 = vld [vmem:[#allocation4 + $0x15a] sm:$0xff]
      %v4300 = vld [vmem:[#allocation4 + $0x16a] sm:$0xff]
      %v4301 = vld [vmem:[#allocation4 + $0x172] sm:$0xff]
      %4334 = vrot.lane.b32.xlu0 %v4270, 32
      %v4335 = vpop.permute.xlu0 %4334
      %4336 = vrot.lane.b32.xlu0 %v4271, 32
      %v4337 = vpop.permute.xlu0 %4336
      %4338 = vrot.lane.b32.xlu0 %v4272, 32
      %v4339 = vpop.permute.xlu0 %4338
      %4340 = vrot.lane.b32.xlu0 %v4273, 32
      %v4341 = vpop.permute.xlu0 %4340
      %4342 = vrot.lane.b32.xlu0 %v4274, 32
      %v4343 = vpop.permute.xlu0 %4342
      %4344 = vrot.lane.b32.xlu0 %v4275, 32
      %v4345 = vpop.permute.xlu0 %4344
      %4346 = vrot.lane.b32.xlu0 %v4276, 32
      %v4347 = vpop.permute.xlu0 %4346
      %4348 = vrot.lane.b32.xlu0 %v4277, 32
      %v4349 = vpop.permute.xlu0 %4348
      %4350 = vrot.lane.b32.xlu0 %v4278, 32
      %v4351 = vpop.permute.xlu0 %4350
      %4352 = vrot.lane.b32.xlu0 %v4279, 32
      %v4353 = vpop.permute.xlu0 %4352
      %4354 = vrot.lane.b32.xlu0 %v4280, 32
      %v4355 = vpop.permute.xlu0 %4354
      %4356 = vrot.lane.b32.xlu0 %v4281, 32
      %v4357 = vpop.permute.xlu0 %4356
      %4358 = vrot.lane.b32.xlu0 %v4282, 32
      %v4359 = vpop.permute.xlu0 %4358
      %4360 = vrot.lane.b32.xlu0 %v4283, 32
      %v4361 = vpop.permute.xlu0 %4360
      %4362 = vrot.lane.b32.xlu0 %v4284, 32
      %v4363 = vpop.permute.xlu0 %4362
      %4364 = vrot.lane.b32.xlu0 %v4285, 32
      %v4365 = vpop.permute.xlu0 %4364
      %4366 = vrot.lane.b32.xlu0 %v4286, 32
      %v4367 = vpop.permute.xlu0 %4366
      %4368 = vrot.lane.b32.xlu0 %v4287, 32
      %v4369 = vpop.permute.xlu0 %4368
      %4370 = vrot.lane.b32.xlu0 %v4288, 32
      %v4371 = vpop.permute.xlu0 %4370
      %4372 = vrot.lane.b32.xlu0 %v4289, 32
      %v4373 = vpop.permute.xlu0 %4372
      %4374 = vrot.lane.b32.xlu0 %v4290, 32
      %v4375 = vpop.permute.xlu0 %4374
      %4376 = vrot.lane.b32.xlu0 %v4291, 32
      %v4377 = vpop.permute.xlu0 %4376
      %4378 = vrot.lane.b32.xlu0 %v4292, 32
      %v4379 = vpop.permute.xlu0 %4378
      %4380 = vrot.lane.b32.xlu0 %v4293, 32
      %v4381 = vpop.permute.xlu0 %4380
      %4382 = vrot.lane.b32.xlu0 %v4294, 32
      %v4383 = vpop.permute.xlu0 %4382
      %4384 = vrot.lane.b32.xlu0 %v4295, 32
      %v4385 = vpop.permute.xlu0 %4384
      %4386 = vrot.lane.b32.xlu0 %v4296, 32
      %v4387 = vpop.permute.xlu0 %4386
      %4388 = vrot.lane.b32.xlu0 %v4297, 32
      %v4389 = vpop.permute.xlu0 %4388
      %4390 = vrot.lane.b32.xlu0 %v4298, 32
      %v4391 = vpop.permute.xlu0 %4390
      %4392 = vrot.lane.b32.xlu0 %v4299, 32
      %v4393 = vpop.permute.xlu0 %4392
      %4394 = vrot.lane.b32.xlu0 %v4300, 32
      %v4395 = vpop.permute.xlu0 %4394
      %4396 = vrot.lane.b32.xlu0 %v4301, 32
      %v4397 = vpop.permute.xlu0 %4396
      %vm4430 = vcmask 392448
      %4431 = vst.msk [vmem:[#allocation5] sm:$0xff] %vm4430, %v4335
      %4432 = vst.msk [vmem:[#allocation5 + $0x10] sm:$0xff] %vm4430, %v4337
      %4433 = vst.msk [vmem:[#allocation5 + $0x20] sm:$0xff] %vm4430, %v4339
      %4434 = vst.msk [vmem:[#allocation5 + $0x30] sm:$0xff] %vm4430, %v4341
      %4435 = vst.msk [vmem:[#allocation5 + $0x40] sm:$0xff] %vm4430, %v4343
      %4436 = vst.msk [vmem:[#allocation5 + $0x50] sm:$0xff] %vm4430, %v4345
      %4437 = vst.msk [vmem:[#allocation5 + $0x60] sm:$0xff] %vm4430, %v4347
      %4438 = vst.msk [vmem:[#allocation5 + $0x70] sm:$0xff] %vm4430, %v4349
      %4439 = vst.msk [vmem:[#allocation5 + $0x80] sm:$0xff] %vm4430, %v4351
      %4440 = vst.msk [vmem:[#allocation5 + $0x90] sm:$0xff] %vm4430, %v4353
      %4441 = vst.msk [vmem:[#allocation5 + $0xa0] sm:$0xff] %vm4430, %v4355
      %4442 = vst.msk [vmem:[#allocation5 + $0xb0] sm:$0xff] %vm4430, %v4357
      %4443 = vst.msk [vmem:[#allocation5 + $0xc0] sm:$0xff] %vm4430, %v4359
      %4444 = vst.msk [vmem:[#allocation5 + $0xd0] sm:$0xff] %vm4430, %v4361
      %4445 = vst.msk [vmem:[#allocation5 + $0xe0] sm:$0xff] %vm4430, %v4363
      %4446 = vst.msk [vmem:[#allocation5 + $0xf0] sm:$0xff] %vm4430, %v4365
      %4447 = vst.msk [vmem:[#allocation5 + $0x100] sm:$0xff] %vm4430, %v4367
      %4448 = vst.msk [vmem:[#allocation5 + $0x110] sm:$0xff] %vm4430, %v4369
      %4449 = vst.msk [vmem:[#allocation5 + $0x120] sm:$0xff] %vm4430, %v4371
      %4450 = vst.msk [vmem:[#allocation5 + $0x130] sm:$0xff] %vm4430, %v4373
      %4451 = vst.msk [vmem:[#allocation5 + $0x140] sm:$0xff] %vm4430, %v4375
      %4452 = vst.msk [vmem:[#allocation5 + $0x150] sm:$0xff] %vm4430, %v4377
      %4453 = vst.msk [vmem:[#allocation5 + $0x160] sm:$0xff] %vm4430, %v4379
      %4454 = vst.msk [vmem:[#allocation5 + $0x170] sm:$0xff] %vm4430, %v4381
      %4455 = vst.msk [vmem:[#allocation5 + $0x180] sm:$0xff] %vm4430, %v4383
      %4456 = vst.msk [vmem:[#allocation5 + $0x190] sm:$0xff] %vm4430, %v4385
      %4457 = vst.msk [vmem:[#allocation5 + $0x1a0] sm:$0xff] %vm4430, %v4387
      %4458 = vst.msk [vmem:[#allocation5 + $0x1b0] sm:$0xff] %vm4430, %v4389
      %4459 = vst.msk [vmem:[#allocation5 + $0x1c0] sm:$0xff] %vm4430, %v4391
      %4460 = vst.msk [vmem:[#allocation5 + $0x1d0] sm:$0xff] %vm4430, %v4393
      %4461 = vst.msk [vmem:[#allocation5 + $0x1e0] sm:$0xff] %vm4430, %v4395
      %4462 = vst.msk [vmem:[#allocation5 + $0x1f0] sm:$0xff] %vm4430, %v4397
      %v4463 = vld [vmem:[%s3975] sm:$0xff]
      %v4464 = vld [vmem:[%s3975 + $0x8] sm:$0xff]
      %v4465 = vld [vmem:[%s3975 + $0x18] sm:$0xff]
      %v4466 = vld [vmem:[%s3975 + $0x20] sm:$0xff]
      %v4467 = vld [vmem:[%s3975 + $0x30] sm:$0xff]
      %v4468 = vld [vmem:[%s3975 + $0x38] sm:$0xff]
      %v4469 = vld [vmem:[%s3975 + $0x48] sm:$0xff]
      %v4470 = vld [vmem:[%s3975 + $0x50] sm:$0xff]
      %v4471 = vld [vmem:[%s3975 + $0x60] sm:$0xff]
      %v4472 = vld [vmem:[%s3975 + $0x68] sm:$0xff]
      %v4473 = vld [vmem:[%s3975 + $0x78] sm:$0xff]
      %v4474 = vld [vmem:[%s3975 + $0x80] sm:$0xff]
      %v4475 = vld [vmem:[%s3975 + $0x90] sm:$0xff]
      %v4476 = vld [vmem:[%s3975 + $0x98] sm:$0xff]
      %v4477 = vld [vmem:[%s3975 + $0xa8] sm:$0xff]
      %v4478 = vld [vmem:[%s3975 + $0xb0] sm:$0xff]
      %v4479 = vld [vmem:[%s3975 + $0xc0] sm:$0xff]
      %v4480 = vld [vmem:[%s3975 + $0xc8] sm:$0xff]
      %v4481 = vld [vmem:[%s3975 + $0xd8] sm:$0xff]
      %v4482 = vld [vmem:[%s3975 + $0xe0] sm:$0xff]
      %v4483 = vld [vmem:[%s3975 + $0xf0] sm:$0xff]
      %v4484 = vld [vmem:[%s3975 + $0xf8] sm:$0xff]
      %v4485 = vld [vmem:[%s3975 + $0x108] sm:$0xff]
      %v4486 = vld [vmem:[%s3975 + $0x110] sm:$0xff]
      %v4487 = vld [vmem:[%s3975 + $0x120] sm:$0xff]
      %v4488 = vld [vmem:[%s3975 + $0x128] sm:$0xff]
      %v4489 = vld [vmem:[%s3975 + $0x138] sm:$0xff]
      %v4490 = vld [vmem:[%s3975 + $0x140] sm:$0xff]
      %v4491 = vld [vmem:[%s3975 + $0x150] sm:$0xff]
      %v4492 = vld [vmem:[%s3975 + $0x158] sm:$0xff]
      %v4493 = vld [vmem:[%s3975 + $0x168] sm:$0xff]
      %v4494 = vld [vmem:[%s3975 + $0x170] sm:$0xff]
      %4527 = vrot.lane.b32.xlu0 %v4463, 48
      %v4528 = vpop.permute.xlu0 %4527
      %4529 = vrot.lane.b32.xlu0 %v4464, 48
      %v4530 = vpop.permute.xlu0 %4529
      %4531 = vrot.lane.b32.xlu0 %v4465, 48
      %v4532 = vpop.permute.xlu0 %4531
      %4533 = vrot.lane.b32.xlu0 %v4466, 48
      %v4534 = vpop.permute.xlu0 %4533
      %4535 = vrot.lane.b32.xlu0 %v4467, 48
      %v4536 = vpop.permute.xlu0 %4535
      %4537 = vrot.lane.b32.xlu0 %v4468, 48
      %v4538 = vpop.permute.xlu0 %4537
      %4539 = vrot.lane.b32.xlu0 %v4469, 48
      %v4540 = vpop.permute.xlu0 %4539
      %4541 = vrot.lane.b32.xlu0 %v4470, 48
      %v4542 = vpop.permute.xlu0 %4541
      %4543 = vrot.lane.b32.xlu0 %v4471, 48
      %v4544 = vpop.permute.xlu0 %4543
      %4545 = vrot.lane.b32.xlu0 %v4472, 48
      %v4546 = vpop.permute.xlu0 %4545
      %4547 = vrot.lane.b32.xlu0 %v4473, 48
      %v4548 = vpop.permute.xlu0 %4547
      %4549 = vrot.lane.b32.xlu0 %v4474, 48
      %v4550 = vpop.permute.xlu0 %4549
      %4551 = vrot.lane.b32.xlu0 %v4475, 48
      %v4552 = vpop.permute.xlu0 %4551
      %4553 = vrot.lane.b32.xlu0 %v4476, 48
      %v4554 = vpop.permute.xlu0 %4553
      %4555 = vrot.lane.b32.xlu0 %v4477, 48
      %v4556 = vpop.permute.xlu0 %4555
      %4557 = vrot.lane.b32.xlu0 %v4478, 48
      %v4558 = vpop.permute.xlu0 %4557
      %4559 = vrot.lane.b32.xlu0 %v4479, 48
      %v4560 = vpop.permute.xlu0 %4559
      %4561 = vrot.lane.b32.xlu0 %v4480, 48
      %v4562 = vpop.permute.xlu0 %4561
      %4563 = vrot.lane.b32.xlu0 %v4481, 48
      %v4564 = vpop.permute.xlu0 %4563
      %4565 = vrot.lane.b32.xlu0 %v4482, 48
      %v4566 = vpop.permute.xlu0 %4565
      %4567 = vrot.lane.b32.xlu0 %v4483, 48
      %v4568 = vpop.permute.xlu0 %4567
      %4569 = vrot.lane.b32.xlu0 %v4484, 48
      %v4570 = vpop.permute.xlu0 %4569
      %4571 = vrot.lane.b32.xlu0 %v4485, 48
      %v4572 = vpop.permute.xlu0 %4571
      %4573 = vrot.lane.b32.xlu0 %v4486, 48
      %v4574 = vpop.permute.xlu0 %4573
      %4575 = vrot.lane.b32.xlu0 %v4487, 48
      %v4576 = vpop.permute.xlu0 %4575
      %4577 = vrot.lane.b32.xlu0 %v4488, 48
      %v4578 = vpop.permute.xlu0 %4577
      %4579 = vrot.lane.b32.xlu0 %v4489, 48
      %v4580 = vpop.permute.xlu0 %4579
      %4581 = vrot.lane.b32.xlu0 %v4490, 48
      %v4582 = vpop.permute.xlu0 %4581
      %4583 = vrot.lane.b32.xlu0 %v4491, 48
      %v4584 = vpop.permute.xlu0 %4583
      %4585 = vrot.lane.b32.xlu0 %v4492, 48
      %v4586 = vpop.permute.xlu0 %4585
      %4587 = vrot.lane.b32.xlu0 %v4493, 48
      %v4588 = vpop.permute.xlu0 %4587
      %4589 = vrot.lane.b32.xlu0 %v4494, 48
      %v4590 = vpop.permute.xlu0 %4589
      %vm4623 = vcmask 523648
      %4624 = vst.msk [vmem:[#allocation5] sm:$0xff] %vm4623, %v4528
      %4625 = vst.msk [vmem:[#allocation5 + $0x10] sm:$0xff] %vm4623, %v4530
      %4626 = vst.msk [vmem:[#allocation5 + $0x20] sm:$0xff] %vm4623, %v4532
      %4627 = vst.msk [vmem:[#allocation5 + $0x30] sm:$0xff] %vm4623, %v4534
      %4628 = vst.msk [vmem:[#allocation5 + $0x40] sm:$0xff] %vm4623, %v4536
      %4629 = vst.msk [vmem:[#allocation5 + $0x50] sm:$0xff] %vm4623, %v4538
      %4630 = vst.msk [vmem:[#allocation5 + $0x60] sm:$0xff] %vm4623, %v4540
      %4631 = vst.msk [vmem:[#allocation5 + $0x70] sm:$0xff] %vm4623, %v4542
      %4632 = vst.msk [vmem:[#allocation5 + $0x80] sm:$0xff] %vm4623, %v4544
      %4633 = vst.msk [vmem:[#allocation5 + $0x90] sm:$0xff] %vm4623, %v4546
      %4634 = vst.msk [vmem:[#allocation5 + $0xa0] sm:$0xff] %vm4623, %v4548
      %4635 = vst.msk [vmem:[#allocation5 + $0xb0] sm:$0xff] %vm4623, %v4550
      %4636 = vst.msk [vmem:[#allocation5 + $0xc0] sm:$0xff] %vm4623, %v4552
      %4637 = vst.msk [vmem:[#allocation5 + $0xd0] sm:$0xff] %vm4623, %v4554
      %4638 = vst.msk [vmem:[#allocation5 + $0xe0] sm:$0xff] %vm4623, %v4556
      %4639 = vst.msk [vmem:[#allocation5 + $0xf0] sm:$0xff] %vm4623, %v4558
      %4640 = vst.msk [vmem:[#allocation5 + $0x100] sm:$0xff] %vm4623, %v4560
      %4641 = vst.msk [vmem:[#allocation5 + $0x110] sm:$0xff] %vm4623, %v4562
      %4642 = vst.msk [vmem:[#allocation5 + $0x120] sm:$0xff] %vm4623, %v4564
      %4643 = vst.msk [vmem:[#allocation5 + $0x130] sm:$0xff] %vm4623, %v4566
      %4644 = vst.msk [vmem:[#allocation5 + $0x140] sm:$0xff] %vm4623, %v4568
      %4645 = vst.msk [vmem:[#allocation5 + $0x150] sm:$0xff] %vm4623, %v4570
      %4646 = vst.msk [vmem:[#allocation5 + $0x160] sm:$0xff] %vm4623, %v4572
      %4647 = vst.msk [vmem:[#allocation5 + $0x170] sm:$0xff] %vm4623, %v4574
      %4648 = vst.msk [vmem:[#allocation5 + $0x180] sm:$0xff] %vm4623, %v4576
      %4649 = vst.msk [vmem:[#allocation5 + $0x190] sm:$0xff] %vm4623, %v4578
      %4650 = vst.msk [vmem:[#allocation5 + $0x1a0] sm:$0xff] %vm4623, %v4580
      %4651 = vst.msk [vmem:[#allocation5 + $0x1b0] sm:$0xff] %vm4623, %v4582
      %4652 = vst.msk [vmem:[#allocation5 + $0x1c0] sm:$0xff] %vm4623, %v4584
      %4653 = vst.msk [vmem:[#allocation5 + $0x1d0] sm:$0xff] %vm4623, %v4586
      %4654 = vst.msk [vmem:[#allocation5 + $0x1e0] sm:$0xff] %vm4623, %v4588
      %4655 = vst.msk [vmem:[#allocation5 + $0x1f0] sm:$0xff] %vm4623, %v4590
      %v4656 = vld [vmem:[%s3975 + $0x1] sm:$0xff]
      %v4657 = vld [vmem:[%s3975 + $0x9] sm:$0xff]
      %v4658 = vld [vmem:[%s3975 + $0x19] sm:$0xff]
      %v4659 = vld [vmem:[%s3975 + $0x21] sm:$0xff]
      %v4660 = vld [vmem:[%s3975 + $0x31] sm:$0xff]
      %v4661 = vld [vmem:[%s3975 + $0x39] sm:$0xff]
      %v4662 = vld [vmem:[%s3975 + $0x49] sm:$0xff]
      %v4663 = vld [vmem:[%s3975 + $0x51] sm:$0xff]
      %v4664 = vld [vmem:[%s3975 + $0x61] sm:$0xff]
      %v4665 = vld [vmem:[%s3975 + $0x69] sm:$0xff]
      %v4666 = vld [vmem:[%s3975 + $0x79] sm:$0xff]
      %v4667 = vld [vmem:[%s3975 + $0x81] sm:$0xff]
      %v4668 = vld [vmem:[%s3975 + $0x91] sm:$0xff]
      %v4669 = vld [vmem:[%s3975 + $0x99] sm:$0xff]
      %v4670 = vld [vmem:[%s3975 + $0xa9] sm:$0xff]
      %v4671 = vld [vmem:[%s3975 + $0xb1] sm:$0xff]
      %v4672 = vld [vmem:[%s3975 + $0xc1] sm:$0xff]
      %v4673 = vld [vmem:[%s3975 + $0xc9] sm:$0xff]
      %v4674 = vld [vmem:[%s3975 + $0xd9] sm:$0xff]
      %v4675 = vld [vmem:[%s3975 + $0xe1] sm:$0xff]
      %v4676 = vld [vmem:[%s3975 + $0xf1] sm:$0xff]
      %v4677 = vld [vmem:[%s3975 + $0xf9] sm:$0xff]
      %v4678 = vld [vmem:[%s3975 + $0x109] sm:$0xff]
      %v4679 = vld [vmem:[%s3975 + $0x111] sm:$0xff]
      %v4680 = vld [vmem:[%s3975 + $0x121] sm:$0xff]
      %v4681 = vld [vmem:[%s3975 + $0x129] sm:$0xff]
      %v4682 = vld [vmem:[%s3975 + $0x139] sm:$0xff]
      %v4683 = vld [vmem:[%s3975 + $0x141] sm:$0xff]
      %v4684 = vld [vmem:[%s3975 + $0x151] sm:$0xff]
      %v4685 = vld [vmem:[%s3975 + $0x159] sm:$0xff]
      %v4686 = vld [vmem:[%s3975 + $0x169] sm:$0xff]
      %v4687 = vld [vmem:[%s3975 + $0x171] sm:$0xff]
      %4720 = vrot.lane.b32.xlu0 %v4656, 64
      %v4721 = vpop.permute.xlu0 %4720
      %4722 = vrot.lane.b32.xlu0 %v4657, 64
      %v4723 = vpop.permute.xlu0 %4722
      %4724 = vrot.lane.b32.xlu0 %v4658, 64
      %v4725 = vpop.permute.xlu0 %4724
      %4726 = vrot.lane.b32.xlu0 %v4659, 64
      %v4727 = vpop.permute.xlu0 %4726
      %4728 = vrot.lane.b32.xlu0 %v4660, 64
      %v4729 = vpop.permute.xlu0 %4728
      %4730 = vrot.lane.b32.xlu0 %v4661, 64
      %v4731 = vpop.permute.xlu0 %4730
      %4732 = vrot.lane.b32.xlu0 %v4662, 64
      %v4733 = vpop.permute.xlu0 %4732
      %4734 = vrot.lane.b32.xlu0 %v4663, 64
      %v4735 = vpop.permute.xlu0 %4734
      %4736 = vrot.lane.b32.xlu0 %v4664, 64
      %v4737 = vpop.permute.xlu0 %4736
      %4738 = vrot.lane.b32.xlu0 %v4665, 64
      %v4739 = vpop.permute.xlu0 %4738
      %4740 = vrot.lane.b32.xlu0 %v4666, 64
      %v4741 = vpop.permute.xlu0 %4740
      %4742 = vrot.lane.b32.xlu0 %v4667, 64
      %v4743 = vpop.permute.xlu0 %4742
      %4744 = vrot.lane.b32.xlu0 %v4668, 64
      %v4745 = vpop.permute.xlu0 %4744
      %4746 = vrot.lane.b32.xlu0 %v4669, 64
      %v4747 = vpop.permute.xlu0 %4746
      %4748 = vrot.lane.b32.xlu0 %v4670, 64
      %v4749 = vpop.permute.xlu0 %4748
      %4750 = vrot.lane.b32.xlu0 %v4671, 64
      %v4751 = vpop.permute.xlu0 %4750
      %4752 = vrot.lane.b32.xlu0 %v4672, 64
      %v4753 = vpop.permute.xlu0 %4752
      %4754 = vrot.lane.b32.xlu0 %v4673, 64
      %v4755 = vpop.permute.xlu0 %4754
      %4756 = vrot.lane.b32.xlu0 %v4674, 64
      %v4757 = vpop.permute.xlu0 %4756
      %4758 = vrot.lane.b32.xlu0 %v4675, 64
      %v4759 = vpop.permute.xlu0 %4758
      %4760 = vrot.lane.b32.xlu0 %v4676, 64
      %v4761 = vpop.permute.xlu0 %4760
      %4762 = vrot.lane.b32.xlu0 %v4677, 64
      %v4763 = vpop.permute.xlu0 %4762
      %4764 = vrot.lane.b32.xlu0 %v4678, 64
      %v4765 = vpop.permute.xlu0 %4764
      %4766 = vrot.lane.b32.xlu0 %v4679, 64
      %v4767 = vpop.permute.xlu0 %4766
      %4768 = vrot.lane.b32.xlu0 %v4680, 64
      %v4769 = vpop.permute.xlu0 %4768
      %4770 = vrot.lane.b32.xlu0 %v4681, 64
      %v4771 = vpop.permute.xlu0 %4770
      %4772 = vrot.lane.b32.xlu0 %v4682, 64
      %v4773 = vpop.permute.xlu0 %4772
      %4774 = vrot.lane.b32.xlu0 %v4683, 64
      %v4775 = vpop.permute.xlu0 %4774
      %4776 = vrot.lane.b32.xlu0 %v4684, 64
      %v4777 = vpop.permute.xlu0 %4776
      %4778 = vrot.lane.b32.xlu0 %v4685, 64
      %v4779 = vpop.permute.xlu0 %4778
      %4780 = vrot.lane.b32.xlu0 %v4686, 64
      %v4781 = vpop.permute.xlu0 %4780
      %4782 = vrot.lane.b32.xlu0 %v4687, 64
      %v4783 = vpop.permute.xlu0 %4782
      %vm4816 = vcmask 654848
      %4817 = vst.msk [vmem:[#allocation5] sm:$0xff] %vm4816, %v4721
      %4818 = vst.msk [vmem:[#allocation5 + $0x10] sm:$0xff] %vm4816, %v4723
      %4819 = vst.msk [vmem:[#allocation5 + $0x20] sm:$0xff] %vm4816, %v4725
      %4820 = vst.msk [vmem:[#allocation5 + $0x30] sm:$0xff] %vm4816, %v4727
      %4821 = vst.msk [vmem:[#allocation5 + $0x40] sm:$0xff] %vm4816, %v4729
      %4822 = vst.msk [vmem:[#allocation5 + $0x50] sm:$0xff] %vm4816, %v4731
      %4823 = vst.msk [vmem:[#allocation5 + $0x60] sm:$0xff] %vm4816, %v4733
      %4824 = vst.msk [vmem:[#allocation5 + $0x70] sm:$0xff] %vm4816, %v4735
      %4825 = vst.msk [vmem:[#allocation5 + $0x80] sm:$0xff] %vm4816, %v4737
      %4826 = vst.msk [vmem:[#allocation5 + $0x90] sm:$0xff] %vm4816, %v4739
      %4827 = vst.msk [vmem:[#allocation5 + $0xa0] sm:$0xff] %vm4816, %v4741
      %4828 = vst.msk [vmem:[#allocation5 + $0xb0] sm:$0xff] %vm4816, %v4743
      %4829 = vst.msk [vmem:[#allocation5 + $0xc0] sm:$0xff] %vm4816, %v4745
      %4830 = vst.msk [vmem:[#allocation5 + $0xd0] sm:$0xff] %vm4816, %v4747
      %4831 = vst.msk [vmem:[#allocation5 + $0xe0] sm:$0xff] %vm4816, %v4749
      %4832 = vst.msk [vmem:[#allocation5 + $0xf0] sm:$0xff] %vm4816, %v4751
      %4833 = vst.msk [vmem:[#allocation5 + $0x100] sm:$0xff] %vm4816, %v4753
      %4834 = vst.msk [vmem:[#allocation5 + $0x110] sm:$0xff] %vm4816, %v4755
      %4835 = vst.msk [vmem:[#allocation5 + $0x120] sm:$0xff] %vm4816, %v4757
      %4836 = vst.msk [vmem:[#allocation5 + $0x130] sm:$0xff] %vm4816, %v4759
      %4837 = vst.msk [vmem:[#allocation5 + $0x140] sm:$0xff] %vm4816, %v4761
      %4838 = vst.msk [vmem:[#allocation5 + $0x150] sm:$0xff] %vm4816, %v4763
      %4839 = vst.msk [vmem:[#allocation5 + $0x160] sm:$0xff] %vm4816, %v4765
      %4840 = vst.msk [vmem:[#allocation5 + $0x170] sm:$0xff] %vm4816, %v4767
      %4841 = vst.msk [vmem:[#allocation5 + $0x180] sm:$0xff] %vm4816, %v4769
      %4842 = vst.msk [vmem:[#allocation5 + $0x190] sm:$0xff] %vm4816, %v4771
      %4843 = vst.msk [vmem:[#allocation5 + $0x1a0] sm:$0xff] %vm4816, %v4773
      %4844 = vst.msk [vmem:[#allocation5 + $0x1b0] sm:$0xff] %vm4816, %v4775
      %4845 = vst.msk [vmem:[#allocation5 + $0x1c0] sm:$0xff] %vm4816, %v4777
      %4846 = vst.msk [vmem:[#allocation5 + $0x1d0] sm:$0xff] %vm4816, %v4779
      %4847 = vst.msk [vmem:[#allocation5 + $0x1e0] sm:$0xff] %vm4816, %v4781
      %4848 = vst.msk [vmem:[#allocation5 + $0x1f0] sm:$0xff] %vm4816, %v4783
      %v4849 = vld [vmem:[%s3975 + $0x2] sm:$0xff]
      %v4850 = vld [vmem:[%s3975 + $0xa] sm:$0xff]
      %v4851 = vld [vmem:[%s3975 + $0x1a] sm:$0xff]
      %v4852 = vld [vmem:[%s3975 + $0x22] sm:$0xff]
      %v4853 = vld [vmem:[%s3975 + $0x32] sm:$0xff]
      %v4854 = vld [vmem:[%s3975 + $0x3a] sm:$0xff]
      %v4855 = vld [vmem:[%s3975 + $0x4a] sm:$0xff]
      %v4856 = vld [vmem:[%s3975 + $0x52] sm:$0xff]
      %v4857 = vld [vmem:[%s3975 + $0x62] sm:$0xff]
      %v4858 = vld [vmem:[%s3975 + $0x6a] sm:$0xff]
      %v4859 = vld [vmem:[%s3975 + $0x7a] sm:$0xff]
      %v4860 = vld [vmem:[%s3975 + $0x82] sm:$0xff]
      %v4861 = vld [vmem:[%s3975 + $0x92] sm:$0xff]
      %v4862 = vld [vmem:[%s3975 + $0x9a] sm:$0xff]
      %v4863 = vld [vmem:[%s3975 + $0xaa] sm:$0xff]
      %v4864 = vld [vmem:[%s3975 + $0xb2] sm:$0xff]
      %v4865 = vld [vmem:[%s3975 + $0xc2] sm:$0xff]
      %v4866 = vld [vmem:[%s3975 + $0xca] sm:$0xff]
      %v4867 = vld [vmem:[%s3975 + $0xda] sm:$0xff]
      %v4868 = vld [vmem:[%s3975 + $0xe2] sm:$0xff]
      %v4869 = vld [vmem:[%s3975 + $0xf2] sm:$0xff]
      %v4870 = vld [vmem:[%s3975 + $0xfa] sm:$0xff]
      %v4871 = vld [vmem:[%s3975 + $0x10a] sm:$0xff]
      %v4872 = vld [vmem:[%s3975 + $0x112] sm:$0xff]
      %v4873 = vld [vmem:[%s3975 + $0x122] sm:$0xff]
      %v4874 = vld [vmem:[%s3975 + $0x12a] sm:$0xff]
      %v4875 = vld [vmem:[%s3975 + $0x13a] sm:$0xff]
      %v4876 = vld [vmem:[%s3975 + $0x142] sm:$0xff]
      %v4877 = vld [vmem:[%s3975 + $0x152] sm:$0xff]
      %v4878 = vld [vmem:[%s3975 + $0x15a] sm:$0xff]
      %v4879 = vld [vmem:[%s3975 + $0x16a] sm:$0xff]
      %v4880 = vld [vmem:[%s3975 + $0x172] sm:$0xff]
      %4913 = vrot.lane.b32.xlu0 %v4849, 80
      %v4914 = vpop.permute.xlu0 %4913
      %4915 = vrot.lane.b32.xlu0 %v4850, 80
      %v4916 = vpop.permute.xlu0 %4915
      %4917 = vrot.lane.b32.xlu0 %v4851, 80
      %v4918 = vpop.permute.xlu0 %4917
      %4919 = vrot.lane.b32.xlu0 %v4852, 80
      %v4920 = vpop.permute.xlu0 %4919
      %4921 = vrot.lane.b32.xlu0 %v4853, 80
      %v4922 = vpop.permute.xlu0 %4921
      %4923 = vrot.lane.b32.xlu0 %v4854, 80
      %v4924 = vpop.permute.xlu0 %4923
      %4925 = vrot.lane.b32.xlu0 %v4855, 80
      %v4926 = vpop.permute.xlu0 %4925
      %4927 = vrot.lane.b32.xlu0 %v4856, 80
      %v4928 = vpop.permute.xlu0 %4927
      %4929 = vrot.lane.b32.xlu0 %v4857, 80
      %v4930 = vpop.permute.xlu0 %4929
      %4931 = vrot.lane.b32.xlu0 %v4858, 80
      %v4932 = vpop.permute.xlu0 %4931
      %4933 = vrot.lane.b32.xlu0 %v4859, 80
      %v4934 = vpop.permute.xlu0 %4933
      %4935 = vrot.lane.b32.xlu0 %v4860, 80
      %v4936 = vpop.permute.xlu0 %4935
      %4937 = vrot.lane.b32.xlu0 %v4861, 80
      %v4938 = vpop.permute.xlu0 %4937
      %4939 = vrot.lane.b32.xlu0 %v4862, 80
      %v4940 = vpop.permute.xlu0 %4939
      %4941 = vrot.lane.b32.xlu0 %v4863, 80
      %v4942 = vpop.permute.xlu0 %4941
      %4943 = vrot.lane.b32.xlu0 %v4864, 80
      %v4944 = vpop.permute.xlu0 %4943
      %4945 = vrot.lane.b32.xlu0 %v4865, 80
      %v4946 = vpop.permute.xlu0 %4945
      %4947 = vrot.lane.b32.xlu0 %v4866, 80
      %v4948 = vpop.permute.xlu0 %4947
      %4949 = vrot.lane.b32.xlu0 %v4867, 80
      %v4950 = vpop.permute.xlu0 %4949
      %4951 = vrot.lane.b32.xlu0 %v4868, 80
      %v4952 = vpop.permute.xlu0 %4951
      %4953 = vrot.lane.b32.xlu0 %v4869, 80
      %v4954 = vpop.permute.xlu0 %4953
      %4955 = vrot.lane.b32.xlu0 %v4870, 80
      %v4956 = vpop.permute.xlu0 %4955
      %4957 = vrot.lane.b32.xlu0 %v4871, 80
      %v4958 = vpop.permute.xlu0 %4957
      %4959 = vrot.lane.b32.xlu0 %v4872, 80
      %v4960 = vpop.permute.xlu0 %4959
      %4961 = vrot.lane.b32.xlu0 %v4873, 80
      %v4962 = vpop.permute.xlu0 %4961
      %4963 = vrot.lane.b32.xlu0 %v4874, 80
      %v4964 = vpop.permute.xlu0 %4963
      %4965 = vrot.lane.b32.xlu0 %v4875, 80
      %v4966 = vpop.permute.xlu0 %4965
      %4967 = vrot.lane.b32.xlu0 %v4876, 80
      %v4968 = vpop.permute.xlu0 %4967
      %4969 = vrot.lane.b32.xlu0 %v4877, 80
      %v4970 = vpop.permute.xlu0 %4969
      %4971 = vrot.lane.b32.xlu0 %v4878, 80
      %v4972 = vpop.permute.xlu0 %4971
      %4973 = vrot.lane.b32.xlu0 %v4879, 80
      %v4974 = vpop.permute.xlu0 %4973
      %4975 = vrot.lane.b32.xlu0 %v4880, 80
      %v4976 = vpop.permute.xlu0 %4975
      %vm5009 = vcmask 786048
      %5010 = vst.msk [vmem:[#allocation5] sm:$0xff] %vm5009, %v4914
      %5011 = vst.msk [vmem:[#allocation5 + $0x10] sm:$0xff] %vm5009, %v4916
      %5012 = vst.msk [vmem:[#allocation5 + $0x20] sm:$0xff] %vm5009, %v4918
      %5013 = vst.msk [vmem:[#allocation5 + $0x30] sm:$0xff] %vm5009, %v4920
      %5014 = vst.msk [vmem:[#allocation5 + $0x40] sm:$0xff] %vm5009, %v4922
      %5015 = vst.msk [vmem:[#allocation5 + $0x50] sm:$0xff] %vm5009, %v4924
      %5016 = vst.msk [vmem:[#allocation5 + $0x60] sm:$0xff] %vm5009, %v4926
      %5017 = vst.msk [vmem:[#allocation5 + $0x70] sm:$0xff] %vm5009, %v4928
      %5018 = vst.msk [vmem:[#allocation5 + $0x80] sm:$0xff] %vm5009, %v4930
      %5019 = vst.msk [vmem:[#allocation5 + $0x90] sm:$0xff] %vm5009, %v4932
      %5020 = vst.msk [vmem:[#allocation5 + $0xa0] sm:$0xff] %vm5009, %v4934
      %5021 = vst.msk [vmem:[#allocation5 + $0xb0] sm:$0xff] %vm5009, %v4936
      %5022 = vst.msk [vmem:[#allocation5 + $0xc0] sm:$0xff] %vm5009, %v4938
      %5023 = vst.msk [vmem:[#allocation5 + $0xd0] sm:$0xff] %vm5009, %v4940
      %5024 = vst.msk [vmem:[#allocation5 + $0xe0] sm:$0xff] %vm5009, %v4942
      %5025 = vst.msk [vmem:[#allocation5 + $0xf0] sm:$0xff] %vm5009, %v4944
      %5026 = vst.msk [vmem:[#allocation5 + $0x100] sm:$0xff] %vm5009, %v4946
      %5027 = vst.msk [vmem:[#allocation5 + $0x110] sm:$0xff] %vm5009, %v4948
      %5028 = vst.msk [vmem:[#allocation5 + $0x120] sm:$0xff] %vm5009, %v4950
      %5029 = vst.msk [vmem:[#allocation5 + $0x130] sm:$0xff] %vm5009, %v4952
      %5030 = vst.msk [vmem:[#allocation5 + $0x140] sm:$0xff] %vm5009, %v4954
      %5031 = vst.msk [vmem:[#allocation5 + $0x150] sm:$0xff] %vm5009, %v4956
      %5032 = vst.msk [vmem:[#allocation5 + $0x160] sm:$0xff] %vm5009, %v4958
      %5033 = vst.msk [vmem:[#allocation5 + $0x170] sm:$0xff] %vm5009, %v4960
      %5034 = vst.msk [vmem:[#allocation5 + $0x180] sm:$0xff] %vm5009, %v4962
      %5035 = vst.msk [vmem:[#allocation5 + $0x190] sm:$0xff] %vm5009, %v4964
      %5036 = vst.msk [vmem:[#allocation5 + $0x1a0] sm:$0xff] %vm5009, %v4966
      %5037 = vst.msk [vmem:[#allocation5 + $0x1b0] sm:$0xff] %vm5009, %v4968
      %5038 = vst.msk [vmem:[#allocation5 + $0x1c0] sm:$0xff] %vm5009, %v4970
      %5039 = vst.msk [vmem:[#allocation5 + $0x1d0] sm:$0xff] %vm5009, %v4972
      %5040 = vst.msk [vmem:[#allocation5 + $0x1e0] sm:$0xff] %vm5009, %v4974
      %5041 = vst.msk [vmem:[#allocation5 + $0x1f0] sm:$0xff] %vm5009, %v4976
      %s5042 = scalar_lea.vmem [#allocation4], 48
      %v5043 = vld [vmem:[%s5042] sm:$0xff]
      %v5044 = vld [vmem:[%s5042 + $0x8] sm:$0xff]
      %v5045 = vld [vmem:[%s5042 + $0x18] sm:$0xff]
      %v5046 = vld [vmem:[%s5042 + $0x20] sm:$0xff]
      %v5047 = vld [vmem:[%s5042 + $0x30] sm:$0xff]
      %v5048 = vld [vmem:[%s5042 + $0x38] sm:$0xff]
      %v5049 = vld [vmem:[%s5042 + $0x48] sm:$0xff]
      %v5050 = vld [vmem:[%s5042 + $0x50] sm:$0xff]
      %v5051 = vld [vmem:[%s5042 + $0x60] sm:$0xff]
      %v5052 = vld [vmem:[%s5042 + $0x68] sm:$0xff]
      %v5053 = vld [vmem:[%s5042 + $0x78] sm:$0xff]
      %v5054 = vld [vmem:[%s5042 + $0x80] sm:$0xff]
      %v5055 = vld [vmem:[%s5042 + $0x90] sm:$0xff]
      %v5056 = vld [vmem:[%s5042 + $0x98] sm:$0xff]
      %v5057 = vld [vmem:[%s5042 + $0xa8] sm:$0xff]
      %v5058 = vld [vmem:[%s5042 + $0xb0] sm:$0xff]
      %v5059 = vld [vmem:[%s5042 + $0xc0] sm:$0xff]
      %v5060 = vld [vmem:[%s5042 + $0xc8] sm:$0xff]
      %v5061 = vld [vmem:[%s5042 + $0xd8] sm:$0xff]
      %v5062 = vld [vmem:[%s5042 + $0xe0] sm:$0xff]
      %v5063 = vld [vmem:[%s5042 + $0xf0] sm:$0xff]
      %v5064 = vld [vmem:[%s5042 + $0xf8] sm:$0xff]
      %v5065 = vld [vmem:[%s5042 + $0x108] sm:$0xff]
      %v5066 = vld [vmem:[%s5042 + $0x110] sm:$0xff]
      %v5067 = vld [vmem:[%s5042 + $0x120] sm:$0xff]
      %v5068 = vld [vmem:[%s5042 + $0x128] sm:$0xff]
      %v5069 = vld [vmem:[%s5042 + $0x138] sm:$0xff]
      %v5070 = vld [vmem:[%s5042 + $0x140] sm:$0xff]
      %v5071 = vld [vmem:[%s5042 + $0x150] sm:$0xff]
      %v5072 = vld [vmem:[%s5042 + $0x158] sm:$0xff]
      %v5073 = vld [vmem:[%s5042 + $0x168] sm:$0xff]
      %v5074 = vld [vmem:[%s5042 + $0x170] sm:$0xff]
      %5107 = vrot.lane.b32.xlu0 %v5043, 96
      %v5108 = vpop.permute.xlu0 %5107
      %5109 = vrot.lane.b32.xlu0 %v5044, 96
      %v5110 = vpop.permute.xlu0 %5109
      %5111 = vrot.lane.b32.xlu0 %v5045, 96
      %v5112 = vpop.permute.xlu0 %5111
      %5113 = vrot.lane.b32.xlu0 %v5046, 96
      %v5114 = vpop.permute.xlu0 %5113
      %5115 = vrot.lane.b32.xlu0 %v5047, 96
      %v5116 = vpop.permute.xlu0 %5115
      %5117 = vrot.lane.b32.xlu0 %v5048, 96
      %v5118 = vpop.permute.xlu0 %5117
      %5119 = vrot.lane.b32.xlu0 %v5049, 96
      %v5120 = vpop.permute.xlu0 %5119
      %5121 = vrot.lane.b32.xlu0 %v5050, 96
      %v5122 = vpop.permute.xlu0 %5121
      %5123 = vrot.lane.b32.xlu0 %v5051, 96
      %v5124 = vpop.permute.xlu0 %5123
      %5125 = vrot.lane.b32.xlu0 %v5052, 96
      %v5126 = vpop.permute.xlu0 %5125
      %5127 = vrot.lane.b32.xlu0 %v5053, 96
      %v5128 = vpop.permute.xlu0 %5127
      %5129 = vrot.lane.b32.xlu0 %v5054, 96
      %v5130 = vpop.permute.xlu0 %5129
      %5131 = vrot.lane.b32.xlu0 %v5055, 96
      %v5132 = vpop.permute.xlu0 %5131
      %5133 = vrot.lane.b32.xlu0 %v5056, 96
      %v5134 = vpop.permute.xlu0 %5133
      %5135 = vrot.lane.b32.xlu0 %v5057, 96
      %v5136 = vpop.permute.xlu0 %5135
      %5137 = vrot.lane.b32.xlu0 %v5058, 96
      %v5138 = vpop.permute.xlu0 %5137
      %5139 = vrot.lane.b32.xlu0 %v5059, 96
      %v5140 = vpop.permute.xlu0 %5139
      %5141 = vrot.lane.b32.xlu0 %v5060, 96
      %v5142 = vpop.permute.xlu0 %5141
      %5143 = vrot.lane.b32.xlu0 %v5061, 96
      %v5144 = vpop.permute.xlu0 %5143
      %5145 = vrot.lane.b32.xlu0 %v5062, 96
      %v5146 = vpop.permute.xlu0 %5145
      %5147 = vrot.lane.b32.xlu0 %v5063, 96
      %v5148 = vpop.permute.xlu0 %5147
      %5149 = vrot.lane.b32.xlu0 %v5064, 96
      %v5150 = vpop.permute.xlu0 %5149
      %5151 = vrot.lane.b32.xlu0 %v5065, 96
      %v5152 = vpop.permute.xlu0 %5151
      %5153 = vrot.lane.b32.xlu0 %v5066, 96
      %v5154 = vpop.permute.xlu0 %5153
      %5155 = vrot.lane.b32.xlu0 %v5067, 96
      %v5156 = vpop.permute.xlu0 %5155
      %5157 = vrot.lane.b32.xlu0 %v5068, 96
      %v5158 = vpop.permute.xlu0 %5157
      %5159 = vrot.lane.b32.xlu0 %v5069, 96
      %v5160 = vpop.permute.xlu0 %5159
      %5161 = vrot.lane.b32.xlu0 %v5070, 96
      %v5162 = vpop.permute.xlu0 %5161
      %5163 = vrot.lane.b32.xlu0 %v5071, 96
      %v5164 = vpop.permute.xlu0 %5163
      %5165 = vrot.lane.b32.xlu0 %v5072, 96
      %v5166 = vpop.permute.xlu0 %5165
      %5167 = vrot.lane.b32.xlu0 %v5073, 96
      %v5168 = vpop.permute.xlu0 %5167
      %5169 = vrot.lane.b32.xlu0 %v5074, 96
      %v5170 = vpop.permute.xlu0 %5169
      %vm5203 = vcmask 917248
      %5204 = vst.msk [vmem:[#allocation5] sm:$0xff] %vm5203, %v5108
      %5205 = vst.msk [vmem:[#allocation5 + $0x10] sm:$0xff] %vm5203, %v5110
      %5206 = vst.msk [vmem:[#allocation5 + $0x20] sm:$0xff] %vm5203, %v5112
      %5207 = vst.msk [vmem:[#allocation5 + $0x30] sm:$0xff] %vm5203, %v5114
      %5208 = vst.msk [vmem:[#allocation5 + $0x40] sm:$0xff] %vm5203, %v5116
      %5209 = vst.msk [vmem:[#allocation5 + $0x50] sm:$0xff] %vm5203, %v5118
      %5210 = vst.msk [vmem:[#allocation5 + $0x60] sm:$0xff] %vm5203, %v5120
      %5211 = vst.msk [vmem:[#allocation5 + $0x70] sm:$0xff] %vm5203, %v5122
      %5212 = vst.msk [vmem:[#allocation5 + $0x80] sm:$0xff] %vm5203, %v5124
      %5213 = vst.msk [vmem:[#allocation5 + $0x90] sm:$0xff] %vm5203, %v5126
      %5214 = vst.msk [vmem:[#allocation5 + $0xa0] sm:$0xff] %vm5203, %v5128
      %5215 = vst.msk [vmem:[#allocation5 + $0xb0] sm:$0xff] %vm5203, %v5130
      %5216 = vst.msk [vmem:[#allocation5 + $0xc0] sm:$0xff] %vm5203, %v5132
      %5217 = vst.msk [vmem:[#allocation5 + $0xd0] sm:$0xff] %vm5203, %v5134
      %5218 = vst.msk [vmem:[#allocation5 + $0xe0] sm:$0xff] %vm5203, %v5136
      %5219 = vst.msk [vmem:[#allocation5 + $0xf0] sm:$0xff] %vm5203, %v5138
      %5220 = vst.msk [vmem:[#allocation5 + $0x100] sm:$0xff] %vm5203, %v5140
      %5221 = vst.msk [vmem:[#allocation5 + $0x110] sm:$0xff] %vm5203, %v5142
      %5222 = vst.msk [vmem:[#allocation5 + $0x120] sm:$0xff] %vm5203, %v5144
      %5223 = vst.msk [vmem:[#allocation5 + $0x130] sm:$0xff] %vm5203, %v5146
      %5224 = vst.msk [vmem:[#allocation5 + $0x140] sm:$0xff] %vm5203, %v5148
      %5225 = vst.msk [vmem:[#allocation5 + $0x150] sm:$0xff] %vm5203, %v5150
      %5226 = vst.msk [vmem:[#allocation5 + $0x160] sm:$0xff] %vm5203, %v5152
      %5227 = vst.msk [vmem:[#allocation5 + $0x170] sm:$0xff] %vm5203, %v5154
      %5228 = vst.msk [vmem:[#allocation5 + $0x180] sm:$0xff] %vm5203, %v5156
      %5229 = vst.msk [vmem:[#allocation5 + $0x190] sm:$0xff] %vm5203, %v5158
      %5230 = vst.msk [vmem:[#allocation5 + $0x1a0] sm:$0xff] %vm5203, %v5160
      %5231 = vst.msk [vmem:[#allocation5 + $0x1b0] sm:$0xff] %vm5203, %v5162
      %5232 = vst.msk [vmem:[#allocation5 + $0x1c0] sm:$0xff] %vm5203, %v5164
      %5233 = vst.msk [vmem:[#allocation5 + $0x1d0] sm:$0xff] %vm5203, %v5166
      %5234 = vst.msk [vmem:[#allocation5 + $0x1e0] sm:$0xff] %vm5203, %v5168
      %5235 = vst.msk [vmem:[#allocation5 + $0x1f0] sm:$0xff] %vm5203, %v5170
      %v5236 = vld [vmem:[%s5042 + $0x1] sm:$0xff]
      %v5237 = vld [vmem:[%s5042 + $0x9] sm:$0xff]
      %v5238 = vld [vmem:[%s5042 + $0x19] sm:$0xff]
      %v5239 = vld [vmem:[%s5042 + $0x21] sm:$0xff]
      %v5240 = vld [vmem:[%s5042 + $0x31] sm:$0xff]
      %v5241 = vld [vmem:[%s5042 + $0x39] sm:$0xff]
      %v5242 = vld [vmem:[%s5042 + $0x49] sm:$0xff]
      %v5243 = vld [vmem:[%s5042 + $0x51] sm:$0xff]
      %v5244 = vld [vmem:[%s5042 + $0x61] sm:$0xff]
      %v5245 = vld [vmem:[%s5042 + $0x69] sm:$0xff]
      %v5246 = vld [vmem:[%s5042 + $0x79] sm:$0xff]
      %v5247 = vld [vmem:[%s5042 + $0x81] sm:$0xff]
      %v5248 = vld [vmem:[%s5042 + $0x91] sm:$0xff]
      %v5249 = vld [vmem:[%s5042 + $0x99] sm:$0xff]
      %v5250 = vld [vmem:[%s5042 + $0xa9] sm:$0xff]
      %v5251 = vld [vmem:[%s5042 + $0xb1] sm:$0xff]
      %v5252 = vld [vmem:[%s5042 + $0xc1] sm:$0xff]
      %v5253 = vld [vmem:[%s5042 + $0xc9] sm:$0xff]
      %v5254 = vld [vmem:[%s5042 + $0xd9] sm:$0xff]
      %v5255 = vld [vmem:[%s5042 + $0xe1] sm:$0xff]
      %v5256 = vld [vmem:[%s5042 + $0xf1] sm:$0xff]
      %v5257 = vld [vmem:[%s5042 + $0xf9] sm:$0xff]
      %v5258 = vld [vmem:[%s5042 + $0x109] sm:$0xff]
      %v5259 = vld [vmem:[%s5042 + $0x111] sm:$0xff]
      %v5260 = vld [vmem:[%s5042 + $0x121] sm:$0xff]
      %v5261 = vld [vmem:[%s5042 + $0x129] sm:$0xff]
      %v5262 = vld [vmem:[%s5042 + $0x139] sm:$0xff]
      %v5263 = vld [vmem:[%s5042 + $0x141] sm:$0xff]
      %v5264 = vld [vmem:[%s5042 + $0x151] sm:$0xff]
      %v5265 = vld [vmem:[%s5042 + $0x159] sm:$0xff]
      %v5266 = vld [vmem:[%s5042 + $0x169] sm:$0xff]
      %v5267 = vld [vmem:[%s5042 + $0x171] sm:$0xff]
      %5300 = vrot.lane.b32.xlu0 %v5236, 112
      %v5301 = vpop.permute.xlu0 %5300
      %5302 = vrot.lane.b32.xlu0 %v5237, 112
      %v5303 = vpop.permute.xlu0 %5302
      %5304 = vrot.lane.b32.xlu0 %v5238, 112
      %v5305 = vpop.permute.xlu0 %5304
      %5306 = vrot.lane.b32.xlu0 %v5239, 112
      %v5307 = vpop.permute.xlu0 %5306
      %5308 = vrot.lane.b32.xlu0 %v5240, 112
      %v5309 = vpop.permute.xlu0 %5308
      %5310 = vrot.lane.b32.xlu0 %v5241, 112
      %v5311 = vpop.permute.xlu0 %5310
      %5312 = vrot.lane.b32.xlu0 %v5242, 112
      %v5313 = vpop.permute.xlu0 %5312
      %5314 = vrot.lane.b32.xlu0 %v5243, 112
      %v5315 = vpop.permute.xlu0 %5314
      %5316 = vrot.lane.b32.xlu0 %v5244, 112
      %v5317 = vpop.permute.xlu0 %5316
      %5318 = vrot.lane.b32.xlu0 %v5245, 112
      %v5319 = vpop.permute.xlu0 %5318
      %5320 = vrot.lane.b32.xlu0 %v5246, 112
      %v5321 = vpop.permute.xlu0 %5320
      %5322 = vrot.lane.b32.xlu0 %v5247, 112
      %v5323 = vpop.permute.xlu0 %5322
      %5324 = vrot.lane.b32.xlu0 %v5248, 112
      %v5325 = vpop.permute.xlu0 %5324
      %5326 = vrot.lane.b32.xlu0 %v5249, 112
      %v5327 = vpop.permute.xlu0 %5326
      %5328 = vrot.lane.b32.xlu0 %v5250, 112
      %v5329 = vpop.permute.xlu0 %5328
      %5330 = vrot.lane.b32.xlu0 %v5251, 112
      %v5331 = vpop.permute.xlu0 %5330
      %5332 = vrot.lane.b32.xlu0 %v5252, 112
      %v5333 = vpop.permute.xlu0 %5332
      %5334 = vrot.lane.b32.xlu0 %v5253, 112
      %v5335 = vpop.permute.xlu0 %5334
      %5336 = vrot.lane.b32.xlu0 %v5254, 112
      %v5337 = vpop.permute.xlu0 %5336
      %5338 = vrot.lane.b32.xlu0 %v5255, 112
      %v5339 = vpop.permute.xlu0 %5338
      %5340 = vrot.lane.b32.xlu0 %v5256, 112
      %v5341 = vpop.permute.xlu0 %5340
      %5342 = vrot.lane.b32.xlu0 %v5257, 112
      %v5343 = vpop.permute.xlu0 %5342
      %5344 = vrot.lane.b32.xlu0 %v5258, 112
      %v5345 = vpop.permute.xlu0 %5344
      %5346 = vrot.lane.b32.xlu0 %v5259, 112
      %v5347 = vpop.permute.xlu0 %5346
      %5348 = vrot.lane.b32.xlu0 %v5260, 112
      %v5349 = vpop.permute.xlu0 %5348
      %5350 = vrot.lane.b32.xlu0 %v5261, 112
      %v5351 = vpop.permute.xlu0 %5350
      %5352 = vrot.lane.b32.xlu0 %v5262, 112
      %v5353 = vpop.permute.xlu0 %5352
      %5354 = vrot.lane.b32.xlu0 %v5263, 112
      %v5355 = vpop.permute.xlu0 %5354
      %5356 = vrot.lane.b32.xlu0 %v5264, 112
      %v5357 = vpop.permute.xlu0 %5356
      %5358 = vrot.lane.b32.xlu0 %v5265, 112
      %v5359 = vpop.permute.xlu0 %5358
      %5360 = vrot.lane.b32.xlu0 %v5266, 112
      %v5361 = vpop.permute.xlu0 %5360
      %5362 = vrot.lane.b32.xlu0 %v5267, 112
      %v5363 = vpop.permute.xlu0 %5362
      %vm5396 = vcmask 1048448
      %5397 = vst.msk [vmem:[#allocation5] sm:$0xff] %vm5396, %v5301
      %5398 = vst.msk [vmem:[#allocation5 + $0x10] sm:$0xff] %vm5396, %v5303
      %5399 = vst.msk [vmem:[#allocation5 + $0x20] sm:$0xff] %vm5396, %v5305
      %5400 = vst.msk [vmem:[#allocation5 + $0x30] sm:$0xff] %vm5396, %v5307
      %5401 = vst.msk [vmem:[#allocation5 + $0x40] sm:$0xff] %vm5396, %v5309
      %5402 = vst.msk [vmem:[#allocation5 + $0x50] sm:$0xff] %vm5396, %v5311
      %5403 = vst.msk [vmem:[#allocation5 + $0x60] sm:$0xff] %vm5396, %v5313
      %5404 = vst.msk [vmem:[#allocation5 + $0x70] sm:$0xff] %vm5396, %v5315
      %5405 = vst.msk [vmem:[#allocation5 + $0x80] sm:$0xff] %vm5396, %v5317
      %5406 = vst.msk [vmem:[#allocation5 + $0x90] sm:$0xff] %vm5396, %v5319
      %5407 = vst.msk [vmem:[#allocation5 + $0xa0] sm:$0xff] %vm5396, %v5321
      %5408 = vst.msk [vmem:[#allocation5 + $0xb0] sm:$0xff] %vm5396, %v5323
      %5409 = vst.msk [vmem:[#allocation5 + $0xc0] sm:$0xff] %vm5396, %v5325
      %5410 = vst.msk [vmem:[#allocation5 + $0xd0] sm:$0xff] %vm5396, %v5327
      %5411 = vst.msk [vmem:[#allocation5 + $0xe0] sm:$0xff] %vm5396, %v5329
      %5412 = vst.msk [vmem:[#allocation5 + $0xf0] sm:$0xff] %vm5396, %v5331
      %5413 = vst.msk [vmem:[#allocation5 + $0x100] sm:$0xff] %vm5396, %v5333
      %5414 = vst.msk [vmem:[#allocation5 + $0x110] sm:$0xff] %vm5396, %v5335
      %5415 = vst.msk [vmem:[#allocation5 + $0x120] sm:$0xff] %vm5396, %v5337
      %5416 = vst.msk [vmem:[#allocation5 + $0x130] sm:$0xff] %vm5396, %v5339
      %5417 = vst.msk [vmem:[#allocation5 + $0x140] sm:$0xff] %vm5396, %v5341
      %5418 = vst.msk [vmem:[#allocation5 + $0x150] sm:$0xff] %vm5396, %v5343
      %5419 = vst.msk [vmem:[#allocation5 + $0x160] sm:$0xff] %vm5396, %v5345
      %5420 = vst.msk [vmem:[#allocation5 + $0x170] sm:$0xff] %vm5396, %v5347
      %5421 = vst.msk [vmem:[#allocation5 + $0x180] sm:$0xff] %vm5396, %v5349
      %5422 = vst.msk [vmem:[#allocation5 + $0x190] sm:$0xff] %vm5396, %v5351
      %5423 = vst.msk [vmem:[#allocation5 + $0x1a0] sm:$0xff] %vm5396, %v5353
      %5424 = vst.msk [vmem:[#allocation5 + $0x1b0] sm:$0xff] %vm5396, %v5355
      %5425 = vst.msk [vmem:[#allocation5 + $0x1c0] sm:$0xff] %vm5396, %v5357
      %5426 = vst.msk [vmem:[#allocation5 + $0x1d0] sm:$0xff] %vm5396, %v5359
      %5427 = vst.msk [vmem:[#allocation5 + $0x1e0] sm:$0xff] %vm5396, %v5361
      %5428 = vst.msk [vmem:[#allocation5 + $0x1f0] sm:$0xff] %vm5396, %v5363
      %v5429 = vld [vmem:[%s5042 + $0x2] sm:$0xff]
      %v5430 = vld [vmem:[%s5042 + $0xa] sm:$0xff]
      %v5431 = vld [vmem:[%s5042 + $0x1a] sm:$0xff]
      %v5432 = vld [vmem:[%s5042 + $0x22] sm:$0xff]
      %v5433 = vld [vmem:[%s5042 + $0x32] sm:$0xff]
      %v5434 = vld [vmem:[%s5042 + $0x3a] sm:$0xff]
      %v5435 = vld [vmem:[%s5042 + $0x4a] sm:$0xff]
      %v5436 = vld [vmem:[%s5042 + $0x52] sm:$0xff]
      %v5437 = vld [vmem:[%s5042 + $0x62] sm:$0xff]
      %v5438 = vld [vmem:[%s5042 + $0x6a] sm:$0xff]
      %v5439 = vld [vmem:[%s5042 + $0x7a] sm:$0xff]
      %v5440 = vld [vmem:[%s5042 + $0x82] sm:$0xff]
      %v5441 = vld [vmem:[%s5042 + $0x92] sm:$0xff]
      %v5442 = vld [vmem:[%s5042 + $0x9a] sm:$0xff]
      %v5443 = vld [vmem:[%s5042 + $0xaa] sm:$0xff]
      %v5444 = vld [vmem:[%s5042 + $0xb2] sm:$0xff]
      %v5445 = vld [vmem:[%s5042 + $0xc2] sm:$0xff]
      %v5446 = vld [vmem:[%s5042 + $0xca] sm:$0xff]
      %v5447 = vld [vmem:[%s5042 + $0xda] sm:$0xff]
      %v5448 = vld [vmem:[%s5042 + $0xe2] sm:$0xff]
      %v5449 = vld [vmem:[%s5042 + $0xf2] sm:$0xff]
      %v5450 = vld [vmem:[%s5042 + $0xfa] sm:$0xff]
      %v5451 = vld [vmem:[%s5042 + $0x10a] sm:$0xff]
      %v5452 = vld [vmem:[%s5042 + $0x112] sm:$0xff]
      %v5453 = vld [vmem:[%s5042 + $0x122] sm:$0xff]
      %v5454 = vld [vmem:[%s5042 + $0x12a] sm:$0xff]
      %v5455 = vld [vmem:[%s5042 + $0x13a] sm:$0xff]
      %v5456 = vld [vmem:[%s5042 + $0x142] sm:$0xff]
      %v5457 = vld [vmem:[%s5042 + $0x152] sm:$0xff]
      %v5458 = vld [vmem:[%s5042 + $0x15a] sm:$0xff]
      %v5459 = vld [vmem:[%s5042 + $0x16a] sm:$0xff]
      %v5460 = vld [vmem:[%s5042 + $0x172] sm:$0xff]
      %5461 = vst.msk [vmem:[#allocation5 + $0x8] sm:$0xff] %vm3972, %v5429
      %5462 = vst.msk [vmem:[#allocation5 + $0x18] sm:$0xff] %vm3972, %v5430
      %5463 = vst.msk [vmem:[#allocation5 + $0x28] sm:$0xff] %vm3972, %v5431
      %5464 = vst.msk [vmem:[#allocation5 + $0x38] sm:$0xff] %vm3972, %v5432
      %5465 = vst.msk [vmem:[#allocation5 + $0x48] sm:$0xff] %vm3972, %v5433
      %5466 = vst.msk [vmem:[#allocation5 + $0x58] sm:$0xff] %vm3972, %v5434
      %5467 = vst.msk [vmem:[#allocation5 + $0x68] sm:$0xff] %vm3972, %v5435
      %5468 = vst.msk [vmem:[#allocation5 + $0x78] sm:$0xff] %vm3972, %v5436
      %5469 = vst.msk [vmem:[#allocation5 + $0x88] sm:$0xff] %vm3972, %v5437
      %5470 = vst.msk [vmem:[#allocation5 + $0x98] sm:$0xff] %vm3972, %v5438
      %5471 = vst.msk [vmem:[#allocation5 + $0xa8] sm:$0xff] %vm3972, %v5439
      %5472 = vst.msk [vmem:[#allocation5 + $0xb8] sm:$0xff] %vm3972, %v5440
      %5473 = vst.msk [vmem:[#allocation5 + $0xc8] sm:$0xff] %vm3972, %v5441
      %5474 = vst.msk [vmem:[#allocation5 + $0xd8] sm:$0xff] %vm3972, %v5442
      %5475 = vst.msk [vmem:[#allocation5 + $0xe8] sm:$0xff] %vm3972, %v5443
      %5476 = vst.msk [vmem:[#allocation5 + $0xf8] sm:$0xff] %vm3972, %v5444
      %5477 = vst.msk [vmem:[#allocation5 + $0x108] sm:$0xff] %vm3972, %v5445
      %5478 = vst.msk [vmem:[#allocation5 + $0x118] sm:$0xff] %vm3972, %v5446
      %5479 = vst.msk [vmem:[#allocation5 + $0x128] sm:$0xff] %vm3972, %v5447
      %5480 = vst.msk [vmem:[#allocation5 + $0x138] sm:$0xff] %vm3972, %v5448
      %5481 = vst.msk [vmem:[#allocation5 + $0x148] sm:$0xff] %vm3972, %v5449
      %5482 = vst.msk [vmem:[#allocation5 + $0x158] sm:$0xff] %vm3972, %v5450
      %5483 = vst.msk [vmem:[#allocation5 + $0x168] sm:$0xff] %vm3972, %v5451
      %5484 = vst.msk [vmem:[#allocation5 + $0x178] sm:$0xff] %vm3972, %v5452
      %5485 = vst.msk [vmem:[#allocation5 + $0x188] sm:$0xff] %vm3972, %v5453
      %5486 = vst.msk [vmem:[#allocation5 + $0x198] sm:$0xff] %vm3972, %v5454
      %5487 = vst.msk [vmem:[#allocation5 + $0x1a8] sm:$0xff] %vm3972, %v5455
      %5488 = vst.msk [vmem:[#allocation5 + $0x1b8] sm:$0xff] %vm3972, %v5456
      %5489 = vst.msk [vmem:[#allocation5 + $0x1c8] sm:$0xff] %vm3972, %v5457
      %5490 = vst.msk [vmem:[#allocation5 + $0x1d8] sm:$0xff] %vm3972, %v5458
      %5491 = vst.msk [vmem:[#allocation5 + $0x1e8] sm:$0xff] %vm3972, %v5459
      %5492 = vst.msk [vmem:[#allocation5 + $0x1f8] sm:$0xff] %vm3972, %v5460
      %v5493 = vld [vmem:[#allocation5] sm:$0xff]
      %v5494 = vld [vmem:[#allocation5 + $0x8] sm:$0xff]
      %v5495 = vld [vmem:[#allocation5 + $0x10] sm:$0xff]
      %v5496 = vld [vmem:[#allocation5 + $0x18] sm:$0xff]
      %v5497 = vld [vmem:[#allocation5 + $0x20] sm:$0xff]
      %v5498 = vld [vmem:[#allocation5 + $0x28] sm:$0xff]
      %v5499 = vld [vmem:[#allocation5 + $0x30] sm:$0xff]
      %v5500 = vld [vmem:[#allocation5 + $0x38] sm:$0xff]
      %v5501 = vld [vmem:[#allocation5 + $0x40] sm:$0xff]
      %v5502 = vld [vmem:[#allocation5 + $0x48] sm:$0xff]
      %v5503 = vld [vmem:[#allocation5 + $0x50] sm:$0xff]
      %v5504 = vld [vmem:[#allocation5 + $0x58] sm:$0xff]
      %v5505 = vld [vmem:[#allocation5 + $0x60] sm:$0xff]
      %v5506 = vld [vmem:[#allocation5 + $0x68] sm:$0xff]
      %v5507 = vld [vmem:[#allocation5 + $0x70] sm:$0xff]
      %v5508 = vld [vmem:[#allocation5 + $0x78] sm:$0xff]
      %v5509 = vld [vmem:[#allocation5 + $0x80] sm:$0xff]
      %v5510 = vld [vmem:[#allocation5 + $0x88] sm:$0xff]
      %v5511 = vld [vmem:[#allocation5 + $0x90] sm:$0xff]
      %v5512 = vld [vmem:[#allocation5 + $0x98] sm:$0xff]
      %v5513 = vld [vmem:[#allocation5 + $0xa0] sm:$0xff]
      %v5514 = vld [vmem:[#allocation5 + $0xa8] sm:$0xff]
      %v5515 = vld [vmem:[#allocation5 + $0xb0] sm:$0xff]
      %v5516 = vld [vmem:[#allocation5 + $0xb8] sm:$0xff]
      %v5517 = vld [vmem:[#allocation5 + $0xc0] sm:$0xff]
      %v5518 = vld [vmem:[#allocation5 + $0xc8] sm:$0xff]
      %v5519 = vld [vmem:[#allocation5 + $0xd0] sm:$0xff]
      %v5520 = vld [vmem:[#allocation5 + $0xd8] sm:$0xff]
      %v5521 = vld [vmem:[#allocation5 + $0xe0] sm:$0xff]
      %v5522 = vld [vmem:[#allocation5 + $0xe8] sm:$0xff]
      %v5523 = vld [vmem:[#allocation5 + $0xf0] sm:$0xff]
      %v5524 = vld [vmem:[#allocation5 + $0xf8] sm:$0xff]
      %v5525 = vld [vmem:[#allocation5 + $0x100] sm:$0xff]
      %v5526 = vld [vmem:[#allocation5 + $0x108] sm:$0xff]
      %v5527 = vld [vmem:[#allocation5 + $0x110] sm:$0xff]
      %v5528 = vld [vmem:[#allocation5 + $0x118] sm:$0xff]
      %v5529 = vld [vmem:[#allocation5 + $0x120] sm:$0xff]
      %v5530 = vld [vmem:[#allocation5 + $0x128] sm:$0xff]
      %v5531 = vld [vmem:[#allocation5 + $0x130] sm:$0xff]
      %v5532 = vld [vmem:[#allocation5 + $0x138] sm:$0xff]
      %v5533 = vld [vmem:[#allocation5 + $0x140] sm:$0xff]
      %v5534 = vld [vmem:[#allocation5 + $0x148] sm:$0xff]
      %v5535 = vld [vmem:[#allocation5 + $0x150] sm:$0xff]
      %v5536 = vld [vmem:[#allocation5 + $0x158] sm:$0xff]
      %v5537 = vld [vmem:[#allocation5 + $0x160] sm:$0xff]
      %v5538 = vld [vmem:[#allocation5 + $0x168] sm:$0xff]
      %v5539 = vld [vmem:[#allocation5 + $0x170] sm:$0xff]
      %v5540 = vld [vmem:[#allocation5 + $0x178] sm:$0xff]
      %v5541 = vld [vmem:[#allocation5 + $0x180] sm:$0xff]
      %v5542 = vld [vmem:[#allocation5 + $0x188] sm:$0xff]
      %v5543 = vld [vmem:[#allocation5 + $0x190] sm:$0xff]
      %v5544 = vld [vmem:[#allocation5 + $0x198] sm:$0xff]
      %v5545 = vld [vmem:[#allocation5 + $0x1a0] sm:$0xff]
      %v5546 = vld [vmem:[#allocation5 + $0x1a8] sm:$0xff]
      %v5547 = vld [vmem:[#allocation5 + $0x1b0] sm:$0xff]
      %v5548 = vld [vmem:[#allocation5 + $0x1b8] sm:$0xff]
      %v5549 = vld [vmem:[#allocation5 + $0x1c0] sm:$0xff]
      %v5550 = vld [vmem:[#allocation5 + $0x1c8] sm:$0xff]
      %v5551 = vld [vmem:[#allocation5 + $0x1d0] sm:$0xff]
      %v5552 = vld [vmem:[#allocation5 + $0x1d8] sm:$0xff]
      %v5553 = vld [vmem:[#allocation5 + $0x1e0] sm:$0xff]
      %v5554 = vld [vmem:[#allocation5 + $0x1e8] sm:$0xff]
      %v5555 = vld [vmem:[#allocation5 + $0x1f0] sm:$0xff]
      %v5556 = vld [vmem:[#allocation5 + $0x1f8] sm:$0xff]
      %v5557 = vld [vmem:[%s9] sm:$0xff]
      %v5558 = vld [vmem:[%s9 + $0x8] sm:$0xff]
      %v5559 = vld [vmem:[%s9 + $0x10] sm:$0xff]
      %v5560 = vld [vmem:[%s9 + $0x18] sm:$0xff]
      %v5561 = vld [vmem:[%s9 + $0x20] sm:$0xff]
      %v5562 = vld [vmem:[%s9 + $0x28] sm:$0xff]
      %v5563 = vld [vmem:[%s9 + $0x30] sm:$0xff]
      %v5564 = vld [vmem:[%s9 + $0x38] sm:$0xff]
      %v5565 = vld [vmem:[%s9 + $0x40] sm:$0xff]
      %v5566 = vld [vmem:[%s9 + $0x48] sm:$0xff]
      %v5567 = vld [vmem:[%s9 + $0x50] sm:$0xff]
      %v5568 = vld [vmem:[%s9 + $0x58] sm:$0xff]
      %v5569 = vld [vmem:[%s9 + $0x60] sm:$0xff]
      %v5570 = vld [vmem:[%s9 + $0x68] sm:$0xff]
      %v5571 = vld [vmem:[%s9 + $0x70] sm:$0xff]
      %v5572 = vld [vmem:[%s9 + $0x78] sm:$0xff]
      %v5573 = vld [vmem:[%s9 + $0x80] sm:$0xff]
      %v5574 = vld [vmem:[%s9 + $0x88] sm:$0xff]
      %v5575 = vld [vmem:[%s10] sm:$0x1]
      %v5577 = vlaneseq
      %v5578 = vshrl.u32 %v5577, 7
      %v5579 = vsub.s32 0, %v5578
      %v5580 = vrot.slane %v5575, %v5579
      %v5583 = vsel %vm3972, %v5494, 0
      %v5586 = vsel %vm3972, %v5496, 0
      %v5589 = vsel %vm3972, %v5498, 0
      %v5592 = vsel %vm3972, %v5500, 0
      %v5595 = vsel %vm3972, %v5502, 0
      %v5598 = vsel %vm3972, %v5504, 0
      %v5601 = vsel %vm3972, %v5506, 0
      %v5604 = vsel %vm3972, %v5508, 0
      %v5607 = vsel %vm3972, %v5510, 0
      %v5610 = vsel %vm3972, %v5512, 0
      %v5613 = vsel %vm3972, %v5514, 0
      %v5616 = vsel %vm3972, %v5516, 0
      %v5619 = vsel %vm3972, %v5518, 0
      %v5622 = vsel %vm3972, %v5520, 0
      %v5625 = vsel %vm3972, %v5522, 0
      %v5628 = vsel %vm3972, %v5524, 0
      %v5631 = vsel %vm3972, %v5526, 0
      %v5634 = vsel %vm3972, %v5528, 0
      %v5637 = vsel %vm3972, %v5530, 0
      %v5640 = vsel %vm3972, %v5532, 0
      %v5643 = vsel %vm3972, %v5534, 0
      %v5646 = vsel %vm3972, %v5536, 0
      %v5649 = vsel %vm3972, %v5538, 0
      %v5652 = vsel %vm3972, %v5540, 0
      %v5655 = vsel %vm3972, %v5542, 0
      %v5658 = vsel %vm3972, %v5544, 0
      %v5661 = vsel %vm3972, %v5546, 0
      %v5664 = vsel %vm3972, %v5548, 0
      %v5667 = vsel %vm3972, %v5550, 0
      %v5670 = vsel %vm3972, %v5552, 0
      %v5673 = vsel %vm3972, %v5554, 0
      %v5676 = vsel %vm3972, %v5556, 0
      %5678 = vmatprep.subr.mxu0 0.0
      %5679 = vmatpush1.msra.mxu0 %v5557
      %5680 = vmatprep.subr.mxu0 0.0
      %5681 = vmatpush1.msra.mxu0 %v5558
      %5682 = vmatprep.subr.mxu0 0.0
      %5683 = vmatpush1.msra.mxu0 %v5559
      %5684 = vmatprep.subr.mxu0 0.0
      %5685 = vmatpush1.msra.mxu0 %v5560
      %5686 = vmatprep.subr.mxu0 0.0
      %5687 = vmatpush1.msra.mxu0 %v5561
      %5688 = vmatprep.subr.mxu0 0.0
      %5689 = vmatpush1.msra.mxu0 %v5562
      %5690 = vmatprep.subr.mxu0 0.0
      %5691 = vmatpush1.msra.mxu0 %v5563
      %5692 = vmatprep.subr.mxu0 0.0
      %5693 = vmatpush1.msra.mxu0 %v5564
      %5694 = vmatprep.subr.mxu0 0.0
      %5695 = vmatpush1.msra.mxu0 %v5565
      %5696 = vmatprep.subr.mxu0 0.0
      %5697 = vmatpush1.msra.mxu0 %v5566
      %5698 = vmatprep.subr.mxu0 0.0
      %5699 = vmatpush1.msra.mxu0 %v5567
      %5700 = vmatprep.subr.mxu0 0.0
      %5701 = vmatpush1.msra.mxu0 %v5568
      %5702 = vmatprep.subr.mxu0 0.0
      %5703 = vmatpush1.msra.mxu0 %v5569
      %5704 = vmatprep.subr.mxu0 0.0
      %5705 = vmatpush1.msra.mxu0 %v5570
      %5706 = vmatprep.subr.mxu0 0.0
      %5707 = vmatpush1.msra.mxu0 %v5571
      %5708 = vmatprep.subr.mxu0 0.0
      %5709 = vmatpush1.msra.mxu0 %v5572
      %5710 = vmatprep.subr.mxu0 0.0
      %5711 = vmatpush1.msra.mxu0 %v5573
      %5712 = vmatprep.subr.mxu0 0.0
      %5713 = vmatpush1.msra.mxu0 %v5574
      %5714 = vmatprep.subr.mxu0 0.0
      %5715 = vmatpush1.msra.mxu0 0.0
      %5716 = vmatprep.subr.mxu0 0.0
      %5717 = vmatpush1.msra.mxu0 0.0
      %5718 = vmatprep.subr.mxu0 0.0
      %5719 = vmatpush1.msra.mxu0 0.0
      %5720 = vmatprep.subr.mxu0 0.0
      %5721 = vmatpush1.msra.mxu0 0.0
      %5722 = vmatprep.subr.mxu0 0.0
      %5723 = vmatpush1.msra.mxu0 0.0
      %5724 = vmatprep.subr.mxu0 0.0
      %5725 = vmatpush1.msra.mxu0 0.0
      %5726 = vmatprep.subr.mxu0 0.0
      %5727 = vmatpush1.msra.mxu0 0.0
      %5728 = vmatprep.subr.mxu0 0.0
      %5729 = vmatpush1.msra.mxu0 0.0
      %5730 = vmatprep.subr.mxu0 0.0
      %5731 = vmatpush1.msra.mxu0 0.0
      %5732 = vmatprep.subr.mxu0 0.0
      %5733 = vmatpush1.msra.mxu0 0.0
      %5734 = vmatprep.subr.mxu0 0.0
      %5735 = vmatpush1.msra.mxu0 0.0
      %5736 = vmatprep.subr.mxu0 0.0
      %5737 = vmatpush1.msra.mxu0 0.0
      %5738 = vmatprep.subr.mxu0 0.0
      %5739 = vmatpush1.msra.mxu0 0.0
      %5740 = vmatprep.subr.mxu0 0.0
      %5741 = vmatpush1.msra.mxu0 0.0
      %5742 = vmatprep.mubr.f32.mxu0 %v5583
      %5743 = vmatmul.mubr.f32.gmra.mrb[0].mxu0 %v5493
      %v5744 = vpop.f32.mrb[0].mxu0
      %v5745 = vadd.f32 %v5580, %v5744
      %v5746 = vpop.f32.mrb[0].mxu0
      %5747 = vmatprep.mubr.f32.mxu0 %v5586
      %5748 = vmatmul.mubr.f32.gmra.mrb[0].mxu0 %v5495
      %v5749 = vpop.f32.mrb[0].mxu0
      %v5750 = vadd.f32 %v5580, %v5749
      %v5751 = vpop.f32.mrb[0].mxu0
      %5752 = vmatprep.mubr.f32.mxu0 %v5589
      %5753 = vmatmul.mubr.f32.gmra.mrb[0].mxu0 %v5497
      %v5754 = vpop.f32.mrb[0].mxu0
      %v5755 = vadd.f32 %v5580, %v5754
      %v5756 = vpop.f32.mrb[0].mxu0
      %5757 = vmatprep.mubr.f32.mxu0 %v5592
      %5758 = vmatmul.mubr.f32.gmra.mrb[0].mxu0 %v5499
      %v5759 = vpop.f32.mrb[0].mxu0
      %v5760 = vadd.f32 %v5580, %v5759
      %v5761 = vpop.f32.mrb[0].mxu0
      %5762 = vmatprep.mubr.f32.mxu0 %v5595
      %5763 = vmatmul.mubr.f32.gmra.mrb[0].mxu0 %v5501
      %v5764 = vpop.f32.mrb[0].mxu0
      %v5765 = vadd.f32 %v5580, %v5764
      %v5766 = vpop.f32.mrb[0].mxu0
      %5767 = vmatprep.mubr.f32.mxu0 %v5598
      %5768 = vmatmul.mubr.f32.gmra.mrb[0].mxu0 %v5503
      %v5769 = vpop.f32.mrb[0].mxu0
      %v5770 = vadd.f32 %v5580, %v5769
      %v5771 = vpop.f32.mrb[0].mxu0
      %5772 = vmatprep.mubr.f32.mxu0 %v5601
      %5773 = vmatmul.mubr.f32.gmra.mrb[0].mxu0 %v5505
      %v5774 = vpop.f32.mrb[0].mxu0
      %v5775 = vadd.f32 %v5580, %v5774
      %v5776 = vpop.f32.mrb[0].mxu0
      %5777 = vmatprep.mubr.f32.mxu0 %v5604
      %5778 = vmatmul.mubr.f32.gmra.mrb[0].mxu0 %v5507
      %v5779 = vpop.f32.mrb[0].mxu0
      %v5780 = vadd.f32 %v5580, %v5779
      %v5781 = vpop.f32.mrb[0].mxu0
      %5782 = vmatprep.mubr.f32.mxu0 %v5607
      %5783 = vmatmul.mubr.f32.gmra.mrb[0].mxu0 %v5509
      %v5784 = vpop.f32.mrb[0].mxu0
      %v5785 = vadd.f32 %v5580, %v5784
      %v5786 = vpop.f32.mrb[0].mxu0
      %5787 = vmatprep.mubr.f32.mxu0 %v5610
      %5788 = vmatmul.mubr.f32.gmra.mrb[0].mxu0 %v5511
      %v5789 = vpop.f32.mrb[0].mxu0
      %v5790 = vadd.f32 %v5580, %v5789
      %v5791 = vpop.f32.mrb[0].mxu0
      %5792 = vmatprep.mubr.f32.mxu0 %v5613
      %5793 = vmatmul.mubr.f32.gmra.mrb[0].mxu0 %v5513
      %v5794 = vpop.f32.mrb[0].mxu0
      %v5795 = vadd.f32 %v5580, %v5794
      %v5796 = vpop.f32.mrb[0].mxu0
      %5797 = vmatprep.mubr.f32.mxu0 %v5616
      %5798 = vmatmul.mubr.f32.gmra.mrb[0].mxu0 %v5515
      %v5799 = vpop.f32.mrb[0].mxu0
      %v5800 = vadd.f32 %v5580, %v5799
      %v5801 = vpop.f32.mrb[0].mxu0
      %5802 = vmatprep.mubr.f32.mxu0 %v5619
      %5803 = vmatmul.mubr.f32.gmra.mrb[0].mxu0 %v5517
      %v5804 = vpop.f32.mrb[0].mxu0
      %v5805 = vadd.f32 %v5580, %v5804
      %v5806 = vpop.f32.mrb[0].mxu0
      %5807 = vmatprep.mubr.f32.mxu0 %v5622
      %5808 = vmatmul.mubr.f32.gmra.mrb[0].mxu0 %v5519
      %v5809 = vpop.f32.mrb[0].mxu0
      %v5810 = vadd.f32 %v5580, %v5809
      %v5811 = vpop.f32.mrb[0].mxu0
      %5812 = vmatprep.mubr.f32.mxu0 %v5625
      %5813 = vmatmul.mubr.f32.gmra.mrb[0].mxu0 %v5521
      %v5814 = vpop.f32.mrb[0].mxu0
      %v5815 = vadd.f32 %v5580, %v5814
      %v5816 = vpop.f32.mrb[0].mxu0
      %5817 = vmatprep.mubr.f32.mxu0 %v5628
      %5818 = vmatmul.mubr.f32.gmra.mrb[0].mxu0 %v5523
      %v5819 = vpop.f32.mrb[0].mxu0
      %v5820 = vadd.f32 %v5580, %v5819
      %v5821 = vpop.f32.mrb[0].mxu0
      %5822 = vmatprep.mubr.f32.mxu0 %v5631
      %5823 = vmatmul.mubr.f32.gmra.mrb[0].mxu0 %v5525
      %v5824 = vpop.f32.mrb[0].mxu0
      %v5825 = vadd.f32 %v5580, %v5824
      %v5826 = vpop.f32.mrb[0].mxu0
      %5827 = vmatprep.mubr.f32.mxu0 %v5634
      %5828 = vmatmul.mubr.f32.gmra.mrb[0].mxu0 %v5527
      %v5829 = vpop.f32.mrb[0].mxu0
      %v5830 = vadd.f32 %v5580, %v5829
      %v5831 = vpop.f32.mrb[0].mxu0
      %5832 = vmatprep.mubr.f32.mxu0 %v5637
      %5833 = vmatmul.mubr.f32.gmra.mrb[0].mxu0 %v5529
      %v5834 = vpop.f32.mrb[0].mxu0
      %v5835 = vadd.f32 %v5580, %v5834
      %v5836 = vpop.f32.mrb[0].mxu0
      %5837 = vmatprep.mubr.f32.mxu0 %v5640
      %5838 = vmatmul.mubr.f32.gmra.mrb[0].mxu0 %v5531
      %v5839 = vpop.f32.mrb[0].mxu0
      %v5840 = vadd.f32 %v5580, %v5839
      %v5841 = vpop.f32.mrb[0].mxu0
      %5842 = vmatprep.mubr.f32.mxu0 %v5643
      %5843 = vmatmul.mubr.f32.gmra.mrb[0].mxu0 %v5533
      %v5844 = vpop.f32.mrb[0].mxu0
      %v5845 = vadd.f32 %v5580, %v5844
      %v5846 = vpop.f32.mrb[0].mxu0
      %5847 = vmatprep.mubr.f32.mxu0 %v5646
      %5848 = vmatmul.mubr.f32.gmra.mrb[0].mxu0 %v5535
      %v5849 = vpop.f32.mrb[0].mxu0
      %v5850 = vadd.f32 %v5580, %v5849
      %v5851 = vpop.f32.mrb[0].mxu0
      %5852 = vmatprep.mubr.f32.mxu0 %v5649
      %5853 = vmatmul.mubr.f32.gmra.mrb[0].mxu0 %v5537
      %v5854 = vpop.f32.mrb[0].mxu0
      %v5855 = vadd.f32 %v5580, %v5854
      %v5856 = vpop.f32.mrb[0].mxu0
      %5857 = vmatprep.mubr.f32.mxu0 %v5652
      %5858 = vmatmul.mubr.f32.gmra.mrb[0].mxu0 %v5539
      %v5859 = vpop.f32.mrb[0].mxu0
      %v5860 = vadd.f32 %v5580, %v5859
      %v5861 = vpop.f32.mrb[0].mxu0
      %5862 = vmatprep.mubr.f32.mxu0 %v5655
      %5863 = vmatmul.mubr.f32.gmra.mrb[0].mxu0 %v5541
      %v5864 = vpop.f32.mrb[0].mxu0
      %v5865 = vadd.f32 %v5580, %v5864
      %v5866 = vpop.f32.mrb[0].mxu0
      %5867 = vmatprep.mubr.f32.mxu0 %v5658
      %5868 = vmatmul.mubr.f32.gmra.mrb[0].mxu0 %v5543
      %v5869 = vpop.f32.mrb[0].mxu0
      %v5870 = vadd.f32 %v5580, %v5869
      %v5871 = vpop.f32.mrb[0].mxu0
      %5872 = vmatprep.mubr.f32.mxu0 %v5661
      %5873 = vmatmul.mubr.f32.gmra.mrb[0].mxu0 %v5545
      %v5874 = vpop.f32.mrb[0].mxu0
      %v5875 = vadd.f32 %v5580, %v5874
      %v5876 = vpop.f32.mrb[0].mxu0
      %5877 = vmatprep.mubr.f32.mxu0 %v5664
      %5878 = vmatmul.mubr.f32.gmra.mrb[0].mxu0 %v5547
      %v5879 = vpop.f32.mrb[0].mxu0
      %v5880 = vadd.f32 %v5580, %v5879
      %v5881 = vpop.f32.mrb[0].mxu0
      %5882 = vmatprep.mubr.f32.mxu0 %v5667
      %5883 = vmatmul.mubr.f32.gmra.mrb[0].mxu0 %v5549
      %v5884 = vpop.f32.mrb[0].mxu0
      %v5885 = vadd.f32 %v5580, %v5884
      %v5886 = vpop.f32.mrb[0].mxu0
      %5887 = vmatprep.mubr.f32.mxu0 %v5670
      %5888 = vmatmul.mubr.f32.gmra.mrb[0].mxu0 %v5551
      %v5889 = vpop.f32.mrb[0].mxu0
      %v5890 = vadd.f32 %v5580, %v5889
      %v5891 = vpop.f32.mrb[0].mxu0
      %5892 = vmatprep.mubr.f32.mxu0 %v5673
      %5893 = vmatmul.mubr.f32.gmra.mrb[0].mxu0 %v5553
      %v5894 = vpop.f32.mrb[0].mxu0
      %v5895 = vadd.f32 %v5580, %v5894
      %v5896 = vpop.f32.mrb[0].mxu0
      %5897 = vmatprep.mubr.f32.mxu0 %v5676
      %5898 = vmatmul.mubr.f32.gmra.mrb[0].mxu0 %v5555
      %v5899 = vpop.f32.mrb[0].mxu0
      %v5900 = vadd.f32 %v5580, %v5899
      %v5901 = vpop.f32.mrb[0].mxu0
      %5902 = vdwg.mxu0
      %v5903 = vld [vmem:[%s716] sm:$0xff]
      %v5904 = vld [vmem:[%s716 + $0x8] sm:$0xff]
      %v5905 = vld [vmem:[%s716 + $0x10] sm:$0xff]
      %v5906 = vld [vmem:[%s716 + $0x18] sm:$0xff]
      %v5907 = vld [vmem:[%s716 + $0x20] sm:$0xff]
      %v5908 = vld [vmem:[%s716 + $0x28] sm:$0xff]
      %v5909 = vld [vmem:[%s716 + $0x30] sm:$0xff]
      %v5910 = vld [vmem:[%s716 + $0x38] sm:$0xff]
      %v5911 = vld [vmem:[%s716 + $0x40] sm:$0xff]
      %v5912 = vld [vmem:[%s716 + $0x48] sm:$0xff]
      %v5913 = vld [vmem:[%s716 + $0x50] sm:$0xff]
      %v5914 = vld [vmem:[%s716 + $0x58] sm:$0xff]
      %v5915 = vld [vmem:[%s716 + $0x60] sm:$0xff]
      %v5916 = vld [vmem:[%s716 + $0x68] sm:$0xff]
      %v5917 = vld [vmem:[%s716 + $0x70] sm:$0xff]
      %v5918 = vld [vmem:[%s716 + $0x78] sm:$0xff]
      %v5919 = vld [vmem:[%s716 + $0x80] sm:$0xff]
      %v5920 = vld [vmem:[%s716 + $0x88] sm:$0xff]
      %v5921 = vld [vmem:[%s716 + $0x90] sm:$0xff]
      %v5922 = vld [vmem:[%s716 + $0x98] sm:$0xff]
      %v5923 = vld [vmem:[%s716 + $0xa0] sm:$0xff]
      %v5924 = vld [vmem:[%s716 + $0xa8] sm:$0xff]
      %v5925 = vld [vmem:[%s716 + $0xb0] sm:$0xff]
      %v5926 = vld [vmem:[%s716 + $0xb8] sm:$0xff]
      %v5927 = vld [vmem:[%s716 + $0xc0] sm:$0xff]
      %v5928 = vld [vmem:[%s716 + $0xc8] sm:$0xff]
      %v5929 = vld [vmem:[%s716 + $0xd0] sm:$0xff]
      %v5930 = vld [vmem:[%s716 + $0xd8] sm:$0xff]
      %v5931 = vld [vmem:[%s716 + $0xe0] sm:$0xff]
      %v5932 = vld [vmem:[%s716 + $0xe8] sm:$0xff]
      %v5933 = vld [vmem:[%s716 + $0xf0] sm:$0xff]
      %v5934 = vld [vmem:[%s716 + $0xf8] sm:$0xff]
      %v5935 = vld [vmem:[%s11] sm:$0xff]
      %v5937 = vsel %vm871, %v5903, 0
      %v5940 = vsel %vm871, %v5904, 0
      %v5943 = vsel %vm871, %v5905, 0
      %v5946 = vsel %vm871, %v5906, 0
      %v5949 = vsel %vm871, %v5907, 0
      %v5952 = vsel %vm871, %v5908, 0
      %v5955 = vsel %vm871, %v5909, 0
      %v5958 = vsel %vm871, %v5910, 0
      %v5961 = vsel %vm871, %v5911, 0
      %v5964 = vsel %vm871, %v5912, 0
      %v5967 = vsel %vm871, %v5913, 0
      %v5970 = vsel %vm871, %v5914, 0
      %v5973 = vsel %vm871, %v5915, 0
      %v5976 = vsel %vm871, %v5916, 0
      %v5979 = vsel %vm871, %v5917, 0
      %v5982 = vsel %vm871, %v5918, 0
      %v5985 = vsel %vm871, %v5919, 0
      %v5988 = vsel %vm871, %v5920, 0
      %v5991 = vsel %vm871, %v5921, 0
      %v5994 = vsel %vm871, %v5922, 0
      %v5997 = vsel %vm871, %v5923, 0
      %v6000 = vsel %vm871, %v5924, 0
      %v6003 = vsel %vm871, %v5925, 0
      %v6006 = vsel %vm871, %v5926, 0
      %v6009 = vsel %vm871, %v5927, 0
      %v6012 = vsel %vm871, %v5928, 0
      %v6015 = vsel %vm871, %v5929, 0
      %v6018 = vsel %vm871, %v5930, 0
      %v6021 = vsel %vm871, %v5931, 0
      %v6024 = vsel %vm871, %v5932, 0
      %v6027 = vsel %vm871, %v5933, 0
      %v6030 = vsel %vm871, %v5934, 0
      %6032 = vmatprep.subr.mxu0 0.0
      %6033 = vmatpush1.msra.mxu0 %v5935
      %6034 = vmatprep.subr.mxu0 0.0
      %6035 = vmatpush1.msra.mxu0 0.0
      %6036 = vmatprep.subr.mxu0 0.0
      %6037 = vmatpush1.msra.mxu0 0.0
      %6038 = vmatprep.subr.mxu0 0.0
      %6039 = vmatpush1.msra.mxu0 0.0
      %6040 = vmatprep.subr.mxu0 0.0
      %6041 = vmatpush1.msra.mxu0 0.0
      %6042 = vmatprep.subr.mxu0 0.0
      %6043 = vmatpush1.msra.mxu0 0.0
      %6044 = vmatprep.subr.mxu0 0.0
      %6045 = vmatpush1.msra.mxu0 0.0
      %6046 = vmatprep.subr.mxu0 0.0
      %6047 = vmatpush1.msra.mxu0 0.0
      %6048 = vmatprep.subr.mxu0 0.0
      %6049 = vmatpush1.msra.mxu0 0.0
      %6050 = vmatprep.subr.mxu0 0.0
      %6051 = vmatpush1.msra.mxu0 0.0
      %6052 = vmatprep.subr.mxu0 0.0
      %6053 = vmatpush1.msra.mxu0 0.0
      %6054 = vmatprep.subr.mxu0 0.0
      %6055 = vmatpush1.msra.mxu0 0.0
      %6056 = vmatprep.subr.mxu0 0.0
      %6057 = vmatpush1.msra.mxu0 0.0
      %6058 = vmatprep.subr.mxu0 0.0
      %6059 = vmatpush1.msra.mxu0 0.0
      %6060 = vmatprep.subr.mxu0 0.0
      %6061 = vmatpush1.msra.mxu0 0.0
      %6062 = vmatprep.subr.mxu0 0.0
      %6063 = vmatpush1.msra.mxu0 0.0
      %6064 = vmatprep.subr.mxu0 0.0
      %6065 = vmatpush1.msra.mxu0 0.0
      %6066 = vmatprep.subr.mxu0 0.0
      %6067 = vmatpush1.msra.mxu0 0.0
      %6068 = vmatprep.subr.mxu0 0.0
      %6069 = vmatpush1.msra.mxu0 0.0
      %6070 = vmatprep.subr.mxu0 0.0
      %6071 = vmatpush1.msra.mxu0 0.0
      %6072 = vmatprep.subr.mxu0 0.0
      %6073 = vmatpush1.msra.mxu0 0.0
      %6074 = vmatprep.subr.mxu0 0.0
      %6075 = vmatpush1.msra.mxu0 0.0
      %6076 = vmatprep.subr.mxu0 0.0
      %6077 = vmatpush1.msra.mxu0 0.0
      %6078 = vmatprep.subr.mxu0 0.0
      %6079 = vmatpush1.msra.mxu0 0.0
      %6080 = vmatprep.subr.mxu0 0.0
      %6081 = vmatpush1.msra.mxu0 0.0
      %6082 = vmatprep.subr.mxu0 0.0
      %6083 = vmatpush1.msra.mxu0 0.0
      %6084 = vmatprep.subr.mxu0 0.0
      %6085 = vmatpush1.msra.mxu0 0.0
      %6086 = vmatprep.subr.mxu0 0.0
      %6087 = vmatpush1.msra.mxu0 0.0
      %6088 = vmatprep.subr.mxu0 0.0
      %6089 = vmatpush1.msra.mxu0 0.0
      %6090 = vmatprep.subr.mxu0 0.0
      %6091 = vmatpush1.msra.mxu0 0.0
      %6092 = vmatprep.subr.mxu0 0.0
      %6093 = vmatpush1.msra.mxu0 0.0
      %6094 = vmatprep.subr.mxu0 0.0
      %6095 = vmatpush1.msra.mxu0 0.0
      %6096 = vmatprep.mubr.f32.mxu0 0.0
      %6097 = vmatmul.mubr.f32.gmra.mrb[0].mxu0 %v5937
      %v6098 = vpop.f32.mrb[0].mxu0
      %v6099 = vadd.f32 0.0, %v6098
      %v6100 = vpop.f32.mrb[0].mxu0
      %6101 = vmatprep.mubr.f32.mxu0 0.0
      %6102 = vmatmul.mubr.f32.gmra.mrb[0].mxu0 %v5940
      %v6103 = vpop.f32.mrb[0].mxu0
      %v6104 = vadd.f32 0.0, %v6103
      %v6105 = vpop.f32.mrb[0].mxu0
      %6106 = vmatprep.mubr.f32.mxu0 0.0
      %6107 = vmatmul.mubr.f32.gmra.mrb[0].mxu0 %v5943
      %v6108 = vpop.f32.mrb[0].mxu0
      %v6109 = vadd.f32 0.0, %v6108
      %v6110 = vpop.f32.mrb[0].mxu0
      %6111 = vmatprep.mubr.f32.mxu0 0.0
      %6112 = vmatmul.mubr.f32.gmra.mrb[0].mxu0 %v5946
      %v6113 = vpop.f32.mrb[0].mxu0
      %v6114 = vadd.f32 0.0, %v6113
      %v6115 = vpop.f32.mrb[0].mxu0
      %6116 = vmatprep.mubr.f32.mxu0 0.0
      %6117 = vmatmul.mubr.f32.gmra.mrb[0].mxu0 %v5949
      %v6118 = vpop.f32.mrb[0].mxu0
      %v6119 = vadd.f32 0.0, %v6118
      %v6120 = vpop.f32.mrb[0].mxu0
      %6121 = vmatprep.mubr.f32.mxu0 0.0
      %6122 = vmatmul.mubr.f32.gmra.mrb[0].mxu0 %v5952
      %v6123 = vpop.f32.mrb[0].mxu0
      %v6124 = vadd.f32 0.0, %v6123
      %v6125 = vpop.f32.mrb[0].mxu0
      %6126 = vmatprep.mubr.f32.mxu0 0.0
      %6127 = vmatmul.mubr.f32.gmra.mrb[0].mxu0 %v5955
      %v6128 = vpop.f32.mrb[0].mxu0
      %v6129 = vadd.f32 0.0, %v6128
      %v6130 = vpop.f32.mrb[0].mxu0
      %6131 = vmatprep.mubr.f32.mxu0 0.0
      %6132 = vmatmul.mubr.f32.gmra.mrb[0].mxu0 %v5958
      %v6133 = vpop.f32.mrb[0].mxu0
      %v6134 = vadd.f32 0.0, %v6133
      %v6135 = vpop.f32.mrb[0].mxu0
      %6136 = vmatprep.mubr.f32.mxu0 0.0
      %6137 = vmatmul.mubr.f32.gmra.mrb[0].mxu0 %v5961
      %v6138 = vpop.f32.mrb[0].mxu0
      %v6139 = vadd.f32 0.0, %v6138
      %v6140 = vpop.f32.mrb[0].mxu0
      %6141 = vmatprep.mubr.f32.mxu0 0.0
      %6142 = vmatmul.mubr.f32.gmra.mrb[0].mxu0 %v5964
      %v6143 = vpop.f32.mrb[0].mxu0
      %v6144 = vadd.f32 0.0, %v6143
      %v6145 = vpop.f32.mrb[0].mxu0
      %6146 = vmatprep.mubr.f32.mxu0 0.0
      %6147 = vmatmul.mubr.f32.gmra.mrb[0].mxu0 %v5967
      %v6148 = vpop.f32.mrb[0].mxu0
      %v6149 = vadd.f32 0.0, %v6148
      %v6150 = vpop.f32.mrb[0].mxu0
      %6151 = vmatprep.mubr.f32.mxu0 0.0
      %6152 = vmatmul.mubr.f32.gmra.mrb[0].mxu0 %v5970
      %v6153 = vpop.f32.mrb[0].mxu0
      %v6154 = vadd.f32 0.0, %v6153
      %v6155 = vpop.f32.mrb[0].mxu0
      %6156 = vmatprep.mubr.f32.mxu0 0.0
      %6157 = vmatmul.mubr.f32.gmra.mrb[0].mxu0 %v5973
      %v6158 = vpop.f32.mrb[0].mxu0
      %v6159 = vadd.f32 0.0, %v6158
      %v6160 = vpop.f32.mrb[0].mxu0
      %6161 = vmatprep.mubr.f32.mxu0 0.0
      %6162 = vmatmul.mubr.f32.gmra.mrb[0].mxu0 %v5976
      %v6163 = vpop.f32.mrb[0].mxu0
      %v6164 = vadd.f32 0.0, %v6163
      %v6165 = vpop.f32.mrb[0].mxu0
      %6166 = vmatprep.mubr.f32.mxu0 0.0
      %6167 = vmatmul.mubr.f32.gmra.mrb[0].mxu0 %v5979
      %v6168 = vpop.f32.mrb[0].mxu0
      %v6169 = vadd.f32 0.0, %v6168
      %v6170 = vpop.f32.mrb[0].mxu0
      %6171 = vmatprep.mubr.f32.mxu0 0.0
      %6172 = vmatmul.mubr.f32.gmra.mrb[0].mxu0 %v5982
      %v6173 = vpop.f32.mrb[0].mxu0
      %v6174 = vadd.f32 0.0, %v6173
      %v6175 = vpop.f32.mrb[0].mxu0
      %6176 = vmatprep.mubr.f32.mxu0 0.0
      %6177 = vmatmul.mubr.f32.gmra.mrb[0].mxu0 %v5985
      %v6178 = vpop.f32.mrb[0].mxu0
      %v6179 = vadd.f32 0.0, %v6178
      %v6180 = vpop.f32.mrb[0].mxu0
      %6181 = vmatprep.mubr.f32.mxu0 0.0
      %6182 = vmatmul.mubr.f32.gmra.mrb[0].mxu0 %v5988
      %v6183 = vpop.f32.mrb[0].mxu0
      %v6184 = vadd.f32 0.0, %v6183
      %v6185 = vpop.f32.mrb[0].mxu0
      %6186 = vmatprep.mubr.f32.mxu0 0.0
      %6187 = vmatmul.mubr.f32.gmra.mrb[0].mxu0 %v5991
      %v6188 = vpop.f32.mrb[0].mxu0
      %v6189 = vadd.f32 0.0, %v6188
      %v6190 = vpop.f32.mrb[0].mxu0
      %6191 = vmatprep.mubr.f32.mxu0 0.0
      %6192 = vmatmul.mubr.f32.gmra.mrb[0].mxu0 %v5994
      %v6193 = vpop.f32.mrb[0].mxu0
      %v6194 = vadd.f32 0.0, %v6193
      %v6195 = vpop.f32.mrb[0].mxu0
      %6196 = vmatprep.mubr.f32.mxu0 0.0
      %6197 = vmatmul.mubr.f32.gmra.mrb[0].mxu0 %v5997
      %v6198 = vpop.f32.mrb[0].mxu0
      %v6199 = vadd.f32 0.0, %v6198
      %v6200 = vpop.f32.mrb[0].mxu0
      %6201 = vmatprep.mubr.f32.mxu0 0.0
      %6202 = vmatmul.mubr.f32.gmra.mrb[0].mxu0 %v6000
      %v6203 = vpop.f32.mrb[0].mxu0
      %v6204 = vadd.f32 0.0, %v6203
      %v6205 = vpop.f32.mrb[0].mxu0
      %6206 = vmatprep.mubr.f32.mxu0 0.0
      %6207 = vmatmul.mubr.f32.gmra.mrb[0].mxu0 %v6003
      %v6208 = vpop.f32.mrb[0].mxu0
      %v6209 = vadd.f32 0.0, %v6208
      %v6210 = vpop.f32.mrb[0].mxu0
      %6211 = vmatprep.mubr.f32.mxu0 0.0
      %6212 = vmatmul.mubr.f32.gmra.mrb[0].mxu0 %v6006
      %v6213 = vpop.f32.mrb[0].mxu0
      %v6214 = vadd.f32 0.0, %v6213
      %v6215 = vpop.f32.mrb[0].mxu0
      %6216 = vmatprep.mubr.f32.mxu0 0.0
      %6217 = vmatmul.mubr.f32.gmra.mrb[0].mxu0 %v6009
      %v6218 = vpop.f32.mrb[0].mxu0
      %v6219 = vadd.f32 0.0, %v6218
      %v6220 = vpop.f32.mrb[0].mxu0
      %6221 = vmatprep.mubr.f32.mxu0 0.0
      %6222 = vmatmul.mubr.f32.gmra.mrb[0].mxu0 %v6012
      %v6223 = vpop.f32.mrb[0].mxu0
      %v6224 = vadd.f32 0.0, %v6223
      %v6225 = vpop.f32.mrb[0].mxu0
      %6226 = vmatprep.mubr.f32.mxu0 0.0
      %6227 = vmatmul.mubr.f32.gmra.mrb[0].mxu0 %v6015
      %v6228 = vpop.f32.mrb[0].mxu0
      %v6229 = vadd.f32 0.0, %v6228
      %v6230 = vpop.f32.mrb[0].mxu0
      %6231 = vmatprep.mubr.f32.mxu0 0.0
      %6232 = vmatmul.mubr.f32.gmra.mrb[0].mxu0 %v6018
      %v6233 = vpop.f32.mrb[0].mxu0
      %v6234 = vadd.f32 0.0, %v6233
      %v6235 = vpop.f32.mrb[0].mxu0
      %6236 = vmatprep.mubr.f32.mxu0 0.0
      %6237 = vmatmul.mubr.f32.gmra.mrb[0].mxu0 %v6021
      %v6238 = vpop.f32.mrb[0].mxu0
      %v6239 = vadd.f32 0.0, %v6238
      %v6240 = vpop.f32.mrb[0].mxu0
      %6241 = vmatprep.mubr.f32.mxu0 0.0
      %6242 = vmatmul.mubr.f32.gmra.mrb[0].mxu0 %v6024
      %v6243 = vpop.f32.mrb[0].mxu0
      %v6244 = vadd.f32 0.0, %v6243
      %v6245 = vpop.f32.mrb[0].mxu0
      %6246 = vmatprep.mubr.f32.mxu0 0.0
      %6247 = vmatmul.mubr.f32.gmra.mrb[0].mxu0 %v6027
      %v6248 = vpop.f32.mrb[0].mxu0
      %v6249 = vadd.f32 0.0, %v6248
      %v6250 = vpop.f32.mrb[0].mxu0
      %6251 = vmatprep.mubr.f32.mxu0 0.0
      %6252 = vmatmul.mubr.f32.gmra.mrb[0].mxu0 %v6030
      %v6253 = vpop.f32.mrb[0].mxu0
      %v6254 = vadd.f32 0.0, %v6253
      %v6255 = vpop.f32.mrb[0].mxu0
      %6256 = vdwg.mxu0
      %v6257 = vadd.f32 %v5745, %v6099
      %v6258 = vadd.f32 %v5750, %v6104
      %v6259 = vadd.f32 %v5755, %v6109
      %v6260 = vadd.f32 %v5760, %v6114
      %v6261 = vadd.f32 %v5765, %v6119
      %v6262 = vadd.f32 %v5770, %v6124
      %v6263 = vadd.f32 %v5775, %v6129
      %v6264 = vadd.f32 %v5780, %v6134
      %v6265 = vadd.f32 %v5785, %v6139
      %v6266 = vadd.f32 %v5790, %v6144
      %v6267 = vadd.f32 %v5795, %v6149
      %v6268 = vadd.f32 %v5800, %v6154
      %v6269 = vadd.f32 %v5805, %v6159
      %v6270 = vadd.f32 %v5810, %v6164
      %v6271 = vadd.f32 %v5815, %v6169
      %v6272 = vadd.f32 %v5820, %v6174
      %v6273 = vadd.f32 %v5825, %v6179
      %v6274 = vadd.f32 %v5830, %v6184
      %v6275 = vadd.f32 %v5835, %v6189
      %v6276 = vadd.f32 %v5840, %v6194
      %v6277 = vadd.f32 %v5845, %v6199
      %v6278 = vadd.f32 %v5850, %v6204
      %v6279 = vadd.f32 %v5855, %v6209
      %v6280 = vadd.f32 %v5860, %v6214
      %v6281 = vadd.f32 %v5865, %v6219
      %v6282 = vadd.f32 %v5870, %v6224
      %v6283 = vadd.f32 %v5875, %v6229
      %v6284 = vadd.f32 %v5880, %v6234
      %v6285 = vadd.f32 %v5885, %v6239
      %v6286 = vadd.f32 %v5890, %v6244
      %v6287 = vadd.f32 %v5895, %v6249
      %v6288 = vadd.f32 %v5900, %v6254
      %v6289 = vld [vmem:[%s12] sm:$0x1]
      %v6291 = vlaneseq
      %v6292 = vshrl.u32 %v6291, 7
      %v6293 = vsub.s32 0, %v6292
      %v6294 = vrot.slane %v6289, %v6293
      %v6296 = vadd.f32 %v6257, %v6294
      %v6297 = vadd.f32 %v6258, %v6294
      %v6298 = vadd.f32 %v6259, %v6294
      %v6299 = vadd.f32 %v6260, %v6294
      %v6300 = vadd.f32 %v6261, %v6294
      %v6301 = vadd.f32 %v6262, %v6294
      %v6302 = vadd.f32 %v6263, %v6294
      %v6303 = vadd.f32 %v6264, %v6294
      %v6304 = vadd.f32 %v6265, %v6294
      %v6305 = vadd.f32 %v6266, %v6294
      %v6306 = vadd.f32 %v6267, %v6294
      %v6307 = vadd.f32 %v6268, %v6294
      %v6308 = vadd.f32 %v6269, %v6294
      %v6309 = vadd.f32 %v6270, %v6294
      %v6310 = vadd.f32 %v6271, %v6294
      %v6311 = vadd.f32 %v6272, %v6294
      %v6312 = vadd.f32 %v6273, %v6294
      %v6313 = vadd.f32 %v6274, %v6294
      %v6314 = vadd.f32 %v6275, %v6294
      %v6315 = vadd.f32 %v6276, %v6294
      %v6316 = vadd.f32 %v6277, %v6294
      %v6317 = vadd.f32 %v6278, %v6294
      %v6318 = vadd.f32 %v6279, %v6294
      %v6319 = vadd.f32 %v6280, %v6294
      %v6320 = vadd.f32 %v6281, %v6294
      %v6321 = vadd.f32 %v6282, %v6294
      %v6322 = vadd.f32 %v6283, %v6294
      %v6323 = vadd.f32 %v6284, %v6294
      %v6324 = vadd.f32 %v6285, %v6294
      %v6325 = vadd.f32 %v6286, %v6294
      %v6326 = vadd.f32 %v6287, %v6294
      %v6327 = vadd.f32 %v6288, %v6294
      %6328 = vxpose.xlu0.b32.start [1/16] %v6296, 128
      %6329 = vxpose.xlu0.b32.cont [2/16] %v6297, 128
      %6330 = vxpose.xlu0.b32.cont [3/16] %v6298, 128
      %6331 = vxpose.xlu0.b32.cont [4/16] %v6299, 128
      %6332 = vxpose.xlu0.b32.cont [5/16] %v6300, 128
      %6333 = vxpose.xlu0.b32.cont [6/16] %v6301, 128
      %6334 = vxpose.xlu0.b32.cont [7/16] %v6302, 128
      %6335 = vxpose.xlu0.b32.cont [8/16] %v6303, 128
      %6336 = vxpose.xlu0.b32.cont [9/16] %v6304, 128
      %6337 = vxpose.xlu0.b32.cont [10/16] %v6305, 128
      %6338 = vxpose.xlu0.b32.cont [11/16] %v6306, 128
      %6339 = vxpose.xlu0.b32.cont [12/16] %v6307, 128
      %6340 = vxpose.xlu0.b32.cont [13/16] %v6308, 128
      %6341 = vxpose.xlu0.b32.cont [14/16] %v6309, 128
      %6342 = vxpose.xlu0.b32.cont [15/16] %v6310, 128
      %6343 = vxpose.xlu0.b32.end [16/16] %v6311, 128
      %v6344 = vpop.trf.xlu0
      %v6345 = vpop.trf.xlu0
      %v6346 = vpop.trf.xlu0
      %v6347 = vpop.trf.xlu0
      %v6348 = vpop.trf.xlu0
      %v6349 = vpop.trf.xlu0
      %v6350 = vpop.trf.xlu0
      %v6351 = vpop.trf.xlu0
      %v6352 = vpop.trf.xlu0
      %v6353 = vpop.trf.xlu0
      %v6354 = vpop.trf.xlu0
      %v6355 = vpop.trf.xlu0
      %v6356 = vpop.trf.xlu0
      %v6357 = vpop.trf.xlu0
      %v6358 = vpop.trf.xlu0
      %v6359 = vpop.trf.xlu0
      %6360 = vxpose.xlu0.b32.start [1/16] %v6312, 128
      %6361 = vxpose.xlu0.b32.cont [2/16] %v6313, 128
      %6362 = vxpose.xlu0.b32.cont [3/16] %v6314, 128
      %6363 = vxpose.xlu0.b32.cont [4/16] %v6315, 128
      %6364 = vxpose.xlu0.b32.cont [5/16] %v6316, 128
      %6365 = vxpose.xlu0.b32.cont [6/16] %v6317, 128
      %6366 = vxpose.xlu0.b32.cont [7/16] %v6318, 128
      %6367 = vxpose.xlu0.b32.cont [8/16] %v6319, 128
      %6368 = vxpose.xlu0.b32.cont [9/16] %v6320, 128
      %6369 = vxpose.xlu0.b32.cont [10/16] %v6321, 128
      %6370 = vxpose.xlu0.b32.cont [11/16] %v6322, 128
      %6371 = vxpose.xlu0.b32.cont [12/16] %v6323, 128
      %6372 = vxpose.xlu0.b32.cont [13/16] %v6324, 128
      %6373 = vxpose.xlu0.b32.cont [14/16] %v6325, 128
      %6374 = vxpose.xlu0.b32.cont [15/16] %v6326, 128
      %6375 = vxpose.xlu0.b32.end [16/16] %v6327, 128
      %v6376 = vpop.trf.xlu0
      %v6377 = vpop.trf.xlu0
      %v6378 = vpop.trf.xlu0
      %v6379 = vpop.trf.xlu0
      %v6380 = vpop.trf.xlu0
      %v6381 = vpop.trf.xlu0
      %v6382 = vpop.trf.xlu0
      %v6383 = vpop.trf.xlu0
      %v6384 = vpop.trf.xlu0
      %v6385 = vpop.trf.xlu0
      %v6386 = vpop.trf.xlu0
      %v6387 = vpop.trf.xlu0
      %v6388 = vpop.trf.xlu0
      %v6389 = vpop.trf.xlu0
      %v6390 = vpop.trf.xlu0
      %v6391 = vpop.trf.xlu0
      %6392 = vst [vmem:[%s770] sm:$0xff] %v6344
      %6393 = vst [vmem:[%s770 + $0x8] sm:$0xff] %v6376
      %6394 = vst [vmem:[%s770 + $0x10] sm:$0xff] %v6345
      %6395 = vst [vmem:[%s770 + $0x18] sm:$0xff] %v6377
      %s6396 = smul.u32 2, %s29
      %p6397 = scmp.lt.s32.totalorder %s28, 1
      %s6398 = scalar_select %p6397, %s28, 1
      %p6399 = scmp.lt.s32.totalorder %s6396, 1
      %s6400 = scalar_select %p6399, %s6396, 1
      %s6401 = smul.addr %s6398, 4
      %s6402 = sadd.s32 %s6400, %s6401
      %s6403 = smul.addr %s6402, 8
      %s6404 = scalar_lea.vmem %s13, %s6403
      // Predicated region
      $region73: #{g_block_pallas.5} parent=71 // pred_check
        %p6405 = pneg %p408
      $region74: #{g_block_pallas.5} parent=71 // pred_check_branch
        %6407 = sbr.rel (%p6405) target = $region76
      $region75: #{g_block_pallas.5} parent=71 // pred_region
        %s6408 = smul.u32 2, %s29
      $region76: #{g_block_pallas.5} parent=71 // pred_fallthru
        _
    $region72: #{g_block_pallas.5} parent=5 // pred_fallthru
      _
    %p6409 = scmp.le.s32.totalorder 2, %s19
    // Predicated region
    $region77: #{g_block_pallas.5} parent=5 // pred_check
      %p6410 = pneg %p6409
    $region78: #{g_block_pallas.5} parent=5 // pred_check_branch
      %6412 = sbr.rel (%p6410) target = $region80
    $region79: #{g_block_pallas.5} parent=5 // pred_region
      %s6413 = ssub.s32 %s19, 2
      // Predicated region
      $region81: #{g_block_pallas.5} parent=79 // pred_check
        %p6414 = pneg %p414
      $region82: #{g_block_pallas.5} parent=79 // pred_check_branch
        %6416 = sbr.rel (%p6414) target = $region84
      $region83: #{g_block_pallas.5} parent=79 // pred_region
        %s6417 = smul.u32 2, %s31
        %p6418 = scmp.lt.s32.totalorder %s30, 1
        %s6419 = scalar_select %p6418, %s30, 1
        %p6420 = scmp.lt.s32.totalorder %s6417, 1
        %s6421 = scalar_select %p6420, %s6417, 1
        %s6422 = smul.addr %s6419, 4
        %s6423 = sadd.s32 %s6421, %s6422
        %s6424 = smul.addr %s6423, 8
        %s6425 = scalar_lea.vmem %s13, %s6424
      $region84: #{g_block_pallas.5} parent=79 // pred_fallthru
        _
    $region80: #{g_block_pallas.5} parent=5 // pred_fallthru
      _
  $region6: #{g_block_pallas.5} parent=0 // loop_footer
    %s23 = sadd.s32 1, %s19
  $region7: #{g_block_pallas.5} parent=0 // loop_footer_branch
    %18 = sbr.rel target = $region3
  $region8: #{g_block_pallas.5} parent=0 // loop_exit
    _

</llo_original>
